<compile_context>
chip_gen: v7x
topology: tpu7x:2x2x1
jax: 0.10.0
libtpu: 0.0.40
codegen_flags: <defaults>
</compile_context>

<pallas_src>
import functools

import jax
import jax.numpy as jnp
from jax import lax
from jax.experimental import pallas as pl
from jax.experimental.pallas import tpu as pltpu


def _fall_detection_kernel(xcol_ref, w1_ref, b1_ref, w2_ref, b2_ref,
                           w3_ref, b3_ref, w4_ref, b4_ref, out_ref, scr_ref,
                           *, t, tp):
    f32 = jnp.float32
    bf16 = jnp.bfloat16
    rows = xcol_ref.shape[0]            # rows = bt * tp
    bt = rows // tp
    c1 = w1_ref.shape[1]                # 32
    c2 = w2_ref.shape[2]                # 64

    # Per-sample row position.  Row 0 is conv2's "time -1" zero pad, rows 1..t hold
    # conv1 outputs for positions 0..t-1, rows > t are alignment padding.
    rowpos = lax.broadcasted_iota(jnp.int32, (rows, 1), 0) % tp
    m_h1 = jnp.logical_and(rowpos >= 1, rowpos <= t).astype(f32)   # valid h1 rows
    m_h2 = (rowpos < t).astype(f32)                                # valid conv2 rows

    # ---- Conv1d(Cin->32, k=3, pad=1) + ReLU: single im2col matmul --------------
    y1 = jnp.dot(xcol_ref[...], w1_ref[...], preferred_element_type=f32)  # (rows,32)
    h1 = jnp.maximum(y1 + b1_ref[...], 0.0) * m_h1            # pad rows -> exact 0

    # Stage h1 (bf16) in a flat scratch with a zero tail; both stores tile-aligned.
    scr_ref[0:rows, :] = h1.astype(bf16)
    scr_ref[rows:rows + 16, :] = jnp.zeros((16, c1), bf16)

    # ---- Conv1d(32->64, k=3, pad=1) + ReLU: shift the bf16 INPUT per tap --------
    # Tap k of conv2 output row r reads h1 row r+k; crossing a sample boundary is
    # safe because every sample's row 0 (and the scratch tail) is an exact zero.
    y2 = jnp.dot(scr_ref[0:rows, :], w2_ref[0], preferred_element_type=f32)
    y2 = y2 + jnp.dot(scr_ref[1:rows + 1, :], w2_ref[1], preferred_element_type=f32)
    y2 = y2 + jnp.dot(scr_ref[2:rows + 2, :], w2_ref[2], preferred_element_type=f32)
    h2 = jnp.maximum(y2 + b2_ref[...], 0.0) * m_h2             # (rows, 64) f32

    # ---- AdaptiveAvgPool1d(1): sum over time (1/t folded into w3 in the wrapper)
    pooled = h2.reshape(bt, tp, c2).sum(axis=1)                # (bt, 64) f32

    # ---- Linear(64->32) + ReLU ---------------------------------------------------
    z3 = jnp.maximum(
        jnp.dot(pooled.astype(bf16), w3_ref[...], preferred_element_type=f32)
        + b3_ref[...], 0.0)                                    # (bt, 32) f32

    # ---- Linear(32->1) + Sigmoid, lane-dense: w4_row @ z3^T -> (1, bt) -----------
    z4 = lax.dot_general(w4_ref[...], z3.astype(bf16),
                         dimension_numbers=(((1,), (1,)), ((), ())),
                         preferred_element_type=f32)           # (1, bt) f32
    out_ref[...] = jax.nn.sigmoid(z4 + b4_ref[...]).reshape(1, 1, bt)


def fall_detection_forward(x, params, *, b_tile=None):
    """x: (B, Cin, T) float32, PyTorch NCW convention. Returns (B, 1) float32."""
    w1, b1, w2, b2, w3, b3, w4, b4 = params
    B, cin, T = x.shape
    # Rows per sample: 1 leading zero-pad row + T conv output rows, rounded up to
    # the bf16 sublane pack (16) so all reshapes are free views.
    tp = -(-(T + 1) // 16) * 16

    if b_tile is None:
        # Single tile for small batches (single-TC v5e/v6e: fewest grid steps);
        # large batches split into <=256-sample tiles ("parallel" lets v7x shard).
        b_tile = min(256, -(-B // 8) * 8)
    num_tiles = -(-B // b_tile)
    b_pad = num_tiles * b_tile
    rows_per_tile = b_tile * tp

    # --- Wrapper-side prep (cheap XLA ops, tiny arrays) ---
    # NCW -> NWC, then conv1 im2col: row p = [x_pad[p], x_pad[p+1], x_pad[p+2]].
    xt = jnp.transpose(x, (0, 2, 1))                           # (B, T, Cin)
    xpad = jnp.pad(xt, ((0, 0), (1, 1), (0, 0)))               # (B, T+2, Cin)
    cols = jnp.concatenate([xpad[:, k:k + T, :] for k in range(3)], axis=-1)
    # Leading zero row per sample (= conv2's time -1 pad) + trailing pad to tp rows.
    xcol = jnp.pad(cols, ((0, b_pad - B), (1, tp - 1 - T), (0, 0)))
    xcol = xcol.reshape(b_pad * tp, 3 * cin).astype(jnp.bfloat16)

    w1cat = w1.reshape(3 * cin, 32).astype(jnp.bfloat16)       # (3*Cin, 32)
    w2b = w2.astype(jnp.bfloat16)                              # (3, 32, 64)
    w3s = (w3 * (1.0 / T)).astype(jnp.bfloat16)                # fold avg-pool 1/T
    w4row = jnp.transpose(w4).astype(jnp.bfloat16)             # (1, 32)

    kernel = functools.partial(_fall_detection_kernel, t=T, tp=tp)
    out = pl.pallas_call(
        kernel,
        out_shape=jax.ShapeDtypeStruct((num_tiles, 1, b_tile), jnp.float32),
        grid=(num_tiles,),
        in_specs=[
            pl.BlockSpec((rows_per_tile, 3 * cin), lambda i: (i, 0)),   # im2col x
            pl.BlockSpec((3 * cin, 32), lambda i: (0, 0)),              # conv1 W
            pl.BlockSpec((1, 32), lambda i: (0, 0)),                    # conv1 b
            pl.BlockSpec((3, 32, 64), lambda i: (0, 0, 0)),             # conv2 W
            pl.BlockSpec((1, 64), lambda i: (0, 0)),                    # conv2 b
            pl.BlockSpec((64, 32), lambda i: (0, 0)),                   # fc1 W (x 1/T)
            pl.BlockSpec((1, 32), lambda i: (0, 0)),                    # fc1 b
            pl.BlockSpec((1, 32), lambda i: (0, 0)),                    # fc2 W row
            pl.BlockSpec((1, 1), lambda i: (0, 0)),                     # fc2 b
        ],
        out_specs=pl.BlockSpec((1, 1, b_tile), lambda i: (i, 0, 0)),
        scratch_shapes=[pltpu.VMEM((rows_per_tile + 16, 32), jnp.bfloat16)],
        compiler_params=pltpu.CompilerParams(
            dimension_semantics=("parallel",)),
    )(xcol, w1cat, b1, w2b, b2, w3s, b3, w4row, b4)

    return out.reshape(b_pad)[:B].reshape(B, 1)


def init_params(key, in_channels=12):
    """Deterministic synthetic parameters (shapes from the PyTorch __init__).

    Conv weights are stored as (K, Cin, Cout) = torch_weight.permute(2, 1, 0);
    Linear weights are stored as (in, out) = torch_weight.T.
    """
    ks = jax.random.split(key, 8)
    scale = 0.1
    w1 = scale * jax.random.normal(ks[0], (3, in_channels, 32), jnp.float32)
    b1 = scale * jax.random.normal(ks[1], (1, 32), jnp.float32)
    w2 = scale * jax.random.normal(ks[2], (3, 32, 64), jnp.float32)
    b2 = scale * jax.random.normal(ks[3], (1, 64), jnp.float32)
    w3 = scale * jax.random.normal(ks[4], (64, 32), jnp.float32)
    b3 = scale * jax.random.normal(ks[5], (1, 32), jnp.float32)
    w4 = scale * jax.random.normal(ks[6], (32, 1), jnp.float32)
    b4 = scale * jax.random.normal(ks[7], (1, 1), jnp.float32)
    return (w1, b1, w2, b2, w3, b3, w4, b4)


def reference_forward(x, params):
    """Pure-JAX f32 reference mirroring the PyTorch forward (for verification)."""
    w1, b1, w2, b2, w3, b3, w4, b4 = params
    xt = jnp.transpose(x, (0, 2, 1))                           # (B, T, Cin)
    xp = jnp.pad(xt, ((0, 0), (1, 1), (0, 0)))
    T = xt.shape[1]
    h1 = sum(jnp.einsum('btc,co->bto', xp[:, k:k + T, :], w1[k]) for k in range(3))
    h1 = jax.nn.relu(h1 + b1[None])
    h1p = jnp.pad(h1, ((0, 0), (1, 1), (0, 0)))
    h2 = sum(jnp.einsum('btc,co->bto', h1p[:, k:k + T, :], w2[k]) for k in range(3))
    h2 = jax.nn.relu(h2 + b2[None])
    pooled = jnp.mean(h2, axis=1)                              # (B, 64)
    z3 = jax.nn.relu(pooled @ w3 + b3)
    z4 = z3 @ w4 + b4
    return jax.nn.sigmoid(z4)


if __name__ == "__main__":
    key = jax.random.PRNGKey(0)
    k_x, k_p = jax.random.split(key)

    B, C_IN, T = 64, 12, 15            # module defaults: in_channels=12, window=15
    x = jax.random.normal(k_x, (B, C_IN, T), jnp.float32)
    params = init_params(k_p, in_channels=C_IN)

    out = jax.block_until_ready(fall_detection_forward(x, params))  # grid=(1,)
    ref = reference_forward(x, params)

    assert out.shape == (B, 1)
    # bf16 matmul operands (f32 accumulation) vs f32 reference -> loose tolerance.
    assert jnp.allclose(out, ref, atol=2e-2, rtol=2e-2), (out, ref)

    print("KERNEL_OK")
</pallas_src>

<mosaic_0001>
module attributes {stable_mosaic.version = 11 : i64} {
  func.func @_fall_detection_kernel(%arg0: i32, %arg1: memref<1024x36xbf16, #tpu.memory_space<vmem>>, %arg2: memref<36x32xbf16, #tpu.memory_space<vmem>>, %arg3: memref<1x32xf32, #tpu.memory_space<vmem>>, %arg4: memref<3x32x64xbf16, #tpu.memory_space<vmem>>, %arg5: memref<1x64xf32, #tpu.memory_space<vmem>>, %arg6: memref<64x32xbf16, #tpu.memory_space<vmem>>, %arg7: memref<1x32xf32, #tpu.memory_space<vmem>>, %arg8: memref<1x32xbf16, #tpu.memory_space<vmem>>, %arg9: memref<1x1xf32, #tpu.memory_space<vmem>>, %arg10: memref<1x1x64xf32, #tpu.memory_space<vmem>>, %arg11: memref<1040x32xbf16, #tpu.memory_space<vmem>>) attributes {dimension_semantics = [#tpu.dimension_semantics<parallel>], iteration_bounds = array<i64: 1>, scalar_prefetch = 0 : i64, scratch_operands = 1 : i64, tpu.core_type = #tpu.core_type<tc>, window_params = [{transform_indices = @transform_0, window_bounds = array<i64: 1024, 36>}, {pipeline_mode = #tpu.pipeline_mode<synchronous>, transform_indices = @transform_1, window_bounds = array<i64: 36, 32>}, {pipeline_mode = #tpu.pipeline_mode<synchronous>, transform_indices = @transform_2, window_bounds = array<i64: 1, 32>}, {pipeline_mode = #tpu.pipeline_mode<synchronous>, transform_indices = @transform_3, window_bounds = array<i64: 3, 32, 64>}, {pipeline_mode = #tpu.pipeline_mode<synchronous>, transform_indices = @transform_4, window_bounds = array<i64: 1, 64>}, {pipeline_mode = #tpu.pipeline_mode<synchronous>, transform_indices = @transform_5, window_bounds = array<i64: 64, 32>}, {pipeline_mode = #tpu.pipeline_mode<synchronous>, transform_indices = @transform_6, window_bounds = array<i64: 1, 32>}, {pipeline_mode = #tpu.pipeline_mode<synchronous>, transform_indices = @transform_7, window_bounds = array<i64: 1, 32>}, {pipeline_mode = #tpu.pipeline_mode<synchronous>, transform_indices = @transform_8, window_bounds = array<i64: 1, 1>}, {transform_indices = @transform_9, window_bounds = array<i64: 1, 1, 64>}]} {
    %0 = tpu.iota {dimensions = array<i32: 0>} : vector<1024x1xi32>
    %c16_i32 = arith.constant 16 : i32
    %c0_i32 = arith.constant 0 : i32
    %1 = arith.cmpi eq, %c16_i32, %c0_i32 : i32
    %c1_i32 = arith.constant 1 : i32
    %2 = arith.select %1, %c1_i32, %c16_i32 : i32
    %3 = vector.broadcast %2 : i32 to vector<1024x1xi32>
    %4 = arith.remsi %0, %3 : vector<1024x1xi32>
    %c0_i32_0 = arith.constant 0 : i32
    %5 = vector.broadcast %c0_i32_0 : i32 to vector<1024x1xi32>
    %6 = arith.cmpi ne, %4, %5 : vector<1024x1xi32>
    %c0_i32_1 = arith.constant 0 : i32
    %7 = vector.broadcast %c0_i32_1 : i32 to vector<1024x1xi32>
    %8 = arith.cmpi slt, %4, %7 : vector<1024x1xi32>
    %c0_i32_2 = arith.constant 0 : i32
    %9 = arith.cmpi slt, %2, %c0_i32_2 : i32
    %10 = vector.broadcast %9 : i1 to vector<1024x1xi1>
    %11 = vector.broadcast %10 : vector<1024x1xi1> to vector<1024x1xi1>
    %12 = arith.xori %8, %11 : vector<1024x1xi1>
    %13 = arith.andi %12, %6 : vector<1024x1xi1>
    %14 = vector.broadcast %2 : i32 to vector<1024x1xi32>
    %15 = arith.addi %4, %14 : vector<1024x1xi32>
    %16 = arith.select %13, %15, %4 : vector<1024x1xi1>, vector<1024x1xi32>
    %c1_i32_3 = arith.constant 1 : i32
    %17 = vector.broadcast %c1_i32_3 : i32 to vector<1024x1xi32>
    %18 = arith.cmpi sge, %16, %17 : vector<1024x1xi32>
    %c15_i32 = arith.constant 15 : i32
    %19 = vector.broadcast %c15_i32 : i32 to vector<1024x1xi32>
    %20 = arith.cmpi sle, %16, %19 : vector<1024x1xi32>
    %21 = arith.andi %18, %20 : vector<1024x1xi1>
    %22 = arith.extui %21 : vector<1024x1xi1> to vector<1024x1xi32>
    %23 = arith.sitofp %22 : vector<1024x1xi32> to vector<1024x1xf32>
    %c15_i32_4 = arith.constant 15 : i32
    %24 = vector.broadcast %c15_i32_4 : i32 to vector<1024x1xi32>
    %25 = arith.cmpi slt, %16, %24 : vector<1024x1xi32>
    %26 = arith.extui %25 : vector<1024x1xi1> to vector<1024x1xi32>
    %27 = arith.sitofp %26 : vector<1024x1xi32> to vector<1024x1xf32>
    %c0 = arith.constant 0 : index
    %c0_5 = arith.constant 0 : index
    %28 = vector.load %arg1[%c0, %c0_5] : memref<1024x36xbf16, #tpu.memory_space<vmem>>, vector<1024x36xbf16>
    %c0_6 = arith.constant 0 : index
    %c0_7 = arith.constant 0 : index
    %29 = vector.load %arg2[%c0_6, %c0_7] : memref<36x32xbf16, #tpu.memory_space<vmem>>, vector<36x32xbf16>
    %cst = arith.constant dense<0.000000e+00> : vector<1024x32xf32>
    %30 = tpu.matmul %28, %29, %cst {dimension_numbers = #tpu.dot_dimension_numbers<[1], [0], [0], [1], [0, 0, 1, 1], [], []>} : vector<1024x36xbf16>, vector<36x32xbf16>, vector<1024x32xf32> -> vector<1024x32xf32>
    %c0_8 = arith.constant 0 : index
    %c0_9 = arith.constant 0 : index
    %31 = vector.load %arg3[%c0_8, %c0_9] : memref<1x32xf32, #tpu.memory_space<vmem>>, vector<1x32xf32>
    %32 = vector.broadcast %31 : vector<1x32xf32> to vector<1024x32xf32>
    %33 = arith.addf %30, %32 : vector<1024x32xf32>
    %cst_10 = arith.constant 0.000000e+00 : f32
    %34 = vector.broadcast %cst_10 : f32 to vector<1024x32xf32>
    %35 = arith.maximumf %33, %34 : vector<1024x32xf32>
    %36 = vector.broadcast %23 : vector<1024x1xf32> to vector<1024x32xf32>
    %37 = arith.mulf %35, %36 : vector<1024x32xf32>
    %38 = arith.truncf %37 : vector<1024x32xf32> to vector<1024x32xbf16>
    %c0_11 = arith.constant 0 : index
    %c0_12 = arith.constant 0 : index
    %39 = vector.load %arg11[%c0_11, %c0_12] : memref<1040x32xbf16, #tpu.memory_space<vmem>>, vector<1024x32xbf16>
    tpu.vector_store %arg11[%c0_11, %c0_12], %38 {strides = array<i32>} : memref<1040x32xbf16, #tpu.memory_space<vmem>>, vector<1024x32xbf16>,
    %cst_13 = arith.constant 0.000000e+00 : bf16
    %40 = vector.broadcast %cst_13 : bf16 to vector<16x32xbf16>
    %c1024 = arith.constant 1024 : index
    %c0_14 = arith.constant 0 : index
    %41 = vector.load %arg11[%c1024, %c0_14] : memref<1040x32xbf16, #tpu.memory_space<vmem>>, vector<16x32xbf16>
    tpu.vector_store %arg11[%c1024, %c0_14], %40 {strides = array<i32>} : memref<1040x32xbf16, #tpu.memory_space<vmem>>, vector<16x32xbf16>,
    %c0_15 = arith.constant 0 : index
    %c0_16 = arith.constant 0 : index
    %42 = vector.load %arg11[%c0_15, %c0_16] : memref<1040x32xbf16, #tpu.memory_space<vmem>>, vector<1024x32xbf16>
    %c0_17 = arith.constant 0 : index
    %c0_18 = arith.constant 0 : index
    %c0_19 = arith.constant 0 : index
    %43 = vector.load %arg4[%c0_17, %c0_18, %c0_19] : memref<3x32x64xbf16, #tpu.memory_space<vmem>>, vector<1x32x64xbf16>
    %44 = vector.shape_cast %43 : vector<1x32x64xbf16> to vector<32x64xbf16>
    %cst_20 = arith.constant dense<0.000000e+00> : vector<1024x64xf32>
    %45 = tpu.matmul %42, %44, %cst_20 {dimension_numbers = #tpu.dot_dimension_numbers<[1], [0], [0], [1], [0, 0, 1, 1], [], []>} : vector<1024x32xbf16>, vector<32x64xbf16>, vector<1024x64xf32> -> vector<1024x64xf32>
    %c1 = arith.constant 1 : index
    %c0_21 = arith.constant 0 : index
    %46 = vector.load %arg11[%c1, %c0_21] : memref<1040x32xbf16, #tpu.memory_space<vmem>>, vector<1024x32xbf16>
    %c1_22 = arith.constant 1 : index
    %c0_23 = arith.constant 0 : index
    %c0_24 = arith.constant 0 : index
    %47 = vector.load %arg4[%c1_22, %c0_23, %c0_24] : memref<3x32x64xbf16, #tpu.memory_space<vmem>>, vector<1x32x64xbf16>
    %48 = vector.shape_cast %47 : vector<1x32x64xbf16> to vector<32x64xbf16>
    %cst_25 = arith.constant dense<0.000000e+00> : vector<1024x64xf32>
    %49 = tpu.matmul %46, %48, %cst_25 {dimension_numbers = #tpu.dot_dimension_numbers<[1], [0], [0], [1], [0, 0, 1, 1], [], []>} : vector<1024x32xbf16>, vector<32x64xbf16>, vector<1024x64xf32> -> vector<1024x64xf32>
    %50 = arith.addf %45, %49 : vector<1024x64xf32>
    %c2 = arith.constant 2 : index
    %c0_26 = arith.constant 0 : index
    %51 = vector.load %arg11[%c2, %c0_26] : memref<1040x32xbf16, #tpu.memory_space<vmem>>, vector<1024x32xbf16>
    %c2_27 = arith.constant 2 : index
    %c0_28 = arith.constant 0 : index
    %c0_29 = arith.constant 0 : index
    %52 = vector.load %arg4[%c2_27, %c0_28, %c0_29] : memref<3x32x64xbf16, #tpu.memory_space<vmem>>, vector<1x32x64xbf16>
    %53 = vector.shape_cast %52 : vector<1x32x64xbf16> to vector<32x64xbf16>
    %cst_30 = arith.constant dense<0.000000e+00> : vector<1024x64xf32>
    %54 = tpu.matmul %51, %53, %cst_30 {dimension_numbers = #tpu.dot_dimension_numbers<[1], [0], [0], [1], [0, 0, 1, 1], [], []>} : vector<1024x32xbf16>, vector<32x64xbf16>, vector<1024x64xf32> -> vector<1024x64xf32>
    %55 = arith.addf %50, %54 : vector<1024x64xf32>
    %c0_31 = arith.constant 0 : index
    %c0_32 = arith.constant 0 : index
    %56 = vector.load %arg5[%c0_31, %c0_32] : memref<1x64xf32, #tpu.memory_space<vmem>>, vector<1x64xf32>
    %57 = vector.broadcast %56 : vector<1x64xf32> to vector<1024x64xf32>
    %58 = arith.addf %55, %57 : vector<1024x64xf32>
    %cst_33 = arith.constant 0.000000e+00 : f32
    %59 = vector.broadcast %cst_33 : f32 to vector<1024x64xf32>
    %60 = arith.maximumf %58, %59 : vector<1024x64xf32>
    %61 = vector.broadcast %27 : vector<1024x1xf32> to vector<1024x64xf32>
    %62 = arith.mulf %60, %61 : vector<1024x64xf32>
    %63 = vector.shape_cast %62 : vector<1024x64xf32> to vector<64x16x64xf32>
    %cst_34 = arith.constant dense<0.000000e+00> : vector<64x64xf32>
    %64 = vector.multi_reduction <add>, %63, %cst_34 [1] : vector<64x16x64xf32> to vector<64x64xf32>
    %65 = arith.truncf %64 : vector<64x64xf32> to vector<64x64xbf16>
    %c0_35 = arith.constant 0 : index
    %c0_36 = arith.constant 0 : index
    %66 = vector.load %arg6[%c0_35, %c0_36] : memref<64x32xbf16, #tpu.memory_space<vmem>>, vector<64x32xbf16>
    %cst_37 = arith.constant dense<0.000000e+00> : vector<64x32xf32>
    %67 = tpu.matmul %65, %66, %cst_37 {dimension_numbers = #tpu.dot_dimension_numbers<[1], [0], [0], [1], [0, 0, 1, 1], [], []>} : vector<64x64xbf16>, vector<64x32xbf16>, vector<64x32xf32> -> vector<64x32xf32>
    %c0_38 = arith.constant 0 : index
    %c0_39 = arith.constant 0 : index
    %68 = vector.load %arg7[%c0_38, %c0_39] : memref<1x32xf32, #tpu.memory_space<vmem>>, vector<1x32xf32>
    %69 = vector.broadcast %68 : vector<1x32xf32> to vector<64x32xf32>
    %70 = arith.addf %67, %69 : vector<64x32xf32>
    %cst_40 = arith.constant 0.000000e+00 : f32
    %71 = vector.broadcast %cst_40 : f32 to vector<64x32xf32>
    %72 = arith.maximumf %70, %71 : vector<64x32xf32>
    %c0_41 = arith.constant 0 : index
    %c0_42 = arith.constant 0 : index
    %73 = vector.load %arg8[%c0_41, %c0_42] : memref<1x32xbf16, #tpu.memory_space<vmem>>, vector<1x32xbf16>
    %74 = arith.truncf %72 : vector<64x32xf32> to vector<64x32xbf16>
    %cst_43 = arith.constant dense<0.000000e+00> : vector<1x64xf32>
    %75 = tpu.matmul %73, %74, %cst_43 {dimension_numbers = #tpu.dot_dimension_numbers<[1], [1], [0], [0], [0, 0, 1, 0], [], []>} : vector<1x32xbf16>, vector<64x32xbf16>, vector<1x64xf32> -> vector<1x64xf32>
    %c0_44 = arith.constant 0 : index
    %c0_45 = arith.constant 0 : index
    %76 = vector.load %arg9[%c0_44, %c0_45] : memref<1x1xf32, #tpu.memory_space<vmem>>, vector<1x1xf32>
    %77 = vector.broadcast %76 : vector<1x1xf32> to vector<1x64xf32>
    %78 = arith.addf %75, %77 : vector<1x64xf32>
    %79 = arith.negf %78 : vector<1x64xf32>
    %80 = math.exp %79 : vector<1x64xf32>
    %cst_46 = arith.constant 1.000000e+00 : f32
    %81 = vector.broadcast %cst_46 : f32 to vector<1x64xf32>
    %82 = arith.addf %81, %80 : vector<1x64xf32>
    %83 = arith.divf %81, %82 : vector<1x64xf32>
    %84 = vector.shape_cast %83 : vector<1x64xf32> to vector<1x1x64xf32>
    %c0_47 = arith.constant 0 : index
    %c0_48 = arith.constant 0 : index
    %c0_49 = arith.constant 0 : index
    %85 = vector.load %arg10[%c0_47, %c0_48, %c0_49] : memref<1x1x64xf32, #tpu.memory_space<vmem>>, vector<1x1x64xf32>
    tpu.vector_store %arg10[%c0_47, %c0_48, %c0_49], %84 {strides = array<i32>} : memref<1x1x64xf32, #tpu.memory_space<vmem>>, vector<1x1x64xf32>,
    return
  }
  func.func @transform_0(%arg0: i32) -> (i32, i32) {
    %c0_i32 = arith.constant 0 : i32
    %c0_i32_0 = arith.constant 0 : i32
    return %arg0, %c0_i32 : i32, i32
  }
  func.func @transform_1(%arg0: i32) -> (i32, i32) {
    %c0_i32 = arith.constant 0 : i32
    %c0_i32_0 = arith.constant 0 : i32
    %c0_i32_1 = arith.constant 0 : i32
    return %c0_i32, %c0_i32_0 : i32, i32
  }
  func.func @transform_2(%arg0: i32) -> (i32, i32) {
    %c0_i32 = arith.constant 0 : i32
    %c0_i32_0 = arith.constant 0 : i32
    %c0_i32_1 = arith.constant 0 : i32
    return %c0_i32, %c0_i32_0 : i32, i32
  }
  func.func @transform_3(%arg0: i32) -> (i32, i32, i32) {
    %c0_i32 = arith.constant 0 : i32
    %c0_i32_0 = arith.constant 0 : i32
    %c0_i32_1 = arith.constant 0 : i32
    %c0_i32_2 = arith.constant 0 : i32
    return %c0_i32, %c0_i32_0, %c0_i32_1 : i32, i32, i32
  }
  func.func @transform_4(%arg0: i32) -> (i32, i32) {
    %c0_i32 = arith.constant 0 : i32
    %c0_i32_0 = arith.constant 0 : i32
    %c0_i32_1 = arith.constant 0 : i32
    return %c0_i32, %c0_i32_0 : i32, i32
  }
  func.func @transform_5(%arg0: i32) -> (i32, i32) {
    %c0_i32 = arith.constant 0 : i32
    %c0_i32_0 = arith.constant 0 : i32
    %c0_i32_1 = arith.constant 0 : i32
    return %c0_i32, %c0_i32_0 : i32, i32
  }
  func.func @transform_6(%arg0: i32) -> (i32, i32) {
    %c0_i32 = arith.constant 0 : i32
    %c0_i32_0 = arith.constant 0 : i32
    %c0_i32_1 = arith.constant 0 : i32
    return %c0_i32, %c0_i32_0 : i32, i32
  }
  func.func @transform_7(%arg0: i32) -> (i32, i32) {
    %c0_i32 = arith.constant 0 : i32
    %c0_i32_0 = arith.constant 0 : i32
    %c0_i32_1 = arith.constant 0 : i32
    return %c0_i32, %c0_i32_0 : i32, i32
  }
  func.func @transform_8(%arg0: i32) -> (i32, i32) {
    %c0_i32 = arith.constant 0 : i32
    %c0_i32_0 = arith.constant 0 : i32
    %c0_i32_1 = arith.constant 0 : i32
    return %c0_i32, %c0_i32_0 : i32, i32
  }
  func.func @transform_9(%arg0: i32) -> (i32, i32, i32) {
    %c0_i32 = arith.constant 0 : i32
    %c0_i32_0 = arith.constant 0 : i32
    %c0_i32_1 = arith.constant 0 : i32
    return %arg0, %c0_i32, %c0_i32_0 : i32, i32, i32
  }
}

</mosaic_0001>

<llo_original>
// kernel: tpu_custom_call.1
$region0: #{tpu_custom_call.1}
  #allocation0 [shape = 'u32[]', space=smem, size = 0x4, offset = 0x4, fixed_abs, tag = 'smem constant byte address 0x4 - core index']
  #allocation1 [shape = 'u32[144,128]{1,0:T(1,128)}', space=vmem, size = 0x12000, scoped, tag = 'internal scratch']
  #allocation2 [shape = 'bf16[1040,32]{1,0:T(16,128)(2,1)}', space=vmem, size = 0x41000, scoped, tag = 'scratch operand']
  #allocation3 [shape = 'f32[1,1]{1,0:T(1,128)S(1)}', space=vmem, size = 0x200, scoped, tag = 'scoped memory for tpu_custom_call.1']
  %s0 = inlined_call_operand.vmem [shape: bf16[1024,36], index: 0, kind: input, shape index: {}]
  %s1 = inlined_call_operand.vmem [shape: bf16[36,32], index: 1, kind: input, shape index: {}]
  %s2 = inlined_call_operand.vmem [shape: f32[1,32], index: 2, kind: input, shape index: {}]
  %s3 = inlined_call_operand.vmem [shape: bf16[3,32,64], index: 3, kind: input, shape index: {}]
  %s4 = inlined_call_operand.vmem [shape: f32[1,64], index: 4, kind: input, shape index: {}]
  %s5 = inlined_call_operand.vmem [shape: bf16[64,32], index: 5, kind: input, shape index: {}]
  %s6 = inlined_call_operand.vmem [shape: f32[1,32], index: 6, kind: input, shape index: {}]
  %s7 = inlined_call_operand.vmem [shape: bf16[1,32], index: 7, kind: input, shape index: {}]
  %s8 = inlined_call_operand.<no memory space> [shape: f32[1,1], index: 8, kind: input, shape index: {}]
  %s9 = inlined_call_operand.hbm [shape: f32[1,1,64], index: 9, kind: output, shape index: {}]
  %s10 = sld [smem:[#allocation0]]
  $region46: #{tpu_custom_call.1} parent=0
    _
  %s12 = ssub.s32 1, %s10
  %s13 = scalar_select 0, %s12, %s10
  %v14 = vstv %s8
  %15 = vst [vmem:[#allocation3] sm:$0x1] %v14
  $region1: #{tpu_custom_call.1} parent=0
    #allocation4 [shape = 'u8[512]{0}', space=vmem, size = 0x400, scoped, tag = 'output window, operand 0, single buffered']
    #allocation5 [shape = 's32[1]{0}', space=sflag, size = 0x4, scoped, tag = 'scoped memory for tpu_custom_call.1']
    %16 = vsyncpa [#allocation5], 0
    // Predicated region
    $region2: #{tpu_custom_call.1} parent=1 // pred_check
      _
    $region3: #{tpu_custom_call.1} parent=1 // pred_check_branch
      %18 = sbr.rel (0) target = $region5
    $region4: #{tpu_custom_call.1} parent=1 // pred_region
      _
    $region5: #{tpu_custom_call.1} parent=1 // pred_fallthru
      _
    // Predicated region
    $region6: #{tpu_custom_call.1} parent=1 // pred_check
      _
    $region7: #{tpu_custom_call.1} parent=1 // pred_check_branch
      %20 = sbr.rel (0) target = $region9
    $region8: #{tpu_custom_call.1} parent=1 // pred_region
      _
    $region9: #{tpu_custom_call.1} parent=1 // pred_fallthru
      _
    // Predicated region
    $region10: #{tpu_custom_call.1} parent=1 // pred_check
      _
    $region11: #{tpu_custom_call.1} parent=1 // pred_check_branch
      %22 = sbr.rel (0) target = $region13
    $region12: #{tpu_custom_call.1} parent=1 // pred_region
      _
    $region13: #{tpu_custom_call.1} parent=1 // pred_fallthru
      _
    // Predicated region
    $region14: #{tpu_custom_call.1} parent=1 // pred_check
      _
    $region15: #{tpu_custom_call.1} parent=1 // pred_check_branch
      %24 = sbr.rel (0) target = $region17
    $region16: #{tpu_custom_call.1} parent=1 // pred_region
      _
    $region17: #{tpu_custom_call.1} parent=1 // pred_fallthru
      _
    // Predicated region
    $region18: #{tpu_custom_call.1} parent=1 // pred_check
      _
    $region19: #{tpu_custom_call.1} parent=1 // pred_check_branch
      %26 = sbr.rel (0) target = $region21
    $region20: #{tpu_custom_call.1} parent=1 // pred_region
      _
    $region21: #{tpu_custom_call.1} parent=1 // pred_fallthru
      _
    // Predicated region
    $region22: #{tpu_custom_call.1} parent=1 // pred_check
      _
    $region23: #{tpu_custom_call.1} parent=1 // pred_check_branch
      %28 = sbr.rel (0) target = $region25
    $region24: #{tpu_custom_call.1} parent=1 // pred_region
      _
    $region25: #{tpu_custom_call.1} parent=1 // pred_fallthru
      _
    // Predicated region
    $region26: #{tpu_custom_call.1} parent=1 // pred_check
      _
    $region27: #{tpu_custom_call.1} parent=1 // pred_check_branch
      %30 = sbr.rel (0) target = $region29
    $region28: #{tpu_custom_call.1} parent=1 // pred_region
      _
    $region29: #{tpu_custom_call.1} parent=1 // pred_fallthru
      _
    // Predicated region
    $region30: #{tpu_custom_call.1} parent=1 // pred_check
      _
    $region31: #{tpu_custom_call.1} parent=1 // pred_check_branch
      %32 = sbr.rel (0) target = $region33
    $region32: #{tpu_custom_call.1} parent=1 // pred_region
      _
    $region33: #{tpu_custom_call.1} parent=1 // pred_fallthru
      _
    // Predicated region
    $region34: #{tpu_custom_call.1} parent=1 // pred_check
      _
    $region35: #{tpu_custom_call.1} parent=1 // pred_check_branch
      %34 = sbr.rel (0) target = $region37
    $region36: #{tpu_custom_call.1} parent=1 // pred_region
      _
    $region37: #{tpu_custom_call.1} parent=1 // pred_fallthru
      _
    %v36 = vlaneseq
    %v37 = vshrl.u32 %v36, 7
    %v38 = vadd.s32 %v37, 8
    %v39 = vadd.s32 %v37, 16
    %v40 = vadd.s32 %v37, 24
    %v41 = vadd.s32 %v37, 32
    %v42 = vadd.s32 %v37, 40
    %v43 = vadd.s32 %v37, 48
    %v44 = vadd.s32 %v37, 56
    %v45 = vadd.s32 %v37, 64
    %v46 = vadd.s32 %v37, 72
    %v47 = vadd.s32 %v37, 80
    %v48 = vadd.s32 %v37, 88
    %v49 = vadd.s32 %v37, 96
    %v50 = vadd.s32 %v37, 104
    %v51 = vadd.s32 %v37, 112
    %v52 = vadd.s32 %v37, 120
    %v53 = vadd.s32 %v37, 128
    %v54 = vadd.s32 %v37, 136
    %v55 = vadd.s32 %v37, 144
    %v56 = vadd.s32 %v37, 152
    %v57 = vadd.s32 %v37, 160
    %v58 = vadd.s32 %v37, 168
    %v59 = vadd.s32 %v37, 176
    %v60 = vadd.s32 %v37, 184
    %v61 = vadd.s32 %v37, 192
    %v62 = vadd.s32 %v37, 200
    %v63 = vadd.s32 %v37, 208
    %v64 = vadd.s32 %v37, 216
    %v65 = vadd.s32 %v37, 224
    %v66 = vadd.s32 %v37, 232
    %v67 = vadd.s32 %v37, 240
    %v68 = vadd.s32 %v37, 248
    %v69 = vadd.s32 %v37, 256
    %v70 = vadd.s32 %v37, 264
    %v71 = vadd.s32 %v37, 272
    %v72 = vadd.s32 %v37, 280
    %v73 = vadd.s32 %v37, 288
    %v74 = vadd.s32 %v37, 296
    %v75 = vadd.s32 %v37, 304
    %v76 = vadd.s32 %v37, 312
    %v77 = vadd.s32 %v37, 320
    %v78 = vadd.s32 %v37, 328
    %v79 = vadd.s32 %v37, 336
    %v80 = vadd.s32 %v37, 344
    %v81 = vadd.s32 %v37, 352
    %v82 = vadd.s32 %v37, 360
    %v83 = vadd.s32 %v37, 368
    %v84 = vadd.s32 %v37, 376
    %v85 = vadd.s32 %v37, 384
    %v86 = vadd.s32 %v37, 392
    %v87 = vadd.s32 %v37, 400
    %v88 = vadd.s32 %v37, 408
    %v89 = vadd.s32 %v37, 416
    %v90 = vadd.s32 %v37, 424
    %v91 = vadd.s32 %v37, 432
    %v92 = vadd.s32 %v37, 440
    %v93 = vadd.s32 %v37, 448
    %v94 = vadd.s32 %v37, 456
    %v95 = vadd.s32 %v37, 464
    %v96 = vadd.s32 %v37, 472
    %v97 = vadd.s32 %v37, 480
    %v98 = vadd.s32 %v37, 488
    %v99 = vadd.s32 %v37, 496
    %v100 = vadd.s32 %v37, 504
    %v101 = vadd.s32 %v37, 512
    %v102 = vadd.s32 %v37, 520
    %v103 = vadd.s32 %v37, 528
    %v104 = vadd.s32 %v37, 536
    %v105 = vadd.s32 %v37, 544
    %v106 = vadd.s32 %v37, 552
    %v107 = vadd.s32 %v37, 560
    %v108 = vadd.s32 %v37, 568
    %v109 = vadd.s32 %v37, 576
    %v110 = vadd.s32 %v37, 584
    %v111 = vadd.s32 %v37, 592
    %v112 = vadd.s32 %v37, 600
    %v113 = vadd.s32 %v37, 608
    %v114 = vadd.s32 %v37, 616
    %v115 = vadd.s32 %v37, 624
    %v116 = vadd.s32 %v37, 632
    %v117 = vadd.s32 %v37, 640
    %v118 = vadd.s32 %v37, 648
    %v119 = vadd.s32 %v37, 656
    %v120 = vadd.s32 %v37, 664
    %v121 = vadd.s32 %v37, 672
    %v122 = vadd.s32 %v37, 680
    %v123 = vadd.s32 %v37, 688
    %v124 = vadd.s32 %v37, 696
    %v125 = vadd.s32 %v37, 704
    %v126 = vadd.s32 %v37, 712
    %v127 = vadd.s32 %v37, 720
    %v128 = vadd.s32 %v37, 728
    %v129 = vadd.s32 %v37, 736
    %v130 = vadd.s32 %v37, 744
    %v131 = vadd.s32 %v37, 752
    %v132 = vadd.s32 %v37, 760
    %v133 = vadd.s32 %v37, 768
    %v134 = vadd.s32 %v37, 776
    %v135 = vadd.s32 %v37, 784
    %v136 = vadd.s32 %v37, 792
    %v137 = vadd.s32 %v37, 800
    %v138 = vadd.s32 %v37, 808
    %v139 = vadd.s32 %v37, 816
    %v140 = vadd.s32 %v37, 824
    %v141 = vadd.s32 %v37, 832
    %v142 = vadd.s32 %v37, 840
    %v143 = vadd.s32 %v37, 848
    %v144 = vadd.s32 %v37, 856
    %v145 = vadd.s32 %v37, 864
    %v146 = vadd.s32 %v37, 872
    %v147 = vadd.s32 %v37, 880
    %v148 = vadd.s32 %v37, 888
    %v149 = vadd.s32 %v37, 896
    %v150 = vadd.s32 %v37, 904
    %v151 = vadd.s32 %v37, 912
    %v152 = vadd.s32 %v37, 920
    %v153 = vadd.s32 %v37, 928
    %v154 = vadd.s32 %v37, 936
    %v155 = vadd.s32 %v37, 944
    %v156 = vadd.s32 %v37, 952
    %v157 = vadd.s32 %v37, 960
    %v158 = vadd.s32 %v37, 968
    %v159 = vadd.s32 %v37, 976
    %v160 = vadd.s32 %v37, 984
    %v161 = vadd.s32 %v37, 992
    %v162 = vadd.s32 %v37, 1000
    %v163 = vadd.s32 %v37, 1008
    %v164 = vadd.s32 %v37, 1016
    %vm165 = vcmp.lt.s32.totalorder %v37, 0
    %v166 = vsub.s32 0, %v37
    %v167 = vsel %vm165, %v166, %v37
    %v168 = vshrl.u32 %v167, 4
    %v169 = vand.u32 %v167, 15
    %v170 = vsub.s32 0, %v169
    %v171 = vsel %vm165, %v170, %v169
    %vm172 = vcmp.lt.s32.totalorder %v38, 0
    %v173 = vsub.s32 0, %v38
    %v174 = vsel %vm172, %v173, %v38
    %v175 = vshrl.u32 %v174, 4
    %v176 = vand.u32 %v174, 15
    %v177 = vsub.s32 0, %v176
    %v178 = vsel %vm172, %v177, %v176
    %vm179 = vcmp.lt.s32.totalorder %v39, 0
    %v180 = vsub.s32 0, %v39
    %v181 = vsel %vm179, %v180, %v39
    %v182 = vshrl.u32 %v181, 4
    %v183 = vand.u32 %v181, 15
    %v184 = vsub.s32 0, %v183
    %v185 = vsel %vm179, %v184, %v183
    %vm186 = vcmp.lt.s32.totalorder %v40, 0
    %v187 = vsub.s32 0, %v40
    %v188 = vsel %vm186, %v187, %v40
    %v189 = vshrl.u32 %v188, 4
    %v190 = vand.u32 %v188, 15
    %v191 = vsub.s32 0, %v190
    %v192 = vsel %vm186, %v191, %v190
    %vm193 = vcmp.lt.s32.totalorder %v41, 0
    %v194 = vsub.s32 0, %v41
    %v195 = vsel %vm193, %v194, %v41
    %v196 = vshrl.u32 %v195, 4
    %v197 = vand.u32 %v195, 15
    %v198 = vsub.s32 0, %v197
    %v199 = vsel %vm193, %v198, %v197
    %vm200 = vcmp.lt.s32.totalorder %v42, 0
    %v201 = vsub.s32 0, %v42
    %v202 = vsel %vm200, %v201, %v42
    %v203 = vshrl.u32 %v202, 4
    %v204 = vand.u32 %v202, 15
    %v205 = vsub.s32 0, %v204
    %v206 = vsel %vm200, %v205, %v204
    %vm207 = vcmp.lt.s32.totalorder %v43, 0
    %v208 = vsub.s32 0, %v43
    %v209 = vsel %vm207, %v208, %v43
    %v210 = vshrl.u32 %v209, 4
    %v211 = vand.u32 %v209, 15
    %v212 = vsub.s32 0, %v211
    %v213 = vsel %vm207, %v212, %v211
    %vm214 = vcmp.lt.s32.totalorder %v44, 0
    %v215 = vsub.s32 0, %v44
    %v216 = vsel %vm214, %v215, %v44
    %v217 = vshrl.u32 %v216, 4
    %v218 = vand.u32 %v216, 15
    %v219 = vsub.s32 0, %v218
    %v220 = vsel %vm214, %v219, %v218
    %vm221 = vcmp.lt.s32.totalorder %v45, 0
    %v222 = vsub.s32 0, %v45
    %v223 = vsel %vm221, %v222, %v45
    %v224 = vshrl.u32 %v223, 4
    %v225 = vand.u32 %v223, 15
    %v226 = vsub.s32 0, %v225
    %v227 = vsel %vm221, %v226, %v225
    %vm228 = vcmp.lt.s32.totalorder %v46, 0
    %v229 = vsub.s32 0, %v46
    %v230 = vsel %vm228, %v229, %v46
    %v231 = vshrl.u32 %v230, 4
    %v232 = vand.u32 %v230, 15
    %v233 = vsub.s32 0, %v232
    %v234 = vsel %vm228, %v233, %v232
    %vm235 = vcmp.lt.s32.totalorder %v47, 0
    %v236 = vsub.s32 0, %v47
    %v237 = vsel %vm235, %v236, %v47
    %v238 = vshrl.u32 %v237, 4
    %v239 = vand.u32 %v237, 15
    %v240 = vsub.s32 0, %v239
    %v241 = vsel %vm235, %v240, %v239
    %vm242 = vcmp.lt.s32.totalorder %v48, 0
    %v243 = vsub.s32 0, %v48
    %v244 = vsel %vm242, %v243, %v48
    %v245 = vshrl.u32 %v244, 4
    %v246 = vand.u32 %v244, 15
    %v247 = vsub.s32 0, %v246
    %v248 = vsel %vm242, %v247, %v246
    %vm249 = vcmp.lt.s32.totalorder %v49, 0
    %v250 = vsub.s32 0, %v49
    %v251 = vsel %vm249, %v250, %v49
    %v252 = vshrl.u32 %v251, 4
    %v253 = vand.u32 %v251, 15
    %v254 = vsub.s32 0, %v253
    %v255 = vsel %vm249, %v254, %v253
    %vm256 = vcmp.lt.s32.totalorder %v50, 0
    %v257 = vsub.s32 0, %v50
    %v258 = vsel %vm256, %v257, %v50
    %v259 = vshrl.u32 %v258, 4
    %v260 = vand.u32 %v258, 15
    %v261 = vsub.s32 0, %v260
    %v262 = vsel %vm256, %v261, %v260
    %vm263 = vcmp.lt.s32.totalorder %v51, 0
    %v264 = vsub.s32 0, %v51
    %v265 = vsel %vm263, %v264, %v51
    %v266 = vshrl.u32 %v265, 4
    %v267 = vand.u32 %v265, 15
    %v268 = vsub.s32 0, %v267
    %v269 = vsel %vm263, %v268, %v267
    %vm270 = vcmp.lt.s32.totalorder %v52, 0
    %v271 = vsub.s32 0, %v52
    %v272 = vsel %vm270, %v271, %v52
    %v273 = vshrl.u32 %v272, 4
    %v274 = vand.u32 %v272, 15
    %v275 = vsub.s32 0, %v274
    %v276 = vsel %vm270, %v275, %v274
    %vm277 = vcmp.lt.s32.totalorder %v53, 0
    %v278 = vsub.s32 0, %v53
    %v279 = vsel %vm277, %v278, %v53
    %v280 = vshrl.u32 %v279, 4
    %v281 = vand.u32 %v279, 15
    %v282 = vsub.s32 0, %v281
    %v283 = vsel %vm277, %v282, %v281
    %vm284 = vcmp.lt.s32.totalorder %v54, 0
    %v285 = vsub.s32 0, %v54
    %v286 = vsel %vm284, %v285, %v54
    %v287 = vshrl.u32 %v286, 4
    %v288 = vand.u32 %v286, 15
    %v289 = vsub.s32 0, %v288
    %v290 = vsel %vm284, %v289, %v288
    %vm291 = vcmp.lt.s32.totalorder %v55, 0
    %v292 = vsub.s32 0, %v55
    %v293 = vsel %vm291, %v292, %v55
    %v294 = vshrl.u32 %v293, 4
    %v295 = vand.u32 %v293, 15
    %v296 = vsub.s32 0, %v295
    %v297 = vsel %vm291, %v296, %v295
    %vm298 = vcmp.lt.s32.totalorder %v56, 0
    %v299 = vsub.s32 0, %v56
    %v300 = vsel %vm298, %v299, %v56
    %v301 = vshrl.u32 %v300, 4
    %v302 = vand.u32 %v300, 15
    %v303 = vsub.s32 0, %v302
    %v304 = vsel %vm298, %v303, %v302
    %vm305 = vcmp.lt.s32.totalorder %v57, 0
    %v306 = vsub.s32 0, %v57
    %v307 = vsel %vm305, %v306, %v57
    %v308 = vshrl.u32 %v307, 4
    %v309 = vand.u32 %v307, 15
    %v310 = vsub.s32 0, %v309
    %v311 = vsel %vm305, %v310, %v309
    %vm312 = vcmp.lt.s32.totalorder %v58, 0
    %v313 = vsub.s32 0, %v58
    %v314 = vsel %vm312, %v313, %v58
    %v315 = vshrl.u32 %v314, 4
    %v316 = vand.u32 %v314, 15
    %v317 = vsub.s32 0, %v316
    %v318 = vsel %vm312, %v317, %v316
    %vm319 = vcmp.lt.s32.totalorder %v59, 0
    %v320 = vsub.s32 0, %v59
    %v321 = vsel %vm319, %v320, %v59
    %v322 = vshrl.u32 %v321, 4
    %v323 = vand.u32 %v321, 15
    %v324 = vsub.s32 0, %v323
    %v325 = vsel %vm319, %v324, %v323
    %vm326 = vcmp.lt.s32.totalorder %v60, 0
    %v327 = vsub.s32 0, %v60
    %v328 = vsel %vm326, %v327, %v60
    %v329 = vshrl.u32 %v328, 4
    %v330 = vand.u32 %v328, 15
    %v331 = vsub.s32 0, %v330
    %v332 = vsel %vm326, %v331, %v330
    %vm333 = vcmp.lt.s32.totalorder %v61, 0
    %v334 = vsub.s32 0, %v61
    %v335 = vsel %vm333, %v334, %v61
    %v336 = vshrl.u32 %v335, 4
    %v337 = vand.u32 %v335, 15
    %v338 = vsub.s32 0, %v337
    %v339 = vsel %vm333, %v338, %v337
    %vm340 = vcmp.lt.s32.totalorder %v62, 0
    %v341 = vsub.s32 0, %v62
    %v342 = vsel %vm340, %v341, %v62
    %v343 = vshrl.u32 %v342, 4
    %v344 = vand.u32 %v342, 15
    %v345 = vsub.s32 0, %v344
    %v346 = vsel %vm340, %v345, %v344
    %vm347 = vcmp.lt.s32.totalorder %v63, 0
    %v348 = vsub.s32 0, %v63
    %v349 = vsel %vm347, %v348, %v63
    %v350 = vshrl.u32 %v349, 4
    %v351 = vand.u32 %v349, 15
    %v352 = vsub.s32 0, %v351
    %v353 = vsel %vm347, %v352, %v351
    %vm354 = vcmp.lt.s32.totalorder %v64, 0
    %v355 = vsub.s32 0, %v64
    %v356 = vsel %vm354, %v355, %v64
    %v357 = vshrl.u32 %v356, 4
    %v358 = vand.u32 %v356, 15
    %v359 = vsub.s32 0, %v358
    %v360 = vsel %vm354, %v359, %v358
    %vm361 = vcmp.lt.s32.totalorder %v65, 0
    %v362 = vsub.s32 0, %v65
    %v363 = vsel %vm361, %v362, %v65
    %v364 = vshrl.u32 %v363, 4
    %v365 = vand.u32 %v363, 15
    %v366 = vsub.s32 0, %v365
    %v367 = vsel %vm361, %v366, %v365
    %vm368 = vcmp.lt.s32.totalorder %v66, 0
    %v369 = vsub.s32 0, %v66
    %v370 = vsel %vm368, %v369, %v66
    %v371 = vshrl.u32 %v370, 4
    %v372 = vand.u32 %v370, 15
    %v373 = vsub.s32 0, %v372
    %v374 = vsel %vm368, %v373, %v372
    %vm375 = vcmp.lt.s32.totalorder %v67, 0
    %v376 = vsub.s32 0, %v67
    %v377 = vsel %vm375, %v376, %v67
    %v378 = vshrl.u32 %v377, 4
    %v379 = vand.u32 %v377, 15
    %v380 = vsub.s32 0, %v379
    %v381 = vsel %vm375, %v380, %v379
    %vm382 = vcmp.lt.s32.totalorder %v68, 0
    %v383 = vsub.s32 0, %v68
    %v384 = vsel %vm382, %v383, %v68
    %v385 = vshrl.u32 %v384, 4
    %v386 = vand.u32 %v384, 15
    %v387 = vsub.s32 0, %v386
    %v388 = vsel %vm382, %v387, %v386
    %vm389 = vcmp.lt.s32.totalorder %v69, 0
    %v390 = vsub.s32 0, %v69
    %v391 = vsel %vm389, %v390, %v69
    %v392 = vshrl.u32 %v391, 4
    %v393 = vand.u32 %v391, 15
    %v394 = vsub.s32 0, %v393
    %v395 = vsel %vm389, %v394, %v393
    %vm396 = vcmp.lt.s32.totalorder %v70, 0
    %v397 = vsub.s32 0, %v70
    %v398 = vsel %vm396, %v397, %v70
    %v399 = vshrl.u32 %v398, 4
    %v400 = vand.u32 %v398, 15
    %v401 = vsub.s32 0, %v400
    %v402 = vsel %vm396, %v401, %v400
    %vm403 = vcmp.lt.s32.totalorder %v71, 0
    %v404 = vsub.s32 0, %v71
    %v405 = vsel %vm403, %v404, %v71
    %v406 = vshrl.u32 %v405, 4
    %v407 = vand.u32 %v405, 15
    %v408 = vsub.s32 0, %v407
    %v409 = vsel %vm403, %v408, %v407
    %vm410 = vcmp.lt.s32.totalorder %v72, 0
    %v411 = vsub.s32 0, %v72
    %v412 = vsel %vm410, %v411, %v72
    %v413 = vshrl.u32 %v412, 4
    %v414 = vand.u32 %v412, 15
    %v415 = vsub.s32 0, %v414
    %v416 = vsel %vm410, %v415, %v414
    %vm417 = vcmp.lt.s32.totalorder %v73, 0
    %v418 = vsub.s32 0, %v73
    %v419 = vsel %vm417, %v418, %v73
    %v420 = vshrl.u32 %v419, 4
    %v421 = vand.u32 %v419, 15
    %v422 = vsub.s32 0, %v421
    %v423 = vsel %vm417, %v422, %v421
    %vm424 = vcmp.lt.s32.totalorder %v74, 0
    %v425 = vsub.s32 0, %v74
    %v426 = vsel %vm424, %v425, %v74
    %v427 = vshrl.u32 %v426, 4
    %v428 = vand.u32 %v426, 15
    %v429 = vsub.s32 0, %v428
    %v430 = vsel %vm424, %v429, %v428
    %vm431 = vcmp.lt.s32.totalorder %v75, 0
    %v432 = vsub.s32 0, %v75
    %v433 = vsel %vm431, %v432, %v75
    %v434 = vshrl.u32 %v433, 4
    %v435 = vand.u32 %v433, 15
    %v436 = vsub.s32 0, %v435
    %v437 = vsel %vm431, %v436, %v435
    %vm438 = vcmp.lt.s32.totalorder %v76, 0
    %v439 = vsub.s32 0, %v76
    %v440 = vsel %vm438, %v439, %v76
    %v441 = vshrl.u32 %v440, 4
    %v442 = vand.u32 %v440, 15
    %v443 = vsub.s32 0, %v442
    %v444 = vsel %vm438, %v443, %v442
    %vm445 = vcmp.lt.s32.totalorder %v77, 0
    %v446 = vsub.s32 0, %v77
    %v447 = vsel %vm445, %v446, %v77
    %v448 = vshrl.u32 %v447, 4
    %v449 = vand.u32 %v447, 15
    %v450 = vsub.s32 0, %v449
    %v451 = vsel %vm445, %v450, %v449
    %vm452 = vcmp.lt.s32.totalorder %v78, 0
    %v453 = vsub.s32 0, %v78
    %v454 = vsel %vm452, %v453, %v78
    %v455 = vshrl.u32 %v454, 4
    %v456 = vand.u32 %v454, 15
    %v457 = vsub.s32 0, %v456
    %v458 = vsel %vm452, %v457, %v456
    %vm459 = vcmp.lt.s32.totalorder %v79, 0
    %v460 = vsub.s32 0, %v79
    %v461 = vsel %vm459, %v460, %v79
    %v462 = vshrl.u32 %v461, 4
    %v463 = vand.u32 %v461, 15
    %v464 = vsub.s32 0, %v463
    %v465 = vsel %vm459, %v464, %v463
    %vm466 = vcmp.lt.s32.totalorder %v80, 0
    %v467 = vsub.s32 0, %v80
    %v468 = vsel %vm466, %v467, %v80
    %v469 = vshrl.u32 %v468, 4
    %v470 = vand.u32 %v468, 15
    %v471 = vsub.s32 0, %v470
    %v472 = vsel %vm466, %v471, %v470
    %vm473 = vcmp.lt.s32.totalorder %v81, 0
    %v474 = vsub.s32 0, %v81
    %v475 = vsel %vm473, %v474, %v81
    %v476 = vshrl.u32 %v475, 4
    %v477 = vand.u32 %v475, 15
    %v478 = vsub.s32 0, %v477
    %v479 = vsel %vm473, %v478, %v477
    %vm480 = vcmp.lt.s32.totalorder %v82, 0
    %v481 = vsub.s32 0, %v82
    %v482 = vsel %vm480, %v481, %v82
    %v483 = vshrl.u32 %v482, 4
    %v484 = vand.u32 %v482, 15
    %v485 = vsub.s32 0, %v484
    %v486 = vsel %vm480, %v485, %v484
    %vm487 = vcmp.lt.s32.totalorder %v83, 0
    %v488 = vsub.s32 0, %v83
    %v489 = vsel %vm487, %v488, %v83
    %v490 = vshrl.u32 %v489, 4
    %v491 = vand.u32 %v489, 15
    %v492 = vsub.s32 0, %v491
    %v493 = vsel %vm487, %v492, %v491
    %vm494 = vcmp.lt.s32.totalorder %v84, 0
    %v495 = vsub.s32 0, %v84
    %v496 = vsel %vm494, %v495, %v84
    %v497 = vshrl.u32 %v496, 4
    %v498 = vand.u32 %v496, 15
    %v499 = vsub.s32 0, %v498
    %v500 = vsel %vm494, %v499, %v498
    %vm501 = vcmp.lt.s32.totalorder %v85, 0
    %v502 = vsub.s32 0, %v85
    %v503 = vsel %vm501, %v502, %v85
    %v504 = vshrl.u32 %v503, 4
    %v505 = vand.u32 %v503, 15
    %v506 = vsub.s32 0, %v505
    %v507 = vsel %vm501, %v506, %v505
    %vm508 = vcmp.lt.s32.totalorder %v86, 0
    %v509 = vsub.s32 0, %v86
    %v510 = vsel %vm508, %v509, %v86
    %v511 = vshrl.u32 %v510, 4
    %v512 = vand.u32 %v510, 15
    %v513 = vsub.s32 0, %v512
    %v514 = vsel %vm508, %v513, %v512
    %vm515 = vcmp.lt.s32.totalorder %v87, 0
    %v516 = vsub.s32 0, %v87
    %v517 = vsel %vm515, %v516, %v87
    %v518 = vshrl.u32 %v517, 4
    %v519 = vand.u32 %v517, 15
    %v520 = vsub.s32 0, %v519
    %v521 = vsel %vm515, %v520, %v519
    %vm522 = vcmp.lt.s32.totalorder %v88, 0
    %v523 = vsub.s32 0, %v88
    %v524 = vsel %vm522, %v523, %v88
    %v525 = vshrl.u32 %v524, 4
    %v526 = vand.u32 %v524, 15
    %v527 = vsub.s32 0, %v526
    %v528 = vsel %vm522, %v527, %v526
    %vm529 = vcmp.lt.s32.totalorder %v89, 0
    %v530 = vsub.s32 0, %v89
    %v531 = vsel %vm529, %v530, %v89
    %v532 = vshrl.u32 %v531, 4
    %v533 = vand.u32 %v531, 15
    %v534 = vsub.s32 0, %v533
    %v535 = vsel %vm529, %v534, %v533
    %vm536 = vcmp.lt.s32.totalorder %v90, 0
    %v537 = vsub.s32 0, %v90
    %v538 = vsel %vm536, %v537, %v90
    %v539 = vshrl.u32 %v538, 4
    %v540 = vand.u32 %v538, 15
    %v541 = vsub.s32 0, %v540
    %v542 = vsel %vm536, %v541, %v540
    %vm543 = vcmp.lt.s32.totalorder %v91, 0
    %v544 = vsub.s32 0, %v91
    %v545 = vsel %vm543, %v544, %v91
    %v546 = vshrl.u32 %v545, 4
    %v547 = vand.u32 %v545, 15
    %v548 = vsub.s32 0, %v547
    %v549 = vsel %vm543, %v548, %v547
    %vm550 = vcmp.lt.s32.totalorder %v92, 0
    %v551 = vsub.s32 0, %v92
    %v552 = vsel %vm550, %v551, %v92
    %v553 = vshrl.u32 %v552, 4
    %v554 = vand.u32 %v552, 15
    %v555 = vsub.s32 0, %v554
    %v556 = vsel %vm550, %v555, %v554
    %vm557 = vcmp.lt.s32.totalorder %v93, 0
    %v558 = vsub.s32 0, %v93
    %v559 = vsel %vm557, %v558, %v93
    %v560 = vshrl.u32 %v559, 4
    %v561 = vand.u32 %v559, 15
    %v562 = vsub.s32 0, %v561
    %v563 = vsel %vm557, %v562, %v561
    %vm564 = vcmp.lt.s32.totalorder %v94, 0
    %v565 = vsub.s32 0, %v94
    %v566 = vsel %vm564, %v565, %v94
    %v567 = vshrl.u32 %v566, 4
    %v568 = vand.u32 %v566, 15
    %v569 = vsub.s32 0, %v568
    %v570 = vsel %vm564, %v569, %v568
    %vm571 = vcmp.lt.s32.totalorder %v95, 0
    %v572 = vsub.s32 0, %v95
    %v573 = vsel %vm571, %v572, %v95
    %v574 = vshrl.u32 %v573, 4
    %v575 = vand.u32 %v573, 15
    %v576 = vsub.s32 0, %v575
    %v577 = vsel %vm571, %v576, %v575
    %vm578 = vcmp.lt.s32.totalorder %v96, 0
    %v579 = vsub.s32 0, %v96
    %v580 = vsel %vm578, %v579, %v96
    %v581 = vshrl.u32 %v580, 4
    %v582 = vand.u32 %v580, 15
    %v583 = vsub.s32 0, %v582
    %v584 = vsel %vm578, %v583, %v582
    %vm585 = vcmp.lt.s32.totalorder %v97, 0
    %v586 = vsub.s32 0, %v97
    %v587 = vsel %vm585, %v586, %v97
    %v588 = vshrl.u32 %v587, 4
    %v589 = vand.u32 %v587, 15
    %v590 = vsub.s32 0, %v589
    %v591 = vsel %vm585, %v590, %v589
    %vm592 = vcmp.lt.s32.totalorder %v98, 0
    %v593 = vsub.s32 0, %v98
    %v594 = vsel %vm592, %v593, %v98
    %v595 = vshrl.u32 %v594, 4
    %v596 = vand.u32 %v594, 15
    %v597 = vsub.s32 0, %v596
    %v598 = vsel %vm592, %v597, %v596
    %vm599 = vcmp.lt.s32.totalorder %v99, 0
    %v600 = vsub.s32 0, %v99
    %v601 = vsel %vm599, %v600, %v99
    %v602 = vshrl.u32 %v601, 4
    %v603 = vand.u32 %v601, 15
    %v604 = vsub.s32 0, %v603
    %v605 = vsel %vm599, %v604, %v603
    %vm606 = vcmp.lt.s32.totalorder %v100, 0
    %v607 = vsub.s32 0, %v100
    %v608 = vsel %vm606, %v607, %v100
    %v609 = vshrl.u32 %v608, 4
    %v610 = vand.u32 %v608, 15
    %v611 = vsub.s32 0, %v610
    %v612 = vsel %vm606, %v611, %v610
    %vm613 = vcmp.lt.s32.totalorder %v101, 0
    %v614 = vsub.s32 0, %v101
    %v615 = vsel %vm613, %v614, %v101
    %v616 = vshrl.u32 %v615, 4
    %v617 = vand.u32 %v615, 15
    %v618 = vsub.s32 0, %v617
    %v619 = vsel %vm613, %v618, %v617
    %vm620 = vcmp.lt.s32.totalorder %v102, 0
    %v621 = vsub.s32 0, %v102
    %v622 = vsel %vm620, %v621, %v102
    %v623 = vshrl.u32 %v622, 4
    %v624 = vand.u32 %v622, 15
    %v625 = vsub.s32 0, %v624
    %v626 = vsel %vm620, %v625, %v624
    %vm627 = vcmp.lt.s32.totalorder %v103, 0
    %v628 = vsub.s32 0, %v103
    %v629 = vsel %vm627, %v628, %v103
    %v630 = vshrl.u32 %v629, 4
    %v631 = vand.u32 %v629, 15
    %v632 = vsub.s32 0, %v631
    %v633 = vsel %vm627, %v632, %v631
    %vm634 = vcmp.lt.s32.totalorder %v104, 0
    %v635 = vsub.s32 0, %v104
    %v636 = vsel %vm634, %v635, %v104
    %v637 = vshrl.u32 %v636, 4
    %v638 = vand.u32 %v636, 15
    %v639 = vsub.s32 0, %v638
    %v640 = vsel %vm634, %v639, %v638
    %vm641 = vcmp.lt.s32.totalorder %v105, 0
    %v642 = vsub.s32 0, %v105
    %v643 = vsel %vm641, %v642, %v105
    %v644 = vshrl.u32 %v643, 4
    %v645 = vand.u32 %v643, 15
    %v646 = vsub.s32 0, %v645
    %v647 = vsel %vm641, %v646, %v645
    %vm648 = vcmp.lt.s32.totalorder %v106, 0
    %v649 = vsub.s32 0, %v106
    %v650 = vsel %vm648, %v649, %v106
    %v651 = vshrl.u32 %v650, 4
    %v652 = vand.u32 %v650, 15
    %v653 = vsub.s32 0, %v652
    %v654 = vsel %vm648, %v653, %v652
    %vm655 = vcmp.lt.s32.totalorder %v107, 0
    %v656 = vsub.s32 0, %v107
    %v657 = vsel %vm655, %v656, %v107
    %v658 = vshrl.u32 %v657, 4
    %v659 = vand.u32 %v657, 15
    %v660 = vsub.s32 0, %v659
    %v661 = vsel %vm655, %v660, %v659
    %vm662 = vcmp.lt.s32.totalorder %v108, 0
    %v663 = vsub.s32 0, %v108
    %v664 = vsel %vm662, %v663, %v108
    %v665 = vshrl.u32 %v664, 4
    %v666 = vand.u32 %v664, 15
    %v667 = vsub.s32 0, %v666
    %v668 = vsel %vm662, %v667, %v666
    %vm669 = vcmp.lt.s32.totalorder %v109, 0
    %v670 = vsub.s32 0, %v109
    %v671 = vsel %vm669, %v670, %v109
    %v672 = vshrl.u32 %v671, 4
    %v673 = vand.u32 %v671, 15
    %v674 = vsub.s32 0, %v673
    %v675 = vsel %vm669, %v674, %v673
    %vm676 = vcmp.lt.s32.totalorder %v110, 0
    %v677 = vsub.s32 0, %v110
    %v678 = vsel %vm676, %v677, %v110
    %v679 = vshrl.u32 %v678, 4
    %v680 = vand.u32 %v678, 15
    %v681 = vsub.s32 0, %v680
    %v682 = vsel %vm676, %v681, %v680
    %vm683 = vcmp.lt.s32.totalorder %v111, 0
    %v684 = vsub.s32 0, %v111
    %v685 = vsel %vm683, %v684, %v111
    %v686 = vshrl.u32 %v685, 4
    %v687 = vand.u32 %v685, 15
    %v688 = vsub.s32 0, %v687
    %v689 = vsel %vm683, %v688, %v687
    %vm690 = vcmp.lt.s32.totalorder %v112, 0
    %v691 = vsub.s32 0, %v112
    %v692 = vsel %vm690, %v691, %v112
    %v693 = vshrl.u32 %v692, 4
    %v694 = vand.u32 %v692, 15
    %v695 = vsub.s32 0, %v694
    %v696 = vsel %vm690, %v695, %v694
    %vm697 = vcmp.lt.s32.totalorder %v113, 0
    %v698 = vsub.s32 0, %v113
    %v699 = vsel %vm697, %v698, %v113
    %v700 = vshrl.u32 %v699, 4
    %v701 = vand.u32 %v699, 15
    %v702 = vsub.s32 0, %v701
    %v703 = vsel %vm697, %v702, %v701
    %vm704 = vcmp.lt.s32.totalorder %v114, 0
    %v705 = vsub.s32 0, %v114
    %v706 = vsel %vm704, %v705, %v114
    %v707 = vshrl.u32 %v706, 4
    %v708 = vand.u32 %v706, 15
    %v709 = vsub.s32 0, %v708
    %v710 = vsel %vm704, %v709, %v708
    %vm711 = vcmp.lt.s32.totalorder %v115, 0
    %v712 = vsub.s32 0, %v115
    %v713 = vsel %vm711, %v712, %v115
    %v714 = vshrl.u32 %v713, 4
    %v715 = vand.u32 %v713, 15
    %v716 = vsub.s32 0, %v715
    %v717 = vsel %vm711, %v716, %v715
    %vm718 = vcmp.lt.s32.totalorder %v116, 0
    %v719 = vsub.s32 0, %v116
    %v720 = vsel %vm718, %v719, %v116
    %v721 = vshrl.u32 %v720, 4
    %v722 = vand.u32 %v720, 15
    %v723 = vsub.s32 0, %v722
    %v724 = vsel %vm718, %v723, %v722
    %vm725 = vcmp.lt.s32.totalorder %v117, 0
    %v726 = vsub.s32 0, %v117
    %v727 = vsel %vm725, %v726, %v117
    %v728 = vshrl.u32 %v727, 4
    %v729 = vand.u32 %v727, 15
    %v730 = vsub.s32 0, %v729
    %v731 = vsel %vm725, %v730, %v729
    %vm732 = vcmp.lt.s32.totalorder %v118, 0
    %v733 = vsub.s32 0, %v118
    %v734 = vsel %vm732, %v733, %v118
    %v735 = vshrl.u32 %v734, 4
    %v736 = vand.u32 %v734, 15
    %v737 = vsub.s32 0, %v736
    %v738 = vsel %vm732, %v737, %v736
    %vm739 = vcmp.lt.s32.totalorder %v119, 0
    %v740 = vsub.s32 0, %v119
    %v741 = vsel %vm739, %v740, %v119
    %v742 = vshrl.u32 %v741, 4
    %v743 = vand.u32 %v741, 15
    %v744 = vsub.s32 0, %v743
    %v745 = vsel %vm739, %v744, %v743
    %vm746 = vcmp.lt.s32.totalorder %v120, 0
    %v747 = vsub.s32 0, %v120
    %v748 = vsel %vm746, %v747, %v120
    %v749 = vshrl.u32 %v748, 4
    %v750 = vand.u32 %v748, 15
    %v751 = vsub.s32 0, %v750
    %v752 = vsel %vm746, %v751, %v750
    %vm753 = vcmp.lt.s32.totalorder %v121, 0
    %v754 = vsub.s32 0, %v121
    %v755 = vsel %vm753, %v754, %v121
    %v756 = vshrl.u32 %v755, 4
    %v757 = vand.u32 %v755, 15
    %v758 = vsub.s32 0, %v757
    %v759 = vsel %vm753, %v758, %v757
    %vm760 = vcmp.lt.s32.totalorder %v122, 0
    %v761 = vsub.s32 0, %v122
    %v762 = vsel %vm760, %v761, %v122
    %v763 = vshrl.u32 %v762, 4
    %v764 = vand.u32 %v762, 15
    %v765 = vsub.s32 0, %v764
    %v766 = vsel %vm760, %v765, %v764
    %vm767 = vcmp.lt.s32.totalorder %v123, 0
    %v768 = vsub.s32 0, %v123
    %v769 = vsel %vm767, %v768, %v123
    %v770 = vshrl.u32 %v769, 4
    %v771 = vand.u32 %v769, 15
    %v772 = vsub.s32 0, %v771
    %v773 = vsel %vm767, %v772, %v771
    %vm774 = vcmp.lt.s32.totalorder %v124, 0
    %v775 = vsub.s32 0, %v124
    %v776 = vsel %vm774, %v775, %v124
    %v777 = vshrl.u32 %v776, 4
    %v778 = vand.u32 %v776, 15
    %v779 = vsub.s32 0, %v778
    %v780 = vsel %vm774, %v779, %v778
    %vm781 = vcmp.lt.s32.totalorder %v125, 0
    %v782 = vsub.s32 0, %v125
    %v783 = vsel %vm781, %v782, %v125
    %v784 = vshrl.u32 %v783, 4
    %v785 = vand.u32 %v783, 15
    %v786 = vsub.s32 0, %v785
    %v787 = vsel %vm781, %v786, %v785
    %vm788 = vcmp.lt.s32.totalorder %v126, 0
    %v789 = vsub.s32 0, %v126
    %v790 = vsel %vm788, %v789, %v126
    %v791 = vshrl.u32 %v790, 4
    %v792 = vand.u32 %v790, 15
    %v793 = vsub.s32 0, %v792
    %v794 = vsel %vm788, %v793, %v792
    %vm795 = vcmp.lt.s32.totalorder %v127, 0
    %v796 = vsub.s32 0, %v127
    %v797 = vsel %vm795, %v796, %v127
    %v798 = vshrl.u32 %v797, 4
    %v799 = vand.u32 %v797, 15
    %v800 = vsub.s32 0, %v799
    %v801 = vsel %vm795, %v800, %v799
    %vm802 = vcmp.lt.s32.totalorder %v128, 0
    %v803 = vsub.s32 0, %v128
    %v804 = vsel %vm802, %v803, %v128
    %v805 = vshrl.u32 %v804, 4
    %v806 = vand.u32 %v804, 15
    %v807 = vsub.s32 0, %v806
    %v808 = vsel %vm802, %v807, %v806
    %vm809 = vcmp.lt.s32.totalorder %v129, 0
    %v810 = vsub.s32 0, %v129
    %v811 = vsel %vm809, %v810, %v129
    %v812 = vshrl.u32 %v811, 4
    %v813 = vand.u32 %v811, 15
    %v814 = vsub.s32 0, %v813
    %v815 = vsel %vm809, %v814, %v813
    %vm816 = vcmp.lt.s32.totalorder %v130, 0
    %v817 = vsub.s32 0, %v130
    %v818 = vsel %vm816, %v817, %v130
    %v819 = vshrl.u32 %v818, 4
    %v820 = vand.u32 %v818, 15
    %v821 = vsub.s32 0, %v820
    %v822 = vsel %vm816, %v821, %v820
    %vm823 = vcmp.lt.s32.totalorder %v131, 0
    %v824 = vsub.s32 0, %v131
    %v825 = vsel %vm823, %v824, %v131
    %v826 = vshrl.u32 %v825, 4
    %v827 = vand.u32 %v825, 15
    %v828 = vsub.s32 0, %v827
    %v829 = vsel %vm823, %v828, %v827
    %vm830 = vcmp.lt.s32.totalorder %v132, 0
    %v831 = vsub.s32 0, %v132
    %v832 = vsel %vm830, %v831, %v132
    %v833 = vshrl.u32 %v832, 4
    %v834 = vand.u32 %v832, 15
    %v835 = vsub.s32 0, %v834
    %v836 = vsel %vm830, %v835, %v834
    %vm837 = vcmp.lt.s32.totalorder %v133, 0
    %v838 = vsub.s32 0, %v133
    %v839 = vsel %vm837, %v838, %v133
    %v840 = vshrl.u32 %v839, 4
    %v841 = vand.u32 %v839, 15
    %v842 = vsub.s32 0, %v841
    %v843 = vsel %vm837, %v842, %v841
    %vm844 = vcmp.lt.s32.totalorder %v134, 0
    %v845 = vsub.s32 0, %v134
    %v846 = vsel %vm844, %v845, %v134
    %v847 = vshrl.u32 %v846, 4
    %v848 = vand.u32 %v846, 15
    %v849 = vsub.s32 0, %v848
    %v850 = vsel %vm844, %v849, %v848
    %vm851 = vcmp.lt.s32.totalorder %v135, 0
    %v852 = vsub.s32 0, %v135
    %v853 = vsel %vm851, %v852, %v135
    %v854 = vshrl.u32 %v853, 4
    %v855 = vand.u32 %v853, 15
    %v856 = vsub.s32 0, %v855
    %v857 = vsel %vm851, %v856, %v855
    %vm858 = vcmp.lt.s32.totalorder %v136, 0
    %v859 = vsub.s32 0, %v136
    %v860 = vsel %vm858, %v859, %v136
    %v861 = vshrl.u32 %v860, 4
    %v862 = vand.u32 %v860, 15
    %v863 = vsub.s32 0, %v862
    %v864 = vsel %vm858, %v863, %v862
    %vm865 = vcmp.lt.s32.totalorder %v137, 0
    %v866 = vsub.s32 0, %v137
    %v867 = vsel %vm865, %v866, %v137
    %v868 = vshrl.u32 %v867, 4
    %v869 = vand.u32 %v867, 15
    %v870 = vsub.s32 0, %v869
    %v871 = vsel %vm865, %v870, %v869
    %vm872 = vcmp.lt.s32.totalorder %v138, 0
    %v873 = vsub.s32 0, %v138
    %v874 = vsel %vm872, %v873, %v138
    %v875 = vshrl.u32 %v874, 4
    %v876 = vand.u32 %v874, 15
    %v877 = vsub.s32 0, %v876
    %v878 = vsel %vm872, %v877, %v876
    %vm879 = vcmp.lt.s32.totalorder %v139, 0
    %v880 = vsub.s32 0, %v139
    %v881 = vsel %vm879, %v880, %v139
    %v882 = vshrl.u32 %v881, 4
    %v883 = vand.u32 %v881, 15
    %v884 = vsub.s32 0, %v883
    %v885 = vsel %vm879, %v884, %v883
    %vm886 = vcmp.lt.s32.totalorder %v140, 0
    %v887 = vsub.s32 0, %v140
    %v888 = vsel %vm886, %v887, %v140
    %v889 = vshrl.u32 %v888, 4
    %v890 = vand.u32 %v888, 15
    %v891 = vsub.s32 0, %v890
    %v892 = vsel %vm886, %v891, %v890
    %vm893 = vcmp.lt.s32.totalorder %v141, 0
    %v894 = vsub.s32 0, %v141
    %v895 = vsel %vm893, %v894, %v141
    %v896 = vshrl.u32 %v895, 4
    %v897 = vand.u32 %v895, 15
    %v898 = vsub.s32 0, %v897
    %v899 = vsel %vm893, %v898, %v897
    %vm900 = vcmp.lt.s32.totalorder %v142, 0
    %v901 = vsub.s32 0, %v142
    %v902 = vsel %vm900, %v901, %v142
    %v903 = vshrl.u32 %v902, 4
    %v904 = vand.u32 %v902, 15
    %v905 = vsub.s32 0, %v904
    %v906 = vsel %vm900, %v905, %v904
    %vm907 = vcmp.lt.s32.totalorder %v143, 0
    %v908 = vsub.s32 0, %v143
    %v909 = vsel %vm907, %v908, %v143
    %v910 = vshrl.u32 %v909, 4
    %v911 = vand.u32 %v909, 15
    %v912 = vsub.s32 0, %v911
    %v913 = vsel %vm907, %v912, %v911
    %vm914 = vcmp.lt.s32.totalorder %v144, 0
    %v915 = vsub.s32 0, %v144
    %v916 = vsel %vm914, %v915, %v144
    %v917 = vshrl.u32 %v916, 4
    %v918 = vand.u32 %v916, 15
    %v919 = vsub.s32 0, %v918
    %v920 = vsel %vm914, %v919, %v918
    %vm921 = vcmp.lt.s32.totalorder %v145, 0
    %v922 = vsub.s32 0, %v145
    %v923 = vsel %vm921, %v922, %v145
    %v924 = vshrl.u32 %v923, 4
    %v925 = vand.u32 %v923, 15
    %v926 = vsub.s32 0, %v925
    %v927 = vsel %vm921, %v926, %v925
    %vm928 = vcmp.lt.s32.totalorder %v146, 0
    %v929 = vsub.s32 0, %v146
    %v930 = vsel %vm928, %v929, %v146
    %v931 = vshrl.u32 %v930, 4
    %v932 = vand.u32 %v930, 15
    %v933 = vsub.s32 0, %v932
    %v934 = vsel %vm928, %v933, %v932
    %vm935 = vcmp.lt.s32.totalorder %v147, 0
    %v936 = vsub.s32 0, %v147
    %v937 = vsel %vm935, %v936, %v147
    %v938 = vshrl.u32 %v937, 4
    %v939 = vand.u32 %v937, 15
    %v940 = vsub.s32 0, %v939
    %v941 = vsel %vm935, %v940, %v939
    %vm942 = vcmp.lt.s32.totalorder %v148, 0
    %v943 = vsub.s32 0, %v148
    %v944 = vsel %vm942, %v943, %v148
    %v945 = vshrl.u32 %v944, 4
    %v946 = vand.u32 %v944, 15
    %v947 = vsub.s32 0, %v946
    %v948 = vsel %vm942, %v947, %v946
    %vm949 = vcmp.lt.s32.totalorder %v149, 0
    %v950 = vsub.s32 0, %v149
    %v951 = vsel %vm949, %v950, %v149
    %v952 = vshrl.u32 %v951, 4
    %v953 = vand.u32 %v951, 15
    %v954 = vsub.s32 0, %v953
    %v955 = vsel %vm949, %v954, %v953
    %vm956 = vcmp.lt.s32.totalorder %v150, 0
    %v957 = vsub.s32 0, %v150
    %v958 = vsel %vm956, %v957, %v150
    %v959 = vshrl.u32 %v958, 4
    %v960 = vand.u32 %v958, 15
    %v961 = vsub.s32 0, %v960
    %v962 = vsel %vm956, %v961, %v960
    %vm963 = vcmp.lt.s32.totalorder %v151, 0
    %v964 = vsub.s32 0, %v151
    %v965 = vsel %vm963, %v964, %v151
    %v966 = vshrl.u32 %v965, 4
    %v967 = vand.u32 %v965, 15
    %v968 = vsub.s32 0, %v967
    %v969 = vsel %vm963, %v968, %v967
    %vm970 = vcmp.lt.s32.totalorder %v152, 0
    %v971 = vsub.s32 0, %v152
    %v972 = vsel %vm970, %v971, %v152
    %v973 = vshrl.u32 %v972, 4
    %v974 = vand.u32 %v972, 15
    %v975 = vsub.s32 0, %v974
    %v976 = vsel %vm970, %v975, %v974
    %vm977 = vcmp.lt.s32.totalorder %v153, 0
    %v978 = vsub.s32 0, %v153
    %v979 = vsel %vm977, %v978, %v153
    %v980 = vshrl.u32 %v979, 4
    %v981 = vand.u32 %v979, 15
    %v982 = vsub.s32 0, %v981
    %v983 = vsel %vm977, %v982, %v981
    %vm984 = vcmp.lt.s32.totalorder %v154, 0
    %v985 = vsub.s32 0, %v154
    %v986 = vsel %vm984, %v985, %v154
    %v987 = vshrl.u32 %v986, 4
    %v988 = vand.u32 %v986, 15
    %v989 = vsub.s32 0, %v988
    %v990 = vsel %vm984, %v989, %v988
    %vm991 = vcmp.lt.s32.totalorder %v155, 0
    %v992 = vsub.s32 0, %v155
    %v993 = vsel %vm991, %v992, %v155
    %v994 = vshrl.u32 %v993, 4
    %v995 = vand.u32 %v993, 15
    %v996 = vsub.s32 0, %v995
    %v997 = vsel %vm991, %v996, %v995
    %vm998 = vcmp.lt.s32.totalorder %v156, 0
    %v999 = vsub.s32 0, %v156
    %v1000 = vsel %vm998, %v999, %v156
    %v1001 = vshrl.u32 %v1000, 4
    %v1002 = vand.u32 %v1000, 15
    %v1003 = vsub.s32 0, %v1002
    %v1004 = vsel %vm998, %v1003, %v1002
    %vm1005 = vcmp.lt.s32.totalorder %v157, 0
    %v1006 = vsub.s32 0, %v157
    %v1007 = vsel %vm1005, %v1006, %v157
    %v1008 = vshrl.u32 %v1007, 4
    %v1009 = vand.u32 %v1007, 15
    %v1010 = vsub.s32 0, %v1009
    %v1011 = vsel %vm1005, %v1010, %v1009
    %vm1012 = vcmp.lt.s32.totalorder %v158, 0
    %v1013 = vsub.s32 0, %v158
    %v1014 = vsel %vm1012, %v1013, %v158
    %v1015 = vshrl.u32 %v1014, 4
    %v1016 = vand.u32 %v1014, 15
    %v1017 = vsub.s32 0, %v1016
    %v1018 = vsel %vm1012, %v1017, %v1016
    %vm1019 = vcmp.lt.s32.totalorder %v159, 0
    %v1020 = vsub.s32 0, %v159
    %v1021 = vsel %vm1019, %v1020, %v159
    %v1022 = vshrl.u32 %v1021, 4
    %v1023 = vand.u32 %v1021, 15
    %v1024 = vsub.s32 0, %v1023
    %v1025 = vsel %vm1019, %v1024, %v1023
    %vm1026 = vcmp.lt.s32.totalorder %v160, 0
    %v1027 = vsub.s32 0, %v160
    %v1028 = vsel %vm1026, %v1027, %v160
    %v1029 = vshrl.u32 %v1028, 4
    %v1030 = vand.u32 %v1028, 15
    %v1031 = vsub.s32 0, %v1030
    %v1032 = vsel %vm1026, %v1031, %v1030
    %vm1033 = vcmp.lt.s32.totalorder %v161, 0
    %v1034 = vsub.s32 0, %v161
    %v1035 = vsel %vm1033, %v1034, %v161
    %v1036 = vshrl.u32 %v1035, 4
    %v1037 = vand.u32 %v1035, 15
    %v1038 = vsub.s32 0, %v1037
    %v1039 = vsel %vm1033, %v1038, %v1037
    %vm1040 = vcmp.lt.s32.totalorder %v162, 0
    %v1041 = vsub.s32 0, %v162
    %v1042 = vsel %vm1040, %v1041, %v162
    %v1043 = vshrl.u32 %v1042, 4
    %v1044 = vand.u32 %v1042, 15
    %v1045 = vsub.s32 0, %v1044
    %v1046 = vsel %vm1040, %v1045, %v1044
    %vm1047 = vcmp.lt.s32.totalorder %v163, 0
    %v1048 = vsub.s32 0, %v163
    %v1049 = vsel %vm1047, %v1048, %v163
    %v1050 = vshrl.u32 %v1049, 4
    %v1051 = vand.u32 %v1049, 15
    %v1052 = vsub.s32 0, %v1051
    %v1053 = vsel %vm1047, %v1052, %v1051
    %vm1054 = vcmp.lt.s32.totalorder %v164, 0
    %v1055 = vsub.s32 0, %v164
    %v1056 = vsel %vm1054, %v1055, %v164
    %v1057 = vshrl.u32 %v1056, 4
    %v1058 = vand.u32 %v1056, 15
    %v1059 = vsub.s32 0, %v1058
    %v1060 = vsel %vm1054, %v1059, %v1058
    %vm1061 = vcmp.ne.s32.totalorder %v171, 0
    %vm1062 = vcmp.ne.s32.totalorder %v178, 0
    %vm1063 = vcmp.ne.s32.totalorder %v185, 0
    %vm1064 = vcmp.ne.s32.totalorder %v192, 0
    %vm1065 = vcmp.ne.s32.totalorder %v199, 0
    %vm1066 = vcmp.ne.s32.totalorder %v206, 0
    %vm1067 = vcmp.ne.s32.totalorder %v213, 0
    %vm1068 = vcmp.ne.s32.totalorder %v220, 0
    %vm1069 = vcmp.ne.s32.totalorder %v227, 0
    %vm1070 = vcmp.ne.s32.totalorder %v234, 0
    %vm1071 = vcmp.ne.s32.totalorder %v241, 0
    %vm1072 = vcmp.ne.s32.totalorder %v248, 0
    %vm1073 = vcmp.ne.s32.totalorder %v255, 0
    %vm1074 = vcmp.ne.s32.totalorder %v262, 0
    %vm1075 = vcmp.ne.s32.totalorder %v269, 0
    %vm1076 = vcmp.ne.s32.totalorder %v276, 0
    %vm1077 = vcmp.ne.s32.totalorder %v283, 0
    %vm1078 = vcmp.ne.s32.totalorder %v290, 0
    %vm1079 = vcmp.ne.s32.totalorder %v297, 0
    %vm1080 = vcmp.ne.s32.totalorder %v304, 0
    %vm1081 = vcmp.ne.s32.totalorder %v311, 0
    %vm1082 = vcmp.ne.s32.totalorder %v318, 0
    %vm1083 = vcmp.ne.s32.totalorder %v325, 0
    %vm1084 = vcmp.ne.s32.totalorder %v332, 0
    %vm1085 = vcmp.ne.s32.totalorder %v339, 0
    %vm1086 = vcmp.ne.s32.totalorder %v346, 0
    %vm1087 = vcmp.ne.s32.totalorder %v353, 0
    %vm1088 = vcmp.ne.s32.totalorder %v360, 0
    %vm1089 = vcmp.ne.s32.totalorder %v367, 0
    %vm1090 = vcmp.ne.s32.totalorder %v374, 0
    %vm1091 = vcmp.ne.s32.totalorder %v381, 0
    %vm1092 = vcmp.ne.s32.totalorder %v388, 0
    %vm1093 = vcmp.ne.s32.totalorder %v395, 0
    %vm1094 = vcmp.ne.s32.totalorder %v402, 0
    %vm1095 = vcmp.ne.s32.totalorder %v409, 0
    %vm1096 = vcmp.ne.s32.totalorder %v416, 0
    %vm1097 = vcmp.ne.s32.totalorder %v423, 0
    %vm1098 = vcmp.ne.s32.totalorder %v430, 0
    %vm1099 = vcmp.ne.s32.totalorder %v437, 0
    %vm1100 = vcmp.ne.s32.totalorder %v444, 0
    %vm1101 = vcmp.ne.s32.totalorder %v451, 0
    %vm1102 = vcmp.ne.s32.totalorder %v458, 0
    %vm1103 = vcmp.ne.s32.totalorder %v465, 0
    %vm1104 = vcmp.ne.s32.totalorder %v472, 0
    %vm1105 = vcmp.ne.s32.totalorder %v479, 0
    %vm1106 = vcmp.ne.s32.totalorder %v486, 0
    %vm1107 = vcmp.ne.s32.totalorder %v493, 0
    %vm1108 = vcmp.ne.s32.totalorder %v500, 0
    %vm1109 = vcmp.ne.s32.totalorder %v507, 0
    %vm1110 = vcmp.ne.s32.totalorder %v514, 0
    %vm1111 = vcmp.ne.s32.totalorder %v521, 0
    %vm1112 = vcmp.ne.s32.totalorder %v528, 0
    %vm1113 = vcmp.ne.s32.totalorder %v535, 0
    %vm1114 = vcmp.ne.s32.totalorder %v542, 0
    %vm1115 = vcmp.ne.s32.totalorder %v549, 0
    %vm1116 = vcmp.ne.s32.totalorder %v556, 0
    %vm1117 = vcmp.ne.s32.totalorder %v563, 0
    %vm1118 = vcmp.ne.s32.totalorder %v570, 0
    %vm1119 = vcmp.ne.s32.totalorder %v577, 0
    %vm1120 = vcmp.ne.s32.totalorder %v584, 0
    %vm1121 = vcmp.ne.s32.totalorder %v591, 0
    %vm1122 = vcmp.ne.s32.totalorder %v598, 0
    %vm1123 = vcmp.ne.s32.totalorder %v605, 0
    %vm1124 = vcmp.ne.s32.totalorder %v612, 0
    %vm1125 = vcmp.ne.s32.totalorder %v619, 0
    %vm1126 = vcmp.ne.s32.totalorder %v626, 0
    %vm1127 = vcmp.ne.s32.totalorder %v633, 0
    %vm1128 = vcmp.ne.s32.totalorder %v640, 0
    %vm1129 = vcmp.ne.s32.totalorder %v647, 0
    %vm1130 = vcmp.ne.s32.totalorder %v654, 0
    %vm1131 = vcmp.ne.s32.totalorder %v661, 0
    %vm1132 = vcmp.ne.s32.totalorder %v668, 0
    %vm1133 = vcmp.ne.s32.totalorder %v675, 0
    %vm1134 = vcmp.ne.s32.totalorder %v682, 0
    %vm1135 = vcmp.ne.s32.totalorder %v689, 0
    %vm1136 = vcmp.ne.s32.totalorder %v696, 0
    %vm1137 = vcmp.ne.s32.totalorder %v703, 0
    %vm1138 = vcmp.ne.s32.totalorder %v710, 0
    %vm1139 = vcmp.ne.s32.totalorder %v717, 0
    %vm1140 = vcmp.ne.s32.totalorder %v724, 0
    %vm1141 = vcmp.ne.s32.totalorder %v731, 0
    %vm1142 = vcmp.ne.s32.totalorder %v738, 0
    %vm1143 = vcmp.ne.s32.totalorder %v745, 0
    %vm1144 = vcmp.ne.s32.totalorder %v752, 0
    %vm1145 = vcmp.ne.s32.totalorder %v759, 0
    %vm1146 = vcmp.ne.s32.totalorder %v766, 0
    %vm1147 = vcmp.ne.s32.totalorder %v773, 0
    %vm1148 = vcmp.ne.s32.totalorder %v780, 0
    %vm1149 = vcmp.ne.s32.totalorder %v787, 0
    %vm1150 = vcmp.ne.s32.totalorder %v794, 0
    %vm1151 = vcmp.ne.s32.totalorder %v801, 0
    %vm1152 = vcmp.ne.s32.totalorder %v808, 0
    %vm1153 = vcmp.ne.s32.totalorder %v815, 0
    %vm1154 = vcmp.ne.s32.totalorder %v822, 0
    %vm1155 = vcmp.ne.s32.totalorder %v829, 0
    %vm1156 = vcmp.ne.s32.totalorder %v836, 0
    %vm1157 = vcmp.ne.s32.totalorder %v843, 0
    %vm1158 = vcmp.ne.s32.totalorder %v850, 0
    %vm1159 = vcmp.ne.s32.totalorder %v857, 0
    %vm1160 = vcmp.ne.s32.totalorder %v864, 0
    %vm1161 = vcmp.ne.s32.totalorder %v871, 0
    %vm1162 = vcmp.ne.s32.totalorder %v878, 0
    %vm1163 = vcmp.ne.s32.totalorder %v885, 0
    %vm1164 = vcmp.ne.s32.totalorder %v892, 0
    %vm1165 = vcmp.ne.s32.totalorder %v899, 0
    %vm1166 = vcmp.ne.s32.totalorder %v906, 0
    %vm1167 = vcmp.ne.s32.totalorder %v913, 0
    %vm1168 = vcmp.ne.s32.totalorder %v920, 0
    %vm1169 = vcmp.ne.s32.totalorder %v927, 0
    %vm1170 = vcmp.ne.s32.totalorder %v934, 0
    %vm1171 = vcmp.ne.s32.totalorder %v941, 0
    %vm1172 = vcmp.ne.s32.totalorder %v948, 0
    %vm1173 = vcmp.ne.s32.totalorder %v955, 0
    %vm1174 = vcmp.ne.s32.totalorder %v962, 0
    %vm1175 = vcmp.ne.s32.totalorder %v969, 0
    %vm1176 = vcmp.ne.s32.totalorder %v976, 0
    %vm1177 = vcmp.ne.s32.totalorder %v983, 0
    %vm1178 = vcmp.ne.s32.totalorder %v990, 0
    %vm1179 = vcmp.ne.s32.totalorder %v997, 0
    %vm1180 = vcmp.ne.s32.totalorder %v1004, 0
    %vm1181 = vcmp.ne.s32.totalorder %v1011, 0
    %vm1182 = vcmp.ne.s32.totalorder %v1018, 0
    %vm1183 = vcmp.ne.s32.totalorder %v1025, 0
    %vm1184 = vcmp.ne.s32.totalorder %v1032, 0
    %vm1185 = vcmp.ne.s32.totalorder %v1039, 0
    %vm1186 = vcmp.ne.s32.totalorder %v1046, 0
    %vm1187 = vcmp.ne.s32.totalorder %v1053, 0
    %vm1188 = vcmp.ne.s32.totalorder %v1060, 0
    %vm1189 = vcmp.lt.s32.totalorder %v171, 0
    %vm1190 = vcmp.lt.s32.totalorder %v178, 0
    %vm1191 = vcmp.lt.s32.totalorder %v185, 0
    %vm1192 = vcmp.lt.s32.totalorder %v192, 0
    %vm1193 = vcmp.lt.s32.totalorder %v199, 0
    %vm1194 = vcmp.lt.s32.totalorder %v206, 0
    %vm1195 = vcmp.lt.s32.totalorder %v213, 0
    %vm1196 = vcmp.lt.s32.totalorder %v220, 0
    %vm1197 = vcmp.lt.s32.totalorder %v227, 0
    %vm1198 = vcmp.lt.s32.totalorder %v234, 0
    %vm1199 = vcmp.lt.s32.totalorder %v241, 0
    %vm1200 = vcmp.lt.s32.totalorder %v248, 0
    %vm1201 = vcmp.lt.s32.totalorder %v255, 0
    %vm1202 = vcmp.lt.s32.totalorder %v262, 0
    %vm1203 = vcmp.lt.s32.totalorder %v269, 0
    %vm1204 = vcmp.lt.s32.totalorder %v276, 0
    %vm1205 = vcmp.lt.s32.totalorder %v283, 0
    %vm1206 = vcmp.lt.s32.totalorder %v290, 0
    %vm1207 = vcmp.lt.s32.totalorder %v297, 0
    %vm1208 = vcmp.lt.s32.totalorder %v304, 0
    %vm1209 = vcmp.lt.s32.totalorder %v311, 0
    %vm1210 = vcmp.lt.s32.totalorder %v318, 0
    %vm1211 = vcmp.lt.s32.totalorder %v325, 0
    %vm1212 = vcmp.lt.s32.totalorder %v332, 0
    %vm1213 = vcmp.lt.s32.totalorder %v339, 0
    %vm1214 = vcmp.lt.s32.totalorder %v346, 0
    %vm1215 = vcmp.lt.s32.totalorder %v353, 0
    %vm1216 = vcmp.lt.s32.totalorder %v360, 0
    %vm1217 = vcmp.lt.s32.totalorder %v367, 0
    %vm1218 = vcmp.lt.s32.totalorder %v374, 0
    %vm1219 = vcmp.lt.s32.totalorder %v381, 0
    %vm1220 = vcmp.lt.s32.totalorder %v388, 0
    %vm1221 = vcmp.lt.s32.totalorder %v395, 0
    %vm1222 = vcmp.lt.s32.totalorder %v402, 0
    %vm1223 = vcmp.lt.s32.totalorder %v409, 0
    %vm1224 = vcmp.lt.s32.totalorder %v416, 0
    %vm1225 = vcmp.lt.s32.totalorder %v423, 0
    %vm1226 = vcmp.lt.s32.totalorder %v430, 0
    %vm1227 = vcmp.lt.s32.totalorder %v437, 0
    %vm1228 = vcmp.lt.s32.totalorder %v444, 0
    %vm1229 = vcmp.lt.s32.totalorder %v451, 0
    %vm1230 = vcmp.lt.s32.totalorder %v458, 0
    %vm1231 = vcmp.lt.s32.totalorder %v465, 0
    %vm1232 = vcmp.lt.s32.totalorder %v472, 0
    %vm1233 = vcmp.lt.s32.totalorder %v479, 0
    %vm1234 = vcmp.lt.s32.totalorder %v486, 0
    %vm1235 = vcmp.lt.s32.totalorder %v493, 0
    %vm1236 = vcmp.lt.s32.totalorder %v500, 0
    %vm1237 = vcmp.lt.s32.totalorder %v507, 0
    %vm1238 = vcmp.lt.s32.totalorder %v514, 0
    %vm1239 = vcmp.lt.s32.totalorder %v521, 0
    %vm1240 = vcmp.lt.s32.totalorder %v528, 0
    %vm1241 = vcmp.lt.s32.totalorder %v535, 0
    %vm1242 = vcmp.lt.s32.totalorder %v542, 0
    %vm1243 = vcmp.lt.s32.totalorder %v549, 0
    %vm1244 = vcmp.lt.s32.totalorder %v556, 0
    %vm1245 = vcmp.lt.s32.totalorder %v563, 0
    %vm1246 = vcmp.lt.s32.totalorder %v570, 0
    %vm1247 = vcmp.lt.s32.totalorder %v577, 0
    %vm1248 = vcmp.lt.s32.totalorder %v584, 0
    %vm1249 = vcmp.lt.s32.totalorder %v591, 0
    %vm1250 = vcmp.lt.s32.totalorder %v598, 0
    %vm1251 = vcmp.lt.s32.totalorder %v605, 0
    %vm1252 = vcmp.lt.s32.totalorder %v612, 0
    %vm1253 = vcmp.lt.s32.totalorder %v619, 0
    %vm1254 = vcmp.lt.s32.totalorder %v626, 0
    %vm1255 = vcmp.lt.s32.totalorder %v633, 0
    %vm1256 = vcmp.lt.s32.totalorder %v640, 0
    %vm1257 = vcmp.lt.s32.totalorder %v647, 0
    %vm1258 = vcmp.lt.s32.totalorder %v654, 0
    %vm1259 = vcmp.lt.s32.totalorder %v661, 0
    %vm1260 = vcmp.lt.s32.totalorder %v668, 0
    %vm1261 = vcmp.lt.s32.totalorder %v675, 0
    %vm1262 = vcmp.lt.s32.totalorder %v682, 0
    %vm1263 = vcmp.lt.s32.totalorder %v689, 0
    %vm1264 = vcmp.lt.s32.totalorder %v696, 0
    %vm1265 = vcmp.lt.s32.totalorder %v703, 0
    %vm1266 = vcmp.lt.s32.totalorder %v710, 0
    %vm1267 = vcmp.lt.s32.totalorder %v717, 0
    %vm1268 = vcmp.lt.s32.totalorder %v724, 0
    %vm1269 = vcmp.lt.s32.totalorder %v731, 0
    %vm1270 = vcmp.lt.s32.totalorder %v738, 0
    %vm1271 = vcmp.lt.s32.totalorder %v745, 0
    %vm1272 = vcmp.lt.s32.totalorder %v752, 0
    %vm1273 = vcmp.lt.s32.totalorder %v759, 0
    %vm1274 = vcmp.lt.s32.totalorder %v766, 0
    %vm1275 = vcmp.lt.s32.totalorder %v773, 0
    %vm1276 = vcmp.lt.s32.totalorder %v780, 0
    %vm1277 = vcmp.lt.s32.totalorder %v787, 0
    %vm1278 = vcmp.lt.s32.totalorder %v794, 0
    %vm1279 = vcmp.lt.s32.totalorder %v801, 0
    %vm1280 = vcmp.lt.s32.totalorder %v808, 0
    %vm1281 = vcmp.lt.s32.totalorder %v815, 0
    %vm1282 = vcmp.lt.s32.totalorder %v822, 0
    %vm1283 = vcmp.lt.s32.totalorder %v829, 0
    %vm1284 = vcmp.lt.s32.totalorder %v836, 0
    %vm1285 = vcmp.lt.s32.totalorder %v843, 0
    %vm1286 = vcmp.lt.s32.totalorder %v850, 0
    %vm1287 = vcmp.lt.s32.totalorder %v857, 0
    %vm1288 = vcmp.lt.s32.totalorder %v864, 0
    %vm1289 = vcmp.lt.s32.totalorder %v871, 0
    %vm1290 = vcmp.lt.s32.totalorder %v878, 0
    %vm1291 = vcmp.lt.s32.totalorder %v885, 0
    %vm1292 = vcmp.lt.s32.totalorder %v892, 0
    %vm1293 = vcmp.lt.s32.totalorder %v899, 0
    %vm1294 = vcmp.lt.s32.totalorder %v906, 0
    %vm1295 = vcmp.lt.s32.totalorder %v913, 0
    %vm1296 = vcmp.lt.s32.totalorder %v920, 0
    %vm1297 = vcmp.lt.s32.totalorder %v927, 0
    %vm1298 = vcmp.lt.s32.totalorder %v934, 0
    %vm1299 = vcmp.lt.s32.totalorder %v941, 0
    %vm1300 = vcmp.lt.s32.totalorder %v948, 0
    %vm1301 = vcmp.lt.s32.totalorder %v955, 0
    %vm1302 = vcmp.lt.s32.totalorder %v962, 0
    %vm1303 = vcmp.lt.s32.totalorder %v969, 0
    %vm1304 = vcmp.lt.s32.totalorder %v976, 0
    %vm1305 = vcmp.lt.s32.totalorder %v983, 0
    %vm1306 = vcmp.lt.s32.totalorder %v990, 0
    %vm1307 = vcmp.lt.s32.totalorder %v997, 0
    %vm1308 = vcmp.lt.s32.totalorder %v1004, 0
    %vm1309 = vcmp.lt.s32.totalorder %v1011, 0
    %vm1310 = vcmp.lt.s32.totalorder %v1018, 0
    %vm1311 = vcmp.lt.s32.totalorder %v1025, 0
    %vm1312 = vcmp.lt.s32.totalorder %v1032, 0
    %vm1313 = vcmp.lt.s32.totalorder %v1039, 0
    %vm1314 = vcmp.lt.s32.totalorder %v1046, 0
    %vm1315 = vcmp.lt.s32.totalorder %v1053, 0
    %vm1316 = vcmp.lt.s32.totalorder %v1060, 0
    %vm1317 = vmand %vm1189, %vm1061
    %vm1318 = vmand %vm1190, %vm1062
    %vm1319 = vmand %vm1191, %vm1063
    %vm1320 = vmand %vm1192, %vm1064
    %vm1321 = vmand %vm1193, %vm1065
    %vm1322 = vmand %vm1194, %vm1066
    %vm1323 = vmand %vm1195, %vm1067
    %vm1324 = vmand %vm1196, %vm1068
    %vm1325 = vmand %vm1197, %vm1069
    %vm1326 = vmand %vm1198, %vm1070
    %vm1327 = vmand %vm1199, %vm1071
    %vm1328 = vmand %vm1200, %vm1072
    %vm1329 = vmand %vm1201, %vm1073
    %vm1330 = vmand %vm1202, %vm1074
    %vm1331 = vmand %vm1203, %vm1075
    %vm1332 = vmand %vm1204, %vm1076
    %vm1333 = vmand %vm1205, %vm1077
    %vm1334 = vmand %vm1206, %vm1078
    %vm1335 = vmand %vm1207, %vm1079
    %vm1336 = vmand %vm1208, %vm1080
    %vm1337 = vmand %vm1209, %vm1081
    %vm1338 = vmand %vm1210, %vm1082
    %vm1339 = vmand %vm1211, %vm1083
    %vm1340 = vmand %vm1212, %vm1084
    %vm1341 = vmand %vm1213, %vm1085
    %vm1342 = vmand %vm1214, %vm1086
    %vm1343 = vmand %vm1215, %vm1087
    %vm1344 = vmand %vm1216, %vm1088
    %vm1345 = vmand %vm1217, %vm1089
    %vm1346 = vmand %vm1218, %vm1090
    %vm1347 = vmand %vm1219, %vm1091
    %vm1348 = vmand %vm1220, %vm1092
    %vm1349 = vmand %vm1221, %vm1093
    %vm1350 = vmand %vm1222, %vm1094
    %vm1351 = vmand %vm1223, %vm1095
    %vm1352 = vmand %vm1224, %vm1096
    %vm1353 = vmand %vm1225, %vm1097
    %vm1354 = vmand %vm1226, %vm1098
    %vm1355 = vmand %vm1227, %vm1099
    %vm1356 = vmand %vm1228, %vm1100
    %vm1357 = vmand %vm1229, %vm1101
    %vm1358 = vmand %vm1230, %vm1102
    %vm1359 = vmand %vm1231, %vm1103
    %vm1360 = vmand %vm1232, %vm1104
    %vm1361 = vmand %vm1233, %vm1105
    %vm1362 = vmand %vm1234, %vm1106
    %vm1363 = vmand %vm1235, %vm1107
    %vm1364 = vmand %vm1236, %vm1108
    %vm1365 = vmand %vm1237, %vm1109
    %vm1366 = vmand %vm1238, %vm1110
    %vm1367 = vmand %vm1239, %vm1111
    %vm1368 = vmand %vm1240, %vm1112
    %vm1369 = vmand %vm1241, %vm1113
    %vm1370 = vmand %vm1242, %vm1114
    %vm1371 = vmand %vm1243, %vm1115
    %vm1372 = vmand %vm1244, %vm1116
    %vm1373 = vmand %vm1245, %vm1117
    %vm1374 = vmand %vm1246, %vm1118
    %vm1375 = vmand %vm1247, %vm1119
    %vm1376 = vmand %vm1248, %vm1120
    %vm1377 = vmand %vm1249, %vm1121
    %vm1378 = vmand %vm1250, %vm1122
    %vm1379 = vmand %vm1251, %vm1123
    %vm1380 = vmand %vm1252, %vm1124
    %vm1381 = vmand %vm1253, %vm1125
    %vm1382 = vmand %vm1254, %vm1126
    %vm1383 = vmand %vm1255, %vm1127
    %vm1384 = vmand %vm1256, %vm1128
    %vm1385 = vmand %vm1257, %vm1129
    %vm1386 = vmand %vm1258, %vm1130
    %vm1387 = vmand %vm1259, %vm1131
    %vm1388 = vmand %vm1260, %vm1132
    %vm1389 = vmand %vm1261, %vm1133
    %vm1390 = vmand %vm1262, %vm1134
    %vm1391 = vmand %vm1263, %vm1135
    %vm1392 = vmand %vm1264, %vm1136
    %vm1393 = vmand %vm1265, %vm1137
    %vm1394 = vmand %vm1266, %vm1138
    %vm1395 = vmand %vm1267, %vm1139
    %vm1396 = vmand %vm1268, %vm1140
    %vm1397 = vmand %vm1269, %vm1141
    %vm1398 = vmand %vm1270, %vm1142
    %vm1399 = vmand %vm1271, %vm1143
    %vm1400 = vmand %vm1272, %vm1144
    %vm1401 = vmand %vm1273, %vm1145
    %vm1402 = vmand %vm1274, %vm1146
    %vm1403 = vmand %vm1275, %vm1147
    %vm1404 = vmand %vm1276, %vm1148
    %vm1405 = vmand %vm1277, %vm1149
    %vm1406 = vmand %vm1278, %vm1150
    %vm1407 = vmand %vm1279, %vm1151
    %vm1408 = vmand %vm1280, %vm1152
    %vm1409 = vmand %vm1281, %vm1153
    %vm1410 = vmand %vm1282, %vm1154
    %vm1411 = vmand %vm1283, %vm1155
    %vm1412 = vmand %vm1284, %vm1156
    %vm1413 = vmand %vm1285, %vm1157
    %vm1414 = vmand %vm1286, %vm1158
    %vm1415 = vmand %vm1287, %vm1159
    %vm1416 = vmand %vm1288, %vm1160
    %vm1417 = vmand %vm1289, %vm1161
    %vm1418 = vmand %vm1290, %vm1162
    %vm1419 = vmand %vm1291, %vm1163
    %vm1420 = vmand %vm1292, %vm1164
    %vm1421 = vmand %vm1293, %vm1165
    %vm1422 = vmand %vm1294, %vm1166
    %vm1423 = vmand %vm1295, %vm1167
    %vm1424 = vmand %vm1296, %vm1168
    %vm1425 = vmand %vm1297, %vm1169
    %vm1426 = vmand %vm1298, %vm1170
    %vm1427 = vmand %vm1299, %vm1171
    %vm1428 = vmand %vm1300, %vm1172
    %vm1429 = vmand %vm1301, %vm1173
    %vm1430 = vmand %vm1302, %vm1174
    %vm1431 = vmand %vm1303, %vm1175
    %vm1432 = vmand %vm1304, %vm1176
    %vm1433 = vmand %vm1305, %vm1177
    %vm1434 = vmand %vm1306, %vm1178
    %vm1435 = vmand %vm1307, %vm1179
    %vm1436 = vmand %vm1308, %vm1180
    %vm1437 = vmand %vm1309, %vm1181
    %vm1438 = vmand %vm1310, %vm1182
    %vm1439 = vmand %vm1311, %vm1183
    %vm1440 = vmand %vm1312, %vm1184
    %vm1441 = vmand %vm1313, %vm1185
    %vm1442 = vmand %vm1314, %vm1186
    %vm1443 = vmand %vm1315, %vm1187
    %vm1444 = vmand %vm1316, %vm1188
    %v1445 = vadd.s32 %v171, 16
    %v1446 = vadd.s32 %v178, 16
    %v1447 = vadd.s32 %v185, 16
    %v1448 = vadd.s32 %v192, 16
    %v1449 = vadd.s32 %v199, 16
    %v1450 = vadd.s32 %v206, 16
    %v1451 = vadd.s32 %v213, 16
    %v1452 = vadd.s32 %v220, 16
    %v1453 = vadd.s32 %v227, 16
    %v1454 = vadd.s32 %v234, 16
    %v1455 = vadd.s32 %v241, 16
    %v1456 = vadd.s32 %v248, 16
    %v1457 = vadd.s32 %v255, 16
    %v1458 = vadd.s32 %v262, 16
    %v1459 = vadd.s32 %v269, 16
    %v1460 = vadd.s32 %v276, 16
    %v1461 = vadd.s32 %v283, 16
    %v1462 = vadd.s32 %v290, 16
    %v1463 = vadd.s32 %v297, 16
    %v1464 = vadd.s32 %v304, 16
    %v1465 = vadd.s32 %v311, 16
    %v1466 = vadd.s32 %v318, 16
    %v1467 = vadd.s32 %v325, 16
    %v1468 = vadd.s32 %v332, 16
    %v1469 = vadd.s32 %v339, 16
    %v1470 = vadd.s32 %v346, 16
    %v1471 = vadd.s32 %v353, 16
    %v1472 = vadd.s32 %v360, 16
    %v1473 = vadd.s32 %v367, 16
    %v1474 = vadd.s32 %v374, 16
    %v1475 = vadd.s32 %v381, 16
    %v1476 = vadd.s32 %v388, 16
    %v1477 = vadd.s32 %v395, 16
    %v1478 = vadd.s32 %v402, 16
    %v1479 = vadd.s32 %v409, 16
    %v1480 = vadd.s32 %v416, 16
    %v1481 = vadd.s32 %v423, 16
    %v1482 = vadd.s32 %v430, 16
    %v1483 = vadd.s32 %v437, 16
    %v1484 = vadd.s32 %v444, 16
    %v1485 = vadd.s32 %v451, 16
    %v1486 = vadd.s32 %v458, 16
    %v1487 = vadd.s32 %v465, 16
    %v1488 = vadd.s32 %v472, 16
    %v1489 = vadd.s32 %v479, 16
    %v1490 = vadd.s32 %v486, 16
    %v1491 = vadd.s32 %v493, 16
    %v1492 = vadd.s32 %v500, 16
    %v1493 = vadd.s32 %v507, 16
    %v1494 = vadd.s32 %v514, 16
    %v1495 = vadd.s32 %v521, 16
    %v1496 = vadd.s32 %v528, 16
    %v1497 = vadd.s32 %v535, 16
    %v1498 = vadd.s32 %v542, 16
    %v1499 = vadd.s32 %v549, 16
    %v1500 = vadd.s32 %v556, 16
    %v1501 = vadd.s32 %v563, 16
    %v1502 = vadd.s32 %v570, 16
    %v1503 = vadd.s32 %v577, 16
    %v1504 = vadd.s32 %v584, 16
    %v1505 = vadd.s32 %v591, 16
    %v1506 = vadd.s32 %v598, 16
    %v1507 = vadd.s32 %v605, 16
    %v1508 = vadd.s32 %v612, 16
    %v1509 = vadd.s32 %v619, 16
    %v1510 = vadd.s32 %v626, 16
    %v1511 = vadd.s32 %v633, 16
    %v1512 = vadd.s32 %v640, 16
    %v1513 = vadd.s32 %v647, 16
    %v1514 = vadd.s32 %v654, 16
    %v1515 = vadd.s32 %v661, 16
    %v1516 = vadd.s32 %v668, 16
    %v1517 = vadd.s32 %v675, 16
    %v1518 = vadd.s32 %v682, 16
    %v1519 = vadd.s32 %v689, 16
    %v1520 = vadd.s32 %v696, 16
    %v1521 = vadd.s32 %v703, 16
    %v1522 = vadd.s32 %v710, 16
    %v1523 = vadd.s32 %v717, 16
    %v1524 = vadd.s32 %v724, 16
    %v1525 = vadd.s32 %v731, 16
    %v1526 = vadd.s32 %v738, 16
    %v1527 = vadd.s32 %v745, 16
    %v1528 = vadd.s32 %v752, 16
    %v1529 = vadd.s32 %v759, 16
    %v1530 = vadd.s32 %v766, 16
    %v1531 = vadd.s32 %v773, 16
    %v1532 = vadd.s32 %v780, 16
    %v1533 = vadd.s32 %v787, 16
    %v1534 = vadd.s32 %v794, 16
    %v1535 = vadd.s32 %v801, 16
    %v1536 = vadd.s32 %v808, 16
    %v1537 = vadd.s32 %v815, 16
    %v1538 = vadd.s32 %v822, 16
    %v1539 = vadd.s32 %v829, 16
    %v1540 = vadd.s32 %v836, 16
    %v1541 = vadd.s32 %v843, 16
    %v1542 = vadd.s32 %v850, 16
    %v1543 = vadd.s32 %v857, 16
    %v1544 = vadd.s32 %v864, 16
    %v1545 = vadd.s32 %v871, 16
    %v1546 = vadd.s32 %v878, 16
    %v1547 = vadd.s32 %v885, 16
    %v1548 = vadd.s32 %v892, 16
    %v1549 = vadd.s32 %v899, 16
    %v1550 = vadd.s32 %v906, 16
    %v1551 = vadd.s32 %v913, 16
    %v1552 = vadd.s32 %v920, 16
    %v1553 = vadd.s32 %v927, 16
    %v1554 = vadd.s32 %v934, 16
    %v1555 = vadd.s32 %v941, 16
    %v1556 = vadd.s32 %v948, 16
    %v1557 = vadd.s32 %v955, 16
    %v1558 = vadd.s32 %v962, 16
    %v1559 = vadd.s32 %v969, 16
    %v1560 = vadd.s32 %v976, 16
    %v1561 = vadd.s32 %v983, 16
    %v1562 = vadd.s32 %v990, 16
    %v1563 = vadd.s32 %v997, 16
    %v1564 = vadd.s32 %v1004, 16
    %v1565 = vadd.s32 %v1011, 16
    %v1566 = vadd.s32 %v1018, 16
    %v1567 = vadd.s32 %v1025, 16
    %v1568 = vadd.s32 %v1032, 16
    %v1569 = vadd.s32 %v1039, 16
    %v1570 = vadd.s32 %v1046, 16
    %v1571 = vadd.s32 %v1053, 16
    %v1572 = vadd.s32 %v1060, 16
    %v1573 = vsel %vm1317, %v1445, %v171
    %v1574 = vsel %vm1318, %v1446, %v178
    %v1575 = vsel %vm1319, %v1447, %v185
    %v1576 = vsel %vm1320, %v1448, %v192
    %v1577 = vsel %vm1321, %v1449, %v199
    %v1578 = vsel %vm1322, %v1450, %v206
    %v1579 = vsel %vm1323, %v1451, %v213
    %v1580 = vsel %vm1324, %v1452, %v220
    %v1581 = vsel %vm1325, %v1453, %v227
    %v1582 = vsel %vm1326, %v1454, %v234
    %v1583 = vsel %vm1327, %v1455, %v241
    %v1584 = vsel %vm1328, %v1456, %v248
    %v1585 = vsel %vm1329, %v1457, %v255
    %v1586 = vsel %vm1330, %v1458, %v262
    %v1587 = vsel %vm1331, %v1459, %v269
    %v1588 = vsel %vm1332, %v1460, %v276
    %v1589 = vsel %vm1333, %v1461, %v283
    %v1590 = vsel %vm1334, %v1462, %v290
    %v1591 = vsel %vm1335, %v1463, %v297
    %v1592 = vsel %vm1336, %v1464, %v304
    %v1593 = vsel %vm1337, %v1465, %v311
    %v1594 = vsel %vm1338, %v1466, %v318
    %v1595 = vsel %vm1339, %v1467, %v325
    %v1596 = vsel %vm1340, %v1468, %v332
    %v1597 = vsel %vm1341, %v1469, %v339
    %v1598 = vsel %vm1342, %v1470, %v346
    %v1599 = vsel %vm1343, %v1471, %v353
    %v1600 = vsel %vm1344, %v1472, %v360
    %v1601 = vsel %vm1345, %v1473, %v367
    %v1602 = vsel %vm1346, %v1474, %v374
    %v1603 = vsel %vm1347, %v1475, %v381
    %v1604 = vsel %vm1348, %v1476, %v388
    %v1605 = vsel %vm1349, %v1477, %v395
    %v1606 = vsel %vm1350, %v1478, %v402
    %v1607 = vsel %vm1351, %v1479, %v409
    %v1608 = vsel %vm1352, %v1480, %v416
    %v1609 = vsel %vm1353, %v1481, %v423
    %v1610 = vsel %vm1354, %v1482, %v430
    %v1611 = vsel %vm1355, %v1483, %v437
    %v1612 = vsel %vm1356, %v1484, %v444
    %v1613 = vsel %vm1357, %v1485, %v451
    %v1614 = vsel %vm1358, %v1486, %v458
    %v1615 = vsel %vm1359, %v1487, %v465
    %v1616 = vsel %vm1360, %v1488, %v472
    %v1617 = vsel %vm1361, %v1489, %v479
    %v1618 = vsel %vm1362, %v1490, %v486
    %v1619 = vsel %vm1363, %v1491, %v493
    %v1620 = vsel %vm1364, %v1492, %v500
    %v1621 = vsel %vm1365, %v1493, %v507
    %v1622 = vsel %vm1366, %v1494, %v514
    %v1623 = vsel %vm1367, %v1495, %v521
    %v1624 = vsel %vm1368, %v1496, %v528
    %v1625 = vsel %vm1369, %v1497, %v535
    %v1626 = vsel %vm1370, %v1498, %v542
    %v1627 = vsel %vm1371, %v1499, %v549
    %v1628 = vsel %vm1372, %v1500, %v556
    %v1629 = vsel %vm1373, %v1501, %v563
    %v1630 = vsel %vm1374, %v1502, %v570
    %v1631 = vsel %vm1375, %v1503, %v577
    %v1632 = vsel %vm1376, %v1504, %v584
    %v1633 = vsel %vm1377, %v1505, %v591
    %v1634 = vsel %vm1378, %v1506, %v598
    %v1635 = vsel %vm1379, %v1507, %v605
    %v1636 = vsel %vm1380, %v1508, %v612
    %v1637 = vsel %vm1381, %v1509, %v619
    %v1638 = vsel %vm1382, %v1510, %v626
    %v1639 = vsel %vm1383, %v1511, %v633
    %v1640 = vsel %vm1384, %v1512, %v640
    %v1641 = vsel %vm1385, %v1513, %v647
    %v1642 = vsel %vm1386, %v1514, %v654
    %v1643 = vsel %vm1387, %v1515, %v661
    %v1644 = vsel %vm1388, %v1516, %v668
    %v1645 = vsel %vm1389, %v1517, %v675
    %v1646 = vsel %vm1390, %v1518, %v682
    %v1647 = vsel %vm1391, %v1519, %v689
    %v1648 = vsel %vm1392, %v1520, %v696
    %v1649 = vsel %vm1393, %v1521, %v703
    %v1650 = vsel %vm1394, %v1522, %v710
    %v1651 = vsel %vm1395, %v1523, %v717
    %v1652 = vsel %vm1396, %v1524, %v724
    %v1653 = vsel %vm1397, %v1525, %v731
    %v1654 = vsel %vm1398, %v1526, %v738
    %v1655 = vsel %vm1399, %v1527, %v745
    %v1656 = vsel %vm1400, %v1528, %v752
    %v1657 = vsel %vm1401, %v1529, %v759
    %v1658 = vsel %vm1402, %v1530, %v766
    %v1659 = vsel %vm1403, %v1531, %v773
    %v1660 = vsel %vm1404, %v1532, %v780
    %v1661 = vsel %vm1405, %v1533, %v787
    %v1662 = vsel %vm1406, %v1534, %v794
    %v1663 = vsel %vm1407, %v1535, %v801
    %v1664 = vsel %vm1408, %v1536, %v808
    %v1665 = vsel %vm1409, %v1537, %v815
    %v1666 = vsel %vm1410, %v1538, %v822
    %v1667 = vsel %vm1411, %v1539, %v829
    %v1668 = vsel %vm1412, %v1540, %v836
    %v1669 = vsel %vm1413, %v1541, %v843
    %v1670 = vsel %vm1414, %v1542, %v850
    %v1671 = vsel %vm1415, %v1543, %v857
    %v1672 = vsel %vm1416, %v1544, %v864
    %v1673 = vsel %vm1417, %v1545, %v871
    %v1674 = vsel %vm1418, %v1546, %v878
    %v1675 = vsel %vm1419, %v1547, %v885
    %v1676 = vsel %vm1420, %v1548, %v892
    %v1677 = vsel %vm1421, %v1549, %v899
    %v1678 = vsel %vm1422, %v1550, %v906
    %v1679 = vsel %vm1423, %v1551, %v913
    %v1680 = vsel %vm1424, %v1552, %v920
    %v1681 = vsel %vm1425, %v1553, %v927
    %v1682 = vsel %vm1426, %v1554, %v934
    %v1683 = vsel %vm1427, %v1555, %v941
    %v1684 = vsel %vm1428, %v1556, %v948
    %v1685 = vsel %vm1429, %v1557, %v955
    %v1686 = vsel %vm1430, %v1558, %v962
    %v1687 = vsel %vm1431, %v1559, %v969
    %v1688 = vsel %vm1432, %v1560, %v976
    %v1689 = vsel %vm1433, %v1561, %v983
    %v1690 = vsel %vm1434, %v1562, %v990
    %v1691 = vsel %vm1435, %v1563, %v997
    %v1692 = vsel %vm1436, %v1564, %v1004
    %v1693 = vsel %vm1437, %v1565, %v1011
    %v1694 = vsel %vm1438, %v1566, %v1018
    %v1695 = vsel %vm1439, %v1567, %v1025
    %v1696 = vsel %vm1440, %v1568, %v1032
    %v1697 = vsel %vm1441, %v1569, %v1039
    %v1698 = vsel %vm1442, %v1570, %v1046
    %v1699 = vsel %vm1443, %v1571, %v1053
    %v1700 = vsel %vm1444, %v1572, %v1060
    %vm1701 = vcmp.ge.s32.totalorder %v1573, 1
    %vm1702 = vcmp.ge.s32.totalorder %v1574, 1
    %vm1703 = vcmp.ge.s32.totalorder %v1575, 1
    %vm1704 = vcmp.ge.s32.totalorder %v1576, 1
    %vm1705 = vcmp.ge.s32.totalorder %v1577, 1
    %vm1706 = vcmp.ge.s32.totalorder %v1578, 1
    %vm1707 = vcmp.ge.s32.totalorder %v1579, 1
    %vm1708 = vcmp.ge.s32.totalorder %v1580, 1
    %vm1709 = vcmp.ge.s32.totalorder %v1581, 1
    %vm1710 = vcmp.ge.s32.totalorder %v1582, 1
    %vm1711 = vcmp.ge.s32.totalorder %v1583, 1
    %vm1712 = vcmp.ge.s32.totalorder %v1584, 1
    %vm1713 = vcmp.ge.s32.totalorder %v1585, 1
    %vm1714 = vcmp.ge.s32.totalorder %v1586, 1
    %vm1715 = vcmp.ge.s32.totalorder %v1587, 1
    %vm1716 = vcmp.ge.s32.totalorder %v1588, 1
    %vm1717 = vcmp.ge.s32.totalorder %v1589, 1
    %vm1718 = vcmp.ge.s32.totalorder %v1590, 1
    %vm1719 = vcmp.ge.s32.totalorder %v1591, 1
    %vm1720 = vcmp.ge.s32.totalorder %v1592, 1
    %vm1721 = vcmp.ge.s32.totalorder %v1593, 1
    %vm1722 = vcmp.ge.s32.totalorder %v1594, 1
    %vm1723 = vcmp.ge.s32.totalorder %v1595, 1
    %vm1724 = vcmp.ge.s32.totalorder %v1596, 1
    %vm1725 = vcmp.ge.s32.totalorder %v1597, 1
    %vm1726 = vcmp.ge.s32.totalorder %v1598, 1
    %vm1727 = vcmp.ge.s32.totalorder %v1599, 1
    %vm1728 = vcmp.ge.s32.totalorder %v1600, 1
    %vm1729 = vcmp.ge.s32.totalorder %v1601, 1
    %vm1730 = vcmp.ge.s32.totalorder %v1602, 1
    %vm1731 = vcmp.ge.s32.totalorder %v1603, 1
    %vm1732 = vcmp.ge.s32.totalorder %v1604, 1
    %vm1733 = vcmp.ge.s32.totalorder %v1605, 1
    %vm1734 = vcmp.ge.s32.totalorder %v1606, 1
    %vm1735 = vcmp.ge.s32.totalorder %v1607, 1
    %vm1736 = vcmp.ge.s32.totalorder %v1608, 1
    %vm1737 = vcmp.ge.s32.totalorder %v1609, 1
    %vm1738 = vcmp.ge.s32.totalorder %v1610, 1
    %vm1739 = vcmp.ge.s32.totalorder %v1611, 1
    %vm1740 = vcmp.ge.s32.totalorder %v1612, 1
    %vm1741 = vcmp.ge.s32.totalorder %v1613, 1
    %vm1742 = vcmp.ge.s32.totalorder %v1614, 1
    %vm1743 = vcmp.ge.s32.totalorder %v1615, 1
    %vm1744 = vcmp.ge.s32.totalorder %v1616, 1
    %vm1745 = vcmp.ge.s32.totalorder %v1617, 1
    %vm1746 = vcmp.ge.s32.totalorder %v1618, 1
    %vm1747 = vcmp.ge.s32.totalorder %v1619, 1
    %vm1748 = vcmp.ge.s32.totalorder %v1620, 1
    %vm1749 = vcmp.ge.s32.totalorder %v1621, 1
    %vm1750 = vcmp.ge.s32.totalorder %v1622, 1
    %vm1751 = vcmp.ge.s32.totalorder %v1623, 1
    %vm1752 = vcmp.ge.s32.totalorder %v1624, 1
    %vm1753 = vcmp.ge.s32.totalorder %v1625, 1
    %vm1754 = vcmp.ge.s32.totalorder %v1626, 1
    %vm1755 = vcmp.ge.s32.totalorder %v1627, 1
    %vm1756 = vcmp.ge.s32.totalorder %v1628, 1
    %vm1757 = vcmp.ge.s32.totalorder %v1629, 1
    %vm1758 = vcmp.ge.s32.totalorder %v1630, 1
    %vm1759 = vcmp.ge.s32.totalorder %v1631, 1
    %vm1760 = vcmp.ge.s32.totalorder %v1632, 1
    %vm1761 = vcmp.ge.s32.totalorder %v1633, 1
    %vm1762 = vcmp.ge.s32.totalorder %v1634, 1
    %vm1763 = vcmp.ge.s32.totalorder %v1635, 1
    %vm1764 = vcmp.ge.s32.totalorder %v1636, 1
    %vm1765 = vcmp.ge.s32.totalorder %v1637, 1
    %vm1766 = vcmp.ge.s32.totalorder %v1638, 1
    %vm1767 = vcmp.ge.s32.totalorder %v1639, 1
    %vm1768 = vcmp.ge.s32.totalorder %v1640, 1
    %vm1769 = vcmp.ge.s32.totalorder %v1641, 1
    %vm1770 = vcmp.ge.s32.totalorder %v1642, 1
    %vm1771 = vcmp.ge.s32.totalorder %v1643, 1
    %vm1772 = vcmp.ge.s32.totalorder %v1644, 1
    %vm1773 = vcmp.ge.s32.totalorder %v1645, 1
    %vm1774 = vcmp.ge.s32.totalorder %v1646, 1
    %vm1775 = vcmp.ge.s32.totalorder %v1647, 1
    %vm1776 = vcmp.ge.s32.totalorder %v1648, 1
    %vm1777 = vcmp.ge.s32.totalorder %v1649, 1
    %vm1778 = vcmp.ge.s32.totalorder %v1650, 1
    %vm1779 = vcmp.ge.s32.totalorder %v1651, 1
    %vm1780 = vcmp.ge.s32.totalorder %v1652, 1
    %vm1781 = vcmp.ge.s32.totalorder %v1653, 1
    %vm1782 = vcmp.ge.s32.totalorder %v1654, 1
    %vm1783 = vcmp.ge.s32.totalorder %v1655, 1
    %vm1784 = vcmp.ge.s32.totalorder %v1656, 1
    %vm1785 = vcmp.ge.s32.totalorder %v1657, 1
    %vm1786 = vcmp.ge.s32.totalorder %v1658, 1
    %vm1787 = vcmp.ge.s32.totalorder %v1659, 1
    %vm1788 = vcmp.ge.s32.totalorder %v1660, 1
    %vm1789 = vcmp.ge.s32.totalorder %v1661, 1
    %vm1790 = vcmp.ge.s32.totalorder %v1662, 1
    %vm1791 = vcmp.ge.s32.totalorder %v1663, 1
    %vm1792 = vcmp.ge.s32.totalorder %v1664, 1
    %vm1793 = vcmp.ge.s32.totalorder %v1665, 1
    %vm1794 = vcmp.ge.s32.totalorder %v1666, 1
    %vm1795 = vcmp.ge.s32.totalorder %v1667, 1
    %vm1796 = vcmp.ge.s32.totalorder %v1668, 1
    %vm1797 = vcmp.ge.s32.totalorder %v1669, 1
    %vm1798 = vcmp.ge.s32.totalorder %v1670, 1
    %vm1799 = vcmp.ge.s32.totalorder %v1671, 1
    %vm1800 = vcmp.ge.s32.totalorder %v1672, 1
    %vm1801 = vcmp.ge.s32.totalorder %v1673, 1
    %vm1802 = vcmp.ge.s32.totalorder %v1674, 1
    %vm1803 = vcmp.ge.s32.totalorder %v1675, 1
    %vm1804 = vcmp.ge.s32.totalorder %v1676, 1
    %vm1805 = vcmp.ge.s32.totalorder %v1677, 1
    %vm1806 = vcmp.ge.s32.totalorder %v1678, 1
    %vm1807 = vcmp.ge.s32.totalorder %v1679, 1
    %vm1808 = vcmp.ge.s32.totalorder %v1680, 1
    %vm1809 = vcmp.ge.s32.totalorder %v1681, 1
    %vm1810 = vcmp.ge.s32.totalorder %v1682, 1
    %vm1811 = vcmp.ge.s32.totalorder %v1683, 1
    %vm1812 = vcmp.ge.s32.totalorder %v1684, 1
    %vm1813 = vcmp.ge.s32.totalorder %v1685, 1
    %vm1814 = vcmp.ge.s32.totalorder %v1686, 1
    %vm1815 = vcmp.ge.s32.totalorder %v1687, 1
    %vm1816 = vcmp.ge.s32.totalorder %v1688, 1
    %vm1817 = vcmp.ge.s32.totalorder %v1689, 1
    %vm1818 = vcmp.ge.s32.totalorder %v1690, 1
    %vm1819 = vcmp.ge.s32.totalorder %v1691, 1
    %vm1820 = vcmp.ge.s32.totalorder %v1692, 1
    %vm1821 = vcmp.ge.s32.totalorder %v1693, 1
    %vm1822 = vcmp.ge.s32.totalorder %v1694, 1
    %vm1823 = vcmp.ge.s32.totalorder %v1695, 1
    %vm1824 = vcmp.ge.s32.totalorder %v1696, 1
    %vm1825 = vcmp.ge.s32.totalorder %v1697, 1
    %vm1826 = vcmp.ge.s32.totalorder %v1698, 1
    %vm1827 = vcmp.ge.s32.totalorder %v1699, 1
    %vm1828 = vcmp.ge.s32.totalorder %v1700, 1
    %vm1829 = vcmp.le.s32.totalorder %v1573, 15
    %vm1830 = vcmp.le.s32.totalorder %v1574, 15
    %vm1831 = vcmp.le.s32.totalorder %v1575, 15
    %vm1832 = vcmp.le.s32.totalorder %v1576, 15
    %vm1833 = vcmp.le.s32.totalorder %v1577, 15
    %vm1834 = vcmp.le.s32.totalorder %v1578, 15
    %vm1835 = vcmp.le.s32.totalorder %v1579, 15
    %vm1836 = vcmp.le.s32.totalorder %v1580, 15
    %vm1837 = vcmp.le.s32.totalorder %v1581, 15
    %vm1838 = vcmp.le.s32.totalorder %v1582, 15
    %vm1839 = vcmp.le.s32.totalorder %v1583, 15
    %vm1840 = vcmp.le.s32.totalorder %v1584, 15
    %vm1841 = vcmp.le.s32.totalorder %v1585, 15
    %vm1842 = vcmp.le.s32.totalorder %v1586, 15
    %vm1843 = vcmp.le.s32.totalorder %v1587, 15
    %vm1844 = vcmp.le.s32.totalorder %v1588, 15
    %vm1845 = vcmp.le.s32.totalorder %v1589, 15
    %vm1846 = vcmp.le.s32.totalorder %v1590, 15
    %vm1847 = vcmp.le.s32.totalorder %v1591, 15
    %vm1848 = vcmp.le.s32.totalorder %v1592, 15
    %vm1849 = vcmp.le.s32.totalorder %v1593, 15
    %vm1850 = vcmp.le.s32.totalorder %v1594, 15
    %vm1851 = vcmp.le.s32.totalorder %v1595, 15
    %vm1852 = vcmp.le.s32.totalorder %v1596, 15
    %vm1853 = vcmp.le.s32.totalorder %v1597, 15
    %vm1854 = vcmp.le.s32.totalorder %v1598, 15
    %vm1855 = vcmp.le.s32.totalorder %v1599, 15
    %vm1856 = vcmp.le.s32.totalorder %v1600, 15
    %vm1857 = vcmp.le.s32.totalorder %v1601, 15
    %vm1858 = vcmp.le.s32.totalorder %v1602, 15
    %vm1859 = vcmp.le.s32.totalorder %v1603, 15
    %vm1860 = vcmp.le.s32.totalorder %v1604, 15
    %vm1861 = vcmp.le.s32.totalorder %v1605, 15
    %vm1862 = vcmp.le.s32.totalorder %v1606, 15
    %vm1863 = vcmp.le.s32.totalorder %v1607, 15
    %vm1864 = vcmp.le.s32.totalorder %v1608, 15
    %vm1865 = vcmp.le.s32.totalorder %v1609, 15
    %vm1866 = vcmp.le.s32.totalorder %v1610, 15
    %vm1867 = vcmp.le.s32.totalorder %v1611, 15
    %vm1868 = vcmp.le.s32.totalorder %v1612, 15
    %vm1869 = vcmp.le.s32.totalorder %v1613, 15
    %vm1870 = vcmp.le.s32.totalorder %v1614, 15
    %vm1871 = vcmp.le.s32.totalorder %v1615, 15
    %vm1872 = vcmp.le.s32.totalorder %v1616, 15
    %vm1873 = vcmp.le.s32.totalorder %v1617, 15
    %vm1874 = vcmp.le.s32.totalorder %v1618, 15
    %vm1875 = vcmp.le.s32.totalorder %v1619, 15
    %vm1876 = vcmp.le.s32.totalorder %v1620, 15
    %vm1877 = vcmp.le.s32.totalorder %v1621, 15
    %vm1878 = vcmp.le.s32.totalorder %v1622, 15
    %vm1879 = vcmp.le.s32.totalorder %v1623, 15
    %vm1880 = vcmp.le.s32.totalorder %v1624, 15
    %vm1881 = vcmp.le.s32.totalorder %v1625, 15
    %vm1882 = vcmp.le.s32.totalorder %v1626, 15
    %vm1883 = vcmp.le.s32.totalorder %v1627, 15
    %vm1884 = vcmp.le.s32.totalorder %v1628, 15
    %vm1885 = vcmp.le.s32.totalorder %v1629, 15
    %vm1886 = vcmp.le.s32.totalorder %v1630, 15
    %vm1887 = vcmp.le.s32.totalorder %v1631, 15
    %vm1888 = vcmp.le.s32.totalorder %v1632, 15
    %vm1889 = vcmp.le.s32.totalorder %v1633, 15
    %vm1890 = vcmp.le.s32.totalorder %v1634, 15
    %vm1891 = vcmp.le.s32.totalorder %v1635, 15
    %vm1892 = vcmp.le.s32.totalorder %v1636, 15
    %vm1893 = vcmp.le.s32.totalorder %v1637, 15
    %vm1894 = vcmp.le.s32.totalorder %v1638, 15
    %vm1895 = vcmp.le.s32.totalorder %v1639, 15
    %vm1896 = vcmp.le.s32.totalorder %v1640, 15
    %vm1897 = vcmp.le.s32.totalorder %v1641, 15
    %vm1898 = vcmp.le.s32.totalorder %v1642, 15
    %vm1899 = vcmp.le.s32.totalorder %v1643, 15
    %vm1900 = vcmp.le.s32.totalorder %v1644, 15
    %vm1901 = vcmp.le.s32.totalorder %v1645, 15
    %vm1902 = vcmp.le.s32.totalorder %v1646, 15
    %vm1903 = vcmp.le.s32.totalorder %v1647, 15
    %vm1904 = vcmp.le.s32.totalorder %v1648, 15
    %vm1905 = vcmp.le.s32.totalorder %v1649, 15
    %vm1906 = vcmp.le.s32.totalorder %v1650, 15
    %vm1907 = vcmp.le.s32.totalorder %v1651, 15
    %vm1908 = vcmp.le.s32.totalorder %v1652, 15
    %vm1909 = vcmp.le.s32.totalorder %v1653, 15
    %vm1910 = vcmp.le.s32.totalorder %v1654, 15
    %vm1911 = vcmp.le.s32.totalorder %v1655, 15
    %vm1912 = vcmp.le.s32.totalorder %v1656, 15
    %vm1913 = vcmp.le.s32.totalorder %v1657, 15
    %vm1914 = vcmp.le.s32.totalorder %v1658, 15
    %vm1915 = vcmp.le.s32.totalorder %v1659, 15
    %vm1916 = vcmp.le.s32.totalorder %v1660, 15
    %vm1917 = vcmp.le.s32.totalorder %v1661, 15
    %vm1918 = vcmp.le.s32.totalorder %v1662, 15
    %vm1919 = vcmp.le.s32.totalorder %v1663, 15
    %vm1920 = vcmp.le.s32.totalorder %v1664, 15
    %vm1921 = vcmp.le.s32.totalorder %v1665, 15
    %vm1922 = vcmp.le.s32.totalorder %v1666, 15
    %vm1923 = vcmp.le.s32.totalorder %v1667, 15
    %vm1924 = vcmp.le.s32.totalorder %v1668, 15
    %vm1925 = vcmp.le.s32.totalorder %v1669, 15
    %vm1926 = vcmp.le.s32.totalorder %v1670, 15
    %vm1927 = vcmp.le.s32.totalorder %v1671, 15
    %vm1928 = vcmp.le.s32.totalorder %v1672, 15
    %vm1929 = vcmp.le.s32.totalorder %v1673, 15
    %vm1930 = vcmp.le.s32.totalorder %v1674, 15
    %vm1931 = vcmp.le.s32.totalorder %v1675, 15
    %vm1932 = vcmp.le.s32.totalorder %v1676, 15
    %vm1933 = vcmp.le.s32.totalorder %v1677, 15
    %vm1934 = vcmp.le.s32.totalorder %v1678, 15
    %vm1935 = vcmp.le.s32.totalorder %v1679, 15
    %vm1936 = vcmp.le.s32.totalorder %v1680, 15
    %vm1937 = vcmp.le.s32.totalorder %v1681, 15
    %vm1938 = vcmp.le.s32.totalorder %v1682, 15
    %vm1939 = vcmp.le.s32.totalorder %v1683, 15
    %vm1940 = vcmp.le.s32.totalorder %v1684, 15
    %vm1941 = vcmp.le.s32.totalorder %v1685, 15
    %vm1942 = vcmp.le.s32.totalorder %v1686, 15
    %vm1943 = vcmp.le.s32.totalorder %v1687, 15
    %vm1944 = vcmp.le.s32.totalorder %v1688, 15
    %vm1945 = vcmp.le.s32.totalorder %v1689, 15
    %vm1946 = vcmp.le.s32.totalorder %v1690, 15
    %vm1947 = vcmp.le.s32.totalorder %v1691, 15
    %vm1948 = vcmp.le.s32.totalorder %v1692, 15
    %vm1949 = vcmp.le.s32.totalorder %v1693, 15
    %vm1950 = vcmp.le.s32.totalorder %v1694, 15
    %vm1951 = vcmp.le.s32.totalorder %v1695, 15
    %vm1952 = vcmp.le.s32.totalorder %v1696, 15
    %vm1953 = vcmp.le.s32.totalorder %v1697, 15
    %vm1954 = vcmp.le.s32.totalorder %v1698, 15
    %vm1955 = vcmp.le.s32.totalorder %v1699, 15
    %vm1956 = vcmp.le.s32.totalorder %v1700, 15
    %vm1957 = vmand %vm1701, %vm1829
    %vm1958 = vmand %vm1702, %vm1830
    %vm1959 = vmand %vm1703, %vm1831
    %vm1960 = vmand %vm1704, %vm1832
    %vm1961 = vmand %vm1705, %vm1833
    %vm1962 = vmand %vm1706, %vm1834
    %vm1963 = vmand %vm1707, %vm1835
    %vm1964 = vmand %vm1708, %vm1836
    %vm1965 = vmand %vm1709, %vm1837
    %vm1966 = vmand %vm1710, %vm1838
    %vm1967 = vmand %vm1711, %vm1839
    %vm1968 = vmand %vm1712, %vm1840
    %vm1969 = vmand %vm1713, %vm1841
    %vm1970 = vmand %vm1714, %vm1842
    %vm1971 = vmand %vm1715, %vm1843
    %vm1972 = vmand %vm1716, %vm1844
    %vm1973 = vmand %vm1717, %vm1845
    %vm1974 = vmand %vm1718, %vm1846
    %vm1975 = vmand %vm1719, %vm1847
    %vm1976 = vmand %vm1720, %vm1848
    %vm1977 = vmand %vm1721, %vm1849
    %vm1978 = vmand %vm1722, %vm1850
    %vm1979 = vmand %vm1723, %vm1851
    %vm1980 = vmand %vm1724, %vm1852
    %vm1981 = vmand %vm1725, %vm1853
    %vm1982 = vmand %vm1726, %vm1854
    %vm1983 = vmand %vm1727, %vm1855
    %vm1984 = vmand %vm1728, %vm1856
    %vm1985 = vmand %vm1729, %vm1857
    %vm1986 = vmand %vm1730, %vm1858
    %vm1987 = vmand %vm1731, %vm1859
    %vm1988 = vmand %vm1732, %vm1860
    %vm1989 = vmand %vm1733, %vm1861
    %vm1990 = vmand %vm1734, %vm1862
    %vm1991 = vmand %vm1735, %vm1863
    %vm1992 = vmand %vm1736, %vm1864
    %vm1993 = vmand %vm1737, %vm1865
    %vm1994 = vmand %vm1738, %vm1866
    %vm1995 = vmand %vm1739, %vm1867
    %vm1996 = vmand %vm1740, %vm1868
    %vm1997 = vmand %vm1741, %vm1869
    %vm1998 = vmand %vm1742, %vm1870
    %vm1999 = vmand %vm1743, %vm1871
    %vm2000 = vmand %vm1744, %vm1872
    %vm2001 = vmand %vm1745, %vm1873
    %vm2002 = vmand %vm1746, %vm1874
    %vm2003 = vmand %vm1747, %vm1875
    %vm2004 = vmand %vm1748, %vm1876
    %vm2005 = vmand %vm1749, %vm1877
    %vm2006 = vmand %vm1750, %vm1878
    %vm2007 = vmand %vm1751, %vm1879
    %vm2008 = vmand %vm1752, %vm1880
    %vm2009 = vmand %vm1753, %vm1881
    %vm2010 = vmand %vm1754, %vm1882
    %vm2011 = vmand %vm1755, %vm1883
    %vm2012 = vmand %vm1756, %vm1884
    %vm2013 = vmand %vm1757, %vm1885
    %vm2014 = vmand %vm1758, %vm1886
    %vm2015 = vmand %vm1759, %vm1887
    %vm2016 = vmand %vm1760, %vm1888
    %vm2017 = vmand %vm1761, %vm1889
    %vm2018 = vmand %vm1762, %vm1890
    %vm2019 = vmand %vm1763, %vm1891
    %vm2020 = vmand %vm1764, %vm1892
    %vm2021 = vmand %vm1765, %vm1893
    %vm2022 = vmand %vm1766, %vm1894
    %vm2023 = vmand %vm1767, %vm1895
    %vm2024 = vmand %vm1768, %vm1896
    %vm2025 = vmand %vm1769, %vm1897
    %vm2026 = vmand %vm1770, %vm1898
    %vm2027 = vmand %vm1771, %vm1899
    %vm2028 = vmand %vm1772, %vm1900
    %vm2029 = vmand %vm1773, %vm1901
    %vm2030 = vmand %vm1774, %vm1902
    %vm2031 = vmand %vm1775, %vm1903
    %vm2032 = vmand %vm1776, %vm1904
    %vm2033 = vmand %vm1777, %vm1905
    %vm2034 = vmand %vm1778, %vm1906
    %vm2035 = vmand %vm1779, %vm1907
    %vm2036 = vmand %vm1780, %vm1908
    %vm2037 = vmand %vm1781, %vm1909
    %vm2038 = vmand %vm1782, %vm1910
    %vm2039 = vmand %vm1783, %vm1911
    %vm2040 = vmand %vm1784, %vm1912
    %vm2041 = vmand %vm1785, %vm1913
    %vm2042 = vmand %vm1786, %vm1914
    %vm2043 = vmand %vm1787, %vm1915
    %vm2044 = vmand %vm1788, %vm1916
    %vm2045 = vmand %vm1789, %vm1917
    %vm2046 = vmand %vm1790, %vm1918
    %vm2047 = vmand %vm1791, %vm1919
    %vm2048 = vmand %vm1792, %vm1920
    %vm2049 = vmand %vm1793, %vm1921
    %vm2050 = vmand %vm1794, %vm1922
    %vm2051 = vmand %vm1795, %vm1923
    %vm2052 = vmand %vm1796, %vm1924
    %vm2053 = vmand %vm1797, %vm1925
    %vm2054 = vmand %vm1798, %vm1926
    %vm2055 = vmand %vm1799, %vm1927
    %vm2056 = vmand %vm1800, %vm1928
    %vm2057 = vmand %vm1801, %vm1929
    %vm2058 = vmand %vm1802, %vm1930
    %vm2059 = vmand %vm1803, %vm1931
    %vm2060 = vmand %vm1804, %vm1932
    %vm2061 = vmand %vm1805, %vm1933
    %vm2062 = vmand %vm1806, %vm1934
    %vm2063 = vmand %vm1807, %vm1935
    %vm2064 = vmand %vm1808, %vm1936
    %vm2065 = vmand %vm1809, %vm1937
    %vm2066 = vmand %vm1810, %vm1938
    %vm2067 = vmand %vm1811, %vm1939
    %vm2068 = vmand %vm1812, %vm1940
    %vm2069 = vmand %vm1813, %vm1941
    %vm2070 = vmand %vm1814, %vm1942
    %vm2071 = vmand %vm1815, %vm1943
    %vm2072 = vmand %vm1816, %vm1944
    %vm2073 = vmand %vm1817, %vm1945
    %vm2074 = vmand %vm1818, %vm1946
    %vm2075 = vmand %vm1819, %vm1947
    %vm2076 = vmand %vm1820, %vm1948
    %vm2077 = vmand %vm1821, %vm1949
    %vm2078 = vmand %vm1822, %vm1950
    %vm2079 = vmand %vm1823, %vm1951
    %vm2080 = vmand %vm1824, %vm1952
    %vm2081 = vmand %vm1825, %vm1953
    %vm2082 = vmand %vm1826, %vm1954
    %vm2083 = vmand %vm1827, %vm1955
    %vm2084 = vmand %vm1828, %vm1956
    %v2085 = vsel %vm1957, 1, 0
    %v2086 = vsel %vm1958, 1, 0
    %v2087 = vsel %vm1959, 1, 0
    %v2088 = vsel %vm1960, 1, 0
    %v2089 = vsel %vm1961, 1, 0
    %v2090 = vsel %vm1962, 1, 0
    %v2091 = vsel %vm1963, 1, 0
    %v2092 = vsel %vm1964, 1, 0
    %v2093 = vsel %vm1965, 1, 0
    %v2094 = vsel %vm1966, 1, 0
    %v2095 = vsel %vm1967, 1, 0
    %v2096 = vsel %vm1968, 1, 0
    %v2097 = vsel %vm1969, 1, 0
    %v2098 = vsel %vm1970, 1, 0
    %v2099 = vsel %vm1971, 1, 0
    %v2100 = vsel %vm1972, 1, 0
    %v2101 = vsel %vm1973, 1, 0
    %v2102 = vsel %vm1974, 1, 0
    %v2103 = vsel %vm1975, 1, 0
    %v2104 = vsel %vm1976, 1, 0
    %v2105 = vsel %vm1977, 1, 0
    %v2106 = vsel %vm1978, 1, 0
    %v2107 = vsel %vm1979, 1, 0
    %v2108 = vsel %vm1980, 1, 0
    %v2109 = vsel %vm1981, 1, 0
    %v2110 = vsel %vm1982, 1, 0
    %v2111 = vsel %vm1983, 1, 0
    %v2112 = vsel %vm1984, 1, 0
    %v2113 = vsel %vm1985, 1, 0
    %v2114 = vsel %vm1986, 1, 0
    %v2115 = vsel %vm1987, 1, 0
    %v2116 = vsel %vm1988, 1, 0
    %v2117 = vsel %vm1989, 1, 0
    %v2118 = vsel %vm1990, 1, 0
    %v2119 = vsel %vm1991, 1, 0
    %v2120 = vsel %vm1992, 1, 0
    %v2121 = vsel %vm1993, 1, 0
    %v2122 = vsel %vm1994, 1, 0
    %v2123 = vsel %vm1995, 1, 0
    %v2124 = vsel %vm1996, 1, 0
    %v2125 = vsel %vm1997, 1, 0
    %v2126 = vsel %vm1998, 1, 0
    %v2127 = vsel %vm1999, 1, 0
    %v2128 = vsel %vm2000, 1, 0
    %v2129 = vsel %vm2001, 1, 0
    %v2130 = vsel %vm2002, 1, 0
    %v2131 = vsel %vm2003, 1, 0
    %v2132 = vsel %vm2004, 1, 0
    %v2133 = vsel %vm2005, 1, 0
    %v2134 = vsel %vm2006, 1, 0
    %v2135 = vsel %vm2007, 1, 0
    %v2136 = vsel %vm2008, 1, 0
    %v2137 = vsel %vm2009, 1, 0
    %v2138 = vsel %vm2010, 1, 0
    %v2139 = vsel %vm2011, 1, 0
    %v2140 = vsel %vm2012, 1, 0
    %v2141 = vsel %vm2013, 1, 0
    %v2142 = vsel %vm2014, 1, 0
    %v2143 = vsel %vm2015, 1, 0
    %v2144 = vsel %vm2016, 1, 0
    %v2145 = vsel %vm2017, 1, 0
    %v2146 = vsel %vm2018, 1, 0
    %v2147 = vsel %vm2019, 1, 0
    %v2148 = vsel %vm2020, 1, 0
    %v2149 = vsel %vm2021, 1, 0
    %v2150 = vsel %vm2022, 1, 0
    %v2151 = vsel %vm2023, 1, 0
    %v2152 = vsel %vm2024, 1, 0
    %v2153 = vsel %vm2025, 1, 0
    %v2154 = vsel %vm2026, 1, 0
    %v2155 = vsel %vm2027, 1, 0
    %v2156 = vsel %vm2028, 1, 0
    %v2157 = vsel %vm2029, 1, 0
    %v2158 = vsel %vm2030, 1, 0
    %v2159 = vsel %vm2031, 1, 0
    %v2160 = vsel %vm2032, 1, 0
    %v2161 = vsel %vm2033, 1, 0
    %v2162 = vsel %vm2034, 1, 0
    %v2163 = vsel %vm2035, 1, 0
    %v2164 = vsel %vm2036, 1, 0
    %v2165 = vsel %vm2037, 1, 0
    %v2166 = vsel %vm2038, 1, 0
    %v2167 = vsel %vm2039, 1, 0
    %v2168 = vsel %vm2040, 1, 0
    %v2169 = vsel %vm2041, 1, 0
    %v2170 = vsel %vm2042, 1, 0
    %v2171 = vsel %vm2043, 1, 0
    %v2172 = vsel %vm2044, 1, 0
    %v2173 = vsel %vm2045, 1, 0
    %v2174 = vsel %vm2046, 1, 0
    %v2175 = vsel %vm2047, 1, 0
    %v2176 = vsel %vm2048, 1, 0
    %v2177 = vsel %vm2049, 1, 0
    %v2178 = vsel %vm2050, 1, 0
    %v2179 = vsel %vm2051, 1, 0
    %v2180 = vsel %vm2052, 1, 0
    %v2181 = vsel %vm2053, 1, 0
    %v2182 = vsel %vm2054, 1, 0
    %v2183 = vsel %vm2055, 1, 0
    %v2184 = vsel %vm2056, 1, 0
    %v2185 = vsel %vm2057, 1, 0
    %v2186 = vsel %vm2058, 1, 0
    %v2187 = vsel %vm2059, 1, 0
    %v2188 = vsel %vm2060, 1, 0
    %v2189 = vsel %vm2061, 1, 0
    %v2190 = vsel %vm2062, 1, 0
    %v2191 = vsel %vm2063, 1, 0
    %v2192 = vsel %vm2064, 1, 0
    %v2193 = vsel %vm2065, 1, 0
    %v2194 = vsel %vm2066, 1, 0
    %v2195 = vsel %vm2067, 1, 0
    %v2196 = vsel %vm2068, 1, 0
    %v2197 = vsel %vm2069, 1, 0
    %v2198 = vsel %vm2070, 1, 0
    %v2199 = vsel %vm2071, 1, 0
    %v2200 = vsel %vm2072, 1, 0
    %v2201 = vsel %vm2073, 1, 0
    %v2202 = vsel %vm2074, 1, 0
    %v2203 = vsel %vm2075, 1, 0
    %v2204 = vsel %vm2076, 1, 0
    %v2205 = vsel %vm2077, 1, 0
    %v2206 = vsel %vm2078, 1, 0
    %v2207 = vsel %vm2079, 1, 0
    %v2208 = vsel %vm2080, 1, 0
    %v2209 = vsel %vm2081, 1, 0
    %v2210 = vsel %vm2082, 1, 0
    %v2211 = vsel %vm2083, 1, 0
    %v2212 = vsel %vm2084, 1, 0
    %v2213 = vcvt.s32.f32 %v2085
    %v2214 = vcvt.s32.f32 %v2086
    %v2215 = vcvt.s32.f32 %v2087
    %v2216 = vcvt.s32.f32 %v2088
    %v2217 = vcvt.s32.f32 %v2089
    %v2218 = vcvt.s32.f32 %v2090
    %v2219 = vcvt.s32.f32 %v2091
    %v2220 = vcvt.s32.f32 %v2092
    %v2221 = vcvt.s32.f32 %v2093
    %v2222 = vcvt.s32.f32 %v2094
    %v2223 = vcvt.s32.f32 %v2095
    %v2224 = vcvt.s32.f32 %v2096
    %v2225 = vcvt.s32.f32 %v2097
    %v2226 = vcvt.s32.f32 %v2098
    %v2227 = vcvt.s32.f32 %v2099
    %v2228 = vcvt.s32.f32 %v2100
    %v2229 = vcvt.s32.f32 %v2101
    %v2230 = vcvt.s32.f32 %v2102
    %v2231 = vcvt.s32.f32 %v2103
    %v2232 = vcvt.s32.f32 %v2104
    %v2233 = vcvt.s32.f32 %v2105
    %v2234 = vcvt.s32.f32 %v2106
    %v2235 = vcvt.s32.f32 %v2107
    %v2236 = vcvt.s32.f32 %v2108
    %v2237 = vcvt.s32.f32 %v2109
    %v2238 = vcvt.s32.f32 %v2110
    %v2239 = vcvt.s32.f32 %v2111
    %v2240 = vcvt.s32.f32 %v2112
    %v2241 = vcvt.s32.f32 %v2113
    %v2242 = vcvt.s32.f32 %v2114
    %v2243 = vcvt.s32.f32 %v2115
    %v2244 = vcvt.s32.f32 %v2116
    %v2245 = vcvt.s32.f32 %v2117
    %v2246 = vcvt.s32.f32 %v2118
    %v2247 = vcvt.s32.f32 %v2119
    %v2248 = vcvt.s32.f32 %v2120
    %v2249 = vcvt.s32.f32 %v2121
    %v2250 = vcvt.s32.f32 %v2122
    %v2251 = vcvt.s32.f32 %v2123
    %v2252 = vcvt.s32.f32 %v2124
    %v2253 = vcvt.s32.f32 %v2125
    %v2254 = vcvt.s32.f32 %v2126
    %v2255 = vcvt.s32.f32 %v2127
    %v2256 = vcvt.s32.f32 %v2128
    %v2257 = vcvt.s32.f32 %v2129
    %v2258 = vcvt.s32.f32 %v2130
    %v2259 = vcvt.s32.f32 %v2131
    %v2260 = vcvt.s32.f32 %v2132
    %v2261 = vcvt.s32.f32 %v2133
    %v2262 = vcvt.s32.f32 %v2134
    %v2263 = vcvt.s32.f32 %v2135
    %v2264 = vcvt.s32.f32 %v2136
    %v2265 = vcvt.s32.f32 %v2137
    %v2266 = vcvt.s32.f32 %v2138
    %v2267 = vcvt.s32.f32 %v2139
    %v2268 = vcvt.s32.f32 %v2140
    %v2269 = vcvt.s32.f32 %v2141
    %v2270 = vcvt.s32.f32 %v2142
    %v2271 = vcvt.s32.f32 %v2143
    %v2272 = vcvt.s32.f32 %v2144
    %v2273 = vcvt.s32.f32 %v2145
    %v2274 = vcvt.s32.f32 %v2146
    %v2275 = vcvt.s32.f32 %v2147
    %v2276 = vcvt.s32.f32 %v2148
    %v2277 = vcvt.s32.f32 %v2149
    %v2278 = vcvt.s32.f32 %v2150
    %v2279 = vcvt.s32.f32 %v2151
    %v2280 = vcvt.s32.f32 %v2152
    %v2281 = vcvt.s32.f32 %v2153
    %v2282 = vcvt.s32.f32 %v2154
    %v2283 = vcvt.s32.f32 %v2155
    %v2284 = vcvt.s32.f32 %v2156
    %v2285 = vcvt.s32.f32 %v2157
    %v2286 = vcvt.s32.f32 %v2158
    %v2287 = vcvt.s32.f32 %v2159
    %v2288 = vcvt.s32.f32 %v2160
    %v2289 = vcvt.s32.f32 %v2161
    %v2290 = vcvt.s32.f32 %v2162
    %v2291 = vcvt.s32.f32 %v2163
    %v2292 = vcvt.s32.f32 %v2164
    %v2293 = vcvt.s32.f32 %v2165
    %v2294 = vcvt.s32.f32 %v2166
    %v2295 = vcvt.s32.f32 %v2167
    %v2296 = vcvt.s32.f32 %v2168
    %v2297 = vcvt.s32.f32 %v2169
    %v2298 = vcvt.s32.f32 %v2170
    %v2299 = vcvt.s32.f32 %v2171
    %v2300 = vcvt.s32.f32 %v2172
    %v2301 = vcvt.s32.f32 %v2173
    %v2302 = vcvt.s32.f32 %v2174
    %v2303 = vcvt.s32.f32 %v2175
    %v2304 = vcvt.s32.f32 %v2176
    %v2305 = vcvt.s32.f32 %v2177
    %v2306 = vcvt.s32.f32 %v2178
    %v2307 = vcvt.s32.f32 %v2179
    %v2308 = vcvt.s32.f32 %v2180
    %v2309 = vcvt.s32.f32 %v2181
    %v2310 = vcvt.s32.f32 %v2182
    %v2311 = vcvt.s32.f32 %v2183
    %v2312 = vcvt.s32.f32 %v2184
    %v2313 = vcvt.s32.f32 %v2185
    %v2314 = vcvt.s32.f32 %v2186
    %v2315 = vcvt.s32.f32 %v2187
    %v2316 = vcvt.s32.f32 %v2188
    %v2317 = vcvt.s32.f32 %v2189
    %v2318 = vcvt.s32.f32 %v2190
    %v2319 = vcvt.s32.f32 %v2191
    %v2320 = vcvt.s32.f32 %v2192
    %v2321 = vcvt.s32.f32 %v2193
    %v2322 = vcvt.s32.f32 %v2194
    %v2323 = vcvt.s32.f32 %v2195
    %v2324 = vcvt.s32.f32 %v2196
    %v2325 = vcvt.s32.f32 %v2197
    %v2326 = vcvt.s32.f32 %v2198
    %v2327 = vcvt.s32.f32 %v2199
    %v2328 = vcvt.s32.f32 %v2200
    %v2329 = vcvt.s32.f32 %v2201
    %v2330 = vcvt.s32.f32 %v2202
    %v2331 = vcvt.s32.f32 %v2203
    %v2332 = vcvt.s32.f32 %v2204
    %v2333 = vcvt.s32.f32 %v2205
    %v2334 = vcvt.s32.f32 %v2206
    %v2335 = vcvt.s32.f32 %v2207
    %v2336 = vcvt.s32.f32 %v2208
    %v2337 = vcvt.s32.f32 %v2209
    %v2338 = vcvt.s32.f32 %v2210
    %v2339 = vcvt.s32.f32 %v2211
    %v2340 = vcvt.s32.f32 %v2212
    %vm2341 = vcmp.lt.s32.totalorder %v1573, 15
    %vm2342 = vcmp.lt.s32.totalorder %v1574, 15
    %vm2343 = vcmp.lt.s32.totalorder %v1575, 15
    %vm2344 = vcmp.lt.s32.totalorder %v1576, 15
    %vm2345 = vcmp.lt.s32.totalorder %v1577, 15
    %vm2346 = vcmp.lt.s32.totalorder %v1578, 15
    %vm2347 = vcmp.lt.s32.totalorder %v1579, 15
    %vm2348 = vcmp.lt.s32.totalorder %v1580, 15
    %vm2349 = vcmp.lt.s32.totalorder %v1581, 15
    %vm2350 = vcmp.lt.s32.totalorder %v1582, 15
    %vm2351 = vcmp.lt.s32.totalorder %v1583, 15
    %vm2352 = vcmp.lt.s32.totalorder %v1584, 15
    %vm2353 = vcmp.lt.s32.totalorder %v1585, 15
    %vm2354 = vcmp.lt.s32.totalorder %v1586, 15
    %vm2355 = vcmp.lt.s32.totalorder %v1587, 15
    %vm2356 = vcmp.lt.s32.totalorder %v1588, 15
    %vm2357 = vcmp.lt.s32.totalorder %v1589, 15
    %vm2358 = vcmp.lt.s32.totalorder %v1590, 15
    %vm2359 = vcmp.lt.s32.totalorder %v1591, 15
    %vm2360 = vcmp.lt.s32.totalorder %v1592, 15
    %vm2361 = vcmp.lt.s32.totalorder %v1593, 15
    %vm2362 = vcmp.lt.s32.totalorder %v1594, 15
    %vm2363 = vcmp.lt.s32.totalorder %v1595, 15
    %vm2364 = vcmp.lt.s32.totalorder %v1596, 15
    %vm2365 = vcmp.lt.s32.totalorder %v1597, 15
    %vm2366 = vcmp.lt.s32.totalorder %v1598, 15
    %vm2367 = vcmp.lt.s32.totalorder %v1599, 15
    %vm2368 = vcmp.lt.s32.totalorder %v1600, 15
    %vm2369 = vcmp.lt.s32.totalorder %v1601, 15
    %vm2370 = vcmp.lt.s32.totalorder %v1602, 15
    %vm2371 = vcmp.lt.s32.totalorder %v1603, 15
    %vm2372 = vcmp.lt.s32.totalorder %v1604, 15
    %vm2373 = vcmp.lt.s32.totalorder %v1605, 15
    %vm2374 = vcmp.lt.s32.totalorder %v1606, 15
    %vm2375 = vcmp.lt.s32.totalorder %v1607, 15
    %vm2376 = vcmp.lt.s32.totalorder %v1608, 15
    %vm2377 = vcmp.lt.s32.totalorder %v1609, 15
    %vm2378 = vcmp.lt.s32.totalorder %v1610, 15
    %vm2379 = vcmp.lt.s32.totalorder %v1611, 15
    %vm2380 = vcmp.lt.s32.totalorder %v1612, 15
    %vm2381 = vcmp.lt.s32.totalorder %v1613, 15
    %vm2382 = vcmp.lt.s32.totalorder %v1614, 15
    %vm2383 = vcmp.lt.s32.totalorder %v1615, 15
    %vm2384 = vcmp.lt.s32.totalorder %v1616, 15
    %vm2385 = vcmp.lt.s32.totalorder %v1617, 15
    %vm2386 = vcmp.lt.s32.totalorder %v1618, 15
    %vm2387 = vcmp.lt.s32.totalorder %v1619, 15
    %vm2388 = vcmp.lt.s32.totalorder %v1620, 15
    %vm2389 = vcmp.lt.s32.totalorder %v1621, 15
    %vm2390 = vcmp.lt.s32.totalorder %v1622, 15
    %vm2391 = vcmp.lt.s32.totalorder %v1623, 15
    %vm2392 = vcmp.lt.s32.totalorder %v1624, 15
    %vm2393 = vcmp.lt.s32.totalorder %v1625, 15
    %vm2394 = vcmp.lt.s32.totalorder %v1626, 15
    %vm2395 = vcmp.lt.s32.totalorder %v1627, 15
    %vm2396 = vcmp.lt.s32.totalorder %v1628, 15
    %vm2397 = vcmp.lt.s32.totalorder %v1629, 15
    %vm2398 = vcmp.lt.s32.totalorder %v1630, 15
    %vm2399 = vcmp.lt.s32.totalorder %v1631, 15
    %vm2400 = vcmp.lt.s32.totalorder %v1632, 15
    %vm2401 = vcmp.lt.s32.totalorder %v1633, 15
    %vm2402 = vcmp.lt.s32.totalorder %v1634, 15
    %vm2403 = vcmp.lt.s32.totalorder %v1635, 15
    %vm2404 = vcmp.lt.s32.totalorder %v1636, 15
    %vm2405 = vcmp.lt.s32.totalorder %v1637, 15
    %vm2406 = vcmp.lt.s32.totalorder %v1638, 15
    %vm2407 = vcmp.lt.s32.totalorder %v1639, 15
    %vm2408 = vcmp.lt.s32.totalorder %v1640, 15
    %vm2409 = vcmp.lt.s32.totalorder %v1641, 15
    %vm2410 = vcmp.lt.s32.totalorder %v1642, 15
    %vm2411 = vcmp.lt.s32.totalorder %v1643, 15
    %vm2412 = vcmp.lt.s32.totalorder %v1644, 15
    %vm2413 = vcmp.lt.s32.totalorder %v1645, 15
    %vm2414 = vcmp.lt.s32.totalorder %v1646, 15
    %vm2415 = vcmp.lt.s32.totalorder %v1647, 15
    %vm2416 = vcmp.lt.s32.totalorder %v1648, 15
    %vm2417 = vcmp.lt.s32.totalorder %v1649, 15
    %vm2418 = vcmp.lt.s32.totalorder %v1650, 15
    %vm2419 = vcmp.lt.s32.totalorder %v1651, 15
    %vm2420 = vcmp.lt.s32.totalorder %v1652, 15
    %vm2421 = vcmp.lt.s32.totalorder %v1653, 15
    %vm2422 = vcmp.lt.s32.totalorder %v1654, 15
    %vm2423 = vcmp.lt.s32.totalorder %v1655, 15
    %vm2424 = vcmp.lt.s32.totalorder %v1656, 15
    %vm2425 = vcmp.lt.s32.totalorder %v1657, 15
    %vm2426 = vcmp.lt.s32.totalorder %v1658, 15
    %vm2427 = vcmp.lt.s32.totalorder %v1659, 15
    %vm2428 = vcmp.lt.s32.totalorder %v1660, 15
    %vm2429 = vcmp.lt.s32.totalorder %v1661, 15
    %vm2430 = vcmp.lt.s32.totalorder %v1662, 15
    %vm2431 = vcmp.lt.s32.totalorder %v1663, 15
    %vm2432 = vcmp.lt.s32.totalorder %v1664, 15
    %vm2433 = vcmp.lt.s32.totalorder %v1665, 15
    %vm2434 = vcmp.lt.s32.totalorder %v1666, 15
    %vm2435 = vcmp.lt.s32.totalorder %v1667, 15
    %vm2436 = vcmp.lt.s32.totalorder %v1668, 15
    %vm2437 = vcmp.lt.s32.totalorder %v1669, 15
    %vm2438 = vcmp.lt.s32.totalorder %v1670, 15
    %vm2439 = vcmp.lt.s32.totalorder %v1671, 15
    %vm2440 = vcmp.lt.s32.totalorder %v1672, 15
    %vm2441 = vcmp.lt.s32.totalorder %v1673, 15
    %vm2442 = vcmp.lt.s32.totalorder %v1674, 15
    %vm2443 = vcmp.lt.s32.totalorder %v1675, 15
    %vm2444 = vcmp.lt.s32.totalorder %v1676, 15
    %vm2445 = vcmp.lt.s32.totalorder %v1677, 15
    %vm2446 = vcmp.lt.s32.totalorder %v1678, 15
    %vm2447 = vcmp.lt.s32.totalorder %v1679, 15
    %vm2448 = vcmp.lt.s32.totalorder %v1680, 15
    %vm2449 = vcmp.lt.s32.totalorder %v1681, 15
    %vm2450 = vcmp.lt.s32.totalorder %v1682, 15
    %vm2451 = vcmp.lt.s32.totalorder %v1683, 15
    %vm2452 = vcmp.lt.s32.totalorder %v1684, 15
    %vm2453 = vcmp.lt.s32.totalorder %v1685, 15
    %vm2454 = vcmp.lt.s32.totalorder %v1686, 15
    %vm2455 = vcmp.lt.s32.totalorder %v1687, 15
    %vm2456 = vcmp.lt.s32.totalorder %v1688, 15
    %vm2457 = vcmp.lt.s32.totalorder %v1689, 15
    %vm2458 = vcmp.lt.s32.totalorder %v1690, 15
    %vm2459 = vcmp.lt.s32.totalorder %v1691, 15
    %vm2460 = vcmp.lt.s32.totalorder %v1692, 15
    %vm2461 = vcmp.lt.s32.totalorder %v1693, 15
    %vm2462 = vcmp.lt.s32.totalorder %v1694, 15
    %vm2463 = vcmp.lt.s32.totalorder %v1695, 15
    %vm2464 = vcmp.lt.s32.totalorder %v1696, 15
    %vm2465 = vcmp.lt.s32.totalorder %v1697, 15
    %vm2466 = vcmp.lt.s32.totalorder %v1698, 15
    %vm2467 = vcmp.lt.s32.totalorder %v1699, 15
    %vm2468 = vcmp.lt.s32.totalorder %v1700, 15
    %v2469 = vsel %vm2341, 1, 0
    %v2470 = vsel %vm2342, 1, 0
    %v2471 = vsel %vm2343, 1, 0
    %v2472 = vsel %vm2344, 1, 0
    %v2473 = vsel %vm2345, 1, 0
    %v2474 = vsel %vm2346, 1, 0
    %v2475 = vsel %vm2347, 1, 0
    %v2476 = vsel %vm2348, 1, 0
    %v2477 = vsel %vm2349, 1, 0
    %v2478 = vsel %vm2350, 1, 0
    %v2479 = vsel %vm2351, 1, 0
    %v2480 = vsel %vm2352, 1, 0
    %v2481 = vsel %vm2353, 1, 0
    %v2482 = vsel %vm2354, 1, 0
    %v2483 = vsel %vm2355, 1, 0
    %v2484 = vsel %vm2356, 1, 0
    %v2485 = vsel %vm2357, 1, 0
    %v2486 = vsel %vm2358, 1, 0
    %v2487 = vsel %vm2359, 1, 0
    %v2488 = vsel %vm2360, 1, 0
    %v2489 = vsel %vm2361, 1, 0
    %v2490 = vsel %vm2362, 1, 0
    %v2491 = vsel %vm2363, 1, 0
    %v2492 = vsel %vm2364, 1, 0
    %v2493 = vsel %vm2365, 1, 0
    %v2494 = vsel %vm2366, 1, 0
    %v2495 = vsel %vm2367, 1, 0
    %v2496 = vsel %vm2368, 1, 0
    %v2497 = vsel %vm2369, 1, 0
    %v2498 = vsel %vm2370, 1, 0
    %v2499 = vsel %vm2371, 1, 0
    %v2500 = vsel %vm2372, 1, 0
    %v2501 = vsel %vm2373, 1, 0
    %v2502 = vsel %vm2374, 1, 0
    %v2503 = vsel %vm2375, 1, 0
    %v2504 = vsel %vm2376, 1, 0
    %v2505 = vsel %vm2377, 1, 0
    %v2506 = vsel %vm2378, 1, 0
    %v2507 = vsel %vm2379, 1, 0
    %v2508 = vsel %vm2380, 1, 0
    %v2509 = vsel %vm2381, 1, 0
    %v2510 = vsel %vm2382, 1, 0
    %v2511 = vsel %vm2383, 1, 0
    %v2512 = vsel %vm2384, 1, 0
    %v2513 = vsel %vm2385, 1, 0
    %v2514 = vsel %vm2386, 1, 0
    %v2515 = vsel %vm2387, 1, 0
    %v2516 = vsel %vm2388, 1, 0
    %v2517 = vsel %vm2389, 1, 0
    %v2518 = vsel %vm2390, 1, 0
    %v2519 = vsel %vm2391, 1, 0
    %v2520 = vsel %vm2392, 1, 0
    %v2521 = vsel %vm2393, 1, 0
    %v2522 = vsel %vm2394, 1, 0
    %v2523 = vsel %vm2395, 1, 0
    %v2524 = vsel %vm2396, 1, 0
    %v2525 = vsel %vm2397, 1, 0
    %v2526 = vsel %vm2398, 1, 0
    %v2527 = vsel %vm2399, 1, 0
    %v2528 = vsel %vm2400, 1, 0
    %v2529 = vsel %vm2401, 1, 0
    %v2530 = vsel %vm2402, 1, 0
    %v2531 = vsel %vm2403, 1, 0
    %v2532 = vsel %vm2404, 1, 0
    %v2533 = vsel %vm2405, 1, 0
    %v2534 = vsel %vm2406, 1, 0
    %v2535 = vsel %vm2407, 1, 0
    %v2536 = vsel %vm2408, 1, 0
    %v2537 = vsel %vm2409, 1, 0
    %v2538 = vsel %vm2410, 1, 0
    %v2539 = vsel %vm2411, 1, 0
    %v2540 = vsel %vm2412, 1, 0
    %v2541 = vsel %vm2413, 1, 0
    %v2542 = vsel %vm2414, 1, 0
    %v2543 = vsel %vm2415, 1, 0
    %v2544 = vsel %vm2416, 1, 0
    %v2545 = vsel %vm2417, 1, 0
    %v2546 = vsel %vm2418, 1, 0
    %v2547 = vsel %vm2419, 1, 0
    %v2548 = vsel %vm2420, 1, 0
    %v2549 = vsel %vm2421, 1, 0
    %v2550 = vsel %vm2422, 1, 0
    %v2551 = vsel %vm2423, 1, 0
    %v2552 = vsel %vm2424, 1, 0
    %v2553 = vsel %vm2425, 1, 0
    %v2554 = vsel %vm2426, 1, 0
    %v2555 = vsel %vm2427, 1, 0
    %v2556 = vsel %vm2428, 1, 0
    %v2557 = vsel %vm2429, 1, 0
    %v2558 = vsel %vm2430, 1, 0
    %v2559 = vsel %vm2431, 1, 0
    %v2560 = vsel %vm2432, 1, 0
    %v2561 = vsel %vm2433, 1, 0
    %v2562 = vsel %vm2434, 1, 0
    %v2563 = vsel %vm2435, 1, 0
    %v2564 = vsel %vm2436, 1, 0
    %v2565 = vsel %vm2437, 1, 0
    %v2566 = vsel %vm2438, 1, 0
    %v2567 = vsel %vm2439, 1, 0
    %v2568 = vsel %vm2440, 1, 0
    %v2569 = vsel %vm2441, 1, 0
    %v2570 = vsel %vm2442, 1, 0
    %v2571 = vsel %vm2443, 1, 0
    %v2572 = vsel %vm2444, 1, 0
    %v2573 = vsel %vm2445, 1, 0
    %v2574 = vsel %vm2446, 1, 0
    %v2575 = vsel %vm2447, 1, 0
    %v2576 = vsel %vm2448, 1, 0
    %v2577 = vsel %vm2449, 1, 0
    %v2578 = vsel %vm2450, 1, 0
    %v2579 = vsel %vm2451, 1, 0
    %v2580 = vsel %vm2452, 1, 0
    %v2581 = vsel %vm2453, 1, 0
    %v2582 = vsel %vm2454, 1, 0
    %v2583 = vsel %vm2455, 1, 0
    %v2584 = vsel %vm2456, 1, 0
    %v2585 = vsel %vm2457, 1, 0
    %v2586 = vsel %vm2458, 1, 0
    %v2587 = vsel %vm2459, 1, 0
    %v2588 = vsel %vm2460, 1, 0
    %v2589 = vsel %vm2461, 1, 0
    %v2590 = vsel %vm2462, 1, 0
    %v2591 = vsel %vm2463, 1, 0
    %v2592 = vsel %vm2464, 1, 0
    %v2593 = vsel %vm2465, 1, 0
    %v2594 = vsel %vm2466, 1, 0
    %v2595 = vsel %vm2467, 1, 0
    %v2596 = vsel %vm2468, 1, 0
    %v2597 = vcvt.s32.f32 %v2469
    %v2598 = vcvt.s32.f32 %v2470
    %v2599 = vcvt.s32.f32 %v2471
    %v2600 = vcvt.s32.f32 %v2472
    %v2601 = vcvt.s32.f32 %v2473
    %v2602 = vcvt.s32.f32 %v2474
    %v2603 = vcvt.s32.f32 %v2475
    %v2604 = vcvt.s32.f32 %v2476
    %v2605 = vcvt.s32.f32 %v2477
    %v2606 = vcvt.s32.f32 %v2478
    %v2607 = vcvt.s32.f32 %v2479
    %v2608 = vcvt.s32.f32 %v2480
    %v2609 = vcvt.s32.f32 %v2481
    %v2610 = vcvt.s32.f32 %v2482
    %v2611 = vcvt.s32.f32 %v2483
    %v2612 = vcvt.s32.f32 %v2484
    %v2613 = vcvt.s32.f32 %v2485
    %v2614 = vcvt.s32.f32 %v2486
    %v2615 = vcvt.s32.f32 %v2487
    %v2616 = vcvt.s32.f32 %v2488
    %v2617 = vcvt.s32.f32 %v2489
    %v2618 = vcvt.s32.f32 %v2490
    %v2619 = vcvt.s32.f32 %v2491
    %v2620 = vcvt.s32.f32 %v2492
    %v2621 = vcvt.s32.f32 %v2493
    %v2622 = vcvt.s32.f32 %v2494
    %v2623 = vcvt.s32.f32 %v2495
    %v2624 = vcvt.s32.f32 %v2496
    %v2625 = vcvt.s32.f32 %v2497
    %v2626 = vcvt.s32.f32 %v2498
    %v2627 = vcvt.s32.f32 %v2499
    %v2628 = vcvt.s32.f32 %v2500
    %v2629 = vcvt.s32.f32 %v2501
    %v2630 = vcvt.s32.f32 %v2502
    %v2631 = vcvt.s32.f32 %v2503
    %v2632 = vcvt.s32.f32 %v2504
    %v2633 = vcvt.s32.f32 %v2505
    %v2634 = vcvt.s32.f32 %v2506
    %v2635 = vcvt.s32.f32 %v2507
    %v2636 = vcvt.s32.f32 %v2508
    %v2637 = vcvt.s32.f32 %v2509
    %v2638 = vcvt.s32.f32 %v2510
    %v2639 = vcvt.s32.f32 %v2511
    %v2640 = vcvt.s32.f32 %v2512
    %v2641 = vcvt.s32.f32 %v2513
    %v2642 = vcvt.s32.f32 %v2514
    %v2643 = vcvt.s32.f32 %v2515
    %v2644 = vcvt.s32.f32 %v2516
    %v2645 = vcvt.s32.f32 %v2517
    %v2646 = vcvt.s32.f32 %v2518
    %v2647 = vcvt.s32.f32 %v2519
    %v2648 = vcvt.s32.f32 %v2520
    %v2649 = vcvt.s32.f32 %v2521
    %v2650 = vcvt.s32.f32 %v2522
    %v2651 = vcvt.s32.f32 %v2523
    %v2652 = vcvt.s32.f32 %v2524
    %v2653 = vcvt.s32.f32 %v2525
    %v2654 = vcvt.s32.f32 %v2526
    %v2655 = vcvt.s32.f32 %v2527
    %v2656 = vcvt.s32.f32 %v2528
    %v2657 = vcvt.s32.f32 %v2529
    %v2658 = vcvt.s32.f32 %v2530
    %v2659 = vcvt.s32.f32 %v2531
    %v2660 = vcvt.s32.f32 %v2532
    %v2661 = vcvt.s32.f32 %v2533
    %v2662 = vcvt.s32.f32 %v2534
    %v2663 = vcvt.s32.f32 %v2535
    %v2664 = vcvt.s32.f32 %v2536
    %v2665 = vcvt.s32.f32 %v2537
    %v2666 = vcvt.s32.f32 %v2538
    %v2667 = vcvt.s32.f32 %v2539
    %v2668 = vcvt.s32.f32 %v2540
    %v2669 = vcvt.s32.f32 %v2541
    %v2670 = vcvt.s32.f32 %v2542
    %v2671 = vcvt.s32.f32 %v2543
    %v2672 = vcvt.s32.f32 %v2544
    %v2673 = vcvt.s32.f32 %v2545
    %v2674 = vcvt.s32.f32 %v2546
    %v2675 = vcvt.s32.f32 %v2547
    %v2676 = vcvt.s32.f32 %v2548
    %v2677 = vcvt.s32.f32 %v2549
    %v2678 = vcvt.s32.f32 %v2550
    %v2679 = vcvt.s32.f32 %v2551
    %v2680 = vcvt.s32.f32 %v2552
    %v2681 = vcvt.s32.f32 %v2553
    %v2682 = vcvt.s32.f32 %v2554
    %v2683 = vcvt.s32.f32 %v2555
    %v2684 = vcvt.s32.f32 %v2556
    %v2685 = vcvt.s32.f32 %v2557
    %v2686 = vcvt.s32.f32 %v2558
    %v2687 = vcvt.s32.f32 %v2559
    %v2688 = vcvt.s32.f32 %v2560
    %v2689 = vcvt.s32.f32 %v2561
    %v2690 = vcvt.s32.f32 %v2562
    %v2691 = vcvt.s32.f32 %v2563
    %v2692 = vcvt.s32.f32 %v2564
    %v2693 = vcvt.s32.f32 %v2565
    %v2694 = vcvt.s32.f32 %v2566
    %v2695 = vcvt.s32.f32 %v2567
    %v2696 = vcvt.s32.f32 %v2568
    %v2697 = vcvt.s32.f32 %v2569
    %v2698 = vcvt.s32.f32 %v2570
    %v2699 = vcvt.s32.f32 %v2571
    %v2700 = vcvt.s32.f32 %v2572
    %v2701 = vcvt.s32.f32 %v2573
    %v2702 = vcvt.s32.f32 %v2574
    %v2703 = vcvt.s32.f32 %v2575
    %v2704 = vcvt.s32.f32 %v2576
    %v2705 = vcvt.s32.f32 %v2577
    %v2706 = vcvt.s32.f32 %v2578
    %v2707 = vcvt.s32.f32 %v2579
    %v2708 = vcvt.s32.f32 %v2580
    %v2709 = vcvt.s32.f32 %v2581
    %v2710 = vcvt.s32.f32 %v2582
    %v2711 = vcvt.s32.f32 %v2583
    %v2712 = vcvt.s32.f32 %v2584
    %v2713 = vcvt.s32.f32 %v2585
    %v2714 = vcvt.s32.f32 %v2586
    %v2715 = vcvt.s32.f32 %v2587
    %v2716 = vcvt.s32.f32 %v2588
    %v2717 = vcvt.s32.f32 %v2589
    %v2718 = vcvt.s32.f32 %v2590
    %v2719 = vcvt.s32.f32 %v2591
    %v2720 = vcvt.s32.f32 %v2592
    %v2721 = vcvt.s32.f32 %v2593
    %v2722 = vcvt.s32.f32 %v2594
    %v2723 = vcvt.s32.f32 %v2595
    %v2724 = vcvt.s32.f32 %v2596
    %v2725 = vld [vmem:[%s0] sm:$0xf]
    %v2726 = vld [vmem:[%s0 + $0x4] sm:$0xf]
    %v2727 = vld [vmem:[%s0 + $0x8] sm:$0xf]
    %v2728 = vld [vmem:[%s0 + $0xc] sm:$0xf]
    %v2729 = vld [vmem:[%s0 + $0x10] sm:$0xf]
    %v2730 = vld [vmem:[%s0 + $0x14] sm:$0xf]
    %v2731 = vld [vmem:[%s0 + $0x18] sm:$0xf]
    %v2732 = vld [vmem:[%s0 + $0x1c] sm:$0xf]
    %v2733 = vld [vmem:[%s0 + $0x20] sm:$0xf]
    %v2734 = vld [vmem:[%s0 + $0x24] sm:$0xf]
    %v2735 = vld [vmem:[%s0 + $0x28] sm:$0xf]
    %v2736 = vld [vmem:[%s0 + $0x2c] sm:$0xf]
    %v2737 = vld [vmem:[%s0 + $0x30] sm:$0xf]
    %v2738 = vld [vmem:[%s0 + $0x34] sm:$0xf]
    %v2739 = vld [vmem:[%s0 + $0x38] sm:$0xf]
    %v2740 = vld [vmem:[%s0 + $0x3c] sm:$0xf]
    %v2741 = vld [vmem:[%s0 + $0x40] sm:$0xf]
    %v2742 = vld [vmem:[%s0 + $0x44] sm:$0xf]
    %v2743 = vld [vmem:[%s0 + $0x48] sm:$0xf]
    %v2744 = vld [vmem:[%s0 + $0x4c] sm:$0xf]
    %v2745 = vld [vmem:[%s0 + $0x50] sm:$0xf]
    %v2746 = vld [vmem:[%s0 + $0x54] sm:$0xf]
    %v2747 = vld [vmem:[%s0 + $0x58] sm:$0xf]
    %v2748 = vld [vmem:[%s0 + $0x5c] sm:$0xf]
    %v2749 = vld [vmem:[%s0 + $0x60] sm:$0xf]
    %v2750 = vld [vmem:[%s0 + $0x64] sm:$0xf]
    %v2751 = vld [vmem:[%s0 + $0x68] sm:$0xf]
    %v2752 = vld [vmem:[%s0 + $0x6c] sm:$0xf]
    %v2753 = vld [vmem:[%s0 + $0x70] sm:$0xf]
    %v2754 = vld [vmem:[%s0 + $0x74] sm:$0xf]
    %v2755 = vld [vmem:[%s0 + $0x78] sm:$0xf]
    %v2756 = vld [vmem:[%s0 + $0x7c] sm:$0xf]
    %v2757 = vld [vmem:[%s0 + $0x80] sm:$0xf]
    %v2758 = vld [vmem:[%s0 + $0x84] sm:$0xf]
    %v2759 = vld [vmem:[%s0 + $0x88] sm:$0xf]
    %v2760 = vld [vmem:[%s0 + $0x8c] sm:$0xf]
    %v2761 = vld [vmem:[%s0 + $0x90] sm:$0xf]
    %v2762 = vld [vmem:[%s0 + $0x94] sm:$0xf]
    %v2763 = vld [vmem:[%s0 + $0x98] sm:$0xf]
    %v2764 = vld [vmem:[%s0 + $0x9c] sm:$0xf]
    %v2765 = vld [vmem:[%s0 + $0xa0] sm:$0xf]
    %v2766 = vld [vmem:[%s0 + $0xa4] sm:$0xf]
    %v2767 = vld [vmem:[%s0 + $0xa8] sm:$0xf]
    %v2768 = vld [vmem:[%s0 + $0xac] sm:$0xf]
    %v2769 = vld [vmem:[%s0 + $0xb0] sm:$0xf]
    %v2770 = vld [vmem:[%s0 + $0xb4] sm:$0xf]
    %v2771 = vld [vmem:[%s0 + $0xb8] sm:$0xf]
    %v2772 = vld [vmem:[%s0 + $0xbc] sm:$0xf]
    %v2773 = vld [vmem:[%s0 + $0xc0] sm:$0xf]
    %v2774 = vld [vmem:[%s0 + $0xc4] sm:$0xf]
    %v2775 = vld [vmem:[%s0 + $0xc8] sm:$0xf]
    %v2776 = vld [vmem:[%s0 + $0xcc] sm:$0xf]
    %v2777 = vld [vmem:[%s0 + $0xd0] sm:$0xf]
    %v2778 = vld [vmem:[%s0 + $0xd4] sm:$0xf]
    %v2779 = vld [vmem:[%s0 + $0xd8] sm:$0xf]
    %v2780 = vld [vmem:[%s0 + $0xdc] sm:$0xf]
    %v2781 = vld [vmem:[%s0 + $0xe0] sm:$0xf]
    %v2782 = vld [vmem:[%s0 + $0xe4] sm:$0xf]
    %v2783 = vld [vmem:[%s0 + $0xe8] sm:$0xf]
    %v2784 = vld [vmem:[%s0 + $0xec] sm:$0xf]
    %v2785 = vld [vmem:[%s0 + $0xf0] sm:$0xf]
    %v2786 = vld [vmem:[%s0 + $0xf4] sm:$0xf]
    %v2787 = vld [vmem:[%s0 + $0xf8] sm:$0xf]
    %v2788 = vld [vmem:[%s0 + $0xfc] sm:$0xf]
    %v2789 = vld [vmem:[%s0 + $0x100] sm:$0xf]
    %v2790 = vld [vmem:[%s0 + $0x104] sm:$0xf]
    %v2791 = vld [vmem:[%s0 + $0x108] sm:$0xf]
    %v2792 = vld [vmem:[%s0 + $0x10c] sm:$0xf]
    %v2793 = vld [vmem:[%s0 + $0x110] sm:$0xf]
    %v2794 = vld [vmem:[%s0 + $0x114] sm:$0xf]
    %v2795 = vld [vmem:[%s0 + $0x118] sm:$0xf]
    %v2796 = vld [vmem:[%s0 + $0x11c] sm:$0xf]
    %v2797 = vld [vmem:[%s0 + $0x120] sm:$0xf]
    %v2798 = vld [vmem:[%s0 + $0x124] sm:$0xf]
    %v2799 = vld [vmem:[%s0 + $0x128] sm:$0xf]
    %v2800 = vld [vmem:[%s0 + $0x12c] sm:$0xf]
    %v2801 = vld [vmem:[%s0 + $0x130] sm:$0xf]
    %v2802 = vld [vmem:[%s0 + $0x134] sm:$0xf]
    %v2803 = vld [vmem:[%s0 + $0x138] sm:$0xf]
    %v2804 = vld [vmem:[%s0 + $0x13c] sm:$0xf]
    %v2805 = vld [vmem:[%s0 + $0x140] sm:$0xf]
    %v2806 = vld [vmem:[%s0 + $0x144] sm:$0xf]
    %v2807 = vld [vmem:[%s0 + $0x148] sm:$0xf]
    %v2808 = vld [vmem:[%s0 + $0x14c] sm:$0xf]
    %v2809 = vld [vmem:[%s0 + $0x150] sm:$0xf]
    %v2810 = vld [vmem:[%s0 + $0x154] sm:$0xf]
    %v2811 = vld [vmem:[%s0 + $0x158] sm:$0xf]
    %v2812 = vld [vmem:[%s0 + $0x15c] sm:$0xf]
    %v2813 = vld [vmem:[%s0 + $0x160] sm:$0xf]
    %v2814 = vld [vmem:[%s0 + $0x164] sm:$0xf]
    %v2815 = vld [vmem:[%s0 + $0x168] sm:$0xf]
    %v2816 = vld [vmem:[%s0 + $0x16c] sm:$0xf]
    %v2817 = vld [vmem:[%s0 + $0x170] sm:$0xf]
    %v2818 = vld [vmem:[%s0 + $0x174] sm:$0xf]
    %v2819 = vld [vmem:[%s0 + $0x178] sm:$0xf]
    %v2820 = vld [vmem:[%s0 + $0x17c] sm:$0xf]
    %v2821 = vld [vmem:[%s0 + $0x180] sm:$0xf]
    %v2822 = vld [vmem:[%s0 + $0x184] sm:$0xf]
    %v2823 = vld [vmem:[%s0 + $0x188] sm:$0xf]
    %v2824 = vld [vmem:[%s0 + $0x18c] sm:$0xf]
    %v2825 = vld [vmem:[%s0 + $0x190] sm:$0xf]
    %v2826 = vld [vmem:[%s0 + $0x194] sm:$0xf]
    %v2827 = vld [vmem:[%s0 + $0x198] sm:$0xf]
    %v2828 = vld [vmem:[%s0 + $0x19c] sm:$0xf]
    %v2829 = vld [vmem:[%s0 + $0x1a0] sm:$0xf]
    %v2830 = vld [vmem:[%s0 + $0x1a4] sm:$0xf]
    %v2831 = vld [vmem:[%s0 + $0x1a8] sm:$0xf]
    %v2832 = vld [vmem:[%s0 + $0x1ac] sm:$0xf]
    %v2833 = vld [vmem:[%s0 + $0x1b0] sm:$0xf]
    %v2834 = vld [vmem:[%s0 + $0x1b4] sm:$0xf]
    %v2835 = vld [vmem:[%s0 + $0x1b8] sm:$0xf]
    %v2836 = vld [vmem:[%s0 + $0x1bc] sm:$0xf]
    %v2837 = vld [vmem:[%s0 + $0x1c0] sm:$0xf]
    %v2838 = vld [vmem:[%s0 + $0x1c4] sm:$0xf]
    %v2839 = vld [vmem:[%s0 + $0x1c8] sm:$0xf]
    %v2840 = vld [vmem:[%s0 + $0x1cc] sm:$0xf]
    %v2841 = vld [vmem:[%s0 + $0x1d0] sm:$0xf]
    %v2842 = vld [vmem:[%s0 + $0x1d4] sm:$0xf]
    %v2843 = vld [vmem:[%s0 + $0x1d8] sm:$0xf]
    %v2844 = vld [vmem:[%s0 + $0x1dc] sm:$0xf]
    %v2845 = vld [vmem:[%s0 + $0x1e0] sm:$0xf]
    %v2846 = vld [vmem:[%s0 + $0x1e4] sm:$0xf]
    %v2847 = vld [vmem:[%s0 + $0x1e8] sm:$0xf]
    %v2848 = vld [vmem:[%s0 + $0x1ec] sm:$0xf]
    %v2849 = vld [vmem:[%s0 + $0x1f0] sm:$0xf]
    %v2850 = vld [vmem:[%s0 + $0x1f4] sm:$0xf]
    %v2851 = vld [vmem:[%s0 + $0x1f8] sm:$0xf]
    %v2852 = vld [vmem:[%s0 + $0x1fc] sm:$0xf]
    %v2853 = vld [vmem:[%s1] sm:$0xf]
    %v2854 = vld [vmem:[%s1 + $0x4] sm:$0xf]
    %v2855 = vld [vmem:[%s1 + $0x8] sm:$0xf]
    %v2856 = vld [vmem:[%s1 + $0xc] sm:$0xf]
    %v2857 = vld [vmem:[%s1 + $0x10] sm:$0x3]
    %v2858 = vld [vmem:[%s2] sm:$0x1]
    %v2860 = vlaneseq
    %v2861 = vshrl.u32 %v2860, 7
    %v2862 = vsub.s32 0, %v2861
    %v2863 = vrot.slane %v2858, %v2862
    %v2993 = vunpack.c.l.b16 %v2725
    %v2994 = vunpack.c.l.b16 %v2726
    %v2995 = vunpack.c.l.b16 %v2727
    %v2996 = vunpack.c.l.b16 %v2728
    %v2997 = vunpack.c.l.b16 %v2729
    %v2998 = vunpack.c.l.b16 %v2730
    %v2999 = vunpack.c.l.b16 %v2731
    %v3000 = vunpack.c.l.b16 %v2732
    %v3001 = vunpack.c.l.b16 %v2733
    %v3002 = vunpack.c.l.b16 %v2734
    %v3003 = vunpack.c.l.b16 %v2735
    %v3004 = vunpack.c.l.b16 %v2736
    %v3005 = vunpack.c.l.b16 %v2737
    %v3006 = vunpack.c.l.b16 %v2738
    %v3007 = vunpack.c.l.b16 %v2739
    %v3008 = vunpack.c.l.b16 %v2740
    %v3009 = vunpack.c.l.b16 %v2741
    %v3010 = vunpack.c.l.b16 %v2742
    %v3011 = vunpack.c.l.b16 %v2743
    %v3012 = vunpack.c.l.b16 %v2744
    %v3013 = vunpack.c.l.b16 %v2745
    %v3014 = vunpack.c.l.b16 %v2746
    %v3015 = vunpack.c.l.b16 %v2747
    %v3016 = vunpack.c.l.b16 %v2748
    %v3017 = vunpack.c.l.b16 %v2749
    %v3018 = vunpack.c.l.b16 %v2750
    %v3019 = vunpack.c.l.b16 %v2751
    %v3020 = vunpack.c.l.b16 %v2752
    %v3021 = vunpack.c.l.b16 %v2753
    %v3022 = vunpack.c.l.b16 %v2754
    %v3023 = vunpack.c.l.b16 %v2755
    %v3024 = vunpack.c.l.b16 %v2756
    %v3025 = vunpack.c.l.b16 %v2757
    %v3026 = vunpack.c.l.b16 %v2758
    %v3027 = vunpack.c.l.b16 %v2759
    %v3028 = vunpack.c.l.b16 %v2760
    %v3029 = vunpack.c.l.b16 %v2761
    %v3030 = vunpack.c.l.b16 %v2762
    %v3031 = vunpack.c.l.b16 %v2763
    %v3032 = vunpack.c.l.b16 %v2764
    %v3033 = vunpack.c.l.b16 %v2765
    %v3034 = vunpack.c.l.b16 %v2766
    %v3035 = vunpack.c.l.b16 %v2767
    %v3036 = vunpack.c.l.b16 %v2768
    %v3037 = vunpack.c.l.b16 %v2769
    %v3038 = vunpack.c.l.b16 %v2770
    %v3039 = vunpack.c.l.b16 %v2771
    %v3040 = vunpack.c.l.b16 %v2772
    %v3041 = vunpack.c.l.b16 %v2773
    %v3042 = vunpack.c.l.b16 %v2774
    %v3043 = vunpack.c.l.b16 %v2775
    %v3044 = vunpack.c.l.b16 %v2776
    %v3045 = vunpack.c.l.b16 %v2777
    %v3046 = vunpack.c.l.b16 %v2778
    %v3047 = vunpack.c.l.b16 %v2779
    %v3048 = vunpack.c.l.b16 %v2780
    %v3049 = vunpack.c.l.b16 %v2781
    %v3050 = vunpack.c.l.b16 %v2782
    %v3051 = vunpack.c.l.b16 %v2783
    %v3052 = vunpack.c.l.b16 %v2784
    %v3053 = vunpack.c.l.b16 %v2785
    %v3054 = vunpack.c.l.b16 %v2786
    %v3055 = vunpack.c.l.b16 %v2787
    %v3056 = vunpack.c.l.b16 %v2788
    %v3057 = vunpack.c.l.b16 %v2789
    %v3058 = vunpack.c.l.b16 %v2790
    %v3059 = vunpack.c.l.b16 %v2791
    %v3060 = vunpack.c.l.b16 %v2792
    %v3061 = vunpack.c.l.b16 %v2793
    %v3062 = vunpack.c.l.b16 %v2794
    %v3063 = vunpack.c.l.b16 %v2795
    %v3064 = vunpack.c.l.b16 %v2796
    %v3065 = vunpack.c.l.b16 %v2797
    %v3066 = vunpack.c.l.b16 %v2798
    %v3067 = vunpack.c.l.b16 %v2799
    %v3068 = vunpack.c.l.b16 %v2800
    %v3069 = vunpack.c.l.b16 %v2801
    %v3070 = vunpack.c.l.b16 %v2802
    %v3071 = vunpack.c.l.b16 %v2803
    %v3072 = vunpack.c.l.b16 %v2804
    %v3073 = vunpack.c.l.b16 %v2805
    %v3074 = vunpack.c.l.b16 %v2806
    %v3075 = vunpack.c.l.b16 %v2807
    %v3076 = vunpack.c.l.b16 %v2808
    %v3077 = vunpack.c.l.b16 %v2809
    %v3078 = vunpack.c.l.b16 %v2810
    %v3079 = vunpack.c.l.b16 %v2811
    %v3080 = vunpack.c.l.b16 %v2812
    %v3081 = vunpack.c.l.b16 %v2813
    %v3082 = vunpack.c.l.b16 %v2814
    %v3083 = vunpack.c.l.b16 %v2815
    %v3084 = vunpack.c.l.b16 %v2816
    %v3085 = vunpack.c.l.b16 %v2817
    %v3086 = vunpack.c.l.b16 %v2818
    %v3087 = vunpack.c.l.b16 %v2819
    %v3088 = vunpack.c.l.b16 %v2820
    %v3089 = vunpack.c.l.b16 %v2821
    %v3090 = vunpack.c.l.b16 %v2822
    %v3091 = vunpack.c.l.b16 %v2823
    %v3092 = vunpack.c.l.b16 %v2824
    %v3093 = vunpack.c.l.b16 %v2825
    %v3094 = vunpack.c.l.b16 %v2826
    %v3095 = vunpack.c.l.b16 %v2827
    %v3096 = vunpack.c.l.b16 %v2828
    %v3097 = vunpack.c.l.b16 %v2829
    %v3098 = vunpack.c.l.b16 %v2830
    %v3099 = vunpack.c.l.b16 %v2831
    %v3100 = vunpack.c.l.b16 %v2832
    %v3101 = vunpack.c.l.b16 %v2833
    %v3102 = vunpack.c.l.b16 %v2834
    %v3103 = vunpack.c.l.b16 %v2835
    %v3104 = vunpack.c.l.b16 %v2836
    %v3105 = vunpack.c.l.b16 %v2837
    %v3106 = vunpack.c.l.b16 %v2838
    %v3107 = vunpack.c.l.b16 %v2839
    %v3108 = vunpack.c.l.b16 %v2840
    %v3109 = vunpack.c.l.b16 %v2841
    %v3110 = vunpack.c.l.b16 %v2842
    %v3111 = vunpack.c.l.b16 %v2843
    %v3112 = vunpack.c.l.b16 %v2844
    %v3113 = vunpack.c.l.b16 %v2845
    %v3114 = vunpack.c.l.b16 %v2846
    %v3115 = vunpack.c.l.b16 %v2847
    %v3116 = vunpack.c.l.b16 %v2848
    %v3117 = vunpack.c.l.b16 %v2849
    %v3118 = vunpack.c.l.b16 %v2850
    %v3119 = vunpack.c.l.b16 %v2851
    %v3120 = vunpack.c.l.b16 %v2852
    %v3121 = vpack.c.b16 %v2994, %v2993
    %v3122 = vpack.c.b16 %v2996, %v2995
    %v3123 = vpack.c.b16 %v2998, %v2997
    %v3124 = vpack.c.b16 %v3000, %v2999
    %v3125 = vpack.c.b16 %v3002, %v3001
    %v3126 = vpack.c.b16 %v3004, %v3003
    %v3127 = vpack.c.b16 %v3006, %v3005
    %v3128 = vpack.c.b16 %v3008, %v3007
    %v3129 = vpack.c.b16 %v3010, %v3009
    %v3130 = vpack.c.b16 %v3012, %v3011
    %v3131 = vpack.c.b16 %v3014, %v3013
    %v3132 = vpack.c.b16 %v3016, %v3015
    %v3133 = vpack.c.b16 %v3018, %v3017
    %v3134 = vpack.c.b16 %v3020, %v3019
    %v3135 = vpack.c.b16 %v3022, %v3021
    %v3136 = vpack.c.b16 %v3024, %v3023
    %v3137 = vpack.c.b16 %v3026, %v3025
    %v3138 = vpack.c.b16 %v3028, %v3027
    %v3139 = vpack.c.b16 %v3030, %v3029
    %v3140 = vpack.c.b16 %v3032, %v3031
    %v3141 = vpack.c.b16 %v3034, %v3033
    %v3142 = vpack.c.b16 %v3036, %v3035
    %v3143 = vpack.c.b16 %v3038, %v3037
    %v3144 = vpack.c.b16 %v3040, %v3039
    %v3145 = vpack.c.b16 %v3042, %v3041
    %v3146 = vpack.c.b16 %v3044, %v3043
    %v3147 = vpack.c.b16 %v3046, %v3045
    %v3148 = vpack.c.b16 %v3048, %v3047
    %v3149 = vpack.c.b16 %v3050, %v3049
    %v3150 = vpack.c.b16 %v3052, %v3051
    %v3151 = vpack.c.b16 %v3054, %v3053
    %v3152 = vpack.c.b16 %v3056, %v3055
    %v3153 = vpack.c.b16 %v3058, %v3057
    %v3154 = vpack.c.b16 %v3060, %v3059
    %v3155 = vpack.c.b16 %v3062, %v3061
    %v3156 = vpack.c.b16 %v3064, %v3063
    %v3157 = vpack.c.b16 %v3066, %v3065
    %v3158 = vpack.c.b16 %v3068, %v3067
    %v3159 = vpack.c.b16 %v3070, %v3069
    %v3160 = vpack.c.b16 %v3072, %v3071
    %v3161 = vpack.c.b16 %v3074, %v3073
    %v3162 = vpack.c.b16 %v3076, %v3075
    %v3163 = vpack.c.b16 %v3078, %v3077
    %v3164 = vpack.c.b16 %v3080, %v3079
    %v3165 = vpack.c.b16 %v3082, %v3081
    %v3166 = vpack.c.b16 %v3084, %v3083
    %v3167 = vpack.c.b16 %v3086, %v3085
    %v3168 = vpack.c.b16 %v3088, %v3087
    %v3169 = vpack.c.b16 %v3090, %v3089
    %v3170 = vpack.c.b16 %v3092, %v3091
    %v3171 = vpack.c.b16 %v3094, %v3093
    %v3172 = vpack.c.b16 %v3096, %v3095
    %v3173 = vpack.c.b16 %v3098, %v3097
    %v3174 = vpack.c.b16 %v3100, %v3099
    %v3175 = vpack.c.b16 %v3102, %v3101
    %v3176 = vpack.c.b16 %v3104, %v3103
    %v3177 = vpack.c.b16 %v3106, %v3105
    %v3178 = vpack.c.b16 %v3108, %v3107
    %v3179 = vpack.c.b16 %v3110, %v3109
    %v3180 = vpack.c.b16 %v3112, %v3111
    %v3181 = vpack.c.b16 %v3114, %v3113
    %v3182 = vpack.c.b16 %v3116, %v3115
    %v3183 = vpack.c.b16 %v3118, %v3117
    %v3184 = vpack.c.b16 %v3120, %v3119
    %v3190 = vunpack.c.l.b16 %v2853
    %v3191 = vunpack.c.l.b16 %v2854
    %v3192 = vunpack.c.l.b16 %v2855
    %v3193 = vunpack.c.l.b16 %v2856
    %v3194 = vunpack.c.l.b16 %v2857
    %v3195 = vpack.c.b16 %v3191, %v3190
    %v3196 = vpack.c.b16 %v3193, %v3192
    %v3197 = vpack.c.b16 %v3194, %v3194
    %vm3200 = vcmask 293888
    %v3202 = vsel %vm3200, %v3121, 0
    %v3205 = vsel %vm3200, %v3122, 0
    %v3208 = vsel %vm3200, %v3123, 0
    %v3211 = vsel %vm3200, %v3124, 0
    %v3214 = vsel %vm3200, %v3125, 0
    %v3217 = vsel %vm3200, %v3126, 0
    %v3220 = vsel %vm3200, %v3127, 0
    %v3223 = vsel %vm3200, %v3128, 0
    %v3226 = vsel %vm3200, %v3129, 0
    %v3229 = vsel %vm3200, %v3130, 0
    %v3232 = vsel %vm3200, %v3131, 0
    %v3235 = vsel %vm3200, %v3132, 0
    %v3238 = vsel %vm3200, %v3133, 0
    %v3241 = vsel %vm3200, %v3134, 0
    %v3244 = vsel %vm3200, %v3135, 0
    %v3247 = vsel %vm3200, %v3136, 0
    %v3250 = vsel %vm3200, %v3137, 0
    %v3253 = vsel %vm3200, %v3138, 0
    %v3256 = vsel %vm3200, %v3139, 0
    %v3259 = vsel %vm3200, %v3140, 0
    %v3262 = vsel %vm3200, %v3141, 0
    %v3265 = vsel %vm3200, %v3142, 0
    %v3268 = vsel %vm3200, %v3143, 0
    %v3271 = vsel %vm3200, %v3144, 0
    %v3274 = vsel %vm3200, %v3145, 0
    %v3277 = vsel %vm3200, %v3146, 0
    %v3280 = vsel %vm3200, %v3147, 0
    %v3283 = vsel %vm3200, %v3148, 0
    %v3286 = vsel %vm3200, %v3149, 0
    %v3289 = vsel %vm3200, %v3150, 0
    %v3292 = vsel %vm3200, %v3151, 0
    %v3295 = vsel %vm3200, %v3152, 0
    %v3298 = vsel %vm3200, %v3153, 0
    %v3301 = vsel %vm3200, %v3154, 0
    %v3304 = vsel %vm3200, %v3155, 0
    %v3307 = vsel %vm3200, %v3156, 0
    %v3310 = vsel %vm3200, %v3157, 0
    %v3313 = vsel %vm3200, %v3158, 0
    %v3316 = vsel %vm3200, %v3159, 0
    %v3319 = vsel %vm3200, %v3160, 0
    %v3322 = vsel %vm3200, %v3161, 0
    %v3325 = vsel %vm3200, %v3162, 0
    %v3328 = vsel %vm3200, %v3163, 0
    %v3331 = vsel %vm3200, %v3164, 0
    %v3334 = vsel %vm3200, %v3165, 0
    %v3337 = vsel %vm3200, %v3166, 0
    %v3340 = vsel %vm3200, %v3167, 0
    %v3343 = vsel %vm3200, %v3168, 0
    %v3346 = vsel %vm3200, %v3169, 0
    %v3349 = vsel %vm3200, %v3170, 0
    %v3352 = vsel %vm3200, %v3171, 0
    %v3355 = vsel %vm3200, %v3172, 0
    %v3358 = vsel %vm3200, %v3173, 0
    %v3361 = vsel %vm3200, %v3174, 0
    %v3364 = vsel %vm3200, %v3175, 0
    %v3367 = vsel %vm3200, %v3176, 0
    %v3370 = vsel %vm3200, %v3177, 0
    %v3373 = vsel %vm3200, %v3178, 0
    %v3376 = vsel %vm3200, %v3179, 0
    %v3379 = vsel %vm3200, %v3180, 0
    %v3382 = vsel %vm3200, %v3181, 0
    %v3385 = vsel %vm3200, %v3182, 0
    %v3388 = vsel %vm3200, %v3183, 0
    %v3391 = vsel %vm3200, %v3184, 0
    %vm3393 = vcmask 1041408
    %v3395 = vsel %vm3393, %v3197, 0
    %3397 = vmatprep.subr.bf16.mxu0 0
    %3398 = vmatpush1.bf16.msra.mxu0 %v3195
    %3399 = vmatprep.subr.bf16.mxu0 0
    %3400 = vmatpush1.bf16.msra.mxu0 %v3196
    %3401 = vmatprep.subr.bf16.mxu0 0
    %3402 = vmatpush1.bf16.msra.mxu0 %v3395
    %3403 = vmatprep.subr.bf16.mxu0 0
    %3404 = vmatpush1.bf16.msra.mxu0 0
    %3405 = vmatprep.subr.bf16.mxu0 0
    %3406 = vmatpush1.bf16.msra.mxu0 0
    %3407 = vmatprep.subr.bf16.mxu0 0
    %3408 = vmatpush1.bf16.msra.mxu0 0
    %3409 = vmatprep.subr.bf16.mxu0 0
    %3410 = vmatpush1.bf16.msra.mxu0 0
    %3411 = vmatprep.subr.bf16.mxu0 0
    %3412 = vmatpush1.bf16.msra.mxu0 0
    %3413 = vmatprep.subr.bf16.mxu0 0
    %3414 = vmatpush1.bf16.msra.mxu0 0
    %3415 = vmatprep.subr.bf16.mxu0 0
    %3416 = vmatpush1.bf16.msra.mxu0 0
    %3417 = vmatprep.subr.bf16.mxu0 0
    %3418 = vmatpush1.bf16.msra.mxu0 0
    %3419 = vmatprep.subr.bf16.mxu0 0
    %3420 = vmatpush1.bf16.msra.mxu0 0
    %3421 = vmatprep.subr.bf16.mxu0 0
    %3422 = vmatpush1.bf16.msra.mxu0 0
    %3423 = vmatprep.subr.bf16.mxu0 0
    %3424 = vmatpush1.bf16.msra.mxu0 0
    %3425 = vmatprep.subr.bf16.mxu0 0
    %3426 = vmatpush1.bf16.msra.mxu0 0
    %3427 = vmatprep.subr.bf16.mxu0 0
    %3428 = vmatpush1.bf16.msra.mxu0 0
    %3429 = vmatprep.mubr.bf16.mxu0 0
    %3430 = vmatmul.mubr.bf16.gmra.mrb[0].mxu0 %v3202
    %v3431 = vpop.f32.mrb[0].mxu0
    %v3432 = vadd.f32 %v2863, %v3431
    %v3433 = vpop.f32.mrb[0].mxu0
    %v3434 = vpop.f32.mrb[0].mxu0
    %v3435 = vadd.f32 %v2863, %v3434
    %v3436 = vpop.f32.mrb[0].mxu0
    %3437 = vmatprep.mubr.bf16.mxu0 0
    %3438 = vmatmul.mubr.bf16.gmra.mrb[0].mxu0 %v3205
    %v3439 = vpop.f32.mrb[0].mxu0
    %v3440 = vadd.f32 %v2863, %v3439
    %v3441 = vpop.f32.mrb[0].mxu0
    %v3442 = vpop.f32.mrb[0].mxu0
    %v3443 = vadd.f32 %v2863, %v3442
    %v3444 = vpop.f32.mrb[0].mxu0
    %3445 = vmatprep.mubr.bf16.mxu0 0
    %3446 = vmatmul.mubr.bf16.gmra.mrb[0].mxu0 %v3208
    %v3447 = vpop.f32.mrb[0].mxu0
    %v3448 = vadd.f32 %v2863, %v3447
    %v3449 = vpop.f32.mrb[0].mxu0
    %v3450 = vpop.f32.mrb[0].mxu0
    %v3451 = vadd.f32 %v2863, %v3450
    %v3452 = vpop.f32.mrb[0].mxu0
    %3453 = vmatprep.mubr.bf16.mxu0 0
    %3454 = vmatmul.mubr.bf16.gmra.mrb[0].mxu0 %v3211
    %v3455 = vpop.f32.mrb[0].mxu0
    %v3456 = vadd.f32 %v2863, %v3455
    %v3457 = vpop.f32.mrb[0].mxu0
    %v3458 = vpop.f32.mrb[0].mxu0
    %v3459 = vadd.f32 %v2863, %v3458
    %v3460 = vpop.f32.mrb[0].mxu0
    %3461 = vmatprep.mubr.bf16.mxu0 0
    %3462 = vmatmul.mubr.bf16.gmra.mrb[0].mxu0 %v3214
    %v3463 = vpop.f32.mrb[0].mxu0
    %v3464 = vadd.f32 %v2863, %v3463
    %v3465 = vpop.f32.mrb[0].mxu0
    %v3466 = vpop.f32.mrb[0].mxu0
    %v3467 = vadd.f32 %v2863, %v3466
    %v3468 = vpop.f32.mrb[0].mxu0
    %3469 = vmatprep.mubr.bf16.mxu0 0
    %3470 = vmatmul.mubr.bf16.gmra.mrb[0].mxu0 %v3217
    %v3471 = vpop.f32.mrb[0].mxu0
    %v3472 = vadd.f32 %v2863, %v3471
    %v3473 = vpop.f32.mrb[0].mxu0
    %v3474 = vpop.f32.mrb[0].mxu0
    %v3475 = vadd.f32 %v2863, %v3474
    %v3476 = vpop.f32.mrb[0].mxu0
    %3477 = vmatprep.mubr.bf16.mxu0 0
    %3478 = vmatmul.mubr.bf16.gmra.mrb[0].mxu0 %v3220
    %v3479 = vpop.f32.mrb[0].mxu0
    %v3480 = vadd.f32 %v2863, %v3479
    %v3481 = vpop.f32.mrb[0].mxu0
    %v3482 = vpop.f32.mrb[0].mxu0
    %v3483 = vadd.f32 %v2863, %v3482
    %v3484 = vpop.f32.mrb[0].mxu0
    %3485 = vmatprep.mubr.bf16.mxu0 0
    %3486 = vmatmul.mubr.bf16.gmra.mrb[0].mxu0 %v3223
    %v3487 = vpop.f32.mrb[0].mxu0
    %v3488 = vadd.f32 %v2863, %v3487
    %v3489 = vpop.f32.mrb[0].mxu0
    %v3490 = vpop.f32.mrb[0].mxu0
    %v3491 = vadd.f32 %v2863, %v3490
    %v3492 = vpop.f32.mrb[0].mxu0
    %3493 = vmatprep.mubr.bf16.mxu0 0
    %3494 = vmatmul.mubr.bf16.gmra.mrb[0].mxu0 %v3226
    %v3495 = vpop.f32.mrb[0].mxu0
    %v3496 = vadd.f32 %v2863, %v3495
    %v3497 = vpop.f32.mrb[0].mxu0
    %v3498 = vpop.f32.mrb[0].mxu0
    %v3499 = vadd.f32 %v2863, %v3498
    %v3500 = vpop.f32.mrb[0].mxu0
    %3501 = vmatprep.mubr.bf16.mxu0 0
    %3502 = vmatmul.mubr.bf16.gmra.mrb[0].mxu0 %v3229
    %v3503 = vpop.f32.mrb[0].mxu0
    %v3504 = vadd.f32 %v2863, %v3503
    %v3505 = vpop.f32.mrb[0].mxu0
    %v3506 = vpop.f32.mrb[0].mxu0
    %v3507 = vadd.f32 %v2863, %v3506
    %v3508 = vpop.f32.mrb[0].mxu0
    %3509 = vmatprep.mubr.bf16.mxu0 0
    %3510 = vmatmul.mubr.bf16.gmra.mrb[0].mxu0 %v3232
    %v3511 = vpop.f32.mrb[0].mxu0
    %v3512 = vadd.f32 %v2863, %v3511
    %v3513 = vpop.f32.mrb[0].mxu0
    %v3514 = vpop.f32.mrb[0].mxu0
    %v3515 = vadd.f32 %v2863, %v3514
    %v3516 = vpop.f32.mrb[0].mxu0
    %3517 = vmatprep.mubr.bf16.mxu0 0
    %3518 = vmatmul.mubr.bf16.gmra.mrb[0].mxu0 %v3235
    %v3519 = vpop.f32.mrb[0].mxu0
    %v3520 = vadd.f32 %v2863, %v3519
    %v3521 = vpop.f32.mrb[0].mxu0
    %v3522 = vpop.f32.mrb[0].mxu0
    %v3523 = vadd.f32 %v2863, %v3522
    %v3524 = vpop.f32.mrb[0].mxu0
    %3525 = vmatprep.mubr.bf16.mxu0 0
    %3526 = vmatmul.mubr.bf16.gmra.mrb[0].mxu0 %v3238
    %v3527 = vpop.f32.mrb[0].mxu0
    %v3528 = vadd.f32 %v2863, %v3527
    %v3529 = vpop.f32.mrb[0].mxu0
    %v3530 = vpop.f32.mrb[0].mxu0
    %v3531 = vadd.f32 %v2863, %v3530
    %v3532 = vpop.f32.mrb[0].mxu0
    %3533 = vmatprep.mubr.bf16.mxu0 0
    %3534 = vmatmul.mubr.bf16.gmra.mrb[0].mxu0 %v3241
    %v3535 = vpop.f32.mrb[0].mxu0
    %v3536 = vadd.f32 %v2863, %v3535
    %v3537 = vpop.f32.mrb[0].mxu0
    %v3538 = vpop.f32.mrb[0].mxu0
    %v3539 = vadd.f32 %v2863, %v3538
    %v3540 = vpop.f32.mrb[0].mxu0
    %3541 = vmatprep.mubr.bf16.mxu0 0
    %3542 = vmatmul.mubr.bf16.gmra.mrb[0].mxu0 %v3244
    %v3543 = vpop.f32.mrb[0].mxu0
    %v3544 = vadd.f32 %v2863, %v3543
    %v3545 = vpop.f32.mrb[0].mxu0
    %v3546 = vpop.f32.mrb[0].mxu0
    %v3547 = vadd.f32 %v2863, %v3546
    %v3548 = vpop.f32.mrb[0].mxu0
    %3549 = vmatprep.mubr.bf16.mxu0 0
    %3550 = vmatmul.mubr.bf16.gmra.mrb[0].mxu0 %v3247
    %v3551 = vpop.f32.mrb[0].mxu0
    %v3552 = vadd.f32 %v2863, %v3551
    %v3553 = vpop.f32.mrb[0].mxu0
    %v3554 = vpop.f32.mrb[0].mxu0
    %v3555 = vadd.f32 %v2863, %v3554
    %v3556 = vpop.f32.mrb[0].mxu0
    %3557 = vmatprep.mubr.bf16.mxu0 0
    %3558 = vmatmul.mubr.bf16.gmra.mrb[0].mxu0 %v3250
    %v3559 = vpop.f32.mrb[0].mxu0
    %v3560 = vadd.f32 %v2863, %v3559
    %v3561 = vpop.f32.mrb[0].mxu0
    %v3562 = vpop.f32.mrb[0].mxu0
    %v3563 = vadd.f32 %v2863, %v3562
    %v3564 = vpop.f32.mrb[0].mxu0
    %3565 = vmatprep.mubr.bf16.mxu0 0
    %3566 = vmatmul.mubr.bf16.gmra.mrb[0].mxu0 %v3253
    %v3567 = vpop.f32.mrb[0].mxu0
    %v3568 = vadd.f32 %v2863, %v3567
    %v3569 = vpop.f32.mrb[0].mxu0
    %v3570 = vpop.f32.mrb[0].mxu0
    %v3571 = vadd.f32 %v2863, %v3570
    %v3572 = vpop.f32.mrb[0].mxu0
    %3573 = vmatprep.mubr.bf16.mxu0 0
    %3574 = vmatmul.mubr.bf16.gmra.mrb[0].mxu0 %v3256
    %v3575 = vpop.f32.mrb[0].mxu0
    %v3576 = vadd.f32 %v2863, %v3575
    %v3577 = vpop.f32.mrb[0].mxu0
    %v3578 = vpop.f32.mrb[0].mxu0
    %v3579 = vadd.f32 %v2863, %v3578
    %v3580 = vpop.f32.mrb[0].mxu0
    %3581 = vmatprep.mubr.bf16.mxu0 0
    %3582 = vmatmul.mubr.bf16.gmra.mrb[0].mxu0 %v3259
    %v3583 = vpop.f32.mrb[0].mxu0
    %v3584 = vadd.f32 %v2863, %v3583
    %v3585 = vpop.f32.mrb[0].mxu0
    %v3586 = vpop.f32.mrb[0].mxu0
    %v3587 = vadd.f32 %v2863, %v3586
    %v3588 = vpop.f32.mrb[0].mxu0
    %3589 = vmatprep.mubr.bf16.mxu0 0
    %3590 = vmatmul.mubr.bf16.gmra.mrb[0].mxu0 %v3262
    %v3591 = vpop.f32.mrb[0].mxu0
    %v3592 = vadd.f32 %v2863, %v3591
    %v3593 = vpop.f32.mrb[0].mxu0
    %v3594 = vpop.f32.mrb[0].mxu0
    %v3595 = vadd.f32 %v2863, %v3594
    %v3596 = vpop.f32.mrb[0].mxu0
    %3597 = vmatprep.mubr.bf16.mxu0 0
    %3598 = vmatmul.mubr.bf16.gmra.mrb[0].mxu0 %v3265
    %v3599 = vpop.f32.mrb[0].mxu0
    %v3600 = vadd.f32 %v2863, %v3599
    %v3601 = vpop.f32.mrb[0].mxu0
    %v3602 = vpop.f32.mrb[0].mxu0
    %v3603 = vadd.f32 %v2863, %v3602
    %v3604 = vpop.f32.mrb[0].mxu0
    %3605 = vmatprep.mubr.bf16.mxu0 0
    %3606 = vmatmul.mubr.bf16.gmra.mrb[0].mxu0 %v3268
    %v3607 = vpop.f32.mrb[0].mxu0
    %v3608 = vadd.f32 %v2863, %v3607
    %v3609 = vpop.f32.mrb[0].mxu0
    %v3610 = vpop.f32.mrb[0].mxu0
    %v3611 = vadd.f32 %v2863, %v3610
    %v3612 = vpop.f32.mrb[0].mxu0
    %3613 = vmatprep.mubr.bf16.mxu0 0
    %3614 = vmatmul.mubr.bf16.gmra.mrb[0].mxu0 %v3271
    %v3615 = vpop.f32.mrb[0].mxu0
    %v3616 = vadd.f32 %v2863, %v3615
    %v3617 = vpop.f32.mrb[0].mxu0
    %v3618 = vpop.f32.mrb[0].mxu0
    %v3619 = vadd.f32 %v2863, %v3618
    %v3620 = vpop.f32.mrb[0].mxu0
    %3621 = vmatprep.mubr.bf16.mxu0 0
    %3622 = vmatmul.mubr.bf16.gmra.mrb[0].mxu0 %v3274
    %v3623 = vpop.f32.mrb[0].mxu0
    %v3624 = vadd.f32 %v2863, %v3623
    %v3625 = vpop.f32.mrb[0].mxu0
    %v3626 = vpop.f32.mrb[0].mxu0
    %v3627 = vadd.f32 %v2863, %v3626
    %v3628 = vpop.f32.mrb[0].mxu0
    %3629 = vmatprep.mubr.bf16.mxu0 0
    %3630 = vmatmul.mubr.bf16.gmra.mrb[0].mxu0 %v3277
    %v3631 = vpop.f32.mrb[0].mxu0
    %v3632 = vadd.f32 %v2863, %v3631
    %v3633 = vpop.f32.mrb[0].mxu0
    %v3634 = vpop.f32.mrb[0].mxu0
    %v3635 = vadd.f32 %v2863, %v3634
    %v3636 = vpop.f32.mrb[0].mxu0
    %3637 = vmatprep.mubr.bf16.mxu0 0
    %3638 = vmatmul.mubr.bf16.gmra.mrb[0].mxu0 %v3280
    %v3639 = vpop.f32.mrb[0].mxu0
    %v3640 = vadd.f32 %v2863, %v3639
    %v3641 = vpop.f32.mrb[0].mxu0
    %v3642 = vpop.f32.mrb[0].mxu0
    %v3643 = vadd.f32 %v2863, %v3642
    %v3644 = vpop.f32.mrb[0].mxu0
    %3645 = vmatprep.mubr.bf16.mxu0 0
    %3646 = vmatmul.mubr.bf16.gmra.mrb[0].mxu0 %v3283
    %v3647 = vpop.f32.mrb[0].mxu0
    %v3648 = vadd.f32 %v2863, %v3647
    %v3649 = vpop.f32.mrb[0].mxu0
    %v3650 = vpop.f32.mrb[0].mxu0
    %v3651 = vadd.f32 %v2863, %v3650
    %v3652 = vpop.f32.mrb[0].mxu0
    %3653 = vmatprep.mubr.bf16.mxu0 0
    %3654 = vmatmul.mubr.bf16.gmra.mrb[0].mxu0 %v3286
    %v3655 = vpop.f32.mrb[0].mxu0
    %v3656 = vadd.f32 %v2863, %v3655
    %v3657 = vpop.f32.mrb[0].mxu0
    %v3658 = vpop.f32.mrb[0].mxu0
    %v3659 = vadd.f32 %v2863, %v3658
    %v3660 = vpop.f32.mrb[0].mxu0
    %3661 = vmatprep.mubr.bf16.mxu0 0
    %3662 = vmatmul.mubr.bf16.gmra.mrb[0].mxu0 %v3289
    %v3663 = vpop.f32.mrb[0].mxu0
    %v3664 = vadd.f32 %v2863, %v3663
    %v3665 = vpop.f32.mrb[0].mxu0
    %v3666 = vpop.f32.mrb[0].mxu0
    %v3667 = vadd.f32 %v2863, %v3666
    %v3668 = vpop.f32.mrb[0].mxu0
    %3669 = vmatprep.mubr.bf16.mxu0 0
    %3670 = vmatmul.mubr.bf16.gmra.mrb[0].mxu0 %v3292
    %v3671 = vpop.f32.mrb[0].mxu0
    %v3672 = vadd.f32 %v2863, %v3671
    %v3673 = vpop.f32.mrb[0].mxu0
    %v3674 = vpop.f32.mrb[0].mxu0
    %v3675 = vadd.f32 %v2863, %v3674
    %v3676 = vpop.f32.mrb[0].mxu0
    %3677 = vmatprep.mubr.bf16.mxu0 0
    %3678 = vmatmul.mubr.bf16.gmra.mrb[0].mxu0 %v3295
    %v3679 = vpop.f32.mrb[0].mxu0
    %v3680 = vadd.f32 %v2863, %v3679
    %v3681 = vpop.f32.mrb[0].mxu0
    %v3682 = vpop.f32.mrb[0].mxu0
    %v3683 = vadd.f32 %v2863, %v3682
    %v3684 = vpop.f32.mrb[0].mxu0
    %3685 = vmatprep.mubr.bf16.mxu0 0
    %3686 = vmatmul.mubr.bf16.gmra.mrb[0].mxu0 %v3298
    %v3687 = vpop.f32.mrb[0].mxu0
    %v3688 = vadd.f32 %v2863, %v3687
    %v3689 = vpop.f32.mrb[0].mxu0
    %v3690 = vpop.f32.mrb[0].mxu0
    %v3691 = vadd.f32 %v2863, %v3690
    %v3692 = vpop.f32.mrb[0].mxu0
    %3693 = vmatprep.mubr.bf16.mxu0 0
    %3694 = vmatmul.mubr.bf16.gmra.mrb[0].mxu0 %v3301
    %v3695 = vpop.f32.mrb[0].mxu0
    %v3696 = vadd.f32 %v2863, %v3695
    %v3697 = vpop.f32.mrb[0].mxu0
    %v3698 = vpop.f32.mrb[0].mxu0
    %v3699 = vadd.f32 %v2863, %v3698
    %v3700 = vpop.f32.mrb[0].mxu0
    %3701 = vmatprep.mubr.bf16.mxu0 0
    %3702 = vmatmul.mubr.bf16.gmra.mrb[0].mxu0 %v3304
    %v3703 = vpop.f32.mrb[0].mxu0
    %v3704 = vadd.f32 %v2863, %v3703
    %v3705 = vpop.f32.mrb[0].mxu0
    %v3706 = vpop.f32.mrb[0].mxu0
    %v3707 = vadd.f32 %v2863, %v3706
    %v3708 = vpop.f32.mrb[0].mxu0
    %3709 = vmatprep.mubr.bf16.mxu0 0
    %3710 = vmatmul.mubr.bf16.gmra.mrb[0].mxu0 %v3307
    %v3711 = vpop.f32.mrb[0].mxu0
    %v3712 = vadd.f32 %v2863, %v3711
    %v3713 = vpop.f32.mrb[0].mxu0
    %v3714 = vpop.f32.mrb[0].mxu0
    %v3715 = vadd.f32 %v2863, %v3714
    %v3716 = vpop.f32.mrb[0].mxu0
    %3717 = vmatprep.mubr.bf16.mxu0 0
    %3718 = vmatmul.mubr.bf16.gmra.mrb[0].mxu0 %v3310
    %v3719 = vpop.f32.mrb[0].mxu0
    %v3720 = vadd.f32 %v2863, %v3719
    %v3721 = vpop.f32.mrb[0].mxu0
    %v3722 = vpop.f32.mrb[0].mxu0
    %v3723 = vadd.f32 %v2863, %v3722
    %v3724 = vpop.f32.mrb[0].mxu0
    %3725 = vmatprep.mubr.bf16.mxu0 0
    %3726 = vmatmul.mubr.bf16.gmra.mrb[0].mxu0 %v3313
    %v3727 = vpop.f32.mrb[0].mxu0
    %v3728 = vadd.f32 %v2863, %v3727
    %v3729 = vpop.f32.mrb[0].mxu0
    %v3730 = vpop.f32.mrb[0].mxu0
    %v3731 = vadd.f32 %v2863, %v3730
    %v3732 = vpop.f32.mrb[0].mxu0
    %3733 = vmatprep.mubr.bf16.mxu0 0
    %3734 = vmatmul.mubr.bf16.gmra.mrb[0].mxu0 %v3316
    %v3735 = vpop.f32.mrb[0].mxu0
    %v3736 = vadd.f32 %v2863, %v3735
    %v3737 = vpop.f32.mrb[0].mxu0
    %v3738 = vpop.f32.mrb[0].mxu0
    %v3739 = vadd.f32 %v2863, %v3738
    %v3740 = vpop.f32.mrb[0].mxu0
    %3741 = vmatprep.mubr.bf16.mxu0 0
    %3742 = vmatmul.mubr.bf16.gmra.mrb[0].mxu0 %v3319
    %v3743 = vpop.f32.mrb[0].mxu0
    %v3744 = vadd.f32 %v2863, %v3743
    %v3745 = vpop.f32.mrb[0].mxu0
    %v3746 = vpop.f32.mrb[0].mxu0
    %v3747 = vadd.f32 %v2863, %v3746
    %v3748 = vpop.f32.mrb[0].mxu0
    %3749 = vmatprep.mubr.bf16.mxu0 0
    %3750 = vmatmul.mubr.bf16.gmra.mrb[0].mxu0 %v3322
    %v3751 = vpop.f32.mrb[0].mxu0
    %v3752 = vadd.f32 %v2863, %v3751
    %v3753 = vpop.f32.mrb[0].mxu0
    %v3754 = vpop.f32.mrb[0].mxu0
    %v3755 = vadd.f32 %v2863, %v3754
    %v3756 = vpop.f32.mrb[0].mxu0
    %3757 = vmatprep.mubr.bf16.mxu0 0
    %3758 = vmatmul.mubr.bf16.gmra.mrb[0].mxu0 %v3325
    %v3759 = vpop.f32.mrb[0].mxu0
    %v3760 = vadd.f32 %v2863, %v3759
    %v3761 = vpop.f32.mrb[0].mxu0
    %v3762 = vpop.f32.mrb[0].mxu0
    %v3763 = vadd.f32 %v2863, %v3762
    %v3764 = vpop.f32.mrb[0].mxu0
    %3765 = vmatprep.mubr.bf16.mxu0 0
    %3766 = vmatmul.mubr.bf16.gmra.mrb[0].mxu0 %v3328
    %v3767 = vpop.f32.mrb[0].mxu0
    %v3768 = vadd.f32 %v2863, %v3767
    %v3769 = vpop.f32.mrb[0].mxu0
    %v3770 = vpop.f32.mrb[0].mxu0
    %v3771 = vadd.f32 %v2863, %v3770
    %v3772 = vpop.f32.mrb[0].mxu0
    %3773 = vmatprep.mubr.bf16.mxu0 0
    %3774 = vmatmul.mubr.bf16.gmra.mrb[0].mxu0 %v3331
    %v3775 = vpop.f32.mrb[0].mxu0
    %v3776 = vadd.f32 %v2863, %v3775
    %v3777 = vpop.f32.mrb[0].mxu0
    %v3778 = vpop.f32.mrb[0].mxu0
    %v3779 = vadd.f32 %v2863, %v3778
    %v3780 = vpop.f32.mrb[0].mxu0
    %3781 = vmatprep.mubr.bf16.mxu0 0
    %3782 = vmatmul.mubr.bf16.gmra.mrb[0].mxu0 %v3334
    %v3783 = vpop.f32.mrb[0].mxu0
    %v3784 = vadd.f32 %v2863, %v3783
    %v3785 = vpop.f32.mrb[0].mxu0
    %v3786 = vpop.f32.mrb[0].mxu0
    %v3787 = vadd.f32 %v2863, %v3786
    %v3788 = vpop.f32.mrb[0].mxu0
    %3789 = vmatprep.mubr.bf16.mxu0 0
    %3790 = vmatmul.mubr.bf16.gmra.mrb[0].mxu0 %v3337
    %v3791 = vpop.f32.mrb[0].mxu0
    %v3792 = vadd.f32 %v2863, %v3791
    %v3793 = vpop.f32.mrb[0].mxu0
    %v3794 = vpop.f32.mrb[0].mxu0
    %v3795 = vadd.f32 %v2863, %v3794
    %v3796 = vpop.f32.mrb[0].mxu0
    %3797 = vmatprep.mubr.bf16.mxu0 0
    %3798 = vmatmul.mubr.bf16.gmra.mrb[0].mxu0 %v3340
    %v3799 = vpop.f32.mrb[0].mxu0
    %v3800 = vadd.f32 %v2863, %v3799
    %v3801 = vpop.f32.mrb[0].mxu0
    %v3802 = vpop.f32.mrb[0].mxu0
    %v3803 = vadd.f32 %v2863, %v3802
    %v3804 = vpop.f32.mrb[0].mxu0
    %3805 = vmatprep.mubr.bf16.mxu0 0
    %3806 = vmatmul.mubr.bf16.gmra.mrb[0].mxu0 %v3343
    %v3807 = vpop.f32.mrb[0].mxu0
    %v3808 = vadd.f32 %v2863, %v3807
    %v3809 = vpop.f32.mrb[0].mxu0
    %v3810 = vpop.f32.mrb[0].mxu0
    %v3811 = vadd.f32 %v2863, %v3810
    %v3812 = vpop.f32.mrb[0].mxu0
    %3813 = vmatprep.mubr.bf16.mxu0 0
    %3814 = vmatmul.mubr.bf16.gmra.mrb[0].mxu0 %v3346
    %v3815 = vpop.f32.mrb[0].mxu0
    %v3816 = vadd.f32 %v2863, %v3815
    %v3817 = vpop.f32.mrb[0].mxu0
    %v3818 = vpop.f32.mrb[0].mxu0
    %v3819 = vadd.f32 %v2863, %v3818
    %v3820 = vpop.f32.mrb[0].mxu0
    %3821 = vmatprep.mubr.bf16.mxu0 0
    %3822 = vmatmul.mubr.bf16.gmra.mrb[0].mxu0 %v3349
    %v3823 = vpop.f32.mrb[0].mxu0
    %v3824 = vadd.f32 %v2863, %v3823
    %v3825 = vpop.f32.mrb[0].mxu0
    %v3826 = vpop.f32.mrb[0].mxu0
    %v3827 = vadd.f32 %v2863, %v3826
    %v3828 = vpop.f32.mrb[0].mxu0
    %3829 = vmatprep.mubr.bf16.mxu0 0
    %3830 = vmatmul.mubr.bf16.gmra.mrb[0].mxu0 %v3352
    %v3831 = vpop.f32.mrb[0].mxu0
    %v3832 = vadd.f32 %v2863, %v3831
    %v3833 = vpop.f32.mrb[0].mxu0
    %v3834 = vpop.f32.mrb[0].mxu0
    %v3835 = vadd.f32 %v2863, %v3834
    %v3836 = vpop.f32.mrb[0].mxu0
    %3837 = vmatprep.mubr.bf16.mxu0 0
    %3838 = vmatmul.mubr.bf16.gmra.mrb[0].mxu0 %v3355
    %v3839 = vpop.f32.mrb[0].mxu0
    %v3840 = vadd.f32 %v2863, %v3839
    %v3841 = vpop.f32.mrb[0].mxu0
    %v3842 = vpop.f32.mrb[0].mxu0
    %v3843 = vadd.f32 %v2863, %v3842
    %v3844 = vpop.f32.mrb[0].mxu0
    %3845 = vmatprep.mubr.bf16.mxu0 0
    %3846 = vmatmul.mubr.bf16.gmra.mrb[0].mxu0 %v3358
    %v3847 = vpop.f32.mrb[0].mxu0
    %v3848 = vadd.f32 %v2863, %v3847
    %v3849 = vpop.f32.mrb[0].mxu0
    %v3850 = vpop.f32.mrb[0].mxu0
    %v3851 = vadd.f32 %v2863, %v3850
    %v3852 = vpop.f32.mrb[0].mxu0
    %3853 = vmatprep.mubr.bf16.mxu0 0
    %3854 = vmatmul.mubr.bf16.gmra.mrb[0].mxu0 %v3361
    %v3855 = vpop.f32.mrb[0].mxu0
    %v3856 = vadd.f32 %v2863, %v3855
    %v3857 = vpop.f32.mrb[0].mxu0
    %v3858 = vpop.f32.mrb[0].mxu0
    %v3859 = vadd.f32 %v2863, %v3858
    %v3860 = vpop.f32.mrb[0].mxu0
    %3861 = vmatprep.mubr.bf16.mxu0 0
    %3862 = vmatmul.mubr.bf16.gmra.mrb[0].mxu0 %v3364
    %v3863 = vpop.f32.mrb[0].mxu0
    %v3864 = vadd.f32 %v2863, %v3863
    %v3865 = vpop.f32.mrb[0].mxu0
    %v3866 = vpop.f32.mrb[0].mxu0
    %v3867 = vadd.f32 %v2863, %v3866
    %v3868 = vpop.f32.mrb[0].mxu0
    %3869 = vmatprep.mubr.bf16.mxu0 0
    %3870 = vmatmul.mubr.bf16.gmra.mrb[0].mxu0 %v3367
    %v3871 = vpop.f32.mrb[0].mxu0
    %v3872 = vadd.f32 %v2863, %v3871
    %v3873 = vpop.f32.mrb[0].mxu0
    %v3874 = vpop.f32.mrb[0].mxu0
    %v3875 = vadd.f32 %v2863, %v3874
    %v3876 = vpop.f32.mrb[0].mxu0
    %3877 = vmatprep.mubr.bf16.mxu0 0
    %3878 = vmatmul.mubr.bf16.gmra.mrb[0].mxu0 %v3370
    %v3879 = vpop.f32.mrb[0].mxu0
    %v3880 = vadd.f32 %v2863, %v3879
    %v3881 = vpop.f32.mrb[0].mxu0
    %v3882 = vpop.f32.mrb[0].mxu0
    %v3883 = vadd.f32 %v2863, %v3882
    %v3884 = vpop.f32.mrb[0].mxu0
    %3885 = vmatprep.mubr.bf16.mxu0 0
    %3886 = vmatmul.mubr.bf16.gmra.mrb[0].mxu0 %v3373
    %v3887 = vpop.f32.mrb[0].mxu0
    %v3888 = vadd.f32 %v2863, %v3887
    %v3889 = vpop.f32.mrb[0].mxu0
    %v3890 = vpop.f32.mrb[0].mxu0
    %v3891 = vadd.f32 %v2863, %v3890
    %v3892 = vpop.f32.mrb[0].mxu0
    %3893 = vmatprep.mubr.bf16.mxu0 0
    %3894 = vmatmul.mubr.bf16.gmra.mrb[0].mxu0 %v3376
    %v3895 = vpop.f32.mrb[0].mxu0
    %v3896 = vadd.f32 %v2863, %v3895
    %v3897 = vpop.f32.mrb[0].mxu0
    %v3898 = vpop.f32.mrb[0].mxu0
    %v3899 = vadd.f32 %v2863, %v3898
    %v3900 = vpop.f32.mrb[0].mxu0
    %3901 = vmatprep.mubr.bf16.mxu0 0
    %3902 = vmatmul.mubr.bf16.gmra.mrb[0].mxu0 %v3379
    %v3903 = vpop.f32.mrb[0].mxu0
    %v3904 = vadd.f32 %v2863, %v3903
    %v3905 = vpop.f32.mrb[0].mxu0
    %v3906 = vpop.f32.mrb[0].mxu0
    %v3907 = vadd.f32 %v2863, %v3906
    %v3908 = vpop.f32.mrb[0].mxu0
    %3909 = vmatprep.mubr.bf16.mxu0 0
    %3910 = vmatmul.mubr.bf16.gmra.mrb[0].mxu0 %v3382
    %v3911 = vpop.f32.mrb[0].mxu0
    %v3912 = vadd.f32 %v2863, %v3911
    %v3913 = vpop.f32.mrb[0].mxu0
    %v3914 = vpop.f32.mrb[0].mxu0
    %v3915 = vadd.f32 %v2863, %v3914
    %v3916 = vpop.f32.mrb[0].mxu0
    %3917 = vmatprep.mubr.bf16.mxu0 0
    %3918 = vmatmul.mubr.bf16.gmra.mrb[0].mxu0 %v3385
    %v3919 = vpop.f32.mrb[0].mxu0
    %v3920 = vadd.f32 %v2863, %v3919
    %v3921 = vpop.f32.mrb[0].mxu0
    %v3922 = vpop.f32.mrb[0].mxu0
    %v3923 = vadd.f32 %v2863, %v3922
    %v3924 = vpop.f32.mrb[0].mxu0
    %3925 = vmatprep.mubr.bf16.mxu0 0
    %3926 = vmatmul.mubr.bf16.gmra.mrb[0].mxu0 %v3388
    %v3927 = vpop.f32.mrb[0].mxu0
    %v3928 = vadd.f32 %v2863, %v3927
    %v3929 = vpop.f32.mrb[0].mxu0
    %v3930 = vpop.f32.mrb[0].mxu0
    %v3931 = vadd.f32 %v2863, %v3930
    %v3932 = vpop.f32.mrb[0].mxu0
    %3933 = vmatprep.mubr.bf16.mxu0 0
    %3934 = vmatmul.mubr.bf16.gmra.mrb[0].mxu0 %v3391
    %v3935 = vpop.f32.mrb[0].mxu0
    %v3936 = vadd.f32 %v2863, %v3935
    %v3937 = vpop.f32.mrb[0].mxu0
    %v3938 = vpop.f32.mrb[0].mxu0
    %v3939 = vadd.f32 %v2863, %v3938
    %v3940 = vpop.f32.mrb[0].mxu0
    %3941 = vdwg.mxu0
    %v3942 = vmax.f32 %v3432, 0.0
    %v3943 = vmax.f32 %v3435, 0.0
    %v3944 = vmax.f32 %v3440, 0.0
    %v3945 = vmax.f32 %v3443, 0.0
    %v3946 = vmax.f32 %v3448, 0.0
    %v3947 = vmax.f32 %v3451, 0.0
    %v3948 = vmax.f32 %v3456, 0.0
    %v3949 = vmax.f32 %v3459, 0.0
    %v3950 = vmax.f32 %v3464, 0.0
    %v3951 = vmax.f32 %v3467, 0.0
    %v3952 = vmax.f32 %v3472, 0.0
    %v3953 = vmax.f32 %v3475, 0.0
    %v3954 = vmax.f32 %v3480, 0.0
    %v3955 = vmax.f32 %v3483, 0.0
    %v3956 = vmax.f32 %v3488, 0.0
    %v3957 = vmax.f32 %v3491, 0.0
    %v3958 = vmax.f32 %v3496, 0.0
    %v3959 = vmax.f32 %v3499, 0.0
    %v3960 = vmax.f32 %v3504, 0.0
    %v3961 = vmax.f32 %v3507, 0.0
    %v3962 = vmax.f32 %v3512, 0.0
    %v3963 = vmax.f32 %v3515, 0.0
    %v3964 = vmax.f32 %v3520, 0.0
    %v3965 = vmax.f32 %v3523, 0.0
    %v3966 = vmax.f32 %v3528, 0.0
    %v3967 = vmax.f32 %v3531, 0.0
    %v3968 = vmax.f32 %v3536, 0.0
    %v3969 = vmax.f32 %v3539, 0.0
    %v3970 = vmax.f32 %v3544, 0.0
    %v3971 = vmax.f32 %v3547, 0.0
    %v3972 = vmax.f32 %v3552, 0.0
    %v3973 = vmax.f32 %v3555, 0.0
    %v3974 = vmax.f32 %v3560, 0.0
    %v3975 = vmax.f32 %v3563, 0.0
    %v3976 = vmax.f32 %v3568, 0.0
    %v3977 = vmax.f32 %v3571, 0.0
    %v3978 = vmax.f32 %v3576, 0.0
    %v3979 = vmax.f32 %v3579, 0.0
    %v3980 = vmax.f32 %v3584, 0.0
    %v3981 = vmax.f32 %v3587, 0.0
    %v3982 = vmax.f32 %v3592, 0.0
    %v3983 = vmax.f32 %v3595, 0.0
    %v3984 = vmax.f32 %v3600, 0.0
    %v3985 = vmax.f32 %v3603, 0.0
    %v3986 = vmax.f32 %v3608, 0.0
    %v3987 = vmax.f32 %v3611, 0.0
    %v3988 = vmax.f32 %v3616, 0.0
    %v3989 = vmax.f32 %v3619, 0.0
    %v3990 = vmax.f32 %v3624, 0.0
    %v3991 = vmax.f32 %v3627, 0.0
    %v3992 = vmax.f32 %v3632, 0.0
    %v3993 = vmax.f32 %v3635, 0.0
    %v3994 = vmax.f32 %v3640, 0.0
    %v3995 = vmax.f32 %v3643, 0.0
    %v3996 = vmax.f32 %v3648, 0.0
    %v3997 = vmax.f32 %v3651, 0.0
    %v3998 = vmax.f32 %v3656, 0.0
    %v3999 = vmax.f32 %v3659, 0.0
    %v4000 = vmax.f32 %v3664, 0.0
    %v4001 = vmax.f32 %v3667, 0.0
    %v4002 = vmax.f32 %v3672, 0.0
    %v4003 = vmax.f32 %v3675, 0.0
    %v4004 = vmax.f32 %v3680, 0.0
    %v4005 = vmax.f32 %v3683, 0.0
    %v4006 = vmax.f32 %v3688, 0.0
    %v4007 = vmax.f32 %v3691, 0.0
    %v4008 = vmax.f32 %v3696, 0.0
    %v4009 = vmax.f32 %v3699, 0.0
    %v4010 = vmax.f32 %v3704, 0.0
    %v4011 = vmax.f32 %v3707, 0.0
    %v4012 = vmax.f32 %v3712, 0.0
    %v4013 = vmax.f32 %v3715, 0.0
    %v4014 = vmax.f32 %v3720, 0.0
    %v4015 = vmax.f32 %v3723, 0.0
    %v4016 = vmax.f32 %v3728, 0.0
    %v4017 = vmax.f32 %v3731, 0.0
    %v4018 = vmax.f32 %v3736, 0.0
    %v4019 = vmax.f32 %v3739, 0.0
    %v4020 = vmax.f32 %v3744, 0.0
    %v4021 = vmax.f32 %v3747, 0.0
    %v4022 = vmax.f32 %v3752, 0.0
    %v4023 = vmax.f32 %v3755, 0.0
    %v4024 = vmax.f32 %v3760, 0.0
    %v4025 = vmax.f32 %v3763, 0.0
    %v4026 = vmax.f32 %v3768, 0.0
    %v4027 = vmax.f32 %v3771, 0.0
    %v4028 = vmax.f32 %v3776, 0.0
    %v4029 = vmax.f32 %v3779, 0.0
    %v4030 = vmax.f32 %v3784, 0.0
    %v4031 = vmax.f32 %v3787, 0.0
    %v4032 = vmax.f32 %v3792, 0.0
    %v4033 = vmax.f32 %v3795, 0.0
    %v4034 = vmax.f32 %v3800, 0.0
    %v4035 = vmax.f32 %v3803, 0.0
    %v4036 = vmax.f32 %v3808, 0.0
    %v4037 = vmax.f32 %v3811, 0.0
    %v4038 = vmax.f32 %v3816, 0.0
    %v4039 = vmax.f32 %v3819, 0.0
    %v4040 = vmax.f32 %v3824, 0.0
    %v4041 = vmax.f32 %v3827, 0.0
    %v4042 = vmax.f32 %v3832, 0.0
    %v4043 = vmax.f32 %v3835, 0.0
    %v4044 = vmax.f32 %v3840, 0.0
    %v4045 = vmax.f32 %v3843, 0.0
    %v4046 = vmax.f32 %v3848, 0.0
    %v4047 = vmax.f32 %v3851, 0.0
    %v4048 = vmax.f32 %v3856, 0.0
    %v4049 = vmax.f32 %v3859, 0.0
    %v4050 = vmax.f32 %v3864, 0.0
    %v4051 = vmax.f32 %v3867, 0.0
    %v4052 = vmax.f32 %v3872, 0.0
    %v4053 = vmax.f32 %v3875, 0.0
    %v4054 = vmax.f32 %v3880, 0.0
    %v4055 = vmax.f32 %v3883, 0.0
    %v4056 = vmax.f32 %v3888, 0.0
    %v4057 = vmax.f32 %v3891, 0.0
    %v4058 = vmax.f32 %v3896, 0.0
    %v4059 = vmax.f32 %v3899, 0.0
    %v4060 = vmax.f32 %v3904, 0.0
    %v4061 = vmax.f32 %v3907, 0.0
    %v4062 = vmax.f32 %v3912, 0.0
    %v4063 = vmax.f32 %v3915, 0.0
    %v4064 = vmax.f32 %v3920, 0.0
    %v4065 = vmax.f32 %v3923, 0.0
    %v4066 = vmax.f32 %v3928, 0.0
    %v4067 = vmax.f32 %v3931, 0.0
    %v4068 = vmax.f32 %v3936, 0.0
    %v4069 = vmax.f32 %v3939, 0.0
    %v4070 = vmul.f32 %v3942, %v2213
    %v4071 = vmul.f32 %v3943, %v2214
    %v4072 = vmul.f32 %v3944, %v2215
    %v4073 = vmul.f32 %v3945, %v2216
    %v4074 = vmul.f32 %v3946, %v2217
    %v4075 = vmul.f32 %v3947, %v2218
    %v4076 = vmul.f32 %v3948, %v2219
    %v4077 = vmul.f32 %v3949, %v2220
    %v4078 = vmul.f32 %v3950, %v2221
    %v4079 = vmul.f32 %v3951, %v2222
    %v4080 = vmul.f32 %v3952, %v2223
    %v4081 = vmul.f32 %v3953, %v2224
    %v4082 = vmul.f32 %v3954, %v2225
    %v4083 = vmul.f32 %v3955, %v2226
    %v4084 = vmul.f32 %v3956, %v2227
    %v4085 = vmul.f32 %v3957, %v2228
    %v4086 = vmul.f32 %v3958, %v2229
    %v4087 = vmul.f32 %v3959, %v2230
    %v4088 = vmul.f32 %v3960, %v2231
    %v4089 = vmul.f32 %v3961, %v2232
    %v4090 = vmul.f32 %v3962, %v2233
    %v4091 = vmul.f32 %v3963, %v2234
    %v4092 = vmul.f32 %v3964, %v2235
    %v4093 = vmul.f32 %v3965, %v2236
    %v4094 = vmul.f32 %v3966, %v2237
    %v4095 = vmul.f32 %v3967, %v2238
    %v4096 = vmul.f32 %v3968, %v2239
    %v4097 = vmul.f32 %v3969, %v2240
    %v4098 = vmul.f32 %v3970, %v2241
    %v4099 = vmul.f32 %v3971, %v2242
    %v4100 = vmul.f32 %v3972, %v2243
    %v4101 = vmul.f32 %v3973, %v2244
    %v4102 = vmul.f32 %v3974, %v2245
    %v4103 = vmul.f32 %v3975, %v2246
    %v4104 = vmul.f32 %v3976, %v2247
    %v4105 = vmul.f32 %v3977, %v2248
    %v4106 = vmul.f32 %v3978, %v2249
    %v4107 = vmul.f32 %v3979, %v2250
    %v4108 = vmul.f32 %v3980, %v2251
    %v4109 = vmul.f32 %v3981, %v2252
    %v4110 = vmul.f32 %v3982, %v2253
    %v4111 = vmul.f32 %v3983, %v2254
    %v4112 = vmul.f32 %v3984, %v2255
    %v4113 = vmul.f32 %v3985, %v2256
    %v4114 = vmul.f32 %v3986, %v2257
    %v4115 = vmul.f32 %v3987, %v2258
    %v4116 = vmul.f32 %v3988, %v2259
    %v4117 = vmul.f32 %v3989, %v2260
    %v4118 = vmul.f32 %v3990, %v2261
    %v4119 = vmul.f32 %v3991, %v2262
    %v4120 = vmul.f32 %v3992, %v2263
    %v4121 = vmul.f32 %v3993, %v2264
    %v4122 = vmul.f32 %v3994, %v2265
    %v4123 = vmul.f32 %v3995, %v2266
    %v4124 = vmul.f32 %v3996, %v2267
    %v4125 = vmul.f32 %v3997, %v2268
    %v4126 = vmul.f32 %v3998, %v2269
    %v4127 = vmul.f32 %v3999, %v2270
    %v4128 = vmul.f32 %v4000, %v2271
    %v4129 = vmul.f32 %v4001, %v2272
    %v4130 = vmul.f32 %v4002, %v2273
    %v4131 = vmul.f32 %v4003, %v2274
    %v4132 = vmul.f32 %v4004, %v2275
    %v4133 = vmul.f32 %v4005, %v2276
    %v4134 = vmul.f32 %v4006, %v2277
    %v4135 = vmul.f32 %v4007, %v2278
    %v4136 = vmul.f32 %v4008, %v2279
    %v4137 = vmul.f32 %v4009, %v2280
    %v4138 = vmul.f32 %v4010, %v2281
    %v4139 = vmul.f32 %v4011, %v2282
    %v4140 = vmul.f32 %v4012, %v2283
    %v4141 = vmul.f32 %v4013, %v2284
    %v4142 = vmul.f32 %v4014, %v2285
    %v4143 = vmul.f32 %v4015, %v2286
    %v4144 = vmul.f32 %v4016, %v2287
    %v4145 = vmul.f32 %v4017, %v2288
    %v4146 = vmul.f32 %v4018, %v2289
    %v4147 = vmul.f32 %v4019, %v2290
    %v4148 = vmul.f32 %v4020, %v2291
    %v4149 = vmul.f32 %v4021, %v2292
    %v4150 = vmul.f32 %v4022, %v2293
    %v4151 = vmul.f32 %v4023, %v2294
    %v4152 = vmul.f32 %v4024, %v2295
    %v4153 = vmul.f32 %v4025, %v2296
    %v4154 = vmul.f32 %v4026, %v2297
    %v4155 = vmul.f32 %v4027, %v2298
    %v4156 = vmul.f32 %v4028, %v2299
    %v4157 = vmul.f32 %v4029, %v2300
    %v4158 = vmul.f32 %v4030, %v2301
    %v4159 = vmul.f32 %v4031, %v2302
    %v4160 = vmul.f32 %v4032, %v2303
    %v4161 = vmul.f32 %v4033, %v2304
    %v4162 = vmul.f32 %v4034, %v2305
    %v4163 = vmul.f32 %v4035, %v2306
    %v4164 = vmul.f32 %v4036, %v2307
    %v4165 = vmul.f32 %v4037, %v2308
    %v4166 = vmul.f32 %v4038, %v2309
    %v4167 = vmul.f32 %v4039, %v2310
    %v4168 = vmul.f32 %v4040, %v2311
    %v4169 = vmul.f32 %v4041, %v2312
    %v4170 = vmul.f32 %v4042, %v2313
    %v4171 = vmul.f32 %v4043, %v2314
    %v4172 = vmul.f32 %v4044, %v2315
    %v4173 = vmul.f32 %v4045, %v2316
    %v4174 = vmul.f32 %v4046, %v2317
    %v4175 = vmul.f32 %v4047, %v2318
    %v4176 = vmul.f32 %v4048, %v2319
    %v4177 = vmul.f32 %v4049, %v2320
    %v4178 = vmul.f32 %v4050, %v2321
    %v4179 = vmul.f32 %v4051, %v2322
    %v4180 = vmul.f32 %v4052, %v2323
    %v4181 = vmul.f32 %v4053, %v2324
    %v4182 = vmul.f32 %v4054, %v2325
    %v4183 = vmul.f32 %v4055, %v2326
    %v4184 = vmul.f32 %v4056, %v2327
    %v4185 = vmul.f32 %v4057, %v2328
    %v4186 = vmul.f32 %v4058, %v2329
    %v4187 = vmul.f32 %v4059, %v2330
    %v4188 = vmul.f32 %v4060, %v2331
    %v4189 = vmul.f32 %v4061, %v2332
    %v4190 = vmul.f32 %v4062, %v2333
    %v4191 = vmul.f32 %v4063, %v2334
    %v4192 = vmul.f32 %v4064, %v2335
    %v4193 = vmul.f32 %v4065, %v2336
    %v4194 = vmul.f32 %v4066, %v2337
    %v4195 = vmul.f32 %v4067, %v2338
    %v4196 = vmul.f32 %v4068, %v2339
    %v4197 = vmul.f32 %v4069, %v2340
    %v4198 = vpack.c.bf16 %v4071, %v4070
    %v4199 = vpack.c.bf16 %v4073, %v4072
    %v4200 = vpack.c.bf16 %v4075, %v4074
    %v4201 = vpack.c.bf16 %v4077, %v4076
    %v4202 = vpack.c.bf16 %v4079, %v4078
    %v4203 = vpack.c.bf16 %v4081, %v4080
    %v4204 = vpack.c.bf16 %v4083, %v4082
    %v4205 = vpack.c.bf16 %v4085, %v4084
    %v4206 = vpack.c.bf16 %v4087, %v4086
    %v4207 = vpack.c.bf16 %v4089, %v4088
    %v4208 = vpack.c.bf16 %v4091, %v4090
    %v4209 = vpack.c.bf16 %v4093, %v4092
    %v4210 = vpack.c.bf16 %v4095, %v4094
    %v4211 = vpack.c.bf16 %v4097, %v4096
    %v4212 = vpack.c.bf16 %v4099, %v4098
    %v4213 = vpack.c.bf16 %v4101, %v4100
    %v4214 = vpack.c.bf16 %v4103, %v4102
    %v4215 = vpack.c.bf16 %v4105, %v4104
    %v4216 = vpack.c.bf16 %v4107, %v4106
    %v4217 = vpack.c.bf16 %v4109, %v4108
    %v4218 = vpack.c.bf16 %v4111, %v4110
    %v4219 = vpack.c.bf16 %v4113, %v4112
    %v4220 = vpack.c.bf16 %v4115, %v4114
    %v4221 = vpack.c.bf16 %v4117, %v4116
    %v4222 = vpack.c.bf16 %v4119, %v4118
    %v4223 = vpack.c.bf16 %v4121, %v4120
    %v4224 = vpack.c.bf16 %v4123, %v4122
    %v4225 = vpack.c.bf16 %v4125, %v4124
    %v4226 = vpack.c.bf16 %v4127, %v4126
    %v4227 = vpack.c.bf16 %v4129, %v4128
    %v4228 = vpack.c.bf16 %v4131, %v4130
    %v4229 = vpack.c.bf16 %v4133, %v4132
    %v4230 = vpack.c.bf16 %v4135, %v4134
    %v4231 = vpack.c.bf16 %v4137, %v4136
    %v4232 = vpack.c.bf16 %v4139, %v4138
    %v4233 = vpack.c.bf16 %v4141, %v4140
    %v4234 = vpack.c.bf16 %v4143, %v4142
    %v4235 = vpack.c.bf16 %v4145, %v4144
    %v4236 = vpack.c.bf16 %v4147, %v4146
    %v4237 = vpack.c.bf16 %v4149, %v4148
    %v4238 = vpack.c.bf16 %v4151, %v4150
    %v4239 = vpack.c.bf16 %v4153, %v4152
    %v4240 = vpack.c.bf16 %v4155, %v4154
    %v4241 = vpack.c.bf16 %v4157, %v4156
    %v4242 = vpack.c.bf16 %v4159, %v4158
    %v4243 = vpack.c.bf16 %v4161, %v4160
    %v4244 = vpack.c.bf16 %v4163, %v4162
    %v4245 = vpack.c.bf16 %v4165, %v4164
    %v4246 = vpack.c.bf16 %v4167, %v4166
    %v4247 = vpack.c.bf16 %v4169, %v4168
    %v4248 = vpack.c.bf16 %v4171, %v4170
    %v4249 = vpack.c.bf16 %v4173, %v4172
    %v4250 = vpack.c.bf16 %v4175, %v4174
    %v4251 = vpack.c.bf16 %v4177, %v4176
    %v4252 = vpack.c.bf16 %v4179, %v4178
    %v4253 = vpack.c.bf16 %v4181, %v4180
    %v4254 = vpack.c.bf16 %v4183, %v4182
    %v4255 = vpack.c.bf16 %v4185, %v4184
    %v4256 = vpack.c.bf16 %v4187, %v4186
    %v4257 = vpack.c.bf16 %v4189, %v4188
    %v4258 = vpack.c.bf16 %v4191, %v4190
    %v4259 = vpack.c.bf16 %v4193, %v4192
    %v4260 = vpack.c.bf16 %v4195, %v4194
    %v4261 = vpack.c.bf16 %v4197, %v4196
    %vm4262 = vcmask 261120
    %4263 = vst.msk [vmem:[#allocation2] sm:$0xff] %vm4262, %v4198
    %4264 = vst.msk [vmem:[#allocation2 + $0x8] sm:$0xff] %vm4262, %v4199
    %4265 = vst.msk [vmem:[#allocation2 + $0x10] sm:$0xff] %vm4262, %v4200
    %4266 = vst.msk [vmem:[#allocation2 + $0x18] sm:$0xff] %vm4262, %v4201
    %4267 = vst.msk [vmem:[#allocation2 + $0x20] sm:$0xff] %vm4262, %v4202
    %4268 = vst.msk [vmem:[#allocation2 + $0x28] sm:$0xff] %vm4262, %v4203
    %4269 = vst.msk [vmem:[#allocation2 + $0x30] sm:$0xff] %vm4262, %v4204
    %4270 = vst.msk [vmem:[#allocation2 + $0x38] sm:$0xff] %vm4262, %v4205
    %4271 = vst.msk [vmem:[#allocation2 + $0x40] sm:$0xff] %vm4262, %v4206
    %4272 = vst.msk [vmem:[#allocation2 + $0x48] sm:$0xff] %vm4262, %v4207
    %4273 = vst.msk [vmem:[#allocation2 + $0x50] sm:$0xff] %vm4262, %v4208
    %4274 = vst.msk [vmem:[#allocation2 + $0x58] sm:$0xff] %vm4262, %v4209
    %4275 = vst.msk [vmem:[#allocation2 + $0x60] sm:$0xff] %vm4262, %v4210
    %4276 = vst.msk [vmem:[#allocation2 + $0x68] sm:$0xff] %vm4262, %v4211
    %4277 = vst.msk [vmem:[#allocation2 + $0x70] sm:$0xff] %vm4262, %v4212
    %4278 = vst.msk [vmem:[#allocation2 + $0x78] sm:$0xff] %vm4262, %v4213
    %4279 = vst.msk [vmem:[#allocation2 + $0x80] sm:$0xff] %vm4262, %v4214
    %4280 = vst.msk [vmem:[#allocation2 + $0x88] sm:$0xff] %vm4262, %v4215
    %4281 = vst.msk [vmem:[#allocation2 + $0x90] sm:$0xff] %vm4262, %v4216
    %4282 = vst.msk [vmem:[#allocation2 + $0x98] sm:$0xff] %vm4262, %v4217
    %4283 = vst.msk [vmem:[#allocation2 + $0xa0] sm:$0xff] %vm4262, %v4218
    %4284 = vst.msk [vmem:[#allocation2 + $0xa8] sm:$0xff] %vm4262, %v4219
    %4285 = vst.msk [vmem:[#allocation2 + $0xb0] sm:$0xff] %vm4262, %v4220
    %4286 = vst.msk [vmem:[#allocation2 + $0xb8] sm:$0xff] %vm4262, %v4221
    %4287 = vst.msk [vmem:[#allocation2 + $0xc0] sm:$0xff] %vm4262, %v4222
    %4288 = vst.msk [vmem:[#allocation2 + $0xc8] sm:$0xff] %vm4262, %v4223
    %4289 = vst.msk [vmem:[#allocation2 + $0xd0] sm:$0xff] %vm4262, %v4224
    %4290 = vst.msk [vmem:[#allocation2 + $0xd8] sm:$0xff] %vm4262, %v4225
    %4291 = vst.msk [vmem:[#allocation2 + $0xe0] sm:$0xff] %vm4262, %v4226
    %4292 = vst.msk [vmem:[#allocation2 + $0xe8] sm:$0xff] %vm4262, %v4227
    %4293 = vst.msk [vmem:[#allocation2 + $0xf0] sm:$0xff] %vm4262, %v4228
    %4294 = vst.msk [vmem:[#allocation2 + $0xf8] sm:$0xff] %vm4262, %v4229
    %4295 = vst.msk [vmem:[#allocation2 + $0x100] sm:$0xff] %vm4262, %v4230
    %4296 = vst.msk [vmem:[#allocation2 + $0x108] sm:$0xff] %vm4262, %v4231
    %4297 = vst.msk [vmem:[#allocation2 + $0x110] sm:$0xff] %vm4262, %v4232
    %4298 = vst.msk [vmem:[#allocation2 + $0x118] sm:$0xff] %vm4262, %v4233
    %4299 = vst.msk [vmem:[#allocation2 + $0x120] sm:$0xff] %vm4262, %v4234
    %4300 = vst.msk [vmem:[#allocation2 + $0x128] sm:$0xff] %vm4262, %v4235
    %4301 = vst.msk [vmem:[#allocation2 + $0x130] sm:$0xff] %vm4262, %v4236
    %4302 = vst.msk [vmem:[#allocation2 + $0x138] sm:$0xff] %vm4262, %v4237
    %4303 = vst.msk [vmem:[#allocation2 + $0x140] sm:$0xff] %vm4262, %v4238
    %4304 = vst.msk [vmem:[#allocation2 + $0x148] sm:$0xff] %vm4262, %v4239
    %4305 = vst.msk [vmem:[#allocation2 + $0x150] sm:$0xff] %vm4262, %v4240
    %4306 = vst.msk [vmem:[#allocation2 + $0x158] sm:$0xff] %vm4262, %v4241
    %4307 = vst.msk [vmem:[#allocation2 + $0x160] sm:$0xff] %vm4262, %v4242
    %4308 = vst.msk [vmem:[#allocation2 + $0x168] sm:$0xff] %vm4262, %v4243
    %4309 = vst.msk [vmem:[#allocation2 + $0x170] sm:$0xff] %vm4262, %v4244
    %4310 = vst.msk [vmem:[#allocation2 + $0x178] sm:$0xff] %vm4262, %v4245
    %4311 = vst.msk [vmem:[#allocation2 + $0x180] sm:$0xff] %vm4262, %v4246
    %4312 = vst.msk [vmem:[#allocation2 + $0x188] sm:$0xff] %vm4262, %v4247
    %4313 = vst.msk [vmem:[#allocation2 + $0x190] sm:$0xff] %vm4262, %v4248
    %4314 = vst.msk [vmem:[#allocation2 + $0x198] sm:$0xff] %vm4262, %v4249
    %4315 = vst.msk [vmem:[#allocation2 + $0x1a0] sm:$0xff] %vm4262, %v4250
    %4316 = vst.msk [vmem:[#allocation2 + $0x1a8] sm:$0xff] %vm4262, %v4251
    %4317 = vst.msk [vmem:[#allocation2 + $0x1b0] sm:$0xff] %vm4262, %v4252
    %4318 = vst.msk [vmem:[#allocation2 + $0x1b8] sm:$0xff] %vm4262, %v4253
    %4319 = vst.msk [vmem:[#allocation2 + $0x1c0] sm:$0xff] %vm4262, %v4254
    %4320 = vst.msk [vmem:[#allocation2 + $0x1c8] sm:$0xff] %vm4262, %v4255
    %4321 = vst.msk [vmem:[#allocation2 + $0x1d0] sm:$0xff] %vm4262, %v4256
    %4322 = vst.msk [vmem:[#allocation2 + $0x1d8] sm:$0xff] %vm4262, %v4257
    %4323 = vst.msk [vmem:[#allocation2 + $0x1e0] sm:$0xff] %vm4262, %v4258
    %4324 = vst.msk [vmem:[#allocation2 + $0x1e8] sm:$0xff] %vm4262, %v4259
    %4325 = vst.msk [vmem:[#allocation2 + $0x1f0] sm:$0xff] %vm4262, %v4260
    %4326 = vst.msk [vmem:[#allocation2 + $0x1f8] sm:$0xff] %vm4262, %v4261
    %4327 = vst.msk [vmem:[#allocation2 + $0x200] sm:$0xff] %vm4262, 0
    %v4328 = vld [vmem:[#allocation2] sm:$0xff]
    %v4329 = vld [vmem:[#allocation2 + $0x8] sm:$0xff]
    %v4330 = vld [vmem:[#allocation2 + $0x10] sm:$0xff]
    %v4331 = vld [vmem:[#allocation2 + $0x18] sm:$0xff]
    %v4332 = vld [vmem:[#allocation2 + $0x20] sm:$0xff]
    %v4333 = vld [vmem:[#allocation2 + $0x28] sm:$0xff]
    %v4334 = vld [vmem:[#allocation2 + $0x30] sm:$0xff]
    %v4335 = vld [vmem:[#allocation2 + $0x38] sm:$0xff]
    %v4336 = vld [vmem:[#allocation2 + $0x40] sm:$0xff]
    %v4337 = vld [vmem:[#allocation2 + $0x48] sm:$0xff]
    %v4338 = vld [vmem:[#allocation2 + $0x50] sm:$0xff]
    %v4339 = vld [vmem:[#allocation2 + $0x58] sm:$0xff]
    %v4340 = vld [vmem:[#allocation2 + $0x60] sm:$0xff]
    %v4341 = vld [vmem:[#allocation2 + $0x68] sm:$0xff]
    %v4342 = vld [vmem:[#allocation2 + $0x70] sm:$0xff]
    %v4343 = vld [vmem:[#allocation2 + $0x78] sm:$0xff]
    %v4344 = vld [vmem:[#allocation2 + $0x80] sm:$0xff]
    %v4345 = vld [vmem:[#allocation2 + $0x88] sm:$0xff]
    %v4346 = vld [vmem:[#allocation2 + $0x90] sm:$0xff]
    %v4347 = vld [vmem:[#allocation2 + $0x98] sm:$0xff]
    %v4348 = vld [vmem:[#allocation2 + $0xa0] sm:$0xff]
    %v4349 = vld [vmem:[#allocation2 + $0xa8] sm:$0xff]
    %v4350 = vld [vmem:[#allocation2 + $0xb0] sm:$0xff]
    %v4351 = vld [vmem:[#allocation2 + $0xb8] sm:$0xff]
    %v4352 = vld [vmem:[#allocation2 + $0xc0] sm:$0xff]
    %v4353 = vld [vmem:[#allocation2 + $0xc8] sm:$0xff]
    %v4354 = vld [vmem:[#allocation2 + $0xd0] sm:$0xff]
    %v4355 = vld [vmem:[#allocation2 + $0xd8] sm:$0xff]
    %v4356 = vld [vmem:[#allocation2 + $0xe0] sm:$0xff]
    %v4357 = vld [vmem:[#allocation2 + $0xe8] sm:$0xff]
    %v4358 = vld [vmem:[#allocation2 + $0xf0] sm:$0xff]
    %v4359 = vld [vmem:[#allocation2 + $0xf8] sm:$0xff]
    %v4360 = vld [vmem:[#allocation2 + $0x100] sm:$0xff]
    %v4361 = vld [vmem:[#allocation2 + $0x108] sm:$0xff]
    %v4362 = vld [vmem:[#allocation2 + $0x110] sm:$0xff]
    %v4363 = vld [vmem:[#allocation2 + $0x118] sm:$0xff]
    %v4364 = vld [vmem:[#allocation2 + $0x120] sm:$0xff]
    %v4365 = vld [vmem:[#allocation2 + $0x128] sm:$0xff]
    %v4366 = vld [vmem:[#allocation2 + $0x130] sm:$0xff]
    %v4367 = vld [vmem:[#allocation2 + $0x138] sm:$0xff]
    %v4368 = vld [vmem:[#allocation2 + $0x140] sm:$0xff]
    %v4369 = vld [vmem:[#allocation2 + $0x148] sm:$0xff]
    %v4370 = vld [vmem:[#allocation2 + $0x150] sm:$0xff]
    %v4371 = vld [vmem:[#allocation2 + $0x158] sm:$0xff]
    %v4372 = vld [vmem:[#allocation2 + $0x160] sm:$0xff]
    %v4373 = vld [vmem:[#allocation2 + $0x168] sm:$0xff]
    %v4374 = vld [vmem:[#allocation2 + $0x170] sm:$0xff]
    %v4375 = vld [vmem:[#allocation2 + $0x178] sm:$0xff]
    %v4376 = vld [vmem:[#allocation2 + $0x180] sm:$0xff]
    %v4377 = vld [vmem:[#allocation2 + $0x188] sm:$0xff]
    %v4378 = vld [vmem:[#allocation2 + $0x190] sm:$0xff]
    %v4379 = vld [vmem:[#allocation2 + $0x198] sm:$0xff]
    %v4380 = vld [vmem:[#allocation2 + $0x1a0] sm:$0xff]
    %v4381 = vld [vmem:[#allocation2 + $0x1a8] sm:$0xff]
    %v4382 = vld [vmem:[#allocation2 + $0x1b0] sm:$0xff]
    %v4383 = vld [vmem:[#allocation2 + $0x1b8] sm:$0xff]
    %v4384 = vld [vmem:[#allocation2 + $0x1c0] sm:$0xff]
    %v4385 = vld [vmem:[#allocation2 + $0x1c8] sm:$0xff]
    %v4386 = vld [vmem:[#allocation2 + $0x1d0] sm:$0xff]
    %v4387 = vld [vmem:[#allocation2 + $0x1d8] sm:$0xff]
    %v4388 = vld [vmem:[#allocation2 + $0x1e0] sm:$0xff]
    %v4389 = vld [vmem:[#allocation2 + $0x1e8] sm:$0xff]
    %v4390 = vld [vmem:[#allocation2 + $0x1f0] sm:$0xff]
    %v4391 = vld [vmem:[#allocation2 + $0x1f8] sm:$0xff]
    %v4392 = vld [vmem:[%s3] sm:$0xf]
    %v4393 = vld [vmem:[%s3 + $0x4] sm:$0xf]
    %v4394 = vld [vmem:[%s3 + $0x8] sm:$0xf]
    %v4395 = vld [vmem:[%s3 + $0xc] sm:$0xf]
    %v4396 = vld [vmem:[#allocation2 + $0x200] sm:$0x1]
    %s4397 = scalar_lea.vmem %s3, 16
    %v4398 = vld [vmem:[%s4397] sm:$0xf]
    %v4399 = vld [vmem:[%s4397 + $0x4] sm:$0xf]
    %v4400 = vld [vmem:[%s4397 + $0x8] sm:$0xf]
    %v4401 = vld [vmem:[%s4397 + $0xc] sm:$0xf]
    %vm4402 = vsmask.f32 7424
    %v4404 = vshrl.u32 %v4328, 16
    %v4406 = vshll.u32 %v4328, 16
    %v4408 = vrot.slane %v4406, 1
    %v4409 = vor.u32 %v4404, %v4408
    %v4411 = vshll.u32 %v4329, 16
    %v4413 = vrot.slane %v4411, 1
    %v4414 = vsel %vm4402, %v4409, %v4413
    %v4415 = vshrl.u32 %v4329, 16
    %v4417 = vor.u32 %v4415, %v4413
    %v4419 = vshll.u32 %v4330, 16
    %v4421 = vrot.slane %v4419, 1
    %v4422 = vsel %vm4402, %v4417, %v4421
    %v4423 = vshrl.u32 %v4330, 16
    %v4425 = vor.u32 %v4423, %v4421
    %v4427 = vshll.u32 %v4331, 16
    %v4429 = vrot.slane %v4427, 1
    %v4430 = vsel %vm4402, %v4425, %v4429
    %v4431 = vshrl.u32 %v4331, 16
    %v4433 = vor.u32 %v4431, %v4429
    %v4435 = vshll.u32 %v4332, 16
    %v4437 = vrot.slane %v4435, 1
    %v4438 = vsel %vm4402, %v4433, %v4437
    %v4439 = vshrl.u32 %v4332, 16
    %v4441 = vor.u32 %v4439, %v4437
    %v4443 = vshll.u32 %v4333, 16
    %v4445 = vrot.slane %v4443, 1
    %v4446 = vsel %vm4402, %v4441, %v4445
    %v4447 = vshrl.u32 %v4333, 16
    %v4449 = vor.u32 %v4447, %v4445
    %v4451 = vshll.u32 %v4334, 16
    %v4453 = vrot.slane %v4451, 1
    %v4454 = vsel %vm4402, %v4449, %v4453
    %v4455 = vshrl.u32 %v4334, 16
    %v4457 = vor.u32 %v4455, %v4453
    %v4459 = vshll.u32 %v4335, 16
    %v4461 = vrot.slane %v4459, 1
    %v4462 = vsel %vm4402, %v4457, %v4461
    %v4463 = vshrl.u32 %v4335, 16
    %v4465 = vor.u32 %v4463, %v4461
    %v4467 = vshll.u32 %v4336, 16
    %v4469 = vrot.slane %v4467, 1
    %v4470 = vsel %vm4402, %v4465, %v4469
    %v4471 = vshrl.u32 %v4336, 16
    %v4473 = vor.u32 %v4471, %v4469
    %v4475 = vshll.u32 %v4337, 16
    %v4477 = vrot.slane %v4475, 1
    %v4478 = vsel %vm4402, %v4473, %v4477
    %v4479 = vshrl.u32 %v4337, 16
    %v4481 = vor.u32 %v4479, %v4477
    %v4483 = vshll.u32 %v4338, 16
    %v4485 = vrot.slane %v4483, 1
    %v4486 = vsel %vm4402, %v4481, %v4485
    %v4487 = vshrl.u32 %v4338, 16
    %v4489 = vor.u32 %v4487, %v4485
    %v4491 = vshll.u32 %v4339, 16
    %v4493 = vrot.slane %v4491, 1
    %v4494 = vsel %vm4402, %v4489, %v4493
    %v4495 = vshrl.u32 %v4339, 16
    %v4497 = vor.u32 %v4495, %v4493
    %v4499 = vshll.u32 %v4340, 16
    %v4501 = vrot.slane %v4499, 1
    %v4502 = vsel %vm4402, %v4497, %v4501
    %v4503 = vshrl.u32 %v4340, 16
    %v4505 = vor.u32 %v4503, %v4501
    %v4507 = vshll.u32 %v4341, 16
    %v4509 = vrot.slane %v4507, 1
    %v4510 = vsel %vm4402, %v4505, %v4509
    %v4511 = vshrl.u32 %v4341, 16
    %v4513 = vor.u32 %v4511, %v4509
    %v4515 = vshll.u32 %v4342, 16
    %v4517 = vrot.slane %v4515, 1
    %v4518 = vsel %vm4402, %v4513, %v4517
    %v4519 = vshrl.u32 %v4342, 16
    %v4521 = vor.u32 %v4519, %v4517
    %v4523 = vshll.u32 %v4343, 16
    %v4525 = vrot.slane %v4523, 1
    %v4526 = vsel %vm4402, %v4521, %v4525
    %v4527 = vshrl.u32 %v4343, 16
    %v4529 = vor.u32 %v4527, %v4525
    %v4531 = vshll.u32 %v4344, 16
    %v4533 = vrot.slane %v4531, 1
    %v4534 = vsel %vm4402, %v4529, %v4533
    %v4535 = vshrl.u32 %v4344, 16
    %v4537 = vor.u32 %v4535, %v4533
    %v4539 = vshll.u32 %v4345, 16
    %v4541 = vrot.slane %v4539, 1
    %v4542 = vsel %vm4402, %v4537, %v4541
    %v4543 = vshrl.u32 %v4345, 16
    %v4545 = vor.u32 %v4543, %v4541
    %v4547 = vshll.u32 %v4346, 16
    %v4549 = vrot.slane %v4547, 1
    %v4550 = vsel %vm4402, %v4545, %v4549
    %v4551 = vshrl.u32 %v4346, 16
    %v4553 = vor.u32 %v4551, %v4549
    %v4555 = vshll.u32 %v4347, 16
    %v4557 = vrot.slane %v4555, 1
    %v4558 = vsel %vm4402, %v4553, %v4557
    %v4559 = vshrl.u32 %v4347, 16
    %v4561 = vor.u32 %v4559, %v4557
    %v4563 = vshll.u32 %v4348, 16
    %v4565 = vrot.slane %v4563, 1
    %v4566 = vsel %vm4402, %v4561, %v4565
    %v4567 = vshrl.u32 %v4348, 16
    %v4569 = vor.u32 %v4567, %v4565
    %v4571 = vshll.u32 %v4349, 16
    %v4573 = vrot.slane %v4571, 1
    %v4574 = vsel %vm4402, %v4569, %v4573
    %v4575 = vshrl.u32 %v4349, 16
    %v4577 = vor.u32 %v4575, %v4573
    %v4579 = vshll.u32 %v4350, 16
    %v4581 = vrot.slane %v4579, 1
    %v4582 = vsel %vm4402, %v4577, %v4581
    %v4583 = vshrl.u32 %v4350, 16
    %v4585 = vor.u32 %v4583, %v4581
    %v4587 = vshll.u32 %v4351, 16
    %v4589 = vrot.slane %v4587, 1
    %v4590 = vsel %vm4402, %v4585, %v4589
    %v4591 = vshrl.u32 %v4351, 16
    %v4593 = vor.u32 %v4591, %v4589
    %v4595 = vshll.u32 %v4352, 16
    %v4597 = vrot.slane %v4595, 1
    %v4598 = vsel %vm4402, %v4593, %v4597
    %v4599 = vshrl.u32 %v4352, 16
    %v4601 = vor.u32 %v4599, %v4597
    %v4603 = vshll.u32 %v4353, 16
    %v4605 = vrot.slane %v4603, 1
    %v4606 = vsel %vm4402, %v4601, %v4605
    %v4607 = vshrl.u32 %v4353, 16
    %v4609 = vor.u32 %v4607, %v4605
    %v4611 = vshll.u32 %v4354, 16
    %v4613 = vrot.slane %v4611, 1
    %v4614 = vsel %vm4402, %v4609, %v4613
    %v4615 = vshrl.u32 %v4354, 16
    %v4617 = vor.u32 %v4615, %v4613
    %v4619 = vshll.u32 %v4355, 16
    %v4621 = vrot.slane %v4619, 1
    %v4622 = vsel %vm4402, %v4617, %v4621
    %v4623 = vshrl.u32 %v4355, 16
    %v4625 = vor.u32 %v4623, %v4621
    %v4627 = vshll.u32 %v4356, 16
    %v4629 = vrot.slane %v4627, 1
    %v4630 = vsel %vm4402, %v4625, %v4629
    %v4631 = vshrl.u32 %v4356, 16
    %v4633 = vor.u32 %v4631, %v4629
    %v4635 = vshll.u32 %v4357, 16
    %v4637 = vrot.slane %v4635, 1
    %v4638 = vsel %vm4402, %v4633, %v4637
    %v4639 = vshrl.u32 %v4357, 16
    %v4641 = vor.u32 %v4639, %v4637
    %v4643 = vshll.u32 %v4358, 16
    %v4645 = vrot.slane %v4643, 1
    %v4646 = vsel %vm4402, %v4641, %v4645
    %v4647 = vshrl.u32 %v4358, 16
    %v4649 = vor.u32 %v4647, %v4645
    %v4651 = vshll.u32 %v4359, 16
    %v4653 = vrot.slane %v4651, 1
    %v4654 = vsel %vm4402, %v4649, %v4653
    %v4655 = vshrl.u32 %v4359, 16
    %v4657 = vor.u32 %v4655, %v4653
    %v4659 = vshll.u32 %v4360, 16
    %v4661 = vrot.slane %v4659, 1
    %v4662 = vsel %vm4402, %v4657, %v4661
    %v4663 = vshrl.u32 %v4360, 16
    %v4665 = vor.u32 %v4663, %v4661
    %v4667 = vshll.u32 %v4361, 16
    %v4669 = vrot.slane %v4667, 1
    %v4670 = vsel %vm4402, %v4665, %v4669
    %v4671 = vshrl.u32 %v4361, 16
    %v4673 = vor.u32 %v4671, %v4669
    %v4675 = vshll.u32 %v4362, 16
    %v4677 = vrot.slane %v4675, 1
    %v4678 = vsel %vm4402, %v4673, %v4677
    %v4679 = vshrl.u32 %v4362, 16
    %v4681 = vor.u32 %v4679, %v4677
    %v4683 = vshll.u32 %v4363, 16
    %v4685 = vrot.slane %v4683, 1
    %v4686 = vsel %vm4402, %v4681, %v4685
    %v4687 = vshrl.u32 %v4363, 16
    %v4689 = vor.u32 %v4687, %v4685
    %v4691 = vshll.u32 %v4364, 16
    %v4693 = vrot.slane %v4691, 1
    %v4694 = vsel %vm4402, %v4689, %v4693
    %v4695 = vshrl.u32 %v4364, 16
    %v4697 = vor.u32 %v4695, %v4693
    %v4699 = vshll.u32 %v4365, 16
    %v4701 = vrot.slane %v4699, 1
    %v4702 = vsel %vm4402, %v4697, %v4701
    %v4703 = vshrl.u32 %v4365, 16
    %v4705 = vor.u32 %v4703, %v4701
    %v4707 = vshll.u32 %v4366, 16
    %v4709 = vrot.slane %v4707, 1
    %v4710 = vsel %vm4402, %v4705, %v4709
    %v4711 = vshrl.u32 %v4366, 16
    %v4713 = vor.u32 %v4711, %v4709
    %v4715 = vshll.u32 %v4367, 16
    %v4717 = vrot.slane %v4715, 1
    %v4718 = vsel %vm4402, %v4713, %v4717
    %v4719 = vshrl.u32 %v4367, 16
    %v4721 = vor.u32 %v4719, %v4717
    %v4723 = vshll.u32 %v4368, 16
    %v4725 = vrot.slane %v4723, 1
    %v4726 = vsel %vm4402, %v4721, %v4725
    %v4727 = vshrl.u32 %v4368, 16
    %v4729 = vor.u32 %v4727, %v4725
    %v4731 = vshll.u32 %v4369, 16
    %v4733 = vrot.slane %v4731, 1
    %v4734 = vsel %vm4402, %v4729, %v4733
    %v4735 = vshrl.u32 %v4369, 16
    %v4737 = vor.u32 %v4735, %v4733
    %v4739 = vshll.u32 %v4370, 16
    %v4741 = vrot.slane %v4739, 1
    %v4742 = vsel %vm4402, %v4737, %v4741
    %v4743 = vshrl.u32 %v4370, 16
    %v4745 = vor.u32 %v4743, %v4741
    %v4747 = vshll.u32 %v4371, 16
    %v4749 = vrot.slane %v4747, 1
    %v4750 = vsel %vm4402, %v4745, %v4749
    %v4751 = vshrl.u32 %v4371, 16
    %v4753 = vor.u32 %v4751, %v4749
    %v4755 = vshll.u32 %v4372, 16
    %v4757 = vrot.slane %v4755, 1
    %v4758 = vsel %vm4402, %v4753, %v4757
    %v4759 = vshrl.u32 %v4372, 16
    %v4761 = vor.u32 %v4759, %v4757
    %v4763 = vshll.u32 %v4373, 16
    %v4765 = vrot.slane %v4763, 1
    %v4766 = vsel %vm4402, %v4761, %v4765
    %v4767 = vshrl.u32 %v4373, 16
    %v4769 = vor.u32 %v4767, %v4765
    %v4771 = vshll.u32 %v4374, 16
    %v4773 = vrot.slane %v4771, 1
    %v4774 = vsel %vm4402, %v4769, %v4773
    %v4775 = vshrl.u32 %v4374, 16
    %v4777 = vor.u32 %v4775, %v4773
    %v4779 = vshll.u32 %v4375, 16
    %v4781 = vrot.slane %v4779, 1
    %v4782 = vsel %vm4402, %v4777, %v4781
    %v4783 = vshrl.u32 %v4375, 16
    %v4785 = vor.u32 %v4783, %v4781
    %v4787 = vshll.u32 %v4376, 16
    %v4789 = vrot.slane %v4787, 1
    %v4790 = vsel %vm4402, %v4785, %v4789
    %v4791 = vshrl.u32 %v4376, 16
    %v4793 = vor.u32 %v4791, %v4789
    %v4795 = vshll.u32 %v4377, 16
    %v4797 = vrot.slane %v4795, 1
    %v4798 = vsel %vm4402, %v4793, %v4797
    %v4799 = vshrl.u32 %v4377, 16
    %v4801 = vor.u32 %v4799, %v4797
    %v4803 = vshll.u32 %v4378, 16
    %v4805 = vrot.slane %v4803, 1
    %v4806 = vsel %vm4402, %v4801, %v4805
    %v4807 = vshrl.u32 %v4378, 16
    %v4809 = vor.u32 %v4807, %v4805
    %v4811 = vshll.u32 %v4379, 16
    %v4813 = vrot.slane %v4811, 1
    %v4814 = vsel %vm4402, %v4809, %v4813
    %v4815 = vshrl.u32 %v4379, 16
    %v4817 = vor.u32 %v4815, %v4813
    %v4819 = vshll.u32 %v4380, 16
    %v4821 = vrot.slane %v4819, 1
    %v4822 = vsel %vm4402, %v4817, %v4821
    %v4823 = vshrl.u32 %v4380, 16
    %v4825 = vor.u32 %v4823, %v4821
    %v4827 = vshll.u32 %v4381, 16
    %v4829 = vrot.slane %v4827, 1
    %v4830 = vsel %vm4402, %v4825, %v4829
    %v4831 = vshrl.u32 %v4381, 16
    %v4833 = vor.u32 %v4831, %v4829
    %v4835 = vshll.u32 %v4382, 16
    %v4837 = vrot.slane %v4835, 1
    %v4838 = vsel %vm4402, %v4833, %v4837
    %v4839 = vshrl.u32 %v4382, 16
    %v4841 = vor.u32 %v4839, %v4837
    %v4843 = vshll.u32 %v4383, 16
    %v4845 = vrot.slane %v4843, 1
    %v4846 = vsel %vm4402, %v4841, %v4845
    %v4847 = vshrl.u32 %v4383, 16
    %v4849 = vor.u32 %v4847, %v4845
    %v4851 = vshll.u32 %v4384, 16
    %v4853 = vrot.slane %v4851, 1
    %v4854 = vsel %vm4402, %v4849, %v4853
    %v4855 = vshrl.u32 %v4384, 16
    %v4857 = vor.u32 %v4855, %v4853
    %v4859 = vshll.u32 %v4385, 16
    %v4861 = vrot.slane %v4859, 1
    %v4862 = vsel %vm4402, %v4857, %v4861
    %v4863 = vshrl.u32 %v4385, 16
    %v4865 = vor.u32 %v4863, %v4861
    %v4867 = vshll.u32 %v4386, 16
    %v4869 = vrot.slane %v4867, 1
    %v4870 = vsel %vm4402, %v4865, %v4869
    %v4871 = vshrl.u32 %v4386, 16
    %v4873 = vor.u32 %v4871, %v4869
    %v4875 = vshll.u32 %v4387, 16
    %v4877 = vrot.slane %v4875, 1
    %v4878 = vsel %vm4402, %v4873, %v4877
    %v4879 = vshrl.u32 %v4387, 16
    %v4881 = vor.u32 %v4879, %v4877
    %v4883 = vshll.u32 %v4388, 16
    %v4885 = vrot.slane %v4883, 1
    %v4886 = vsel %vm4402, %v4881, %v4885
    %v4887 = vshrl.u32 %v4388, 16
    %v4889 = vor.u32 %v4887, %v4885
    %v4891 = vshll.u32 %v4389, 16
    %v4893 = vrot.slane %v4891, 1
    %v4894 = vsel %vm4402, %v4889, %v4893
    %v4895 = vshrl.u32 %v4389, 16
    %v4897 = vor.u32 %v4895, %v4893
    %v4899 = vshll.u32 %v4390, 16
    %v4901 = vrot.slane %v4899, 1
    %v4902 = vsel %vm4402, %v4897, %v4901
    %v4903 = vshrl.u32 %v4390, 16
    %v4905 = vor.u32 %v4903, %v4901
    %v4907 = vshll.u32 %v4391, 16
    %v4909 = vrot.slane %v4907, 1
    %v4910 = vsel %vm4402, %v4905, %v4909
    %v4911 = vshrl.u32 %v4391, 16
    %v4913 = vor.u32 %v4911, %v4909
    %v4915 = vshll.u32 %v4396, 16
    %v4917 = vrot.slane %v4915, 1
    %v4918 = vsel %vm4402, %v4913, %v4917
    %v4923 = vunpack.c.l.b16 %v4398
    %v4924 = vunpack.c.l.b16 %v4399
    %v4925 = vunpack.c.l.b16 %v4400
    %v4926 = vunpack.c.l.b16 %v4401
    %v4927 = vpack.c.b16 %v4924, %v4923
    %v4928 = vpack.c.b16 %v4926, %v4925
    %v4932 = vsel %vm4262, %v4414, 0
    %v4935 = vsel %vm4262, %v4422, 0
    %v4938 = vsel %vm4262, %v4430, 0
    %v4941 = vsel %vm4262, %v4438, 0
    %v4944 = vsel %vm4262, %v4446, 0
    %v4947 = vsel %vm4262, %v4454, 0
    %v4950 = vsel %vm4262, %v4462, 0
    %v4953 = vsel %vm4262, %v4470, 0
    %v4956 = vsel %vm4262, %v4478, 0
    %v4959 = vsel %vm4262, %v4486, 0
    %v4962 = vsel %vm4262, %v4494, 0
    %v4965 = vsel %vm4262, %v4502, 0
    %v4968 = vsel %vm4262, %v4510, 0
    %v4971 = vsel %vm4262, %v4518, 0
    %v4974 = vsel %vm4262, %v4526, 0
    %v4977 = vsel %vm4262, %v4534, 0
    %v4980 = vsel %vm4262, %v4542, 0
    %v4983 = vsel %vm4262, %v4550, 0
    %v4986 = vsel %vm4262, %v4558, 0
    %v4989 = vsel %vm4262, %v4566, 0
    %v4992 = vsel %vm4262, %v4574, 0
    %v4995 = vsel %vm4262, %v4582, 0
    %v4998 = vsel %vm4262, %v4590, 0
    %v5001 = vsel %vm4262, %v4598, 0
    %v5004 = vsel %vm4262, %v4606, 0
    %v5007 = vsel %vm4262, %v4614, 0
    %v5010 = vsel %vm4262, %v4622, 0
    %v5013 = vsel %vm4262, %v4630, 0
    %v5016 = vsel %vm4262, %v4638, 0
    %v5019 = vsel %vm4262, %v4646, 0
    %v5022 = vsel %vm4262, %v4654, 0
    %v5025 = vsel %vm4262, %v4662, 0
    %v5028 = vsel %vm4262, %v4670, 0
    %v5031 = vsel %vm4262, %v4678, 0
    %v5034 = vsel %vm4262, %v4686, 0
    %v5037 = vsel %vm4262, %v4694, 0
    %v5040 = vsel %vm4262, %v4702, 0
    %v5043 = vsel %vm4262, %v4710, 0
    %v5046 = vsel %vm4262, %v4718, 0
    %v5049 = vsel %vm4262, %v4726, 0
    %v5052 = vsel %vm4262, %v4734, 0
    %v5055 = vsel %vm4262, %v4742, 0
    %v5058 = vsel %vm4262, %v4750, 0
    %v5061 = vsel %vm4262, %v4758, 0
    %v5064 = vsel %vm4262, %v4766, 0
    %v5067 = vsel %vm4262, %v4774, 0
    %v5070 = vsel %vm4262, %v4782, 0
    %v5073 = vsel %vm4262, %v4790, 0
    %v5076 = vsel %vm4262, %v4798, 0
    %v5079 = vsel %vm4262, %v4806, 0
    %v5082 = vsel %vm4262, %v4814, 0
    %v5085 = vsel %vm4262, %v4822, 0
    %v5088 = vsel %vm4262, %v4830, 0
    %v5091 = vsel %vm4262, %v4838, 0
    %v5094 = vsel %vm4262, %v4846, 0
    %v5097 = vsel %vm4262, %v4854, 0
    %v5100 = vsel %vm4262, %v4862, 0
    %v5103 = vsel %vm4262, %v4870, 0
    %v5106 = vsel %vm4262, %v4878, 0
    %v5109 = vsel %vm4262, %v4886, 0
    %v5112 = vsel %vm4262, %v4894, 0
    %v5115 = vsel %vm4262, %v4902, 0
    %v5118 = vsel %vm4262, %v4910, 0
    %v5121 = vsel %vm4262, %v4918, 0
    %5123 = vmatprep.subr.bf16.mxu0 0
    %5124 = vmatpush1.bf16.msra.mxu0 %v4927
    %5125 = vmatprep.subr.bf16.mxu0 0
    %5126 = vmatpush1.bf16.msra.mxu0 %v4928
    %5127 = vmatprep.subr.bf16.mxu0 0
    %5128 = vmatpush1.bf16.msra.mxu0 0
    %5129 = vmatprep.subr.bf16.mxu0 0
    %5130 = vmatpush1.bf16.msra.mxu0 0
    %5131 = vmatprep.subr.bf16.mxu0 0
    %5132 = vmatpush1.bf16.msra.mxu0 0
    %5133 = vmatprep.subr.bf16.mxu0 0
    %5134 = vmatpush1.bf16.msra.mxu0 0
    %5135 = vmatprep.subr.bf16.mxu0 0
    %5136 = vmatpush1.bf16.msra.mxu0 0
    %5137 = vmatprep.subr.bf16.mxu0 0
    %5138 = vmatpush1.bf16.msra.mxu0 0
    %5139 = vmatprep.subr.bf16.mxu0 0
    %5140 = vmatpush1.bf16.msra.mxu0 0
    %5141 = vmatprep.subr.bf16.mxu0 0
    %5142 = vmatpush1.bf16.msra.mxu0 0
    %5143 = vmatprep.subr.bf16.mxu0 0
    %5144 = vmatpush1.bf16.msra.mxu0 0
    %5145 = vmatprep.subr.bf16.mxu0 0
    %5146 = vmatpush1.bf16.msra.mxu0 0
    %5147 = vmatprep.subr.bf16.mxu0 0
    %5148 = vmatpush1.bf16.msra.mxu0 0
    %5149 = vmatprep.subr.bf16.mxu0 0
    %5150 = vmatpush1.bf16.msra.mxu0 0
    %5151 = vmatprep.subr.bf16.mxu0 0
    %5152 = vmatpush1.bf16.msra.mxu0 0
    %5153 = vmatprep.subr.bf16.mxu0 0
    %5154 = vmatpush1.bf16.msra.mxu0 0
    %5155 = vmatprep.mubr.bf16.mxu0 0
    %5156 = vmatmul.mubr.bf16.gmra.mrb[0].mxu0 %v4932
    %v5157 = vpop.f32.mrb[0].mxu0
    %v5158 = vadd.f32 0.0, %v5157
    %v5159 = vpop.f32.mrb[0].mxu0
    %v5160 = vpop.f32.mrb[0].mxu0
    %v5161 = vadd.f32 0.0, %v5160
    %v5162 = vpop.f32.mrb[0].mxu0
    %5163 = vmatprep.mubr.bf16.mxu0 0
    %5164 = vmatmul.mubr.bf16.gmra.mrb[0].mxu0 %v4935
    %v5165 = vpop.f32.mrb[0].mxu0
    %v5166 = vadd.f32 0.0, %v5165
    %v5167 = vpop.f32.mrb[0].mxu0
    %v5168 = vpop.f32.mrb[0].mxu0
    %v5169 = vadd.f32 0.0, %v5168
    %v5170 = vpop.f32.mrb[0].mxu0
    %5171 = vmatprep.mubr.bf16.mxu0 0
    %5172 = vmatmul.mubr.bf16.gmra.mrb[0].mxu0 %v4938
    %v5173 = vpop.f32.mrb[0].mxu0
    %v5174 = vadd.f32 0.0, %v5173
    %v5175 = vpop.f32.mrb[0].mxu0
    %v5176 = vpop.f32.mrb[0].mxu0
    %v5177 = vadd.f32 0.0, %v5176
    %v5178 = vpop.f32.mrb[0].mxu0
    %5179 = vmatprep.mubr.bf16.mxu0 0
    %5180 = vmatmul.mubr.bf16.gmra.mrb[0].mxu0 %v4941
    %v5181 = vpop.f32.mrb[0].mxu0
    %v5182 = vadd.f32 0.0, %v5181
    %v5183 = vpop.f32.mrb[0].mxu0
    %v5184 = vpop.f32.mrb[0].mxu0
    %v5185 = vadd.f32 0.0, %v5184
    %v5186 = vpop.f32.mrb[0].mxu0
    %5187 = vmatprep.mubr.bf16.mxu0 0
    %5188 = vmatmul.mubr.bf16.gmra.mrb[0].mxu0 %v4944
    %v5189 = vpop.f32.mrb[0].mxu0
    %v5190 = vadd.f32 0.0, %v5189
    %v5191 = vpop.f32.mrb[0].mxu0
    %v5192 = vpop.f32.mrb[0].mxu0
    %v5193 = vadd.f32 0.0, %v5192
    %v5194 = vpop.f32.mrb[0].mxu0
    %5195 = vmatprep.mubr.bf16.mxu0 0
    %5196 = vmatmul.mubr.bf16.gmra.mrb[0].mxu0 %v4947
    %v5197 = vpop.f32.mrb[0].mxu0
    %v5198 = vadd.f32 0.0, %v5197
    %v5199 = vpop.f32.mrb[0].mxu0
    %v5200 = vpop.f32.mrb[0].mxu0
    %v5201 = vadd.f32 0.0, %v5200
    %v5202 = vpop.f32.mrb[0].mxu0
    %5203 = vmatprep.mubr.bf16.mxu0 0
    %5204 = vmatmul.mubr.bf16.gmra.mrb[0].mxu0 %v4950
    %v5205 = vpop.f32.mrb[0].mxu0
    %v5206 = vadd.f32 0.0, %v5205
    %v5207 = vpop.f32.mrb[0].mxu0
    %v5208 = vpop.f32.mrb[0].mxu0
    %v5209 = vadd.f32 0.0, %v5208
    %v5210 = vpop.f32.mrb[0].mxu0
    %5211 = vmatprep.mubr.bf16.mxu0 0
    %5212 = vmatmul.mubr.bf16.gmra.mrb[0].mxu0 %v4953
    %v5213 = vpop.f32.mrb[0].mxu0
    %v5214 = vadd.f32 0.0, %v5213
    %v5215 = vpop.f32.mrb[0].mxu0
    %v5216 = vpop.f32.mrb[0].mxu0
    %v5217 = vadd.f32 0.0, %v5216
    %v5218 = vpop.f32.mrb[0].mxu0
    %5219 = vmatprep.mubr.bf16.mxu0 0
    %5220 = vmatmul.mubr.bf16.gmra.mrb[0].mxu0 %v4956
    %v5221 = vpop.f32.mrb[0].mxu0
    %v5222 = vadd.f32 0.0, %v5221
    %v5223 = vpop.f32.mrb[0].mxu0
    %v5224 = vpop.f32.mrb[0].mxu0
    %v5225 = vadd.f32 0.0, %v5224
    %v5226 = vpop.f32.mrb[0].mxu0
    %5227 = vmatprep.mubr.bf16.mxu0 0
    %5228 = vmatmul.mubr.bf16.gmra.mrb[0].mxu0 %v4959
    %v5229 = vpop.f32.mrb[0].mxu0
    %v5230 = vadd.f32 0.0, %v5229
    %v5231 = vpop.f32.mrb[0].mxu0
    %v5232 = vpop.f32.mrb[0].mxu0
    %v5233 = vadd.f32 0.0, %v5232
    %v5234 = vpop.f32.mrb[0].mxu0
    %5235 = vmatprep.mubr.bf16.mxu0 0
    %5236 = vmatmul.mubr.bf16.gmra.mrb[0].mxu0 %v4962
    %v5237 = vpop.f32.mrb[0].mxu0
    %v5238 = vadd.f32 0.0, %v5237
    %v5239 = vpop.f32.mrb[0].mxu0
    %v5240 = vpop.f32.mrb[0].mxu0
    %v5241 = vadd.f32 0.0, %v5240
    %v5242 = vpop.f32.mrb[0].mxu0
    %5243 = vmatprep.mubr.bf16.mxu0 0
    %5244 = vmatmul.mubr.bf16.gmra.mrb[0].mxu0 %v4965
    %v5245 = vpop.f32.mrb[0].mxu0
    %v5246 = vadd.f32 0.0, %v5245
    %v5247 = vpop.f32.mrb[0].mxu0
    %v5248 = vpop.f32.mrb[0].mxu0
    %v5249 = vadd.f32 0.0, %v5248
    %v5250 = vpop.f32.mrb[0].mxu0
    %5251 = vmatprep.mubr.bf16.mxu0 0
    %5252 = vmatmul.mubr.bf16.gmra.mrb[0].mxu0 %v4968
    %v5253 = vpop.f32.mrb[0].mxu0
    %v5254 = vadd.f32 0.0, %v5253
    %v5255 = vpop.f32.mrb[0].mxu0
    %v5256 = vpop.f32.mrb[0].mxu0
    %v5257 = vadd.f32 0.0, %v5256
    %v5258 = vpop.f32.mrb[0].mxu0
    %5259 = vmatprep.mubr.bf16.mxu0 0
    %5260 = vmatmul.mubr.bf16.gmra.mrb[0].mxu0 %v4971
    %v5261 = vpop.f32.mrb[0].mxu0
    %v5262 = vadd.f32 0.0, %v5261
    %v5263 = vpop.f32.mrb[0].mxu0
    %v5264 = vpop.f32.mrb[0].mxu0
    %v5265 = vadd.f32 0.0, %v5264
    %v5266 = vpop.f32.mrb[0].mxu0
    %5267 = vmatprep.mubr.bf16.mxu0 0
    %5268 = vmatmul.mubr.bf16.gmra.mrb[0].mxu0 %v4974
    %v5269 = vpop.f32.mrb[0].mxu0
    %v5270 = vadd.f32 0.0, %v5269
    %v5271 = vpop.f32.mrb[0].mxu0
    %v5272 = vpop.f32.mrb[0].mxu0
    %v5273 = vadd.f32 0.0, %v5272
    %v5274 = vpop.f32.mrb[0].mxu0
    %5275 = vmatprep.mubr.bf16.mxu0 0
    %5276 = vmatmul.mubr.bf16.gmra.mrb[0].mxu0 %v4977
    %v5277 = vpop.f32.mrb[0].mxu0
    %v5278 = vadd.f32 0.0, %v5277
    %v5279 = vpop.f32.mrb[0].mxu0
    %v5280 = vpop.f32.mrb[0].mxu0
    %v5281 = vadd.f32 0.0, %v5280
    %v5282 = vpop.f32.mrb[0].mxu0
    %5283 = vmatprep.mubr.bf16.mxu0 0
    %5284 = vmatmul.mubr.bf16.gmra.mrb[0].mxu0 %v4980
    %v5285 = vpop.f32.mrb[0].mxu0
    %v5286 = vadd.f32 0.0, %v5285
    %v5287 = vpop.f32.mrb[0].mxu0
    %v5288 = vpop.f32.mrb[0].mxu0
    %v5289 = vadd.f32 0.0, %v5288
    %v5290 = vpop.f32.mrb[0].mxu0
    %5291 = vmatprep.mubr.bf16.mxu0 0
    %5292 = vmatmul.mubr.bf16.gmra.mrb[0].mxu0 %v4983
    %v5293 = vpop.f32.mrb[0].mxu0
    %v5294 = vadd.f32 0.0, %v5293
    %v5295 = vpop.f32.mrb[0].mxu0
    %v5296 = vpop.f32.mrb[0].mxu0
    %v5297 = vadd.f32 0.0, %v5296
    %v5298 = vpop.f32.mrb[0].mxu0
    %5299 = vmatprep.mubr.bf16.mxu0 0
    %5300 = vmatmul.mubr.bf16.gmra.mrb[0].mxu0 %v4986
    %v5301 = vpop.f32.mrb[0].mxu0
    %v5302 = vadd.f32 0.0, %v5301
    %v5303 = vpop.f32.mrb[0].mxu0
    %v5304 = vpop.f32.mrb[0].mxu0
    %v5305 = vadd.f32 0.0, %v5304
    %v5306 = vpop.f32.mrb[0].mxu0
    %5307 = vmatprep.mubr.bf16.mxu0 0
    %5308 = vmatmul.mubr.bf16.gmra.mrb[0].mxu0 %v4989
    %v5309 = vpop.f32.mrb[0].mxu0
    %v5310 = vadd.f32 0.0, %v5309
    %v5311 = vpop.f32.mrb[0].mxu0
    %v5312 = vpop.f32.mrb[0].mxu0
    %v5313 = vadd.f32 0.0, %v5312
    %v5314 = vpop.f32.mrb[0].mxu0
    %5315 = vmatprep.mubr.bf16.mxu0 0
    %5316 = vmatmul.mubr.bf16.gmra.mrb[0].mxu0 %v4992
    %v5317 = vpop.f32.mrb[0].mxu0
    %v5318 = vadd.f32 0.0, %v5317
    %v5319 = vpop.f32.mrb[0].mxu0
    %v5320 = vpop.f32.mrb[0].mxu0
    %v5321 = vadd.f32 0.0, %v5320
    %v5322 = vpop.f32.mrb[0].mxu0
    %5323 = vmatprep.mubr.bf16.mxu0 0
    %5324 = vmatmul.mubr.bf16.gmra.mrb[0].mxu0 %v4995
    %v5325 = vpop.f32.mrb[0].mxu0
    %v5326 = vadd.f32 0.0, %v5325
    %v5327 = vpop.f32.mrb[0].mxu0
    %v5328 = vpop.f32.mrb[0].mxu0
    %v5329 = vadd.f32 0.0, %v5328
    %v5330 = vpop.f32.mrb[0].mxu0
    %5331 = vmatprep.mubr.bf16.mxu0 0
    %5332 = vmatmul.mubr.bf16.gmra.mrb[0].mxu0 %v4998
    %v5333 = vpop.f32.mrb[0].mxu0
    %v5334 = vadd.f32 0.0, %v5333
    %v5335 = vpop.f32.mrb[0].mxu0
    %v5336 = vpop.f32.mrb[0].mxu0
    %v5337 = vadd.f32 0.0, %v5336
    %v5338 = vpop.f32.mrb[0].mxu0
    %5339 = vmatprep.mubr.bf16.mxu0 0
    %5340 = vmatmul.mubr.bf16.gmra.mrb[0].mxu0 %v5001
    %v5341 = vpop.f32.mrb[0].mxu0
    %v5342 = vadd.f32 0.0, %v5341
    %v5343 = vpop.f32.mrb[0].mxu0
    %v5344 = vpop.f32.mrb[0].mxu0
    %v5345 = vadd.f32 0.0, %v5344
    %v5346 = vpop.f32.mrb[0].mxu0
    %5347 = vmatprep.mubr.bf16.mxu0 0
    %5348 = vmatmul.mubr.bf16.gmra.mrb[0].mxu0 %v5004
    %v5349 = vpop.f32.mrb[0].mxu0
    %v5350 = vadd.f32 0.0, %v5349
    %v5351 = vpop.f32.mrb[0].mxu0
    %v5352 = vpop.f32.mrb[0].mxu0
    %v5353 = vadd.f32 0.0, %v5352
    %v5354 = vpop.f32.mrb[0].mxu0
    %5355 = vmatprep.mubr.bf16.mxu0 0
    %5356 = vmatmul.mubr.bf16.gmra.mrb[0].mxu0 %v5007
    %v5357 = vpop.f32.mrb[0].mxu0
    %v5358 = vadd.f32 0.0, %v5357
    %v5359 = vpop.f32.mrb[0].mxu0
    %v5360 = vpop.f32.mrb[0].mxu0
    %v5361 = vadd.f32 0.0, %v5360
    %v5362 = vpop.f32.mrb[0].mxu0
    %5363 = vmatprep.mubr.bf16.mxu0 0
    %5364 = vmatmul.mubr.bf16.gmra.mrb[0].mxu0 %v5010
    %v5365 = vpop.f32.mrb[0].mxu0
    %v5366 = vadd.f32 0.0, %v5365
    %v5367 = vpop.f32.mrb[0].mxu0
    %v5368 = vpop.f32.mrb[0].mxu0
    %v5369 = vadd.f32 0.0, %v5368
    %v5370 = vpop.f32.mrb[0].mxu0
    %5371 = vmatprep.mubr.bf16.mxu0 0
    %5372 = vmatmul.mubr.bf16.gmra.mrb[0].mxu0 %v5013
    %v5373 = vpop.f32.mrb[0].mxu0
    %v5374 = vadd.f32 0.0, %v5373
    %v5375 = vpop.f32.mrb[0].mxu0
    %v5376 = vpop.f32.mrb[0].mxu0
    %v5377 = vadd.f32 0.0, %v5376
    %v5378 = vpop.f32.mrb[0].mxu0
    %5379 = vmatprep.mubr.bf16.mxu0 0
    %5380 = vmatmul.mubr.bf16.gmra.mrb[0].mxu0 %v5016
    %v5381 = vpop.f32.mrb[0].mxu0
    %v5382 = vadd.f32 0.0, %v5381
    %v5383 = vpop.f32.mrb[0].mxu0
    %v5384 = vpop.f32.mrb[0].mxu0
    %v5385 = vadd.f32 0.0, %v5384
    %v5386 = vpop.f32.mrb[0].mxu0
    %5387 = vmatprep.mubr.bf16.mxu0 0
    %5388 = vmatmul.mubr.bf16.gmra.mrb[0].mxu0 %v5019
    %v5389 = vpop.f32.mrb[0].mxu0
    %v5390 = vadd.f32 0.0, %v5389
    %v5391 = vpop.f32.mrb[0].mxu0
    %v5392 = vpop.f32.mrb[0].mxu0
    %v5393 = vadd.f32 0.0, %v5392
    %v5394 = vpop.f32.mrb[0].mxu0
    %5395 = vmatprep.mubr.bf16.mxu0 0
    %5396 = vmatmul.mubr.bf16.gmra.mrb[0].mxu0 %v5022
    %v5397 = vpop.f32.mrb[0].mxu0
    %v5398 = vadd.f32 0.0, %v5397
    %v5399 = vpop.f32.mrb[0].mxu0
    %v5400 = vpop.f32.mrb[0].mxu0
    %v5401 = vadd.f32 0.0, %v5400
    %v5402 = vpop.f32.mrb[0].mxu0
    %5403 = vmatprep.mubr.bf16.mxu0 0
    %5404 = vmatmul.mubr.bf16.gmra.mrb[0].mxu0 %v5025
    %v5405 = vpop.f32.mrb[0].mxu0
    %v5406 = vadd.f32 0.0, %v5405
    %v5407 = vpop.f32.mrb[0].mxu0
    %v5408 = vpop.f32.mrb[0].mxu0
    %v5409 = vadd.f32 0.0, %v5408
    %v5410 = vpop.f32.mrb[0].mxu0
    %5411 = vmatprep.mubr.bf16.mxu0 0
    %5412 = vmatmul.mubr.bf16.gmra.mrb[0].mxu0 %v5028
    %v5413 = vpop.f32.mrb[0].mxu0
    %v5414 = vadd.f32 0.0, %v5413
    %v5415 = vpop.f32.mrb[0].mxu0
    %v5416 = vpop.f32.mrb[0].mxu0
    %v5417 = vadd.f32 0.0, %v5416
    %v5418 = vpop.f32.mrb[0].mxu0
    %5419 = vmatprep.mubr.bf16.mxu0 0
    %5420 = vmatmul.mubr.bf16.gmra.mrb[0].mxu0 %v5031
    %v5421 = vpop.f32.mrb[0].mxu0
    %v5422 = vadd.f32 0.0, %v5421
    %v5423 = vpop.f32.mrb[0].mxu0
    %v5424 = vpop.f32.mrb[0].mxu0
    %v5425 = vadd.f32 0.0, %v5424
    %v5426 = vpop.f32.mrb[0].mxu0
    %5427 = vmatprep.mubr.bf16.mxu0 0
    %5428 = vmatmul.mubr.bf16.gmra.mrb[0].mxu0 %v5034
    %v5429 = vpop.f32.mrb[0].mxu0
    %v5430 = vadd.f32 0.0, %v5429
    %v5431 = vpop.f32.mrb[0].mxu0
    %v5432 = vpop.f32.mrb[0].mxu0
    %v5433 = vadd.f32 0.0, %v5432
    %v5434 = vpop.f32.mrb[0].mxu0
    %5435 = vmatprep.mubr.bf16.mxu0 0
    %5436 = vmatmul.mubr.bf16.gmra.mrb[0].mxu0 %v5037
    %v5437 = vpop.f32.mrb[0].mxu0
    %v5438 = vadd.f32 0.0, %v5437
    %v5439 = vpop.f32.mrb[0].mxu0
    %v5440 = vpop.f32.mrb[0].mxu0
    %v5441 = vadd.f32 0.0, %v5440
    %v5442 = vpop.f32.mrb[0].mxu0
    %5443 = vmatprep.mubr.bf16.mxu0 0
    %5444 = vmatmul.mubr.bf16.gmra.mrb[0].mxu0 %v5040
    %v5445 = vpop.f32.mrb[0].mxu0
    %v5446 = vadd.f32 0.0, %v5445
    %v5447 = vpop.f32.mrb[0].mxu0
    %v5448 = vpop.f32.mrb[0].mxu0
    %v5449 = vadd.f32 0.0, %v5448
    %v5450 = vpop.f32.mrb[0].mxu0
    %5451 = vmatprep.mubr.bf16.mxu0 0
    %5452 = vmatmul.mubr.bf16.gmra.mrb[0].mxu0 %v5043
    %v5453 = vpop.f32.mrb[0].mxu0
    %v5454 = vadd.f32 0.0, %v5453
    %v5455 = vpop.f32.mrb[0].mxu0
    %v5456 = vpop.f32.mrb[0].mxu0
    %v5457 = vadd.f32 0.0, %v5456
    %v5458 = vpop.f32.mrb[0].mxu0
    %5459 = vmatprep.mubr.bf16.mxu0 0
    %5460 = vmatmul.mubr.bf16.gmra.mrb[0].mxu0 %v5046
    %v5461 = vpop.f32.mrb[0].mxu0
    %v5462 = vadd.f32 0.0, %v5461
    %v5463 = vpop.f32.mrb[0].mxu0
    %v5464 = vpop.f32.mrb[0].mxu0
    %v5465 = vadd.f32 0.0, %v5464
    %v5466 = vpop.f32.mrb[0].mxu0
    %5467 = vmatprep.mubr.bf16.mxu0 0
    %5468 = vmatmul.mubr.bf16.gmra.mrb[0].mxu0 %v5049
    %v5469 = vpop.f32.mrb[0].mxu0
    %v5470 = vadd.f32 0.0, %v5469
    %v5471 = vpop.f32.mrb[0].mxu0
    %v5472 = vpop.f32.mrb[0].mxu0
    %v5473 = vadd.f32 0.0, %v5472
    %v5474 = vpop.f32.mrb[0].mxu0
    %5475 = vmatprep.mubr.bf16.mxu0 0
    %5476 = vmatmul.mubr.bf16.gmra.mrb[0].mxu0 %v5052
    %v5477 = vpop.f32.mrb[0].mxu0
    %v5478 = vadd.f32 0.0, %v5477
    %v5479 = vpop.f32.mrb[0].mxu0
    %v5480 = vpop.f32.mrb[0].mxu0
    %v5481 = vadd.f32 0.0, %v5480
    %v5482 = vpop.f32.mrb[0].mxu0
    %5483 = vmatprep.mubr.bf16.mxu0 0
    %5484 = vmatmul.mubr.bf16.gmra.mrb[0].mxu0 %v5055
    %v5485 = vpop.f32.mrb[0].mxu0
    %v5486 = vadd.f32 0.0, %v5485
    %v5487 = vpop.f32.mrb[0].mxu0
    %v5488 = vpop.f32.mrb[0].mxu0
    %v5489 = vadd.f32 0.0, %v5488
    %v5490 = vpop.f32.mrb[0].mxu0
    %5491 = vmatprep.mubr.bf16.mxu0 0
    %5492 = vmatmul.mubr.bf16.gmra.mrb[0].mxu0 %v5058
    %v5493 = vpop.f32.mrb[0].mxu0
    %v5494 = vadd.f32 0.0, %v5493
    %v5495 = vpop.f32.mrb[0].mxu0
    %v5496 = vpop.f32.mrb[0].mxu0
    %v5497 = vadd.f32 0.0, %v5496
    %v5498 = vpop.f32.mrb[0].mxu0
    %5499 = vmatprep.mubr.bf16.mxu0 0
    %5500 = vmatmul.mubr.bf16.gmra.mrb[0].mxu0 %v5061
    %v5501 = vpop.f32.mrb[0].mxu0
    %v5502 = vadd.f32 0.0, %v5501
    %v5503 = vpop.f32.mrb[0].mxu0
    %v5504 = vpop.f32.mrb[0].mxu0
    %v5505 = vadd.f32 0.0, %v5504
    %v5506 = vpop.f32.mrb[0].mxu0
    %5507 = vmatprep.mubr.bf16.mxu0 0
    %5508 = vmatmul.mubr.bf16.gmra.mrb[0].mxu0 %v5064
    %v5509 = vpop.f32.mrb[0].mxu0
    %v5510 = vadd.f32 0.0, %v5509
    %v5511 = vpop.f32.mrb[0].mxu0
    %v5512 = vpop.f32.mrb[0].mxu0
    %v5513 = vadd.f32 0.0, %v5512
    %v5514 = vpop.f32.mrb[0].mxu0
    %5515 = vmatprep.mubr.bf16.mxu0 0
    %5516 = vmatmul.mubr.bf16.gmra.mrb[0].mxu0 %v5067
    %v5517 = vpop.f32.mrb[0].mxu0
    %v5518 = vadd.f32 0.0, %v5517
    %v5519 = vpop.f32.mrb[0].mxu0
    %v5520 = vpop.f32.mrb[0].mxu0
    %v5521 = vadd.f32 0.0, %v5520
    %v5522 = vpop.f32.mrb[0].mxu0
    %5523 = vmatprep.mubr.bf16.mxu0 0
    %5524 = vmatmul.mubr.bf16.gmra.mrb[0].mxu0 %v5070
    %v5525 = vpop.f32.mrb[0].mxu0
    %v5526 = vadd.f32 0.0, %v5525
    %v5527 = vpop.f32.mrb[0].mxu0
    %v5528 = vpop.f32.mrb[0].mxu0
    %v5529 = vadd.f32 0.0, %v5528
    %v5530 = vpop.f32.mrb[0].mxu0
    %5531 = vmatprep.mubr.bf16.mxu0 0
    %5532 = vmatmul.mubr.bf16.gmra.mrb[0].mxu0 %v5073
    %v5533 = vpop.f32.mrb[0].mxu0
    %v5534 = vadd.f32 0.0, %v5533
    %v5535 = vpop.f32.mrb[0].mxu0
    %v5536 = vpop.f32.mrb[0].mxu0
    %v5537 = vadd.f32 0.0, %v5536
    %v5538 = vpop.f32.mrb[0].mxu0
    %5539 = vmatprep.mubr.bf16.mxu0 0
    %5540 = vmatmul.mubr.bf16.gmra.mrb[0].mxu0 %v5076
    %v5541 = vpop.f32.mrb[0].mxu0
    %v5542 = vadd.f32 0.0, %v5541
    %v5543 = vpop.f32.mrb[0].mxu0
    %v5544 = vpop.f32.mrb[0].mxu0
    %v5545 = vadd.f32 0.0, %v5544
    %v5546 = vpop.f32.mrb[0].mxu0
    %5547 = vmatprep.mubr.bf16.mxu0 0
    %5548 = vmatmul.mubr.bf16.gmra.mrb[0].mxu0 %v5079
    %v5549 = vpop.f32.mrb[0].mxu0
    %v5550 = vadd.f32 0.0, %v5549
    %v5551 = vpop.f32.mrb[0].mxu0
    %v5552 = vpop.f32.mrb[0].mxu0
    %v5553 = vadd.f32 0.0, %v5552
    %v5554 = vpop.f32.mrb[0].mxu0
    %5555 = vmatprep.mubr.bf16.mxu0 0
    %5556 = vmatmul.mubr.bf16.gmra.mrb[0].mxu0 %v5082
    %v5557 = vpop.f32.mrb[0].mxu0
    %v5558 = vadd.f32 0.0, %v5557
    %v5559 = vpop.f32.mrb[0].mxu0
    %v5560 = vpop.f32.mrb[0].mxu0
    %v5561 = vadd.f32 0.0, %v5560
    %v5562 = vpop.f32.mrb[0].mxu0
    %5563 = vmatprep.mubr.bf16.mxu0 0
    %5564 = vmatmul.mubr.bf16.gmra.mrb[0].mxu0 %v5085
    %v5565 = vpop.f32.mrb[0].mxu0
    %v5566 = vadd.f32 0.0, %v5565
    %v5567 = vpop.f32.mrb[0].mxu0
    %v5568 = vpop.f32.mrb[0].mxu0
    %v5569 = vadd.f32 0.0, %v5568
    %v5570 = vpop.f32.mrb[0].mxu0
    %5571 = vmatprep.mubr.bf16.mxu0 0
    %5572 = vmatmul.mubr.bf16.gmra.mrb[0].mxu0 %v5088
    %v5573 = vpop.f32.mrb[0].mxu0
    %v5574 = vadd.f32 0.0, %v5573
    %v5575 = vpop.f32.mrb[0].mxu0
    %v5576 = vpop.f32.mrb[0].mxu0
    %v5577 = vadd.f32 0.0, %v5576
    %v5578 = vpop.f32.mrb[0].mxu0
    %5579 = vmatprep.mubr.bf16.mxu0 0
    %5580 = vmatmul.mubr.bf16.gmra.mrb[0].mxu0 %v5091
    %v5581 = vpop.f32.mrb[0].mxu0
    %v5582 = vadd.f32 0.0, %v5581
    %v5583 = vpop.f32.mrb[0].mxu0
    %v5584 = vpop.f32.mrb[0].mxu0
    %v5585 = vadd.f32 0.0, %v5584
    %v5586 = vpop.f32.mrb[0].mxu0
    %5587 = vmatprep.mubr.bf16.mxu0 0
    %5588 = vmatmul.mubr.bf16.gmra.mrb[0].mxu0 %v5094
    %v5589 = vpop.f32.mrb[0].mxu0
    %v5590 = vadd.f32 0.0, %v5589
    %v5591 = vpop.f32.mrb[0].mxu0
    %v5592 = vpop.f32.mrb[0].mxu0
    %v5593 = vadd.f32 0.0, %v5592
    %v5594 = vpop.f32.mrb[0].mxu0
    %5595 = vmatprep.mubr.bf16.mxu0 0
    %5596 = vmatmul.mubr.bf16.gmra.mrb[0].mxu0 %v5097
    %v5597 = vpop.f32.mrb[0].mxu0
    %v5598 = vadd.f32 0.0, %v5597
    %v5599 = vpop.f32.mrb[0].mxu0
    %v5600 = vpop.f32.mrb[0].mxu0
    %v5601 = vadd.f32 0.0, %v5600
    %v5602 = vpop.f32.mrb[0].mxu0
    %5603 = vmatprep.mubr.bf16.mxu0 0
    %5604 = vmatmul.mubr.bf16.gmra.mrb[0].mxu0 %v5100
    %v5605 = vpop.f32.mrb[0].mxu0
    %v5606 = vadd.f32 0.0, %v5605
    %v5607 = vpop.f32.mrb[0].mxu0
    %v5608 = vpop.f32.mrb[0].mxu0
    %v5609 = vadd.f32 0.0, %v5608
    %v5610 = vpop.f32.mrb[0].mxu0
    %5611 = vmatprep.mubr.bf16.mxu0 0
    %5612 = vmatmul.mubr.bf16.gmra.mrb[0].mxu0 %v5103
    %v5613 = vpop.f32.mrb[0].mxu0
    %v5614 = vadd.f32 0.0, %v5613
    %v5615 = vpop.f32.mrb[0].mxu0
    %v5616 = vpop.f32.mrb[0].mxu0
    %v5617 = vadd.f32 0.0, %v5616
    %v5618 = vpop.f32.mrb[0].mxu0
    %5619 = vmatprep.mubr.bf16.mxu0 0
    %5620 = vmatmul.mubr.bf16.gmra.mrb[0].mxu0 %v5106
    %v5621 = vpop.f32.mrb[0].mxu0
    %v5622 = vadd.f32 0.0, %v5621
    %v5623 = vpop.f32.mrb[0].mxu0
    %v5624 = vpop.f32.mrb[0].mxu0
    %v5625 = vadd.f32 0.0, %v5624
    %v5626 = vpop.f32.mrb[0].mxu0
    %5627 = vmatprep.mubr.bf16.mxu0 0
    %5628 = vmatmul.mubr.bf16.gmra.mrb[0].mxu0 %v5109
    %v5629 = vpop.f32.mrb[0].mxu0
    %v5630 = vadd.f32 0.0, %v5629
    %v5631 = vpop.f32.mrb[0].mxu0
    %v5632 = vpop.f32.mrb[0].mxu0
    %v5633 = vadd.f32 0.0, %v5632
    %v5634 = vpop.f32.mrb[0].mxu0
    %5635 = vmatprep.mubr.bf16.mxu0 0
    %5636 = vmatmul.mubr.bf16.gmra.mrb[0].mxu0 %v5112
    %v5637 = vpop.f32.mrb[0].mxu0
    %v5638 = vadd.f32 0.0, %v5637
    %v5639 = vpop.f32.mrb[0].mxu0
    %v5640 = vpop.f32.mrb[0].mxu0
    %v5641 = vadd.f32 0.0, %v5640
    %v5642 = vpop.f32.mrb[0].mxu0
    %5643 = vmatprep.mubr.bf16.mxu0 0
    %5644 = vmatmul.mubr.bf16.gmra.mrb[0].mxu0 %v5115
    %v5645 = vpop.f32.mrb[0].mxu0
    %v5646 = vadd.f32 0.0, %v5645
    %v5647 = vpop.f32.mrb[0].mxu0
    %v5648 = vpop.f32.mrb[0].mxu0
    %v5649 = vadd.f32 0.0, %v5648
    %v5650 = vpop.f32.mrb[0].mxu0
    %5651 = vmatprep.mubr.bf16.mxu0 0
    %5652 = vmatmul.mubr.bf16.gmra.mrb[0].mxu0 %v5118
    %v5653 = vpop.f32.mrb[0].mxu0
    %v5654 = vadd.f32 0.0, %v5653
    %v5655 = vpop.f32.mrb[0].mxu0
    %v5656 = vpop.f32.mrb[0].mxu0
    %v5657 = vadd.f32 0.0, %v5656
    %v5658 = vpop.f32.mrb[0].mxu0
    %5659 = vmatprep.mubr.bf16.mxu0 0
    %5660 = vmatmul.mubr.bf16.gmra.mrb[0].mxu0 %v5121
    %v5661 = vpop.f32.mrb[0].mxu0
    %v5662 = vadd.f32 0.0, %v5661
    %v5663 = vpop.f32.mrb[0].mxu0
    %v5664 = vpop.f32.mrb[0].mxu0
    %v5665 = vadd.f32 0.0, %v5664
    %v5666 = vpop.f32.mrb[0].mxu0
    %5667 = vdwg.mxu0
    %v5672 = vunpack.c.l.b16 %v4392
    %v5673 = vunpack.c.l.b16 %v4393
    %v5674 = vunpack.c.l.b16 %v4394
    %v5675 = vunpack.c.l.b16 %v4395
    %v5676 = vpack.c.b16 %v5673, %v5672
    %v5677 = vpack.c.b16 %v5675, %v5674
    %v5680 = vsel %vm4262, %v4328, 0
    %v5682 = vsel %vm4262, %v4329, 0
    %v5684 = vsel %vm4262, %v4330, 0
    %v5686 = vsel %vm4262, %v4331, 0
    %v5688 = vsel %vm4262, %v4332, 0
    %v5690 = vsel %vm4262, %v4333, 0
    %v5692 = vsel %vm4262, %v4334, 0
    %v5694 = vsel %vm4262, %v4335, 0
    %v5696 = vsel %vm4262, %v4336, 0
    %v5698 = vsel %vm4262, %v4337, 0
    %v5700 = vsel %vm4262, %v4338, 0
    %v5702 = vsel %vm4262, %v4339, 0
    %v5704 = vsel %vm4262, %v4340, 0
    %v5706 = vsel %vm4262, %v4341, 0
    %v5708 = vsel %vm4262, %v4342, 0
    %v5710 = vsel %vm4262, %v4343, 0
    %v5712 = vsel %vm4262, %v4344, 0
    %v5714 = vsel %vm4262, %v4345, 0
    %v5716 = vsel %vm4262, %v4346, 0
    %v5718 = vsel %vm4262, %v4347, 0
    %v5720 = vsel %vm4262, %v4348, 0
    %v5722 = vsel %vm4262, %v4349, 0
    %v5724 = vsel %vm4262, %v4350, 0
    %v5726 = vsel %vm4262, %v4351, 0
    %v5728 = vsel %vm4262, %v4352, 0
    %v5730 = vsel %vm4262, %v4353, 0
    %v5732 = vsel %vm4262, %v4354, 0
    %v5734 = vsel %vm4262, %v4355, 0
    %v5736 = vsel %vm4262, %v4356, 0
    %v5738 = vsel %vm4262, %v4357, 0
    %v5740 = vsel %vm4262, %v4358, 0
    %v5742 = vsel %vm4262, %v4359, 0
    %v5744 = vsel %vm4262, %v4360, 0
    %v5746 = vsel %vm4262, %v4361, 0
    %v5748 = vsel %vm4262, %v4362, 0
    %v5750 = vsel %vm4262, %v4363, 0
    %v5752 = vsel %vm4262, %v4364, 0
    %v5754 = vsel %vm4262, %v4365, 0
    %v5756 = vsel %vm4262, %v4366, 0
    %v5758 = vsel %vm4262, %v4367, 0
    %v5760 = vsel %vm4262, %v4368, 0
    %v5762 = vsel %vm4262, %v4369, 0
    %v5764 = vsel %vm4262, %v4370, 0
    %v5766 = vsel %vm4262, %v4371, 0
    %v5768 = vsel %vm4262, %v4372, 0
    %v5770 = vsel %vm4262, %v4373, 0
    %v5772 = vsel %vm4262, %v4374, 0
    %v5774 = vsel %vm4262, %v4375, 0
    %v5776 = vsel %vm4262, %v4376, 0
    %v5778 = vsel %vm4262, %v4377, 0
    %v5780 = vsel %vm4262, %v4378, 0
    %v5782 = vsel %vm4262, %v4379, 0
    %v5784 = vsel %vm4262, %v4380, 0
    %v5786 = vsel %vm4262, %v4381, 0
    %v5788 = vsel %vm4262, %v4382, 0
    %v5790 = vsel %vm4262, %v4383, 0
    %v5792 = vsel %vm4262, %v4384, 0
    %v5794 = vsel %vm4262, %v4385, 0
    %v5796 = vsel %vm4262, %v4386, 0
    %v5798 = vsel %vm4262, %v4387, 0
    %v5800 = vsel %vm4262, %v4388, 0
    %v5802 = vsel %vm4262, %v4389, 0
    %v5804 = vsel %vm4262, %v4390, 0
    %v5806 = vsel %vm4262, %v4391, 0
    %5808 = vmatprep.subr.bf16.mxu0 0
    %5809 = vmatpush1.bf16.msra.mxu0 %v5676
    %5810 = vmatprep.subr.bf16.mxu0 0
    %5811 = vmatpush1.bf16.msra.mxu0 %v5677
    %5812 = vmatprep.subr.bf16.mxu0 0
    %5813 = vmatpush1.bf16.msra.mxu0 0
    %5814 = vmatprep.subr.bf16.mxu0 0
    %5815 = vmatpush1.bf16.msra.mxu0 0
    %5816 = vmatprep.subr.bf16.mxu0 0
    %5817 = vmatpush1.bf16.msra.mxu0 0
    %5818 = vmatprep.subr.bf16.mxu0 0
    %5819 = vmatpush1.bf16.msra.mxu0 0
    %5820 = vmatprep.subr.bf16.mxu0 0
    %5821 = vmatpush1.bf16.msra.mxu0 0
    %5822 = vmatprep.subr.bf16.mxu0 0
    %5823 = vmatpush1.bf16.msra.mxu0 0
    %5824 = vmatprep.subr.bf16.mxu0 0
    %5825 = vmatpush1.bf16.msra.mxu0 0
    %5826 = vmatprep.subr.bf16.mxu0 0
    %5827 = vmatpush1.bf16.msra.mxu0 0
    %5828 = vmatprep.subr.bf16.mxu0 0
    %5829 = vmatpush1.bf16.msra.mxu0 0
    %5830 = vmatprep.subr.bf16.mxu0 0
    %5831 = vmatpush1.bf16.msra.mxu0 0
    %5832 = vmatprep.subr.bf16.mxu0 0
    %5833 = vmatpush1.bf16.msra.mxu0 0
    %5834 = vmatprep.subr.bf16.mxu0 0
    %5835 = vmatpush1.bf16.msra.mxu0 0
    %5836 = vmatprep.subr.bf16.mxu0 0
    %5837 = vmatpush1.bf16.msra.mxu0 0
    %5838 = vmatprep.subr.bf16.mxu0 0
    %5839 = vmatpush1.bf16.msra.mxu0 0
    %5840 = vmatprep.mubr.bf16.mxu0 0
    %5841 = vmatmul.mubr.bf16.gmra.mrb[0].mxu0 %v5680
    %v5842 = vpop.f32.mrb[0].mxu0
    %v5843 = vadd.f32 %v5158, %v5842
    %v5844 = vpop.f32.mrb[0].mxu0
    %v5845 = vpop.f32.mrb[0].mxu0
    %v5846 = vadd.f32 %v5161, %v5845
    %v5847 = vpop.f32.mrb[0].mxu0
    %5848 = vmatprep.mubr.bf16.mxu0 0
    %5849 = vmatmul.mubr.bf16.gmra.mrb[0].mxu0 %v5682
    %v5850 = vpop.f32.mrb[0].mxu0
    %v5851 = vadd.f32 %v5166, %v5850
    %v5852 = vpop.f32.mrb[0].mxu0
    %v5853 = vpop.f32.mrb[0].mxu0
    %v5854 = vadd.f32 %v5169, %v5853
    %v5855 = vpop.f32.mrb[0].mxu0
    %5856 = vmatprep.mubr.bf16.mxu0 0
    %5857 = vmatmul.mubr.bf16.gmra.mrb[0].mxu0 %v5684
    %v5858 = vpop.f32.mrb[0].mxu0
    %v5859 = vadd.f32 %v5174, %v5858
    %v5860 = vpop.f32.mrb[0].mxu0
    %v5861 = vpop.f32.mrb[0].mxu0
    %v5862 = vadd.f32 %v5177, %v5861
    %v5863 = vpop.f32.mrb[0].mxu0
    %5864 = vmatprep.mubr.bf16.mxu0 0
    %5865 = vmatmul.mubr.bf16.gmra.mrb[0].mxu0 %v5686
    %v5866 = vpop.f32.mrb[0].mxu0
    %v5867 = vadd.f32 %v5182, %v5866
    %v5868 = vpop.f32.mrb[0].mxu0
    %v5869 = vpop.f32.mrb[0].mxu0
    %v5870 = vadd.f32 %v5185, %v5869
    %v5871 = vpop.f32.mrb[0].mxu0
    %5872 = vmatprep.mubr.bf16.mxu0 0
    %5873 = vmatmul.mubr.bf16.gmra.mrb[0].mxu0 %v5688
    %v5874 = vpop.f32.mrb[0].mxu0
    %v5875 = vadd.f32 %v5190, %v5874
    %v5876 = vpop.f32.mrb[0].mxu0
    %v5877 = vpop.f32.mrb[0].mxu0
    %v5878 = vadd.f32 %v5193, %v5877
    %v5879 = vpop.f32.mrb[0].mxu0
    %5880 = vmatprep.mubr.bf16.mxu0 0
    %5881 = vmatmul.mubr.bf16.gmra.mrb[0].mxu0 %v5690
    %v5882 = vpop.f32.mrb[0].mxu0
    %v5883 = vadd.f32 %v5198, %v5882
    %v5884 = vpop.f32.mrb[0].mxu0
    %v5885 = vpop.f32.mrb[0].mxu0
    %v5886 = vadd.f32 %v5201, %v5885
    %v5887 = vpop.f32.mrb[0].mxu0
    %5888 = vmatprep.mubr.bf16.mxu0 0
    %5889 = vmatmul.mubr.bf16.gmra.mrb[0].mxu0 %v5692
    %v5890 = vpop.f32.mrb[0].mxu0
    %v5891 = vadd.f32 %v5206, %v5890
    %v5892 = vpop.f32.mrb[0].mxu0
    %v5893 = vpop.f32.mrb[0].mxu0
    %v5894 = vadd.f32 %v5209, %v5893
    %v5895 = vpop.f32.mrb[0].mxu0
    %5896 = vmatprep.mubr.bf16.mxu0 0
    %5897 = vmatmul.mubr.bf16.gmra.mrb[0].mxu0 %v5694
    %v5898 = vpop.f32.mrb[0].mxu0
    %v5899 = vadd.f32 %v5214, %v5898
    %v5900 = vpop.f32.mrb[0].mxu0
    %v5901 = vpop.f32.mrb[0].mxu0
    %v5902 = vadd.f32 %v5217, %v5901
    %v5903 = vpop.f32.mrb[0].mxu0
    %5904 = vmatprep.mubr.bf16.mxu0 0
    %5905 = vmatmul.mubr.bf16.gmra.mrb[0].mxu0 %v5696
    %v5906 = vpop.f32.mrb[0].mxu0
    %v5907 = vadd.f32 %v5222, %v5906
    %v5908 = vpop.f32.mrb[0].mxu0
    %v5909 = vpop.f32.mrb[0].mxu0
    %v5910 = vadd.f32 %v5225, %v5909
    %v5911 = vpop.f32.mrb[0].mxu0
    %5912 = vmatprep.mubr.bf16.mxu0 0
    %5913 = vmatmul.mubr.bf16.gmra.mrb[0].mxu0 %v5698
    %v5914 = vpop.f32.mrb[0].mxu0
    %v5915 = vadd.f32 %v5230, %v5914
    %v5916 = vpop.f32.mrb[0].mxu0
    %v5917 = vpop.f32.mrb[0].mxu0
    %v5918 = vadd.f32 %v5233, %v5917
    %v5919 = vpop.f32.mrb[0].mxu0
    %5920 = vmatprep.mubr.bf16.mxu0 0
    %5921 = vmatmul.mubr.bf16.gmra.mrb[0].mxu0 %v5700
    %v5922 = vpop.f32.mrb[0].mxu0
    %v5923 = vadd.f32 %v5238, %v5922
    %v5924 = vpop.f32.mrb[0].mxu0
    %v5925 = vpop.f32.mrb[0].mxu0
    %v5926 = vadd.f32 %v5241, %v5925
    %v5927 = vpop.f32.mrb[0].mxu0
    %5928 = vmatprep.mubr.bf16.mxu0 0
    %5929 = vmatmul.mubr.bf16.gmra.mrb[0].mxu0 %v5702
    %v5930 = vpop.f32.mrb[0].mxu0
    %v5931 = vadd.f32 %v5246, %v5930
    %v5932 = vpop.f32.mrb[0].mxu0
    %v5933 = vpop.f32.mrb[0].mxu0
    %v5934 = vadd.f32 %v5249, %v5933
    %v5935 = vpop.f32.mrb[0].mxu0
    %5936 = vmatprep.mubr.bf16.mxu0 0
    %5937 = vmatmul.mubr.bf16.gmra.mrb[0].mxu0 %v5704
    %v5938 = vpop.f32.mrb[0].mxu0
    %v5939 = vadd.f32 %v5254, %v5938
    %v5940 = vpop.f32.mrb[0].mxu0
    %v5941 = vpop.f32.mrb[0].mxu0
    %v5942 = vadd.f32 %v5257, %v5941
    %v5943 = vpop.f32.mrb[0].mxu0
    %5944 = vmatprep.mubr.bf16.mxu0 0
    %5945 = vmatmul.mubr.bf16.gmra.mrb[0].mxu0 %v5706
    %v5946 = vpop.f32.mrb[0].mxu0
    %v5947 = vadd.f32 %v5262, %v5946
    %v5948 = vpop.f32.mrb[0].mxu0
    %v5949 = vpop.f32.mrb[0].mxu0
    %v5950 = vadd.f32 %v5265, %v5949
    %v5951 = vpop.f32.mrb[0].mxu0
    %5952 = vmatprep.mubr.bf16.mxu0 0
    %5953 = vmatmul.mubr.bf16.gmra.mrb[0].mxu0 %v5708
    %v5954 = vpop.f32.mrb[0].mxu0
    %v5955 = vadd.f32 %v5270, %v5954
    %v5956 = vpop.f32.mrb[0].mxu0
    %v5957 = vpop.f32.mrb[0].mxu0
    %v5958 = vadd.f32 %v5273, %v5957
    %v5959 = vpop.f32.mrb[0].mxu0
    %5960 = vmatprep.mubr.bf16.mxu0 0
    %5961 = vmatmul.mubr.bf16.gmra.mrb[0].mxu0 %v5710
    %v5962 = vpop.f32.mrb[0].mxu0
    %v5963 = vadd.f32 %v5278, %v5962
    %v5964 = vpop.f32.mrb[0].mxu0
    %v5965 = vpop.f32.mrb[0].mxu0
    %v5966 = vadd.f32 %v5281, %v5965
    %v5967 = vpop.f32.mrb[0].mxu0
    %5968 = vmatprep.mubr.bf16.mxu0 0
    %5969 = vmatmul.mubr.bf16.gmra.mrb[0].mxu0 %v5712
    %v5970 = vpop.f32.mrb[0].mxu0
    %v5971 = vadd.f32 %v5286, %v5970
    %v5972 = vpop.f32.mrb[0].mxu0
    %v5973 = vpop.f32.mrb[0].mxu0
    %v5974 = vadd.f32 %v5289, %v5973
    %v5975 = vpop.f32.mrb[0].mxu0
    %5976 = vmatprep.mubr.bf16.mxu0 0
    %5977 = vmatmul.mubr.bf16.gmra.mrb[0].mxu0 %v5714
    %v5978 = vpop.f32.mrb[0].mxu0
    %v5979 = vadd.f32 %v5294, %v5978
    %v5980 = vpop.f32.mrb[0].mxu0
    %v5981 = vpop.f32.mrb[0].mxu0
    %v5982 = vadd.f32 %v5297, %v5981
    %v5983 = vpop.f32.mrb[0].mxu0
    %5984 = vmatprep.mubr.bf16.mxu0 0
    %5985 = vmatmul.mubr.bf16.gmra.mrb[0].mxu0 %v5716
    %v5986 = vpop.f32.mrb[0].mxu0
    %v5987 = vadd.f32 %v5302, %v5986
    %v5988 = vpop.f32.mrb[0].mxu0
    %v5989 = vpop.f32.mrb[0].mxu0
    %v5990 = vadd.f32 %v5305, %v5989
    %v5991 = vpop.f32.mrb[0].mxu0
    %5992 = vmatprep.mubr.bf16.mxu0 0
    %5993 = vmatmul.mubr.bf16.gmra.mrb[0].mxu0 %v5718
    %v5994 = vpop.f32.mrb[0].mxu0
    %v5995 = vadd.f32 %v5310, %v5994
    %v5996 = vpop.f32.mrb[0].mxu0
    %v5997 = vpop.f32.mrb[0].mxu0
    %v5998 = vadd.f32 %v5313, %v5997
    %v5999 = vpop.f32.mrb[0].mxu0
    %6000 = vmatprep.mubr.bf16.mxu0 0
    %6001 = vmatmul.mubr.bf16.gmra.mrb[0].mxu0 %v5720
    %v6002 = vpop.f32.mrb[0].mxu0
    %v6003 = vadd.f32 %v5318, %v6002
    %v6004 = vpop.f32.mrb[0].mxu0
    %v6005 = vpop.f32.mrb[0].mxu0
    %v6006 = vadd.f32 %v5321, %v6005
    %v6007 = vpop.f32.mrb[0].mxu0
    %6008 = vmatprep.mubr.bf16.mxu0 0
    %6009 = vmatmul.mubr.bf16.gmra.mrb[0].mxu0 %v5722
    %v6010 = vpop.f32.mrb[0].mxu0
    %v6011 = vadd.f32 %v5326, %v6010
    %v6012 = vpop.f32.mrb[0].mxu0
    %v6013 = vpop.f32.mrb[0].mxu0
    %v6014 = vadd.f32 %v5329, %v6013
    %v6015 = vpop.f32.mrb[0].mxu0
    %6016 = vmatprep.mubr.bf16.mxu0 0
    %6017 = vmatmul.mubr.bf16.gmra.mrb[0].mxu0 %v5724
    %v6018 = vpop.f32.mrb[0].mxu0
    %v6019 = vadd.f32 %v5334, %v6018
    %v6020 = vpop.f32.mrb[0].mxu0
    %v6021 = vpop.f32.mrb[0].mxu0
    %v6022 = vadd.f32 %v5337, %v6021
    %v6023 = vpop.f32.mrb[0].mxu0
    %6024 = vmatprep.mubr.bf16.mxu0 0
    %6025 = vmatmul.mubr.bf16.gmra.mrb[0].mxu0 %v5726
    %v6026 = vpop.f32.mrb[0].mxu0
    %v6027 = vadd.f32 %v5342, %v6026
    %v6028 = vpop.f32.mrb[0].mxu0
    %v6029 = vpop.f32.mrb[0].mxu0
    %v6030 = vadd.f32 %v5345, %v6029
    %v6031 = vpop.f32.mrb[0].mxu0
    %6032 = vmatprep.mubr.bf16.mxu0 0
    %6033 = vmatmul.mubr.bf16.gmra.mrb[0].mxu0 %v5728
    %v6034 = vpop.f32.mrb[0].mxu0
    %v6035 = vadd.f32 %v5350, %v6034
    %v6036 = vpop.f32.mrb[0].mxu0
    %v6037 = vpop.f32.mrb[0].mxu0
    %v6038 = vadd.f32 %v5353, %v6037
    %v6039 = vpop.f32.mrb[0].mxu0
    %6040 = vmatprep.mubr.bf16.mxu0 0
    %6041 = vmatmul.mubr.bf16.gmra.mrb[0].mxu0 %v5730
    %v6042 = vpop.f32.mrb[0].mxu0
    %v6043 = vadd.f32 %v5358, %v6042
    %v6044 = vpop.f32.mrb[0].mxu0
    %v6045 = vpop.f32.mrb[0].mxu0
    %v6046 = vadd.f32 %v5361, %v6045
    %v6047 = vpop.f32.mrb[0].mxu0
    %6048 = vmatprep.mubr.bf16.mxu0 0
    %6049 = vmatmul.mubr.bf16.gmra.mrb[0].mxu0 %v5732
    %v6050 = vpop.f32.mrb[0].mxu0
    %v6051 = vadd.f32 %v5366, %v6050
    %v6052 = vpop.f32.mrb[0].mxu0
    %v6053 = vpop.f32.mrb[0].mxu0
    %v6054 = vadd.f32 %v5369, %v6053
    %v6055 = vpop.f32.mrb[0].mxu0
    %6056 = vmatprep.mubr.bf16.mxu0 0
    %6057 = vmatmul.mubr.bf16.gmra.mrb[0].mxu0 %v5734
    %v6058 = vpop.f32.mrb[0].mxu0
    %v6059 = vadd.f32 %v5374, %v6058
    %v6060 = vpop.f32.mrb[0].mxu0
    %v6061 = vpop.f32.mrb[0].mxu0
    %v6062 = vadd.f32 %v5377, %v6061
    %v6063 = vpop.f32.mrb[0].mxu0
    %6064 = vmatprep.mubr.bf16.mxu0 0
    %6065 = vmatmul.mubr.bf16.gmra.mrb[0].mxu0 %v5736
    %v6066 = vpop.f32.mrb[0].mxu0
    %v6067 = vadd.f32 %v5382, %v6066
    %v6068 = vpop.f32.mrb[0].mxu0
    %v6069 = vpop.f32.mrb[0].mxu0
    %v6070 = vadd.f32 %v5385, %v6069
    %v6071 = vpop.f32.mrb[0].mxu0
    %6072 = vmatprep.mubr.bf16.mxu0 0
    %6073 = vmatmul.mubr.bf16.gmra.mrb[0].mxu0 %v5738
    %v6074 = vpop.f32.mrb[0].mxu0
    %v6075 = vadd.f32 %v5390, %v6074
    %v6076 = vpop.f32.mrb[0].mxu0
    %v6077 = vpop.f32.mrb[0].mxu0
    %v6078 = vadd.f32 %v5393, %v6077
    %v6079 = vpop.f32.mrb[0].mxu0
    %6080 = vmatprep.mubr.bf16.mxu0 0
    %6081 = vmatmul.mubr.bf16.gmra.mrb[0].mxu0 %v5740
    %v6082 = vpop.f32.mrb[0].mxu0
    %v6083 = vadd.f32 %v5398, %v6082
    %v6084 = vpop.f32.mrb[0].mxu0
    %v6085 = vpop.f32.mrb[0].mxu0
    %v6086 = vadd.f32 %v5401, %v6085
    %v6087 = vpop.f32.mrb[0].mxu0
    %6088 = vmatprep.mubr.bf16.mxu0 0
    %6089 = vmatmul.mubr.bf16.gmra.mrb[0].mxu0 %v5742
    %v6090 = vpop.f32.mrb[0].mxu0
    %v6091 = vadd.f32 %v5406, %v6090
    %v6092 = vpop.f32.mrb[0].mxu0
    %v6093 = vpop.f32.mrb[0].mxu0
    %v6094 = vadd.f32 %v5409, %v6093
    %v6095 = vpop.f32.mrb[0].mxu0
    %6096 = vmatprep.mubr.bf16.mxu0 0
    %6097 = vmatmul.mubr.bf16.gmra.mrb[0].mxu0 %v5744
    %v6098 = vpop.f32.mrb[0].mxu0
    %v6099 = vadd.f32 %v5414, %v6098
    %v6100 = vpop.f32.mrb[0].mxu0
    %v6101 = vpop.f32.mrb[0].mxu0
    %v6102 = vadd.f32 %v5417, %v6101
    %v6103 = vpop.f32.mrb[0].mxu0
    %6104 = vmatprep.mubr.bf16.mxu0 0
    %6105 = vmatmul.mubr.bf16.gmra.mrb[0].mxu0 %v5746
    %v6106 = vpop.f32.mrb[0].mxu0
    %v6107 = vadd.f32 %v5422, %v6106
    %v6108 = vpop.f32.mrb[0].mxu0
    %v6109 = vpop.f32.mrb[0].mxu0
    %v6110 = vadd.f32 %v5425, %v6109
    %v6111 = vpop.f32.mrb[0].mxu0
    %6112 = vmatprep.mubr.bf16.mxu0 0
    %6113 = vmatmul.mubr.bf16.gmra.mrb[0].mxu0 %v5748
    %v6114 = vpop.f32.mrb[0].mxu0
    %v6115 = vadd.f32 %v5430, %v6114
    %v6116 = vpop.f32.mrb[0].mxu0
    %v6117 = vpop.f32.mrb[0].mxu0
    %v6118 = vadd.f32 %v5433, %v6117
    %v6119 = vpop.f32.mrb[0].mxu0
    %6120 = vmatprep.mubr.bf16.mxu0 0
    %6121 = vmatmul.mubr.bf16.gmra.mrb[0].mxu0 %v5750
    %v6122 = vpop.f32.mrb[0].mxu0
    %v6123 = vadd.f32 %v5438, %v6122
    %v6124 = vpop.f32.mrb[0].mxu0
    %v6125 = vpop.f32.mrb[0].mxu0
    %v6126 = vadd.f32 %v5441, %v6125
    %v6127 = vpop.f32.mrb[0].mxu0
    %6128 = vmatprep.mubr.bf16.mxu0 0
    %6129 = vmatmul.mubr.bf16.gmra.mrb[0].mxu0 %v5752
    %v6130 = vpop.f32.mrb[0].mxu0
    %v6131 = vadd.f32 %v5446, %v6130
    %v6132 = vpop.f32.mrb[0].mxu0
    %v6133 = vpop.f32.mrb[0].mxu0
    %v6134 = vadd.f32 %v5449, %v6133
    %v6135 = vpop.f32.mrb[0].mxu0
    %6136 = vmatprep.mubr.bf16.mxu0 0
    %6137 = vmatmul.mubr.bf16.gmra.mrb[0].mxu0 %v5754
    %v6138 = vpop.f32.mrb[0].mxu0
    %v6139 = vadd.f32 %v5454, %v6138
    %v6140 = vpop.f32.mrb[0].mxu0
    %v6141 = vpop.f32.mrb[0].mxu0
    %v6142 = vadd.f32 %v5457, %v6141
    %v6143 = vpop.f32.mrb[0].mxu0
    %6144 = vmatprep.mubr.bf16.mxu0 0
    %6145 = vmatmul.mubr.bf16.gmra.mrb[0].mxu0 %v5756
    %v6146 = vpop.f32.mrb[0].mxu0
    %v6147 = vadd.f32 %v5462, %v6146
    %v6148 = vpop.f32.mrb[0].mxu0
    %v6149 = vpop.f32.mrb[0].mxu0
    %v6150 = vadd.f32 %v5465, %v6149
    %v6151 = vpop.f32.mrb[0].mxu0
    %6152 = vmatprep.mubr.bf16.mxu0 0
    %6153 = vmatmul.mubr.bf16.gmra.mrb[0].mxu0 %v5758
    %v6154 = vpop.f32.mrb[0].mxu0
    %v6155 = vadd.f32 %v5470, %v6154
    %v6156 = vpop.f32.mrb[0].mxu0
    %v6157 = vpop.f32.mrb[0].mxu0
    %v6158 = vadd.f32 %v5473, %v6157
    %v6159 = vpop.f32.mrb[0].mxu0
    %6160 = vmatprep.mubr.bf16.mxu0 0
    %6161 = vmatmul.mubr.bf16.gmra.mrb[0].mxu0 %v5760
    %v6162 = vpop.f32.mrb[0].mxu0
    %v6163 = vadd.f32 %v5478, %v6162
    %v6164 = vpop.f32.mrb[0].mxu0
    %v6165 = vpop.f32.mrb[0].mxu0
    %v6166 = vadd.f32 %v5481, %v6165
    %v6167 = vpop.f32.mrb[0].mxu0
    %6168 = vmatprep.mubr.bf16.mxu0 0
    %6169 = vmatmul.mubr.bf16.gmra.mrb[0].mxu0 %v5762
    %v6170 = vpop.f32.mrb[0].mxu0
    %v6171 = vadd.f32 %v5486, %v6170
    %v6172 = vpop.f32.mrb[0].mxu0
    %v6173 = vpop.f32.mrb[0].mxu0
    %v6174 = vadd.f32 %v5489, %v6173
    %v6175 = vpop.f32.mrb[0].mxu0
    %6176 = vmatprep.mubr.bf16.mxu0 0
    %6177 = vmatmul.mubr.bf16.gmra.mrb[0].mxu0 %v5764
    %v6178 = vpop.f32.mrb[0].mxu0
    %v6179 = vadd.f32 %v5494, %v6178
    %v6180 = vpop.f32.mrb[0].mxu0
    %v6181 = vpop.f32.mrb[0].mxu0
    %v6182 = vadd.f32 %v5497, %v6181
    %v6183 = vpop.f32.mrb[0].mxu0
    %6184 = vmatprep.mubr.bf16.mxu0 0
    %6185 = vmatmul.mubr.bf16.gmra.mrb[0].mxu0 %v5766
    %v6186 = vpop.f32.mrb[0].mxu0
    %v6187 = vadd.f32 %v5502, %v6186
    %v6188 = vpop.f32.mrb[0].mxu0
    %v6189 = vpop.f32.mrb[0].mxu0
    %v6190 = vadd.f32 %v5505, %v6189
    %v6191 = vpop.f32.mrb[0].mxu0
    %6192 = vmatprep.mubr.bf16.mxu0 0
    %6193 = vmatmul.mubr.bf16.gmra.mrb[0].mxu0 %v5768
    %v6194 = vpop.f32.mrb[0].mxu0
    %v6195 = vadd.f32 %v5510, %v6194
    %v6196 = vpop.f32.mrb[0].mxu0
    %v6197 = vpop.f32.mrb[0].mxu0
    %v6198 = vadd.f32 %v5513, %v6197
    %v6199 = vpop.f32.mrb[0].mxu0
    %6200 = vmatprep.mubr.bf16.mxu0 0
    %6201 = vmatmul.mubr.bf16.gmra.mrb[0].mxu0 %v5770
    %v6202 = vpop.f32.mrb[0].mxu0
    %v6203 = vadd.f32 %v5518, %v6202
    %v6204 = vpop.f32.mrb[0].mxu0
    %v6205 = vpop.f32.mrb[0].mxu0
    %v6206 = vadd.f32 %v5521, %v6205
    %v6207 = vpop.f32.mrb[0].mxu0
    %6208 = vmatprep.mubr.bf16.mxu0 0
    %6209 = vmatmul.mubr.bf16.gmra.mrb[0].mxu0 %v5772
    %v6210 = vpop.f32.mrb[0].mxu0
    %v6211 = vadd.f32 %v5526, %v6210
    %v6212 = vpop.f32.mrb[0].mxu0
    %v6213 = vpop.f32.mrb[0].mxu0
    %v6214 = vadd.f32 %v5529, %v6213
    %v6215 = vpop.f32.mrb[0].mxu0
    %6216 = vmatprep.mubr.bf16.mxu0 0
    %6217 = vmatmul.mubr.bf16.gmra.mrb[0].mxu0 %v5774
    %v6218 = vpop.f32.mrb[0].mxu0
    %v6219 = vadd.f32 %v5534, %v6218
    %v6220 = vpop.f32.mrb[0].mxu0
    %v6221 = vpop.f32.mrb[0].mxu0
    %v6222 = vadd.f32 %v5537, %v6221
    %v6223 = vpop.f32.mrb[0].mxu0
    %6224 = vmatprep.mubr.bf16.mxu0 0
    %6225 = vmatmul.mubr.bf16.gmra.mrb[0].mxu0 %v5776
    %v6226 = vpop.f32.mrb[0].mxu0
    %v6227 = vadd.f32 %v5542, %v6226
    %v6228 = vpop.f32.mrb[0].mxu0
    %v6229 = vpop.f32.mrb[0].mxu0
    %v6230 = vadd.f32 %v5545, %v6229
    %v6231 = vpop.f32.mrb[0].mxu0
    %6232 = vmatprep.mubr.bf16.mxu0 0
    %6233 = vmatmul.mubr.bf16.gmra.mrb[0].mxu0 %v5778
    %v6234 = vpop.f32.mrb[0].mxu0
    %v6235 = vadd.f32 %v5550, %v6234
    %v6236 = vpop.f32.mrb[0].mxu0
    %v6237 = vpop.f32.mrb[0].mxu0
    %v6238 = vadd.f32 %v5553, %v6237
    %v6239 = vpop.f32.mrb[0].mxu0
    %6240 = vmatprep.mubr.bf16.mxu0 0
    %6241 = vmatmul.mubr.bf16.gmra.mrb[0].mxu0 %v5780
    %v6242 = vpop.f32.mrb[0].mxu0
    %v6243 = vadd.f32 %v5558, %v6242
    %v6244 = vpop.f32.mrb[0].mxu0
    %v6245 = vpop.f32.mrb[0].mxu0
    %v6246 = vadd.f32 %v5561, %v6245
    %v6247 = vpop.f32.mrb[0].mxu0
    %6248 = vmatprep.mubr.bf16.mxu0 0
    %6249 = vmatmul.mubr.bf16.gmra.mrb[0].mxu0 %v5782
    %v6250 = vpop.f32.mrb[0].mxu0
    %v6251 = vadd.f32 %v5566, %v6250
    %v6252 = vpop.f32.mrb[0].mxu0
    %v6253 = vpop.f32.mrb[0].mxu0
    %v6254 = vadd.f32 %v5569, %v6253
    %v6255 = vpop.f32.mrb[0].mxu0
    %6256 = vmatprep.mubr.bf16.mxu0 0
    %6257 = vmatmul.mubr.bf16.gmra.mrb[0].mxu0 %v5784
    %v6258 = vpop.f32.mrb[0].mxu0
    %v6259 = vadd.f32 %v5574, %v6258
    %v6260 = vpop.f32.mrb[0].mxu0
    %v6261 = vpop.f32.mrb[0].mxu0
    %v6262 = vadd.f32 %v5577, %v6261
    %v6263 = vpop.f32.mrb[0].mxu0
    %6264 = vmatprep.mubr.bf16.mxu0 0
    %6265 = vmatmul.mubr.bf16.gmra.mrb[0].mxu0 %v5786
    %v6266 = vpop.f32.mrb[0].mxu0
    %v6267 = vadd.f32 %v5582, %v6266
    %v6268 = vpop.f32.mrb[0].mxu0
    %v6269 = vpop.f32.mrb[0].mxu0
    %v6270 = vadd.f32 %v5585, %v6269
    %v6271 = vpop.f32.mrb[0].mxu0
    %6272 = vmatprep.mubr.bf16.mxu0 0
    %6273 = vmatmul.mubr.bf16.gmra.mrb[0].mxu0 %v5788
    %v6274 = vpop.f32.mrb[0].mxu0
    %v6275 = vadd.f32 %v5590, %v6274
    %v6276 = vpop.f32.mrb[0].mxu0
    %v6277 = vpop.f32.mrb[0].mxu0
    %v6278 = vadd.f32 %v5593, %v6277
    %v6279 = vpop.f32.mrb[0].mxu0
    %6280 = vmatprep.mubr.bf16.mxu0 0
    %6281 = vmatmul.mubr.bf16.gmra.mrb[0].mxu0 %v5790
    %v6282 = vpop.f32.mrb[0].mxu0
    %v6283 = vadd.f32 %v5598, %v6282
    %v6284 = vpop.f32.mrb[0].mxu0
    %v6285 = vpop.f32.mrb[0].mxu0
    %v6286 = vadd.f32 %v5601, %v6285
    %v6287 = vpop.f32.mrb[0].mxu0
    %6288 = vmatprep.mubr.bf16.mxu0 0
    %6289 = vmatmul.mubr.bf16.gmra.mrb[0].mxu0 %v5792
    %v6290 = vpop.f32.mrb[0].mxu0
    %v6291 = vadd.f32 %v5606, %v6290
    %v6292 = vpop.f32.mrb[0].mxu0
    %v6293 = vpop.f32.mrb[0].mxu0
    %v6294 = vadd.f32 %v5609, %v6293
    %v6295 = vpop.f32.mrb[0].mxu0
    %6296 = vmatprep.mubr.bf16.mxu0 0
    %6297 = vmatmul.mubr.bf16.gmra.mrb[0].mxu0 %v5794
    %v6298 = vpop.f32.mrb[0].mxu0
    %v6299 = vadd.f32 %v5614, %v6298
    %v6300 = vpop.f32.mrb[0].mxu0
    %v6301 = vpop.f32.mrb[0].mxu0
    %v6302 = vadd.f32 %v5617, %v6301
    %v6303 = vpop.f32.mrb[0].mxu0
    %6304 = vmatprep.mubr.bf16.mxu0 0
    %6305 = vmatmul.mubr.bf16.gmra.mrb[0].mxu0 %v5796
    %v6306 = vpop.f32.mrb[0].mxu0
    %v6307 = vadd.f32 %v5622, %v6306
    %v6308 = vpop.f32.mrb[0].mxu0
    %v6309 = vpop.f32.mrb[0].mxu0
    %v6310 = vadd.f32 %v5625, %v6309
    %v6311 = vpop.f32.mrb[0].mxu0
    %6312 = vmatprep.mubr.bf16.mxu0 0
    %6313 = vmatmul.mubr.bf16.gmra.mrb[0].mxu0 %v5798
    %v6314 = vpop.f32.mrb[0].mxu0
    %v6315 = vadd.f32 %v5630, %v6314
    %v6316 = vpop.f32.mrb[0].mxu0
    %v6317 = vpop.f32.mrb[0].mxu0
    %v6318 = vadd.f32 %v5633, %v6317
    %v6319 = vpop.f32.mrb[0].mxu0
    %6320 = vmatprep.mubr.bf16.mxu0 0
    %6321 = vmatmul.mubr.bf16.gmra.mrb[0].mxu0 %v5800
    %v6322 = vpop.f32.mrb[0].mxu0
    %v6323 = vadd.f32 %v5638, %v6322
    %v6324 = vpop.f32.mrb[0].mxu0
    %v6325 = vpop.f32.mrb[0].mxu0
    %v6326 = vadd.f32 %v5641, %v6325
    %v6327 = vpop.f32.mrb[0].mxu0
    %6328 = vmatprep.mubr.bf16.mxu0 0
    %6329 = vmatmul.mubr.bf16.gmra.mrb[0].mxu0 %v5802
    %v6330 = vpop.f32.mrb[0].mxu0
    %v6331 = vadd.f32 %v5646, %v6330
    %v6332 = vpop.f32.mrb[0].mxu0
    %v6333 = vpop.f32.mrb[0].mxu0
    %v6334 = vadd.f32 %v5649, %v6333
    %v6335 = vpop.f32.mrb[0].mxu0
    %6336 = vmatprep.mubr.bf16.mxu0 0
    %6337 = vmatmul.mubr.bf16.gmra.mrb[0].mxu0 %v5804
    %v6338 = vpop.f32.mrb[0].mxu0
    %v6339 = vadd.f32 %v5654, %v6338
    %v6340 = vpop.f32.mrb[0].mxu0
    %v6341 = vpop.f32.mrb[0].mxu0
    %v6342 = vadd.f32 %v5657, %v6341
    %v6343 = vpop.f32.mrb[0].mxu0
    %6344 = vmatprep.mubr.bf16.mxu0 0
    %6345 = vmatmul.mubr.bf16.gmra.mrb[0].mxu0 %v5806
    %v6346 = vpop.f32.mrb[0].mxu0
    %v6347 = vadd.f32 %v5662, %v6346
    %v6348 = vpop.f32.mrb[0].mxu0
    %v6349 = vpop.f32.mrb[0].mxu0
    %v6350 = vadd.f32 %v5665, %v6349
    %v6351 = vpop.f32.mrb[0].mxu0
    %6352 = vdwg.mxu0
    %v6353 = vld [vmem:[#allocation2] sm:$0xfe]
    %s6354 = scalar_lea.vmem %s3, 32
    %v6355 = vld [vmem:[%s6354] sm:$0xf]
    %v6356 = vld [vmem:[%s6354 + $0x4] sm:$0xf]
    %v6357 = vld [vmem:[%s6354 + $0x8] sm:$0xf]
    %v6358 = vld [vmem:[%s6354 + $0xc] sm:$0xf]
    %vm6424 = vcmask 1046528
    %v6425 = vrot.slane %v6353, 1
    %v6426 = vrot.slane %v4329, 1
    %v6427 = vsel %vm6424, %v6425, %v6426
    %v6428 = vrot.slane %v4330, 1
    %v6429 = vsel %vm6424, %v6426, %v6428
    %v6430 = vrot.slane %v4331, 1
    %v6431 = vsel %vm6424, %v6428, %v6430
    %v6432 = vrot.slane %v4332, 1
    %v6433 = vsel %vm6424, %v6430, %v6432
    %v6434 = vrot.slane %v4333, 1
    %v6435 = vsel %vm6424, %v6432, %v6434
    %v6436 = vrot.slane %v4334, 1
    %v6437 = vsel %vm6424, %v6434, %v6436
    %v6438 = vrot.slane %v4335, 1
    %v6439 = vsel %vm6424, %v6436, %v6438
    %v6440 = vrot.slane %v4336, 1
    %v6441 = vsel %vm6424, %v6438, %v6440
    %v6442 = vrot.slane %v4337, 1
    %v6443 = vsel %vm6424, %v6440, %v6442
    %v6444 = vrot.slane %v4338, 1
    %v6445 = vsel %vm6424, %v6442, %v6444
    %v6446 = vrot.slane %v4339, 1
    %v6447 = vsel %vm6424, %v6444, %v6446
    %v6448 = vrot.slane %v4340, 1
    %v6449 = vsel %vm6424, %v6446, %v6448
    %v6450 = vrot.slane %v4341, 1
    %v6451 = vsel %vm6424, %v6448, %v6450
    %v6452 = vrot.slane %v4342, 1
    %v6453 = vsel %vm6424, %v6450, %v6452
    %v6454 = vrot.slane %v4343, 1
    %v6455 = vsel %vm6424, %v6452, %v6454
    %v6456 = vrot.slane %v4344, 1
    %v6457 = vsel %vm6424, %v6454, %v6456
    %v6458 = vrot.slane %v4345, 1
    %v6459 = vsel %vm6424, %v6456, %v6458
    %v6460 = vrot.slane %v4346, 1
    %v6461 = vsel %vm6424, %v6458, %v6460
    %v6462 = vrot.slane %v4347, 1
    %v6463 = vsel %vm6424, %v6460, %v6462
    %v6464 = vrot.slane %v4348, 1
    %v6465 = vsel %vm6424, %v6462, %v6464
    %v6466 = vrot.slane %v4349, 1
    %v6467 = vsel %vm6424, %v6464, %v6466
    %v6468 = vrot.slane %v4350, 1
    %v6469 = vsel %vm6424, %v6466, %v6468
    %v6470 = vrot.slane %v4351, 1
    %v6471 = vsel %vm6424, %v6468, %v6470
    %v6472 = vrot.slane %v4352, 1
    %v6473 = vsel %vm6424, %v6470, %v6472
    %v6474 = vrot.slane %v4353, 1
    %v6475 = vsel %vm6424, %v6472, %v6474
    %v6476 = vrot.slane %v4354, 1
    %v6477 = vsel %vm6424, %v6474, %v6476
    %v6478 = vrot.slane %v4355, 1
    %v6479 = vsel %vm6424, %v6476, %v6478
    %v6480 = vrot.slane %v4356, 1
    %v6481 = vsel %vm6424, %v6478, %v6480
    %v6482 = vrot.slane %v4357, 1
    %v6483 = vsel %vm6424, %v6480, %v6482
    %v6484 = vrot.slane %v4358, 1
    %v6485 = vsel %vm6424, %v6482, %v6484
    %v6486 = vrot.slane %v4359, 1
    %v6487 = vsel %vm6424, %v6484, %v6486
    %v6488 = vrot.slane %v4360, 1
    %v6489 = vsel %vm6424, %v6486, %v6488
    %v6490 = vrot.slane %v4361, 1
    %v6491 = vsel %vm6424, %v6488, %v6490
    %v6492 = vrot.slane %v4362, 1
    %v6493 = vsel %vm6424, %v6490, %v6492
    %v6494 = vrot.slane %v4363, 1
    %v6495 = vsel %vm6424, %v6492, %v6494
    %v6496 = vrot.slane %v4364, 1
    %v6497 = vsel %vm6424, %v6494, %v6496
    %v6498 = vrot.slane %v4365, 1
    %v6499 = vsel %vm6424, %v6496, %v6498
    %v6500 = vrot.slane %v4366, 1
    %v6501 = vsel %vm6424, %v6498, %v6500
    %v6502 = vrot.slane %v4367, 1
    %v6503 = vsel %vm6424, %v6500, %v6502
    %v6504 = vrot.slane %v4368, 1
    %v6505 = vsel %vm6424, %v6502, %v6504
    %v6506 = vrot.slane %v4369, 1
    %v6507 = vsel %vm6424, %v6504, %v6506
    %v6508 = vrot.slane %v4370, 1
    %v6509 = vsel %vm6424, %v6506, %v6508
    %v6510 = vrot.slane %v4371, 1
    %v6511 = vsel %vm6424, %v6508, %v6510
    %v6512 = vrot.slane %v4372, 1
    %v6513 = vsel %vm6424, %v6510, %v6512
    %v6514 = vrot.slane %v4373, 1
    %v6515 = vsel %vm6424, %v6512, %v6514
    %v6516 = vrot.slane %v4374, 1
    %v6517 = vsel %vm6424, %v6514, %v6516
    %v6518 = vrot.slane %v4375, 1
    %v6519 = vsel %vm6424, %v6516, %v6518
    %v6520 = vrot.slane %v4376, 1
    %v6521 = vsel %vm6424, %v6518, %v6520
    %v6522 = vrot.slane %v4377, 1
    %v6523 = vsel %vm6424, %v6520, %v6522
    %v6524 = vrot.slane %v4378, 1
    %v6525 = vsel %vm6424, %v6522, %v6524
    %v6526 = vrot.slane %v4379, 1
    %v6527 = vsel %vm6424, %v6524, %v6526
    %v6528 = vrot.slane %v4380, 1
    %v6529 = vsel %vm6424, %v6526, %v6528
    %v6530 = vrot.slane %v4381, 1
    %v6531 = vsel %vm6424, %v6528, %v6530
    %v6532 = vrot.slane %v4382, 1
    %v6533 = vsel %vm6424, %v6530, %v6532
    %v6534 = vrot.slane %v4383, 1
    %v6535 = vsel %vm6424, %v6532, %v6534
    %v6536 = vrot.slane %v4384, 1
    %v6537 = vsel %vm6424, %v6534, %v6536
    %v6538 = vrot.slane %v4385, 1
    %v6539 = vsel %vm6424, %v6536, %v6538
    %v6540 = vrot.slane %v4386, 1
    %v6541 = vsel %vm6424, %v6538, %v6540
    %v6542 = vrot.slane %v4387, 1
    %v6543 = vsel %vm6424, %v6540, %v6542
    %v6544 = vrot.slane %v4388, 1
    %v6545 = vsel %vm6424, %v6542, %v6544
    %v6546 = vrot.slane %v4389, 1
    %v6547 = vsel %vm6424, %v6544, %v6546
    %v6548 = vrot.slane %v4390, 1
    %v6549 = vsel %vm6424, %v6546, %v6548
    %v6550 = vrot.slane %v4391, 1
    %v6551 = vsel %vm6424, %v6548, %v6550
    %v6552 = vrot.slane %v4396, 1
    %v6553 = vsel %vm6424, %v6550, %v6552
    %v6558 = vunpack.c.l.b16 %v6355
    %v6559 = vunpack.c.l.b16 %v6356
    %v6560 = vunpack.c.l.b16 %v6357
    %v6561 = vunpack.c.l.b16 %v6358
    %v6562 = vpack.c.b16 %v6559, %v6558
    %v6563 = vpack.c.b16 %v6561, %v6560
    %v6567 = vsel %vm4262, %v6427, 0
    %v6570 = vsel %vm4262, %v6429, 0
    %v6573 = vsel %vm4262, %v6431, 0
    %v6576 = vsel %vm4262, %v6433, 0
    %v6579 = vsel %vm4262, %v6435, 0
    %v6582 = vsel %vm4262, %v6437, 0
    %v6585 = vsel %vm4262, %v6439, 0
    %v6588 = vsel %vm4262, %v6441, 0
    %v6591 = vsel %vm4262, %v6443, 0
    %v6594 = vsel %vm4262, %v6445, 0
    %v6597 = vsel %vm4262, %v6447, 0
    %v6600 = vsel %vm4262, %v6449, 0
    %v6603 = vsel %vm4262, %v6451, 0
    %v6606 = vsel %vm4262, %v6453, 0
    %v6609 = vsel %vm4262, %v6455, 0
    %v6612 = vsel %vm4262, %v6457, 0
    %v6615 = vsel %vm4262, %v6459, 0
    %v6618 = vsel %vm4262, %v6461, 0
    %v6621 = vsel %vm4262, %v6463, 0
    %v6624 = vsel %vm4262, %v6465, 0
    %v6627 = vsel %vm4262, %v6467, 0
    %v6630 = vsel %vm4262, %v6469, 0
    %v6633 = vsel %vm4262, %v6471, 0
    %v6636 = vsel %vm4262, %v6473, 0
    %v6639 = vsel %vm4262, %v6475, 0
    %v6642 = vsel %vm4262, %v6477, 0
    %v6645 = vsel %vm4262, %v6479, 0
    %v6648 = vsel %vm4262, %v6481, 0
    %v6651 = vsel %vm4262, %v6483, 0
    %v6654 = vsel %vm4262, %v6485, 0
    %v6657 = vsel %vm4262, %v6487, 0
    %v6660 = vsel %vm4262, %v6489, 0
    %v6663 = vsel %vm4262, %v6491, 0
    %v6666 = vsel %vm4262, %v6493, 0
    %v6669 = vsel %vm4262, %v6495, 0
    %v6672 = vsel %vm4262, %v6497, 0
    %v6675 = vsel %vm4262, %v6499, 0
    %v6678 = vsel %vm4262, %v6501, 0
    %v6681 = vsel %vm4262, %v6503, 0
    %v6684 = vsel %vm4262, %v6505, 0
    %v6687 = vsel %vm4262, %v6507, 0
    %v6690 = vsel %vm4262, %v6509, 0
    %v6693 = vsel %vm4262, %v6511, 0
    %v6696 = vsel %vm4262, %v6513, 0
    %v6699 = vsel %vm4262, %v6515, 0
    %v6702 = vsel %vm4262, %v6517, 0
    %v6705 = vsel %vm4262, %v6519, 0
    %v6708 = vsel %vm4262, %v6521, 0
    %v6711 = vsel %vm4262, %v6523, 0
    %v6714 = vsel %vm4262, %v6525, 0
    %v6717 = vsel %vm4262, %v6527, 0
    %v6720 = vsel %vm4262, %v6529, 0
    %v6723 = vsel %vm4262, %v6531, 0
    %v6726 = vsel %vm4262, %v6533, 0
    %v6729 = vsel %vm4262, %v6535, 0
    %v6732 = vsel %vm4262, %v6537, 0
    %v6735 = vsel %vm4262, %v6539, 0
    %v6738 = vsel %vm4262, %v6541, 0
    %v6741 = vsel %vm4262, %v6543, 0
    %v6744 = vsel %vm4262, %v6545, 0
    %v6747 = vsel %vm4262, %v6547, 0
    %v6750 = vsel %vm4262, %v6549, 0
    %v6753 = vsel %vm4262, %v6551, 0
    %v6756 = vsel %vm4262, %v6553, 0
    %6758 = vmatprep.subr.bf16.mxu0 0
    %6759 = vmatpush1.bf16.msra.mxu0 %v6562
    %6760 = vmatprep.subr.bf16.mxu0 0
    %6761 = vmatpush1.bf16.msra.mxu0 %v6563
    %6762 = vmatprep.subr.bf16.mxu0 0
    %6763 = vmatpush1.bf16.msra.mxu0 0
    %6764 = vmatprep.subr.bf16.mxu0 0
    %6765 = vmatpush1.bf16.msra.mxu0 0
    %6766 = vmatprep.subr.bf16.mxu0 0
    %6767 = vmatpush1.bf16.msra.mxu0 0
    %6768 = vmatprep.subr.bf16.mxu0 0
    %6769 = vmatpush1.bf16.msra.mxu0 0
    %6770 = vmatprep.subr.bf16.mxu0 0
    %6771 = vmatpush1.bf16.msra.mxu0 0
    %6772 = vmatprep.subr.bf16.mxu0 0
    %6773 = vmatpush1.bf16.msra.mxu0 0
    %6774 = vmatprep.subr.bf16.mxu0 0
    %6775 = vmatpush1.bf16.msra.mxu0 0
    %6776 = vmatprep.subr.bf16.mxu0 0
    %6777 = vmatpush1.bf16.msra.mxu0 0
    %6778 = vmatprep.subr.bf16.mxu0 0
    %6779 = vmatpush1.bf16.msra.mxu0 0
    %6780 = vmatprep.subr.bf16.mxu0 0
    %6781 = vmatpush1.bf16.msra.mxu0 0
    %6782 = vmatprep.subr.bf16.mxu0 0
    %6783 = vmatpush1.bf16.msra.mxu0 0
    %6784 = vmatprep.subr.bf16.mxu0 0
    %6785 = vmatpush1.bf16.msra.mxu0 0
    %6786 = vmatprep.subr.bf16.mxu0 0
    %6787 = vmatpush1.bf16.msra.mxu0 0
    %6788 = vmatprep.subr.bf16.mxu0 0
    %6789 = vmatpush1.bf16.msra.mxu0 0
    %6790 = vmatprep.mubr.bf16.mxu0 0
    %6791 = vmatmul.mubr.bf16.gmra.mrb[0].mxu0 %v6567
    %v6792 = vpop.f32.mrb[0].mxu0
    %v6793 = vadd.f32 0.0, %v6792
    %v6794 = vpop.f32.mrb[0].mxu0
    %v6795 = vpop.f32.mrb[0].mxu0
    %v6796 = vadd.f32 0.0, %v6795
    %v6797 = vpop.f32.mrb[0].mxu0
    %6798 = vmatprep.mubr.bf16.mxu0 0
    %6799 = vmatmul.mubr.bf16.gmra.mrb[0].mxu0 %v6570
    %v6800 = vpop.f32.mrb[0].mxu0
    %v6801 = vadd.f32 0.0, %v6800
    %v6802 = vpop.f32.mrb[0].mxu0
    %v6803 = vpop.f32.mrb[0].mxu0
    %v6804 = vadd.f32 0.0, %v6803
    %v6805 = vpop.f32.mrb[0].mxu0
    %6806 = vmatprep.mubr.bf16.mxu0 0
    %6807 = vmatmul.mubr.bf16.gmra.mrb[0].mxu0 %v6573
    %v6808 = vpop.f32.mrb[0].mxu0
    %v6809 = vadd.f32 0.0, %v6808
    %v6810 = vpop.f32.mrb[0].mxu0
    %v6811 = vpop.f32.mrb[0].mxu0
    %v6812 = vadd.f32 0.0, %v6811
    %v6813 = vpop.f32.mrb[0].mxu0
    %6814 = vmatprep.mubr.bf16.mxu0 0
    %6815 = vmatmul.mubr.bf16.gmra.mrb[0].mxu0 %v6576
    %v6816 = vpop.f32.mrb[0].mxu0
    %v6817 = vadd.f32 0.0, %v6816
    %v6818 = vpop.f32.mrb[0].mxu0
    %v6819 = vpop.f32.mrb[0].mxu0
    %v6820 = vadd.f32 0.0, %v6819
    %v6821 = vpop.f32.mrb[0].mxu0
    %6822 = vmatprep.mubr.bf16.mxu0 0
    %6823 = vmatmul.mubr.bf16.gmra.mrb[0].mxu0 %v6579
    %v6824 = vpop.f32.mrb[0].mxu0
    %v6825 = vadd.f32 0.0, %v6824
    %v6826 = vpop.f32.mrb[0].mxu0
    %v6827 = vpop.f32.mrb[0].mxu0
    %v6828 = vadd.f32 0.0, %v6827
    %v6829 = vpop.f32.mrb[0].mxu0
    %6830 = vmatprep.mubr.bf16.mxu0 0
    %6831 = vmatmul.mubr.bf16.gmra.mrb[0].mxu0 %v6582
    %v6832 = vpop.f32.mrb[0].mxu0
    %v6833 = vadd.f32 0.0, %v6832
    %v6834 = vpop.f32.mrb[0].mxu0
    %v6835 = vpop.f32.mrb[0].mxu0
    %v6836 = vadd.f32 0.0, %v6835
    %v6837 = vpop.f32.mrb[0].mxu0
    %6838 = vmatprep.mubr.bf16.mxu0 0
    %6839 = vmatmul.mubr.bf16.gmra.mrb[0].mxu0 %v6585
    %v6840 = vpop.f32.mrb[0].mxu0
    %v6841 = vadd.f32 0.0, %v6840
    %v6842 = vpop.f32.mrb[0].mxu0
    %v6843 = vpop.f32.mrb[0].mxu0
    %v6844 = vadd.f32 0.0, %v6843
    %v6845 = vpop.f32.mrb[0].mxu0
    %6846 = vmatprep.mubr.bf16.mxu0 0
    %6847 = vmatmul.mubr.bf16.gmra.mrb[0].mxu0 %v6588
    %v6848 = vpop.f32.mrb[0].mxu0
    %v6849 = vadd.f32 0.0, %v6848
    %v6850 = vpop.f32.mrb[0].mxu0
    %v6851 = vpop.f32.mrb[0].mxu0
    %v6852 = vadd.f32 0.0, %v6851
    %v6853 = vpop.f32.mrb[0].mxu0
    %6854 = vmatprep.mubr.bf16.mxu0 0
    %6855 = vmatmul.mubr.bf16.gmra.mrb[0].mxu0 %v6591
    %v6856 = vpop.f32.mrb[0].mxu0
    %v6857 = vadd.f32 0.0, %v6856
    %v6858 = vpop.f32.mrb[0].mxu0
    %v6859 = vpop.f32.mrb[0].mxu0
    %v6860 = vadd.f32 0.0, %v6859
    %v6861 = vpop.f32.mrb[0].mxu0
    %6862 = vmatprep.mubr.bf16.mxu0 0
    %6863 = vmatmul.mubr.bf16.gmra.mrb[0].mxu0 %v6594
    %v6864 = vpop.f32.mrb[0].mxu0
    %v6865 = vadd.f32 0.0, %v6864
    %v6866 = vpop.f32.mrb[0].mxu0
    %v6867 = vpop.f32.mrb[0].mxu0
    %v6868 = vadd.f32 0.0, %v6867
    %v6869 = vpop.f32.mrb[0].mxu0
    %6870 = vmatprep.mubr.bf16.mxu0 0
    %6871 = vmatmul.mubr.bf16.gmra.mrb[0].mxu0 %v6597
    %v6872 = vpop.f32.mrb[0].mxu0
    %v6873 = vadd.f32 0.0, %v6872
    %v6874 = vpop.f32.mrb[0].mxu0
    %v6875 = vpop.f32.mrb[0].mxu0
    %v6876 = vadd.f32 0.0, %v6875
    %v6877 = vpop.f32.mrb[0].mxu0
    %6878 = vmatprep.mubr.bf16.mxu0 0
    %6879 = vmatmul.mubr.bf16.gmra.mrb[0].mxu0 %v6600
    %v6880 = vpop.f32.mrb[0].mxu0
    %v6881 = vadd.f32 0.0, %v6880
    %v6882 = vpop.f32.mrb[0].mxu0
    %v6883 = vpop.f32.mrb[0].mxu0
    %v6884 = vadd.f32 0.0, %v6883
    %v6885 = vpop.f32.mrb[0].mxu0
    %6886 = vmatprep.mubr.bf16.mxu0 0
    %6887 = vmatmul.mubr.bf16.gmra.mrb[0].mxu0 %v6603
    %v6888 = vpop.f32.mrb[0].mxu0
    %v6889 = vadd.f32 0.0, %v6888
    %v6890 = vpop.f32.mrb[0].mxu0
    %v6891 = vpop.f32.mrb[0].mxu0
    %v6892 = vadd.f32 0.0, %v6891
    %v6893 = vpop.f32.mrb[0].mxu0
    %6894 = vmatprep.mubr.bf16.mxu0 0
    %6895 = vmatmul.mubr.bf16.gmra.mrb[0].mxu0 %v6606
    %v6896 = vpop.f32.mrb[0].mxu0
    %v6897 = vadd.f32 0.0, %v6896
    %v6898 = vpop.f32.mrb[0].mxu0
    %v6899 = vpop.f32.mrb[0].mxu0
    %v6900 = vadd.f32 0.0, %v6899
    %v6901 = vpop.f32.mrb[0].mxu0
    %6902 = vmatprep.mubr.bf16.mxu0 0
    %6903 = vmatmul.mubr.bf16.gmra.mrb[0].mxu0 %v6609
    %v6904 = vpop.f32.mrb[0].mxu0
    %v6905 = vadd.f32 0.0, %v6904
    %v6906 = vpop.f32.mrb[0].mxu0
    %v6907 = vpop.f32.mrb[0].mxu0
    %v6908 = vadd.f32 0.0, %v6907
    %v6909 = vpop.f32.mrb[0].mxu0
    %6910 = vmatprep.mubr.bf16.mxu0 0
    %6911 = vmatmul.mubr.bf16.gmra.mrb[0].mxu0 %v6612
    %v6912 = vpop.f32.mrb[0].mxu0
    %v6913 = vadd.f32 0.0, %v6912
    %v6914 = vpop.f32.mrb[0].mxu0
    %v6915 = vpop.f32.mrb[0].mxu0
    %v6916 = vadd.f32 0.0, %v6915
    %v6917 = vpop.f32.mrb[0].mxu0
    %6918 = vmatprep.mubr.bf16.mxu0 0
    %6919 = vmatmul.mubr.bf16.gmra.mrb[0].mxu0 %v6615
    %v6920 = vpop.f32.mrb[0].mxu0
    %v6921 = vadd.f32 0.0, %v6920
    %v6922 = vpop.f32.mrb[0].mxu0
    %v6923 = vpop.f32.mrb[0].mxu0
    %v6924 = vadd.f32 0.0, %v6923
    %v6925 = vpop.f32.mrb[0].mxu0
    %6926 = vmatprep.mubr.bf16.mxu0 0
    %6927 = vmatmul.mubr.bf16.gmra.mrb[0].mxu0 %v6618
    %v6928 = vpop.f32.mrb[0].mxu0
    %v6929 = vadd.f32 0.0, %v6928
    %v6930 = vpop.f32.mrb[0].mxu0
    %v6931 = vpop.f32.mrb[0].mxu0
    %v6932 = vadd.f32 0.0, %v6931
    %v6933 = vpop.f32.mrb[0].mxu0
    %6934 = vmatprep.mubr.bf16.mxu0 0
    %6935 = vmatmul.mubr.bf16.gmra.mrb[0].mxu0 %v6621
    %v6936 = vpop.f32.mrb[0].mxu0
    %v6937 = vadd.f32 0.0, %v6936
    %v6938 = vpop.f32.mrb[0].mxu0
    %v6939 = vpop.f32.mrb[0].mxu0
    %v6940 = vadd.f32 0.0, %v6939
    %v6941 = vpop.f32.mrb[0].mxu0
    %6942 = vmatprep.mubr.bf16.mxu0 0
    %6943 = vmatmul.mubr.bf16.gmra.mrb[0].mxu0 %v6624
    %v6944 = vpop.f32.mrb[0].mxu0
    %v6945 = vadd.f32 0.0, %v6944
    %v6946 = vpop.f32.mrb[0].mxu0
    %v6947 = vpop.f32.mrb[0].mxu0
    %v6948 = vadd.f32 0.0, %v6947
    %v6949 = vpop.f32.mrb[0].mxu0
    %6950 = vmatprep.mubr.bf16.mxu0 0
    %6951 = vmatmul.mubr.bf16.gmra.mrb[0].mxu0 %v6627
    %v6952 = vpop.f32.mrb[0].mxu0
    %v6953 = vadd.f32 0.0, %v6952
    %v6954 = vpop.f32.mrb[0].mxu0
    %v6955 = vpop.f32.mrb[0].mxu0
    %v6956 = vadd.f32 0.0, %v6955
    %v6957 = vpop.f32.mrb[0].mxu0
    %6958 = vmatprep.mubr.bf16.mxu0 0
    %6959 = vmatmul.mubr.bf16.gmra.mrb[0].mxu0 %v6630
    %v6960 = vpop.f32.mrb[0].mxu0
    %v6961 = vadd.f32 0.0, %v6960
    %v6962 = vpop.f32.mrb[0].mxu0
    %v6963 = vpop.f32.mrb[0].mxu0
    %v6964 = vadd.f32 0.0, %v6963
    %v6965 = vpop.f32.mrb[0].mxu0
    %6966 = vmatprep.mubr.bf16.mxu0 0
    %6967 = vmatmul.mubr.bf16.gmra.mrb[0].mxu0 %v6633
    %v6968 = vpop.f32.mrb[0].mxu0
    %v6969 = vadd.f32 0.0, %v6968
    %v6970 = vpop.f32.mrb[0].mxu0
    %v6971 = vpop.f32.mrb[0].mxu0
    %v6972 = vadd.f32 0.0, %v6971
    %v6973 = vpop.f32.mrb[0].mxu0
    %6974 = vmatprep.mubr.bf16.mxu0 0
    %6975 = vmatmul.mubr.bf16.gmra.mrb[0].mxu0 %v6636
    %v6976 = vpop.f32.mrb[0].mxu0
    %v6977 = vadd.f32 0.0, %v6976
    %v6978 = vpop.f32.mrb[0].mxu0
    %v6979 = vpop.f32.mrb[0].mxu0
    %v6980 = vadd.f32 0.0, %v6979
    %v6981 = vpop.f32.mrb[0].mxu0
    %6982 = vmatprep.mubr.bf16.mxu0 0
    %6983 = vmatmul.mubr.bf16.gmra.mrb[0].mxu0 %v6639
    %v6984 = vpop.f32.mrb[0].mxu0
    %v6985 = vadd.f32 0.0, %v6984
    %v6986 = vpop.f32.mrb[0].mxu0
    %v6987 = vpop.f32.mrb[0].mxu0
    %v6988 = vadd.f32 0.0, %v6987
    %v6989 = vpop.f32.mrb[0].mxu0
    %6990 = vmatprep.mubr.bf16.mxu0 0
    %6991 = vmatmul.mubr.bf16.gmra.mrb[0].mxu0 %v6642
    %v6992 = vpop.f32.mrb[0].mxu0
    %v6993 = vadd.f32 0.0, %v6992
    %v6994 = vpop.f32.mrb[0].mxu0
    %v6995 = vpop.f32.mrb[0].mxu0
    %v6996 = vadd.f32 0.0, %v6995
    %v6997 = vpop.f32.mrb[0].mxu0
    %6998 = vmatprep.mubr.bf16.mxu0 0
    %6999 = vmatmul.mubr.bf16.gmra.mrb[0].mxu0 %v6645
    %v7000 = vpop.f32.mrb[0].mxu0
    %v7001 = vadd.f32 0.0, %v7000
    %v7002 = vpop.f32.mrb[0].mxu0
    %v7003 = vpop.f32.mrb[0].mxu0
    %v7004 = vadd.f32 0.0, %v7003
    %v7005 = vpop.f32.mrb[0].mxu0
    %7006 = vmatprep.mubr.bf16.mxu0 0
    %7007 = vmatmul.mubr.bf16.gmra.mrb[0].mxu0 %v6648
    %v7008 = vpop.f32.mrb[0].mxu0
    %v7009 = vadd.f32 0.0, %v7008
    %v7010 = vpop.f32.mrb[0].mxu0
    %v7011 = vpop.f32.mrb[0].mxu0
    %v7012 = vadd.f32 0.0, %v7011
    %v7013 = vpop.f32.mrb[0].mxu0
    %7014 = vmatprep.mubr.bf16.mxu0 0
    %7015 = vmatmul.mubr.bf16.gmra.mrb[0].mxu0 %v6651
    %v7016 = vpop.f32.mrb[0].mxu0
    %v7017 = vadd.f32 0.0, %v7016
    %v7018 = vpop.f32.mrb[0].mxu0
    %v7019 = vpop.f32.mrb[0].mxu0
    %v7020 = vadd.f32 0.0, %v7019
    %v7021 = vpop.f32.mrb[0].mxu0
    %7022 = vmatprep.mubr.bf16.mxu0 0
    %7023 = vmatmul.mubr.bf16.gmra.mrb[0].mxu0 %v6654
    %v7024 = vpop.f32.mrb[0].mxu0
    %v7025 = vadd.f32 0.0, %v7024
    %v7026 = vpop.f32.mrb[0].mxu0
    %v7027 = vpop.f32.mrb[0].mxu0
    %v7028 = vadd.f32 0.0, %v7027
    %v7029 = vpop.f32.mrb[0].mxu0
    %7030 = vmatprep.mubr.bf16.mxu0 0
    %7031 = vmatmul.mubr.bf16.gmra.mrb[0].mxu0 %v6657
    %v7032 = vpop.f32.mrb[0].mxu0
    %v7033 = vadd.f32 0.0, %v7032
    %v7034 = vpop.f32.mrb[0].mxu0
    %v7035 = vpop.f32.mrb[0].mxu0
    %v7036 = vadd.f32 0.0, %v7035
    %v7037 = vpop.f32.mrb[0].mxu0
    %7038 = vmatprep.mubr.bf16.mxu0 0
    %7039 = vmatmul.mubr.bf16.gmra.mrb[0].mxu0 %v6660
    %v7040 = vpop.f32.mrb[0].mxu0
    %v7041 = vadd.f32 0.0, %v7040
    %v7042 = vpop.f32.mrb[0].mxu0
    %v7043 = vpop.f32.mrb[0].mxu0
    %v7044 = vadd.f32 0.0, %v7043
    %v7045 = vpop.f32.mrb[0].mxu0
    %7046 = vmatprep.mubr.bf16.mxu0 0
    %7047 = vmatmul.mubr.bf16.gmra.mrb[0].mxu0 %v6663
    %v7048 = vpop.f32.mrb[0].mxu0
    %v7049 = vadd.f32 0.0, %v7048
    %v7050 = vpop.f32.mrb[0].mxu0
    %v7051 = vpop.f32.mrb[0].mxu0
    %v7052 = vadd.f32 0.0, %v7051
    %v7053 = vpop.f32.mrb[0].mxu0
    %7054 = vmatprep.mubr.bf16.mxu0 0
    %7055 = vmatmul.mubr.bf16.gmra.mrb[0].mxu0 %v6666
    %v7056 = vpop.f32.mrb[0].mxu0
    %v7057 = vadd.f32 0.0, %v7056
    %v7058 = vpop.f32.mrb[0].mxu0
    %v7059 = vpop.f32.mrb[0].mxu0
    %v7060 = vadd.f32 0.0, %v7059
    %v7061 = vpop.f32.mrb[0].mxu0
    %7062 = vmatprep.mubr.bf16.mxu0 0
    %7063 = vmatmul.mubr.bf16.gmra.mrb[0].mxu0 %v6669
    %v7064 = vpop.f32.mrb[0].mxu0
    %v7065 = vadd.f32 0.0, %v7064
    %v7066 = vpop.f32.mrb[0].mxu0
    %v7067 = vpop.f32.mrb[0].mxu0
    %v7068 = vadd.f32 0.0, %v7067
    %v7069 = vpop.f32.mrb[0].mxu0
    %7070 = vmatprep.mubr.bf16.mxu0 0
    %7071 = vmatmul.mubr.bf16.gmra.mrb[0].mxu0 %v6672
    %v7072 = vpop.f32.mrb[0].mxu0
    %v7073 = vadd.f32 0.0, %v7072
    %v7074 = vpop.f32.mrb[0].mxu0
    %v7075 = vpop.f32.mrb[0].mxu0
    %v7076 = vadd.f32 0.0, %v7075
    %v7077 = vpop.f32.mrb[0].mxu0
    %7078 = vmatprep.mubr.bf16.mxu0 0
    %7079 = vmatmul.mubr.bf16.gmra.mrb[0].mxu0 %v6675
    %v7080 = vpop.f32.mrb[0].mxu0
    %v7081 = vadd.f32 0.0, %v7080
    %v7082 = vpop.f32.mrb[0].mxu0
    %v7083 = vpop.f32.mrb[0].mxu0
    %v7084 = vadd.f32 0.0, %v7083
    %v7085 = vpop.f32.mrb[0].mxu0
    %7086 = vmatprep.mubr.bf16.mxu0 0
    %7087 = vmatmul.mubr.bf16.gmra.mrb[0].mxu0 %v6678
    %v7088 = vpop.f32.mrb[0].mxu0
    %v7089 = vadd.f32 0.0, %v7088
    %v7090 = vpop.f32.mrb[0].mxu0
    %v7091 = vpop.f32.mrb[0].mxu0
    %v7092 = vadd.f32 0.0, %v7091
    %v7093 = vpop.f32.mrb[0].mxu0
    %7094 = vmatprep.mubr.bf16.mxu0 0
    %7095 = vmatmul.mubr.bf16.gmra.mrb[0].mxu0 %v6681
    %v7096 = vpop.f32.mrb[0].mxu0
    %v7097 = vadd.f32 0.0, %v7096
    %v7098 = vpop.f32.mrb[0].mxu0
    %v7099 = vpop.f32.mrb[0].mxu0
    %v7100 = vadd.f32 0.0, %v7099
    %v7101 = vpop.f32.mrb[0].mxu0
    %7102 = vmatprep.mubr.bf16.mxu0 0
    %7103 = vmatmul.mubr.bf16.gmra.mrb[0].mxu0 %v6684
    %v7104 = vpop.f32.mrb[0].mxu0
    %v7105 = vadd.f32 0.0, %v7104
    %v7106 = vpop.f32.mrb[0].mxu0
    %v7107 = vpop.f32.mrb[0].mxu0
    %v7108 = vadd.f32 0.0, %v7107
    %v7109 = vpop.f32.mrb[0].mxu0
    %7110 = vmatprep.mubr.bf16.mxu0 0
    %7111 = vmatmul.mubr.bf16.gmra.mrb[0].mxu0 %v6687
    %v7112 = vpop.f32.mrb[0].mxu0
    %v7113 = vadd.f32 0.0, %v7112
    %v7114 = vpop.f32.mrb[0].mxu0
    %v7115 = vpop.f32.mrb[0].mxu0
    %v7116 = vadd.f32 0.0, %v7115
    %v7117 = vpop.f32.mrb[0].mxu0
    %7118 = vmatprep.mubr.bf16.mxu0 0
    %7119 = vmatmul.mubr.bf16.gmra.mrb[0].mxu0 %v6690
    %v7120 = vpop.f32.mrb[0].mxu0
    %v7121 = vadd.f32 0.0, %v7120
    %v7122 = vpop.f32.mrb[0].mxu0
    %v7123 = vpop.f32.mrb[0].mxu0
    %v7124 = vadd.f32 0.0, %v7123
    %v7125 = vpop.f32.mrb[0].mxu0
    %7126 = vmatprep.mubr.bf16.mxu0 0
    %7127 = vmatmul.mubr.bf16.gmra.mrb[0].mxu0 %v6693
    %v7128 = vpop.f32.mrb[0].mxu0
    %v7129 = vadd.f32 0.0, %v7128
    %v7130 = vpop.f32.mrb[0].mxu0
    %v7131 = vpop.f32.mrb[0].mxu0
    %v7132 = vadd.f32 0.0, %v7131
    %v7133 = vpop.f32.mrb[0].mxu0
    %7134 = vmatprep.mubr.bf16.mxu0 0
    %7135 = vmatmul.mubr.bf16.gmra.mrb[0].mxu0 %v6696
    %v7136 = vpop.f32.mrb[0].mxu0
    %v7137 = vadd.f32 0.0, %v7136
    %v7138 = vpop.f32.mrb[0].mxu0
    %v7139 = vpop.f32.mrb[0].mxu0
    %v7140 = vadd.f32 0.0, %v7139
    %v7141 = vpop.f32.mrb[0].mxu0
    %7142 = vmatprep.mubr.bf16.mxu0 0
    %7143 = vmatmul.mubr.bf16.gmra.mrb[0].mxu0 %v6699
    %v7144 = vpop.f32.mrb[0].mxu0
    %v7145 = vadd.f32 0.0, %v7144
    %v7146 = vpop.f32.mrb[0].mxu0
    %v7147 = vpop.f32.mrb[0].mxu0
    %v7148 = vadd.f32 0.0, %v7147
    %v7149 = vpop.f32.mrb[0].mxu0
    %7150 = vmatprep.mubr.bf16.mxu0 0
    %7151 = vmatmul.mubr.bf16.gmra.mrb[0].mxu0 %v6702
    %v7152 = vpop.f32.mrb[0].mxu0
    %v7153 = vadd.f32 0.0, %v7152
    %v7154 = vpop.f32.mrb[0].mxu0
    %v7155 = vpop.f32.mrb[0].mxu0
    %v7156 = vadd.f32 0.0, %v7155
    %v7157 = vpop.f32.mrb[0].mxu0
    %7158 = vmatprep.mubr.bf16.mxu0 0
    %7159 = vmatmul.mubr.bf16.gmra.mrb[0].mxu0 %v6705
    %v7160 = vpop.f32.mrb[0].mxu0
    %v7161 = vadd.f32 0.0, %v7160
    %v7162 = vpop.f32.mrb[0].mxu0
    %v7163 = vpop.f32.mrb[0].mxu0
    %v7164 = vadd.f32 0.0, %v7163
    %v7165 = vpop.f32.mrb[0].mxu0
    %7166 = vmatprep.mubr.bf16.mxu0 0
    %7167 = vmatmul.mubr.bf16.gmra.mrb[0].mxu0 %v6708
    %v7168 = vpop.f32.mrb[0].mxu0
    %v7169 = vadd.f32 0.0, %v7168
    %v7170 = vpop.f32.mrb[0].mxu0
    %v7171 = vpop.f32.mrb[0].mxu0
    %v7172 = vadd.f32 0.0, %v7171
    %v7173 = vpop.f32.mrb[0].mxu0
    %7174 = vmatprep.mubr.bf16.mxu0 0
    %7175 = vmatmul.mubr.bf16.gmra.mrb[0].mxu0 %v6711
    %v7176 = vpop.f32.mrb[0].mxu0
    %v7177 = vadd.f32 0.0, %v7176
    %v7178 = vpop.f32.mrb[0].mxu0
    %v7179 = vpop.f32.mrb[0].mxu0
    %v7180 = vadd.f32 0.0, %v7179
    %v7181 = vpop.f32.mrb[0].mxu0
    %7182 = vmatprep.mubr.bf16.mxu0 0
    %7183 = vmatmul.mubr.bf16.gmra.mrb[0].mxu0 %v6714
    %v7184 = vpop.f32.mrb[0].mxu0
    %v7185 = vadd.f32 0.0, %v7184
    %v7186 = vpop.f32.mrb[0].mxu0
    %v7187 = vpop.f32.mrb[0].mxu0
    %v7188 = vadd.f32 0.0, %v7187
    %v7189 = vpop.f32.mrb[0].mxu0
    %7190 = vmatprep.mubr.bf16.mxu0 0
    %7191 = vmatmul.mubr.bf16.gmra.mrb[0].mxu0 %v6717
    %v7192 = vpop.f32.mrb[0].mxu0
    %v7193 = vadd.f32 0.0, %v7192
    %v7194 = vpop.f32.mrb[0].mxu0
    %v7195 = vpop.f32.mrb[0].mxu0
    %v7196 = vadd.f32 0.0, %v7195
    %v7197 = vpop.f32.mrb[0].mxu0
    %7198 = vmatprep.mubr.bf16.mxu0 0
    %7199 = vmatmul.mubr.bf16.gmra.mrb[0].mxu0 %v6720
    %v7200 = vpop.f32.mrb[0].mxu0
    %v7201 = vadd.f32 0.0, %v7200
    %v7202 = vpop.f32.mrb[0].mxu0
    %v7203 = vpop.f32.mrb[0].mxu0
    %v7204 = vadd.f32 0.0, %v7203
    %v7205 = vpop.f32.mrb[0].mxu0
    %7206 = vmatprep.mubr.bf16.mxu0 0
    %7207 = vmatmul.mubr.bf16.gmra.mrb[0].mxu0 %v6723
    %v7208 = vpop.f32.mrb[0].mxu0
    %v7209 = vadd.f32 0.0, %v7208
    %v7210 = vpop.f32.mrb[0].mxu0
    %v7211 = vpop.f32.mrb[0].mxu0
    %v7212 = vadd.f32 0.0, %v7211
    %v7213 = vpop.f32.mrb[0].mxu0
    %7214 = vmatprep.mubr.bf16.mxu0 0
    %7215 = vmatmul.mubr.bf16.gmra.mrb[0].mxu0 %v6726
    %v7216 = vpop.f32.mrb[0].mxu0
    %v7217 = vadd.f32 0.0, %v7216
    %v7218 = vpop.f32.mrb[0].mxu0
    %v7219 = vpop.f32.mrb[0].mxu0
    %v7220 = vadd.f32 0.0, %v7219
    %v7221 = vpop.f32.mrb[0].mxu0
    %7222 = vmatprep.mubr.bf16.mxu0 0
    %7223 = vmatmul.mubr.bf16.gmra.mrb[0].mxu0 %v6729
    %v7224 = vpop.f32.mrb[0].mxu0
    %v7225 = vadd.f32 0.0, %v7224
    %v7226 = vpop.f32.mrb[0].mxu0
    %v7227 = vpop.f32.mrb[0].mxu0
    %v7228 = vadd.f32 0.0, %v7227
    %v7229 = vpop.f32.mrb[0].mxu0
    %7230 = vmatprep.mubr.bf16.mxu0 0
    %7231 = vmatmul.mubr.bf16.gmra.mrb[0].mxu0 %v6732
    %v7232 = vpop.f32.mrb[0].mxu0
    %v7233 = vadd.f32 0.0, %v7232
    %v7234 = vpop.f32.mrb[0].mxu0
    %v7235 = vpop.f32.mrb[0].mxu0
    %v7236 = vadd.f32 0.0, %v7235
    %v7237 = vpop.f32.mrb[0].mxu0
    %7238 = vmatprep.mubr.bf16.mxu0 0
    %7239 = vmatmul.mubr.bf16.gmra.mrb[0].mxu0 %v6735
    %v7240 = vpop.f32.mrb[0].mxu0
    %v7241 = vadd.f32 0.0, %v7240
    %v7242 = vpop.f32.mrb[0].mxu0
    %v7243 = vpop.f32.mrb[0].mxu0
    %v7244 = vadd.f32 0.0, %v7243
    %v7245 = vpop.f32.mrb[0].mxu0
    %7246 = vmatprep.mubr.bf16.mxu0 0
    %7247 = vmatmul.mubr.bf16.gmra.mrb[0].mxu0 %v6738
    %v7248 = vpop.f32.mrb[0].mxu0
    %v7249 = vadd.f32 0.0, %v7248
    %v7250 = vpop.f32.mrb[0].mxu0
    %v7251 = vpop.f32.mrb[0].mxu0
    %v7252 = vadd.f32 0.0, %v7251
    %v7253 = vpop.f32.mrb[0].mxu0
    %7254 = vmatprep.mubr.bf16.mxu0 0
    %7255 = vmatmul.mubr.bf16.gmra.mrb[0].mxu0 %v6741
    %v7256 = vpop.f32.mrb[0].mxu0
    %v7257 = vadd.f32 0.0, %v7256
    %v7258 = vpop.f32.mrb[0].mxu0
    %v7259 = vpop.f32.mrb[0].mxu0
    %v7260 = vadd.f32 0.0, %v7259
    %v7261 = vpop.f32.mrb[0].mxu0
    %7262 = vmatprep.mubr.bf16.mxu0 0
    %7263 = vmatmul.mubr.bf16.gmra.mrb[0].mxu0 %v6744
    %v7264 = vpop.f32.mrb[0].mxu0
    %v7265 = vadd.f32 0.0, %v7264
    %v7266 = vpop.f32.mrb[0].mxu0
    %v7267 = vpop.f32.mrb[0].mxu0
    %v7268 = vadd.f32 0.0, %v7267
    %v7269 = vpop.f32.mrb[0].mxu0
    %7270 = vmatprep.mubr.bf16.mxu0 0
    %7271 = vmatmul.mubr.bf16.gmra.mrb[0].mxu0 %v6747
    %v7272 = vpop.f32.mrb[0].mxu0
    %v7273 = vadd.f32 0.0, %v7272
    %v7274 = vpop.f32.mrb[0].mxu0
    %v7275 = vpop.f32.mrb[0].mxu0
    %v7276 = vadd.f32 0.0, %v7275
    %v7277 = vpop.f32.mrb[0].mxu0
    %7278 = vmatprep.mubr.bf16.mxu0 0
    %7279 = vmatmul.mubr.bf16.gmra.mrb[0].mxu0 %v6750
    %v7280 = vpop.f32.mrb[0].mxu0
    %v7281 = vadd.f32 0.0, %v7280
    %v7282 = vpop.f32.mrb[0].mxu0
    %v7283 = vpop.f32.mrb[0].mxu0
    %v7284 = vadd.f32 0.0, %v7283
    %v7285 = vpop.f32.mrb[0].mxu0
    %7286 = vmatprep.mubr.bf16.mxu0 0
    %7287 = vmatmul.mubr.bf16.gmra.mrb[0].mxu0 %v6753
    %v7288 = vpop.f32.mrb[0].mxu0
    %v7289 = vadd.f32 0.0, %v7288
    %v7290 = vpop.f32.mrb[0].mxu0
    %v7291 = vpop.f32.mrb[0].mxu0
    %v7292 = vadd.f32 0.0, %v7291
    %v7293 = vpop.f32.mrb[0].mxu0
    %7294 = vmatprep.mubr.bf16.mxu0 0
    %7295 = vmatmul.mubr.bf16.gmra.mrb[0].mxu0 %v6756
    %v7296 = vpop.f32.mrb[0].mxu0
    %v7297 = vadd.f32 0.0, %v7296
    %v7298 = vpop.f32.mrb[0].mxu0
    %v7299 = vpop.f32.mrb[0].mxu0
    %v7300 = vadd.f32 0.0, %v7299
    %v7301 = vpop.f32.mrb[0].mxu0
    %7302 = vdwg.mxu0
    %v7303 = vadd.f32 %v5843, %v6793
    %v7304 = vadd.f32 %v5846, %v6796
    %v7305 = vadd.f32 %v5851, %v6801
    %v7306 = vadd.f32 %v5854, %v6804
    %v7307 = vadd.f32 %v5859, %v6809
    %v7308 = vadd.f32 %v5862, %v6812
    %v7309 = vadd.f32 %v5867, %v6817
    %v7310 = vadd.f32 %v5870, %v6820
    %v7311 = vadd.f32 %v5875, %v6825
    %v7312 = vadd.f32 %v5878, %v6828
    %v7313 = vadd.f32 %v5883, %v6833
    %v7314 = vadd.f32 %v5886, %v6836
    %v7315 = vadd.f32 %v5891, %v6841
    %v7316 = vadd.f32 %v5894, %v6844
    %v7317 = vadd.f32 %v5899, %v6849
    %v7318 = vadd.f32 %v5902, %v6852
    %v7319 = vadd.f32 %v5907, %v6857
    %v7320 = vadd.f32 %v5910, %v6860
    %v7321 = vadd.f32 %v5915, %v6865
    %v7322 = vadd.f32 %v5918, %v6868
    %v7323 = vadd.f32 %v5923, %v6873
    %v7324 = vadd.f32 %v5926, %v6876
    %v7325 = vadd.f32 %v5931, %v6881
    %v7326 = vadd.f32 %v5934, %v6884
    %v7327 = vadd.f32 %v5939, %v6889
    %v7328 = vadd.f32 %v5942, %v6892
    %v7329 = vadd.f32 %v5947, %v6897
    %v7330 = vadd.f32 %v5950, %v6900
    %v7331 = vadd.f32 %v5955, %v6905
    %v7332 = vadd.f32 %v5958, %v6908
    %v7333 = vadd.f32 %v5963, %v6913
    %v7334 = vadd.f32 %v5966, %v6916
    %v7335 = vadd.f32 %v5971, %v6921
    %v7336 = vadd.f32 %v5974, %v6924
    %v7337 = vadd.f32 %v5979, %v6929
    %v7338 = vadd.f32 %v5982, %v6932
    %v7339 = vadd.f32 %v5987, %v6937
    %v7340 = vadd.f32 %v5990, %v6940
    %v7341 = vadd.f32 %v5995, %v6945
    %v7342 = vadd.f32 %v5998, %v6948
    %v7343 = vadd.f32 %v6003, %v6953
    %v7344 = vadd.f32 %v6006, %v6956
    %v7345 = vadd.f32 %v6011, %v6961
    %v7346 = vadd.f32 %v6014, %v6964
    %v7347 = vadd.f32 %v6019, %v6969
    %v7348 = vadd.f32 %v6022, %v6972
    %v7349 = vadd.f32 %v6027, %v6977
    %v7350 = vadd.f32 %v6030, %v6980
    %v7351 = vadd.f32 %v6035, %v6985
    %v7352 = vadd.f32 %v6038, %v6988
    %v7353 = vadd.f32 %v6043, %v6993
    %v7354 = vadd.f32 %v6046, %v6996
    %v7355 = vadd.f32 %v6051, %v7001
    %v7356 = vadd.f32 %v6054, %v7004
    %v7357 = vadd.f32 %v6059, %v7009
    %v7358 = vadd.f32 %v6062, %v7012
    %v7359 = vadd.f32 %v6067, %v7017
    %v7360 = vadd.f32 %v6070, %v7020
    %v7361 = vadd.f32 %v6075, %v7025
    %v7362 = vadd.f32 %v6078, %v7028
    %v7363 = vadd.f32 %v6083, %v7033
    %v7364 = vadd.f32 %v6086, %v7036
    %v7365 = vadd.f32 %v6091, %v7041
    %v7366 = vadd.f32 %v6094, %v7044
    %v7367 = vadd.f32 %v6099, %v7049
    %v7368 = vadd.f32 %v6102, %v7052
    %v7369 = vadd.f32 %v6107, %v7057
    %v7370 = vadd.f32 %v6110, %v7060
    %v7371 = vadd.f32 %v6115, %v7065
    %v7372 = vadd.f32 %v6118, %v7068
    %v7373 = vadd.f32 %v6123, %v7073
    %v7374 = vadd.f32 %v6126, %v7076
    %v7375 = vadd.f32 %v6131, %v7081
    %v7376 = vadd.f32 %v6134, %v7084
    %v7377 = vadd.f32 %v6139, %v7089
    %v7378 = vadd.f32 %v6142, %v7092
    %v7379 = vadd.f32 %v6147, %v7097
    %v7380 = vadd.f32 %v6150, %v7100
    %v7381 = vadd.f32 %v6155, %v7105
    %v7382 = vadd.f32 %v6158, %v7108
    %v7383 = vadd.f32 %v6163, %v7113
    %v7384 = vadd.f32 %v6166, %v7116
    %v7385 = vadd.f32 %v6171, %v7121
    %v7386 = vadd.f32 %v6174, %v7124
    %v7387 = vadd.f32 %v6179, %v7129
    %v7388 = vadd.f32 %v6182, %v7132
    %v7389 = vadd.f32 %v6187, %v7137
    %v7390 = vadd.f32 %v6190, %v7140
    %v7391 = vadd.f32 %v6195, %v7145
    %v7392 = vadd.f32 %v6198, %v7148
    %v7393 = vadd.f32 %v6203, %v7153
    %v7394 = vadd.f32 %v6206, %v7156
    %v7395 = vadd.f32 %v6211, %v7161
    %v7396 = vadd.f32 %v6214, %v7164
    %v7397 = vadd.f32 %v6219, %v7169
    %v7398 = vadd.f32 %v6222, %v7172
    %v7399 = vadd.f32 %v6227, %v7177
    %v7400 = vadd.f32 %v6230, %v7180
    %v7401 = vadd.f32 %v6235, %v7185
    %v7402 = vadd.f32 %v6238, %v7188
    %v7403 = vadd.f32 %v6243, %v7193
    %v7404 = vadd.f32 %v6246, %v7196
    %v7405 = vadd.f32 %v6251, %v7201
    %v7406 = vadd.f32 %v6254, %v7204
    %v7407 = vadd.f32 %v6259, %v7209
    %v7408 = vadd.f32 %v6262, %v7212
    %v7409 = vadd.f32 %v6267, %v7217
    %v7410 = vadd.f32 %v6270, %v7220
    %v7411 = vadd.f32 %v6275, %v7225
    %v7412 = vadd.f32 %v6278, %v7228
    %v7413 = vadd.f32 %v6283, %v7233
    %v7414 = vadd.f32 %v6286, %v7236
    %v7415 = vadd.f32 %v6291, %v7241
    %v7416 = vadd.f32 %v6294, %v7244
    %v7417 = vadd.f32 %v6299, %v7249
    %v7418 = vadd.f32 %v6302, %v7252
    %v7419 = vadd.f32 %v6307, %v7257
    %v7420 = vadd.f32 %v6310, %v7260
    %v7421 = vadd.f32 %v6315, %v7265
    %v7422 = vadd.f32 %v6318, %v7268
    %v7423 = vadd.f32 %v6323, %v7273
    %v7424 = vadd.f32 %v6326, %v7276
    %v7425 = vadd.f32 %v6331, %v7281
    %v7426 = vadd.f32 %v6334, %v7284
    %v7427 = vadd.f32 %v6339, %v7289
    %v7428 = vadd.f32 %v6342, %v7292
    %v7429 = vadd.f32 %v6347, %v7297
    %v7430 = vadd.f32 %v6350, %v7300
    %v7431 = vld [vmem:[%s4] sm:$0x1]
    %v7433 = vlaneseq
    %v7434 = vshrl.u32 %v7433, 7
    %v7435 = vsub.s32 0, %v7434
    %v7436 = vrot.slane %v7431, %v7435
    %v7438 = vadd.f32 %v7303, %v7436
    %v7439 = vadd.f32 %v7304, %v7436
    %v7440 = vadd.f32 %v7305, %v7436
    %v7441 = vadd.f32 %v7306, %v7436
    %v7442 = vadd.f32 %v7307, %v7436
    %v7443 = vadd.f32 %v7308, %v7436
    %v7444 = vadd.f32 %v7309, %v7436
    %v7445 = vadd.f32 %v7310, %v7436
    %v7446 = vadd.f32 %v7311, %v7436
    %v7447 = vadd.f32 %v7312, %v7436
    %v7448 = vadd.f32 %v7313, %v7436
    %v7449 = vadd.f32 %v7314, %v7436
    %v7450 = vadd.f32 %v7315, %v7436
    %v7451 = vadd.f32 %v7316, %v7436
    %v7452 = vadd.f32 %v7317, %v7436
    %v7453 = vadd.f32 %v7318, %v7436
    %v7454 = vadd.f32 %v7319, %v7436
    %v7455 = vadd.f32 %v7320, %v7436
    %v7456 = vadd.f32 %v7321, %v7436
    %v7457 = vadd.f32 %v7322, %v7436
    %v7458 = vadd.f32 %v7323, %v7436
    %v7459 = vadd.f32 %v7324, %v7436
    %v7460 = vadd.f32 %v7325, %v7436
    %v7461 = vadd.f32 %v7326, %v7436
    %v7462 = vadd.f32 %v7327, %v7436
    %v7463 = vadd.f32 %v7328, %v7436
    %v7464 = vadd.f32 %v7329, %v7436
    %v7465 = vadd.f32 %v7330, %v7436
    %v7466 = vadd.f32 %v7331, %v7436
    %v7467 = vadd.f32 %v7332, %v7436
    %v7468 = vadd.f32 %v7333, %v7436
    %v7469 = vadd.f32 %v7334, %v7436
    %v7470 = vadd.f32 %v7335, %v7436
    %v7471 = vadd.f32 %v7336, %v7436
    %v7472 = vadd.f32 %v7337, %v7436
    %v7473 = vadd.f32 %v7338, %v7436
    %v7474 = vadd.f32 %v7339, %v7436
    %v7475 = vadd.f32 %v7340, %v7436
    %v7476 = vadd.f32 %v7341, %v7436
    %v7477 = vadd.f32 %v7342, %v7436
    %v7478 = vadd.f32 %v7343, %v7436
    %v7479 = vadd.f32 %v7344, %v7436
    %v7480 = vadd.f32 %v7345, %v7436
    %v7481 = vadd.f32 %v7346, %v7436
    %v7482 = vadd.f32 %v7347, %v7436
    %v7483 = vadd.f32 %v7348, %v7436
    %v7484 = vadd.f32 %v7349, %v7436
    %v7485 = vadd.f32 %v7350, %v7436
    %v7486 = vadd.f32 %v7351, %v7436
    %v7487 = vadd.f32 %v7352, %v7436
    %v7488 = vadd.f32 %v7353, %v7436
    %v7489 = vadd.f32 %v7354, %v7436
    %v7490 = vadd.f32 %v7355, %v7436
    %v7491 = vadd.f32 %v7356, %v7436
    %v7492 = vadd.f32 %v7357, %v7436
    %v7493 = vadd.f32 %v7358, %v7436
    %v7494 = vadd.f32 %v7359, %v7436
    %v7495 = vadd.f32 %v7360, %v7436
    %v7496 = vadd.f32 %v7361, %v7436
    %v7497 = vadd.f32 %v7362, %v7436
    %v7498 = vadd.f32 %v7363, %v7436
    %v7499 = vadd.f32 %v7364, %v7436
    %v7500 = vadd.f32 %v7365, %v7436
    %v7501 = vadd.f32 %v7366, %v7436
    %v7502 = vadd.f32 %v7367, %v7436
    %v7503 = vadd.f32 %v7368, %v7436
    %v7504 = vadd.f32 %v7369, %v7436
    %v7505 = vadd.f32 %v7370, %v7436
    %v7506 = vadd.f32 %v7371, %v7436
    %v7507 = vadd.f32 %v7372, %v7436
    %v7508 = vadd.f32 %v7373, %v7436
    %v7509 = vadd.f32 %v7374, %v7436
    %v7510 = vadd.f32 %v7375, %v7436
    %v7511 = vadd.f32 %v7376, %v7436
    %v7512 = vadd.f32 %v7377, %v7436
    %v7513 = vadd.f32 %v7378, %v7436
    %v7514 = vadd.f32 %v7379, %v7436
    %v7515 = vadd.f32 %v7380, %v7436
    %v7516 = vadd.f32 %v7381, %v7436
    %v7517 = vadd.f32 %v7382, %v7436
    %v7518 = vadd.f32 %v7383, %v7436
    %v7519 = vadd.f32 %v7384, %v7436
    %v7520 = vadd.f32 %v7385, %v7436
    %v7521 = vadd.f32 %v7386, %v7436
    %v7522 = vadd.f32 %v7387, %v7436
    %v7523 = vadd.f32 %v7388, %v7436
    %v7524 = vadd.f32 %v7389, %v7436
    %v7525 = vadd.f32 %v7390, %v7436
    %v7526 = vadd.f32 %v7391, %v7436
    %v7527 = vadd.f32 %v7392, %v7436
    %v7528 = vadd.f32 %v7393, %v7436
    %v7529 = vadd.f32 %v7394, %v7436
    %v7530 = vadd.f32 %v7395, %v7436
    %v7531 = vadd.f32 %v7396, %v7436
    %v7532 = vadd.f32 %v7397, %v7436
    %v7533 = vadd.f32 %v7398, %v7436
    %v7534 = vadd.f32 %v7399, %v7436
    %v7535 = vadd.f32 %v7400, %v7436
    %v7536 = vadd.f32 %v7401, %v7436
    %v7537 = vadd.f32 %v7402, %v7436
    %v7538 = vadd.f32 %v7403, %v7436
    %v7539 = vadd.f32 %v7404, %v7436
    %v7540 = vadd.f32 %v7405, %v7436
    %v7541 = vadd.f32 %v7406, %v7436
    %v7542 = vadd.f32 %v7407, %v7436
    %v7543 = vadd.f32 %v7408, %v7436
    %v7544 = vadd.f32 %v7409, %v7436
    %v7545 = vadd.f32 %v7410, %v7436
    %v7546 = vadd.f32 %v7411, %v7436
    %v7547 = vadd.f32 %v7412, %v7436
    %v7548 = vadd.f32 %v7413, %v7436
    %v7549 = vadd.f32 %v7414, %v7436
    %v7550 = vadd.f32 %v7415, %v7436
    %v7551 = vadd.f32 %v7416, %v7436
    %v7552 = vadd.f32 %v7417, %v7436
    %v7553 = vadd.f32 %v7418, %v7436
    %v7554 = vadd.f32 %v7419, %v7436
    %v7555 = vadd.f32 %v7420, %v7436
    %v7556 = vadd.f32 %v7421, %v7436
    %v7557 = vadd.f32 %v7422, %v7436
    %v7558 = vadd.f32 %v7423, %v7436
    %v7559 = vadd.f32 %v7424, %v7436
    %v7560 = vadd.f32 %v7425, %v7436
    %v7561 = vadd.f32 %v7426, %v7436
    %v7562 = vadd.f32 %v7427, %v7436
    %v7563 = vadd.f32 %v7428, %v7436
    %v7564 = vadd.f32 %v7429, %v7436
    %v7565 = vadd.f32 %v7430, %v7436
    %v7566 = vmax.f32 %v7438, 0.0
    %v7567 = vmax.f32 %v7439, 0.0
    %v7568 = vmax.f32 %v7440, 0.0
    %v7569 = vmax.f32 %v7441, 0.0
    %v7570 = vmax.f32 %v7442, 0.0
    %v7571 = vmax.f32 %v7443, 0.0
    %v7572 = vmax.f32 %v7444, 0.0
    %v7573 = vmax.f32 %v7445, 0.0
    %v7574 = vmax.f32 %v7446, 0.0
    %v7575 = vmax.f32 %v7447, 0.0
    %v7576 = vmax.f32 %v7448, 0.0
    %v7577 = vmax.f32 %v7449, 0.0
    %v7578 = vmax.f32 %v7450, 0.0
    %v7579 = vmax.f32 %v7451, 0.0
    %v7580 = vmax.f32 %v7452, 0.0
    %v7581 = vmax.f32 %v7453, 0.0
    %v7582 = vmax.f32 %v7454, 0.0
    %v7583 = vmax.f32 %v7455, 0.0
    %v7584 = vmax.f32 %v7456, 0.0
    %v7585 = vmax.f32 %v7457, 0.0
    %v7586 = vmax.f32 %v7458, 0.0
    %v7587 = vmax.f32 %v7459, 0.0
    %v7588 = vmax.f32 %v7460, 0.0
    %v7589 = vmax.f32 %v7461, 0.0
    %v7590 = vmax.f32 %v7462, 0.0
    %v7591 = vmax.f32 %v7463, 0.0
    %v7592 = vmax.f32 %v7464, 0.0
    %v7593 = vmax.f32 %v7465, 0.0
    %v7594 = vmax.f32 %v7466, 0.0
    %v7595 = vmax.f32 %v7467, 0.0
    %v7596 = vmax.f32 %v7468, 0.0
    %v7597 = vmax.f32 %v7469, 0.0
    %v7598 = vmax.f32 %v7470, 0.0
    %v7599 = vmax.f32 %v7471, 0.0
    %v7600 = vmax.f32 %v7472, 0.0
    %v7601 = vmax.f32 %v7473, 0.0
    %v7602 = vmax.f32 %v7474, 0.0
    %v7603 = vmax.f32 %v7475, 0.0
    %v7604 = vmax.f32 %v7476, 0.0
    %v7605 = vmax.f32 %v7477, 0.0
    %v7606 = vmax.f32 %v7478, 0.0
    %v7607 = vmax.f32 %v7479, 0.0
    %v7608 = vmax.f32 %v7480, 0.0
    %v7609 = vmax.f32 %v7481, 0.0
    %v7610 = vmax.f32 %v7482, 0.0
    %v7611 = vmax.f32 %v7483, 0.0
    %v7612 = vmax.f32 %v7484, 0.0
    %v7613 = vmax.f32 %v7485, 0.0
    %v7614 = vmax.f32 %v7486, 0.0
    %v7615 = vmax.f32 %v7487, 0.0
    %v7616 = vmax.f32 %v7488, 0.0
    %v7617 = vmax.f32 %v7489, 0.0
    %v7618 = vmax.f32 %v7490, 0.0
    %v7619 = vmax.f32 %v7491, 0.0
    %v7620 = vmax.f32 %v7492, 0.0
    %v7621 = vmax.f32 %v7493, 0.0
    %v7622 = vmax.f32 %v7494, 0.0
    %v7623 = vmax.f32 %v7495, 0.0
    %v7624 = vmax.f32 %v7496, 0.0
    %v7625 = vmax.f32 %v7497, 0.0
    %v7626 = vmax.f32 %v7498, 0.0
    %v7627 = vmax.f32 %v7499, 0.0
    %v7628 = vmax.f32 %v7500, 0.0
    %v7629 = vmax.f32 %v7501, 0.0
    %v7630 = vmax.f32 %v7502, 0.0
    %v7631 = vmax.f32 %v7503, 0.0
    %v7632 = vmax.f32 %v7504, 0.0
    %v7633 = vmax.f32 %v7505, 0.0
    %v7634 = vmax.f32 %v7506, 0.0
    %v7635 = vmax.f32 %v7507, 0.0
    %v7636 = vmax.f32 %v7508, 0.0
    %v7637 = vmax.f32 %v7509, 0.0
    %v7638 = vmax.f32 %v7510, 0.0
    %v7639 = vmax.f32 %v7511, 0.0
    %v7640 = vmax.f32 %v7512, 0.0
    %v7641 = vmax.f32 %v7513, 0.0
    %v7642 = vmax.f32 %v7514, 0.0
    %v7643 = vmax.f32 %v7515, 0.0
    %v7644 = vmax.f32 %v7516, 0.0
    %v7645 = vmax.f32 %v7517, 0.0
    %v7646 = vmax.f32 %v7518, 0.0
    %v7647 = vmax.f32 %v7519, 0.0
    %v7648 = vmax.f32 %v7520, 0.0
    %v7649 = vmax.f32 %v7521, 0.0
    %v7650 = vmax.f32 %v7522, 0.0
    %v7651 = vmax.f32 %v7523, 0.0
    %v7652 = vmax.f32 %v7524, 0.0
    %v7653 = vmax.f32 %v7525, 0.0
    %v7654 = vmax.f32 %v7526, 0.0
    %v7655 = vmax.f32 %v7527, 0.0
    %v7656 = vmax.f32 %v7528, 0.0
    %v7657 = vmax.f32 %v7529, 0.0
    %v7658 = vmax.f32 %v7530, 0.0
    %v7659 = vmax.f32 %v7531, 0.0
    %v7660 = vmax.f32 %v7532, 0.0
    %v7661 = vmax.f32 %v7533, 0.0
    %v7662 = vmax.f32 %v7534, 0.0
    %v7663 = vmax.f32 %v7535, 0.0
    %v7664 = vmax.f32 %v7536, 0.0
    %v7665 = vmax.f32 %v7537, 0.0
    %v7666 = vmax.f32 %v7538, 0.0
    %v7667 = vmax.f32 %v7539, 0.0
    %v7668 = vmax.f32 %v7540, 0.0
    %v7669 = vmax.f32 %v7541, 0.0
    %v7670 = vmax.f32 %v7542, 0.0
    %v7671 = vmax.f32 %v7543, 0.0
    %v7672 = vmax.f32 %v7544, 0.0
    %v7673 = vmax.f32 %v7545, 0.0
    %v7674 = vmax.f32 %v7546, 0.0
    %v7675 = vmax.f32 %v7547, 0.0
    %v7676 = vmax.f32 %v7548, 0.0
    %v7677 = vmax.f32 %v7549, 0.0
    %v7678 = vmax.f32 %v7550, 0.0
    %v7679 = vmax.f32 %v7551, 0.0
    %v7680 = vmax.f32 %v7552, 0.0
    %v7681 = vmax.f32 %v7553, 0.0
    %v7682 = vmax.f32 %v7554, 0.0
    %v7683 = vmax.f32 %v7555, 0.0
    %v7684 = vmax.f32 %v7556, 0.0
    %v7685 = vmax.f32 %v7557, 0.0
    %v7686 = vmax.f32 %v7558, 0.0
    %v7687 = vmax.f32 %v7559, 0.0
    %v7688 = vmax.f32 %v7560, 0.0
    %v7689 = vmax.f32 %v7561, 0.0
    %v7690 = vmax.f32 %v7562, 0.0
    %v7691 = vmax.f32 %v7563, 0.0
    %v7692 = vmax.f32 %v7564, 0.0
    %v7693 = vmax.f32 %v7565, 0.0
    %v7694 = vmul.f32 %v7566, %v2597
    %v7695 = vmul.f32 %v7567, %v2598
    %v7696 = vmul.f32 %v7568, %v2599
    %v7697 = vmul.f32 %v7569, %v2600
    %v7698 = vmul.f32 %v7570, %v2601
    %v7699 = vmul.f32 %v7571, %v2602
    %v7700 = vmul.f32 %v7572, %v2603
    %v7701 = vmul.f32 %v7573, %v2604
    %v7702 = vmul.f32 %v7574, %v2605
    %v7703 = vmul.f32 %v7575, %v2606
    %v7704 = vmul.f32 %v7576, %v2607
    %v7705 = vmul.f32 %v7577, %v2608
    %v7706 = vmul.f32 %v7578, %v2609
    %v7707 = vmul.f32 %v7579, %v2610
    %v7708 = vmul.f32 %v7580, %v2611
    %v7709 = vmul.f32 %v7581, %v2612
    %v7710 = vmul.f32 %v7582, %v2613
    %v7711 = vmul.f32 %v7583, %v2614
    %v7712 = vmul.f32 %v7584, %v2615
    %v7713 = vmul.f32 %v7585, %v2616
    %v7714 = vmul.f32 %v7586, %v2617
    %v7715 = vmul.f32 %v7587, %v2618
    %v7716 = vmul.f32 %v7588, %v2619
    %v7717 = vmul.f32 %v7589, %v2620
    %v7718 = vmul.f32 %v7590, %v2621
    %v7719 = vmul.f32 %v7591, %v2622
    %v7720 = vmul.f32 %v7592, %v2623
    %v7721 = vmul.f32 %v7593, %v2624
    %v7722 = vmul.f32 %v7594, %v2625
    %v7723 = vmul.f32 %v7595, %v2626
    %v7724 = vmul.f32 %v7596, %v2627
    %v7725 = vmul.f32 %v7597, %v2628
    %v7726 = vmul.f32 %v7598, %v2629
    %v7727 = vmul.f32 %v7599, %v2630
    %v7728 = vmul.f32 %v7600, %v2631
    %v7729 = vmul.f32 %v7601, %v2632
    %v7730 = vmul.f32 %v7602, %v2633
    %v7731 = vmul.f32 %v7603, %v2634
    %v7732 = vmul.f32 %v7604, %v2635
    %v7733 = vmul.f32 %v7605, %v2636
    %v7734 = vmul.f32 %v7606, %v2637
    %v7735 = vmul.f32 %v7607, %v2638
    %v7736 = vmul.f32 %v7608, %v2639
    %v7737 = vmul.f32 %v7609, %v2640
    %v7738 = vmul.f32 %v7610, %v2641
    %v7739 = vmul.f32 %v7611, %v2642
    %v7740 = vmul.f32 %v7612, %v2643
    %v7741 = vmul.f32 %v7613, %v2644
    %v7742 = vmul.f32 %v7614, %v2645
    %v7743 = vmul.f32 %v7615, %v2646
    %v7744 = vmul.f32 %v7616, %v2647
    %v7745 = vmul.f32 %v7617, %v2648
    %v7746 = vmul.f32 %v7618, %v2649
    %v7747 = vmul.f32 %v7619, %v2650
    %v7748 = vmul.f32 %v7620, %v2651
    %v7749 = vmul.f32 %v7621, %v2652
    %v7750 = vmul.f32 %v7622, %v2653
    %v7751 = vmul.f32 %v7623, %v2654
    %v7752 = vmul.f32 %v7624, %v2655
    %v7753 = vmul.f32 %v7625, %v2656
    %v7754 = vmul.f32 %v7626, %v2657
    %v7755 = vmul.f32 %v7627, %v2658
    %v7756 = vmul.f32 %v7628, %v2659
    %v7757 = vmul.f32 %v7629, %v2660
    %v7758 = vmul.f32 %v7630, %v2661
    %v7759 = vmul.f32 %v7631, %v2662
    %v7760 = vmul.f32 %v7632, %v2663
    %v7761 = vmul.f32 %v7633, %v2664
    %v7762 = vmul.f32 %v7634, %v2665
    %v7763 = vmul.f32 %v7635, %v2666
    %v7764 = vmul.f32 %v7636, %v2667
    %v7765 = vmul.f32 %v7637, %v2668
    %v7766 = vmul.f32 %v7638, %v2669
    %v7767 = vmul.f32 %v7639, %v2670
    %v7768 = vmul.f32 %v7640, %v2671
    %v7769 = vmul.f32 %v7641, %v2672
    %v7770 = vmul.f32 %v7642, %v2673
    %v7771 = vmul.f32 %v7643, %v2674
    %v7772 = vmul.f32 %v7644, %v2675
    %v7773 = vmul.f32 %v7645, %v2676
    %v7774 = vmul.f32 %v7646, %v2677
    %v7775 = vmul.f32 %v7647, %v2678
    %v7776 = vmul.f32 %v7648, %v2679
    %v7777 = vmul.f32 %v7649, %v2680
    %v7778 = vmul.f32 %v7650, %v2681
    %v7779 = vmul.f32 %v7651, %v2682
    %v7780 = vmul.f32 %v7652, %v2683
    %v7781 = vmul.f32 %v7653, %v2684
    %v7782 = vmul.f32 %v7654, %v2685
    %v7783 = vmul.f32 %v7655, %v2686
    %v7784 = vmul.f32 %v7656, %v2687
    %v7785 = vmul.f32 %v7657, %v2688
    %v7786 = vmul.f32 %v7658, %v2689
    %v7787 = vmul.f32 %v7659, %v2690
    %v7788 = vmul.f32 %v7660, %v2691
    %v7789 = vmul.f32 %v7661, %v2692
    %v7790 = vmul.f32 %v7662, %v2693
    %v7791 = vmul.f32 %v7663, %v2694
    %v7792 = vmul.f32 %v7664, %v2695
    %v7793 = vmul.f32 %v7665, %v2696
    %v7794 = vmul.f32 %v7666, %v2697
    %v7795 = vmul.f32 %v7667, %v2698
    %v7796 = vmul.f32 %v7668, %v2699
    %v7797 = vmul.f32 %v7669, %v2700
    %v7798 = vmul.f32 %v7670, %v2701
    %v7799 = vmul.f32 %v7671, %v2702
    %v7800 = vmul.f32 %v7672, %v2703
    %v7801 = vmul.f32 %v7673, %v2704
    %v7802 = vmul.f32 %v7674, %v2705
    %v7803 = vmul.f32 %v7675, %v2706
    %v7804 = vmul.f32 %v7676, %v2707
    %v7805 = vmul.f32 %v7677, %v2708
    %v7806 = vmul.f32 %v7678, %v2709
    %v7807 = vmul.f32 %v7679, %v2710
    %v7808 = vmul.f32 %v7680, %v2711
    %v7809 = vmul.f32 %v7681, %v2712
    %v7810 = vmul.f32 %v7682, %v2713
    %v7811 = vmul.f32 %v7683, %v2714
    %v7812 = vmul.f32 %v7684, %v2715
    %v7813 = vmul.f32 %v7685, %v2716
    %v7814 = vmul.f32 %v7686, %v2717
    %v7815 = vmul.f32 %v7687, %v2718
    %v7816 = vmul.f32 %v7688, %v2719
    %v7817 = vmul.f32 %v7689, %v2720
    %v7818 = vmul.f32 %v7690, %v2721
    %v7819 = vmul.f32 %v7691, %v2722
    %v7820 = vmul.f32 %v7692, %v2723
    %v7821 = vmul.f32 %v7693, %v2724
    %vm7822 = vcmask 523264
    %v7823 = vsel %vm7822, %v7694, 0.0
    %v7824 = vsel %vm7822, %v7695, 0.0
    %v7825 = vadd.f32 %v7823, %v7824
    %v7826 = vrot.slane %v7825, 4
    %v7827 = vadd.f32 %v7825, %v7826
    %v7828 = vrot.slane %v7827, 2
    %v7829 = vadd.f32 %v7827, %v7828
    %v7830 = vrot.slane %v7829, 1
    %v7831 = vadd.f32 %v7829, %v7830
    %v7832 = vsel %vm7822, %v7696, 0.0
    %v7833 = vsel %vm7822, %v7697, 0.0
    %v7834 = vadd.f32 %v7832, %v7833
    %v7835 = vrot.slane %v7834, 4
    %v7836 = vadd.f32 %v7834, %v7835
    %v7837 = vrot.slane %v7836, 2
    %v7838 = vadd.f32 %v7836, %v7837
    %v7839 = vrot.slane %v7838, 1
    %v7840 = vadd.f32 %v7838, %v7839
    %v7841 = vsel %vm7822, %v7698, 0.0
    %v7842 = vsel %vm7822, %v7699, 0.0
    %v7843 = vadd.f32 %v7841, %v7842
    %v7844 = vrot.slane %v7843, 4
    %v7845 = vadd.f32 %v7843, %v7844
    %v7846 = vrot.slane %v7845, 2
    %v7847 = vadd.f32 %v7845, %v7846
    %v7848 = vrot.slane %v7847, 1
    %v7849 = vadd.f32 %v7847, %v7848
    %v7850 = vsel %vm7822, %v7700, 0.0
    %v7851 = vsel %vm7822, %v7701, 0.0
    %v7852 = vadd.f32 %v7850, %v7851
    %v7853 = vrot.slane %v7852, 4
    %v7854 = vadd.f32 %v7852, %v7853
    %v7855 = vrot.slane %v7854, 2
    %v7856 = vadd.f32 %v7854, %v7855
    %v7857 = vrot.slane %v7856, 1
    %v7858 = vadd.f32 %v7856, %v7857
    %v7859 = vsel %vm7822, %v7702, 0.0
    %v7860 = vsel %vm7822, %v7703, 0.0
    %v7861 = vadd.f32 %v7859, %v7860
    %v7862 = vrot.slane %v7861, 4
    %v7863 = vadd.f32 %v7861, %v7862
    %v7864 = vrot.slane %v7863, 2
    %v7865 = vadd.f32 %v7863, %v7864
    %v7866 = vrot.slane %v7865, 1
    %v7867 = vadd.f32 %v7865, %v7866
    %v7868 = vsel %vm7822, %v7704, 0.0
    %v7869 = vsel %vm7822, %v7705, 0.0
    %v7870 = vadd.f32 %v7868, %v7869
    %v7871 = vrot.slane %v7870, 4
    %v7872 = vadd.f32 %v7870, %v7871
    %v7873 = vrot.slane %v7872, 2
    %v7874 = vadd.f32 %v7872, %v7873
    %v7875 = vrot.slane %v7874, 1
    %v7876 = vadd.f32 %v7874, %v7875
    %v7877 = vsel %vm7822, %v7706, 0.0
    %v7878 = vsel %vm7822, %v7707, 0.0
    %v7879 = vadd.f32 %v7877, %v7878
    %v7880 = vrot.slane %v7879, 4
    %v7881 = vadd.f32 %v7879, %v7880
    %v7882 = vrot.slane %v7881, 2
    %v7883 = vadd.f32 %v7881, %v7882
    %v7884 = vrot.slane %v7883, 1
    %v7885 = vadd.f32 %v7883, %v7884
    %v7886 = vsel %vm7822, %v7708, 0.0
    %v7887 = vsel %vm7822, %v7709, 0.0
    %v7888 = vadd.f32 %v7886, %v7887
    %v7889 = vrot.slane %v7888, 4
    %v7890 = vadd.f32 %v7888, %v7889
    %v7891 = vrot.slane %v7890, 2
    %v7892 = vadd.f32 %v7890, %v7891
    %v7893 = vrot.slane %v7892, 1
    %v7894 = vadd.f32 %v7892, %v7893
    %v7895 = vsel %vm7822, %v7710, 0.0
    %v7896 = vsel %vm7822, %v7711, 0.0
    %v7897 = vadd.f32 %v7895, %v7896
    %v7898 = vrot.slane %v7897, 4
    %v7899 = vadd.f32 %v7897, %v7898
    %v7900 = vrot.slane %v7899, 2
    %v7901 = vadd.f32 %v7899, %v7900
    %v7902 = vrot.slane %v7901, 1
    %v7903 = vadd.f32 %v7901, %v7902
    %v7904 = vsel %vm7822, %v7712, 0.0
    %v7905 = vsel %vm7822, %v7713, 0.0
    %v7906 = vadd.f32 %v7904, %v7905
    %v7907 = vrot.slane %v7906, 4
    %v7908 = vadd.f32 %v7906, %v7907
    %v7909 = vrot.slane %v7908, 2
    %v7910 = vadd.f32 %v7908, %v7909
    %v7911 = vrot.slane %v7910, 1
    %v7912 = vadd.f32 %v7910, %v7911
    %v7913 = vsel %vm7822, %v7714, 0.0
    %v7914 = vsel %vm7822, %v7715, 0.0
    %v7915 = vadd.f32 %v7913, %v7914
    %v7916 = vrot.slane %v7915, 4
    %v7917 = vadd.f32 %v7915, %v7916
    %v7918 = vrot.slane %v7917, 2
    %v7919 = vadd.f32 %v7917, %v7918
    %v7920 = vrot.slane %v7919, 1
    %v7921 = vadd.f32 %v7919, %v7920
    %v7922 = vsel %vm7822, %v7716, 0.0
    %v7923 = vsel %vm7822, %v7717, 0.0
    %v7924 = vadd.f32 %v7922, %v7923
    %v7925 = vrot.slane %v7924, 4
    %v7926 = vadd.f32 %v7924, %v7925
    %v7927 = vrot.slane %v7926, 2
    %v7928 = vadd.f32 %v7926, %v7927
    %v7929 = vrot.slane %v7928, 1
    %v7930 = vadd.f32 %v7928, %v7929
    %v7931 = vsel %vm7822, %v7718, 0.0
    %v7932 = vsel %vm7822, %v7719, 0.0
    %v7933 = vadd.f32 %v7931, %v7932
    %v7934 = vrot.slane %v7933, 4
    %v7935 = vadd.f32 %v7933, %v7934
    %v7936 = vrot.slane %v7935, 2
    %v7937 = vadd.f32 %v7935, %v7936
    %v7938 = vrot.slane %v7937, 1
    %v7939 = vadd.f32 %v7937, %v7938
    %v7940 = vsel %vm7822, %v7720, 0.0
    %v7941 = vsel %vm7822, %v7721, 0.0
    %v7942 = vadd.f32 %v7940, %v7941
    %v7943 = vrot.slane %v7942, 4
    %v7944 = vadd.f32 %v7942, %v7943
    %v7945 = vrot.slane %v7944, 2
    %v7946 = vadd.f32 %v7944, %v7945
    %v7947 = vrot.slane %v7946, 1
    %v7948 = vadd.f32 %v7946, %v7947
    %v7949 = vsel %vm7822, %v7722, 0.0
    %v7950 = vsel %vm7822, %v7723, 0.0
    %v7951 = vadd.f32 %v7949, %v7950
    %v7952 = vrot.slane %v7951, 4
    %v7953 = vadd.f32 %v7951, %v7952
    %v7954 = vrot.slane %v7953, 2
    %v7955 = vadd.f32 %v7953, %v7954
    %v7956 = vrot.slane %v7955, 1
    %v7957 = vadd.f32 %v7955, %v7956
    %v7958 = vsel %vm7822, %v7724, 0.0
    %v7959 = vsel %vm7822, %v7725, 0.0
    %v7960 = vadd.f32 %v7958, %v7959
    %v7961 = vrot.slane %v7960, 4
    %v7962 = vadd.f32 %v7960, %v7961
    %v7963 = vrot.slane %v7962, 2
    %v7964 = vadd.f32 %v7962, %v7963
    %v7965 = vrot.slane %v7964, 1
    %v7966 = vadd.f32 %v7964, %v7965
    %v7967 = vsel %vm7822, %v7726, 0.0
    %v7968 = vsel %vm7822, %v7727, 0.0
    %v7969 = vadd.f32 %v7967, %v7968
    %v7970 = vrot.slane %v7969, 4
    %v7971 = vadd.f32 %v7969, %v7970
    %v7972 = vrot.slane %v7971, 2
    %v7973 = vadd.f32 %v7971, %v7972
    %v7974 = vrot.slane %v7973, 1
    %v7975 = vadd.f32 %v7973, %v7974
    %v7976 = vsel %vm7822, %v7728, 0.0
    %v7977 = vsel %vm7822, %v7729, 0.0
    %v7978 = vadd.f32 %v7976, %v7977
    %v7979 = vrot.slane %v7978, 4
    %v7980 = vadd.f32 %v7978, %v7979
    %v7981 = vrot.slane %v7980, 2
    %v7982 = vadd.f32 %v7980, %v7981
    %v7983 = vrot.slane %v7982, 1
    %v7984 = vadd.f32 %v7982, %v7983
    %v7985 = vsel %vm7822, %v7730, 0.0
    %v7986 = vsel %vm7822, %v7731, 0.0
    %v7987 = vadd.f32 %v7985, %v7986
    %v7988 = vrot.slane %v7987, 4
    %v7989 = vadd.f32 %v7987, %v7988
    %v7990 = vrot.slane %v7989, 2
    %v7991 = vadd.f32 %v7989, %v7990
    %v7992 = vrot.slane %v7991, 1
    %v7993 = vadd.f32 %v7991, %v7992
    %v7994 = vsel %vm7822, %v7732, 0.0
    %v7995 = vsel %vm7822, %v7733, 0.0
    %v7996 = vadd.f32 %v7994, %v7995
    %v7997 = vrot.slane %v7996, 4
    %v7998 = vadd.f32 %v7996, %v7997
    %v7999 = vrot.slane %v7998, 2
    %v8000 = vadd.f32 %v7998, %v7999
    %v8001 = vrot.slane %v8000, 1
    %v8002 = vadd.f32 %v8000, %v8001
    %v8003 = vsel %vm7822, %v7734, 0.0
    %v8004 = vsel %vm7822, %v7735, 0.0
    %v8005 = vadd.f32 %v8003, %v8004
    %v8006 = vrot.slane %v8005, 4
    %v8007 = vadd.f32 %v8005, %v8006
    %v8008 = vrot.slane %v8007, 2
    %v8009 = vadd.f32 %v8007, %v8008
    %v8010 = vrot.slane %v8009, 1
    %v8011 = vadd.f32 %v8009, %v8010
    %v8012 = vsel %vm7822, %v7736, 0.0
    %v8013 = vsel %vm7822, %v7737, 0.0
    %v8014 = vadd.f32 %v8012, %v8013
    %v8015 = vrot.slane %v8014, 4
    %v8016 = vadd.f32 %v8014, %v8015
    %v8017 = vrot.slane %v8016, 2
    %v8018 = vadd.f32 %v8016, %v8017
    %v8019 = vrot.slane %v8018, 1
    %v8020 = vadd.f32 %v8018, %v8019
    %v8021 = vsel %vm7822, %v7738, 0.0
    %v8022 = vsel %vm7822, %v7739, 0.0
    %v8023 = vadd.f32 %v8021, %v8022
    %v8024 = vrot.slane %v8023, 4
    %v8025 = vadd.f32 %v8023, %v8024
    %v8026 = vrot.slane %v8025, 2
    %v8027 = vadd.f32 %v8025, %v8026
    %v8028 = vrot.slane %v8027, 1
    %v8029 = vadd.f32 %v8027, %v8028
    %v8030 = vsel %vm7822, %v7740, 0.0
    %v8031 = vsel %vm7822, %v7741, 0.0
    %v8032 = vadd.f32 %v8030, %v8031
    %v8033 = vrot.slane %v8032, 4
    %v8034 = vadd.f32 %v8032, %v8033
    %v8035 = vrot.slane %v8034, 2
    %v8036 = vadd.f32 %v8034, %v8035
    %v8037 = vrot.slane %v8036, 1
    %v8038 = vadd.f32 %v8036, %v8037
    %v8039 = vsel %vm7822, %v7742, 0.0
    %v8040 = vsel %vm7822, %v7743, 0.0
    %v8041 = vadd.f32 %v8039, %v8040
    %v8042 = vrot.slane %v8041, 4
    %v8043 = vadd.f32 %v8041, %v8042
    %v8044 = vrot.slane %v8043, 2
    %v8045 = vadd.f32 %v8043, %v8044
    %v8046 = vrot.slane %v8045, 1
    %v8047 = vadd.f32 %v8045, %v8046
    %v8048 = vsel %vm7822, %v7744, 0.0
    %v8049 = vsel %vm7822, %v7745, 0.0
    %v8050 = vadd.f32 %v8048, %v8049
    %v8051 = vrot.slane %v8050, 4
    %v8052 = vadd.f32 %v8050, %v8051
    %v8053 = vrot.slane %v8052, 2
    %v8054 = vadd.f32 %v8052, %v8053
    %v8055 = vrot.slane %v8054, 1
    %v8056 = vadd.f32 %v8054, %v8055
    %v8057 = vsel %vm7822, %v7746, 0.0
    %v8058 = vsel %vm7822, %v7747, 0.0
    %v8059 = vadd.f32 %v8057, %v8058
    %v8060 = vrot.slane %v8059, 4
    %v8061 = vadd.f32 %v8059, %v8060
    %v8062 = vrot.slane %v8061, 2
    %v8063 = vadd.f32 %v8061, %v8062
    %v8064 = vrot.slane %v8063, 1
    %v8065 = vadd.f32 %v8063, %v8064
    %v8066 = vsel %vm7822, %v7748, 0.0
    %v8067 = vsel %vm7822, %v7749, 0.0
    %v8068 = vadd.f32 %v8066, %v8067
    %v8069 = vrot.slane %v8068, 4
    %v8070 = vadd.f32 %v8068, %v8069
    %v8071 = vrot.slane %v8070, 2
    %v8072 = vadd.f32 %v8070, %v8071
    %v8073 = vrot.slane %v8072, 1
    %v8074 = vadd.f32 %v8072, %v8073
    %v8075 = vsel %vm7822, %v7750, 0.0
    %v8076 = vsel %vm7822, %v7751, 0.0
    %v8077 = vadd.f32 %v8075, %v8076
    %v8078 = vrot.slane %v8077, 4
    %v8079 = vadd.f32 %v8077, %v8078
    %v8080 = vrot.slane %v8079, 2
    %v8081 = vadd.f32 %v8079, %v8080
    %v8082 = vrot.slane %v8081, 1
    %v8083 = vadd.f32 %v8081, %v8082
    %v8084 = vsel %vm7822, %v7752, 0.0
    %v8085 = vsel %vm7822, %v7753, 0.0
    %v8086 = vadd.f32 %v8084, %v8085
    %v8087 = vrot.slane %v8086, 4
    %v8088 = vadd.f32 %v8086, %v8087
    %v8089 = vrot.slane %v8088, 2
    %v8090 = vadd.f32 %v8088, %v8089
    %v8091 = vrot.slane %v8090, 1
    %v8092 = vadd.f32 %v8090, %v8091
    %v8093 = vsel %vm7822, %v7754, 0.0
    %v8094 = vsel %vm7822, %v7755, 0.0
    %v8095 = vadd.f32 %v8093, %v8094
    %v8096 = vrot.slane %v8095, 4
    %v8097 = vadd.f32 %v8095, %v8096
    %v8098 = vrot.slane %v8097, 2
    %v8099 = vadd.f32 %v8097, %v8098
    %v8100 = vrot.slane %v8099, 1
    %v8101 = vadd.f32 %v8099, %v8100
    %v8102 = vsel %vm7822, %v7756, 0.0
    %v8103 = vsel %vm7822, %v7757, 0.0
    %v8104 = vadd.f32 %v8102, %v8103
    %v8105 = vrot.slane %v8104, 4
    %v8106 = vadd.f32 %v8104, %v8105
    %v8107 = vrot.slane %v8106, 2
    %v8108 = vadd.f32 %v8106, %v8107
    %v8109 = vrot.slane %v8108, 1
    %v8110 = vadd.f32 %v8108, %v8109
    %v8111 = vsel %vm7822, %v7758, 0.0
    %v8112 = vsel %vm7822, %v7759, 0.0
    %v8113 = vadd.f32 %v8111, %v8112
    %v8114 = vrot.slane %v8113, 4
    %v8115 = vadd.f32 %v8113, %v8114
    %v8116 = vrot.slane %v8115, 2
    %v8117 = vadd.f32 %v8115, %v8116
    %v8118 = vrot.slane %v8117, 1
    %v8119 = vadd.f32 %v8117, %v8118
    %v8120 = vsel %vm7822, %v7760, 0.0
    %v8121 = vsel %vm7822, %v7761, 0.0
    %v8122 = vadd.f32 %v8120, %v8121
    %v8123 = vrot.slane %v8122, 4
    %v8124 = vadd.f32 %v8122, %v8123
    %v8125 = vrot.slane %v8124, 2
    %v8126 = vadd.f32 %v8124, %v8125
    %v8127 = vrot.slane %v8126, 1
    %v8128 = vadd.f32 %v8126, %v8127
    %v8129 = vsel %vm7822, %v7762, 0.0
    %v8130 = vsel %vm7822, %v7763, 0.0
    %v8131 = vadd.f32 %v8129, %v8130
    %v8132 = vrot.slane %v8131, 4
    %v8133 = vadd.f32 %v8131, %v8132
    %v8134 = vrot.slane %v8133, 2
    %v8135 = vadd.f32 %v8133, %v8134
    %v8136 = vrot.slane %v8135, 1
    %v8137 = vadd.f32 %v8135, %v8136
    %v8138 = vsel %vm7822, %v7764, 0.0
    %v8139 = vsel %vm7822, %v7765, 0.0
    %v8140 = vadd.f32 %v8138, %v8139
    %v8141 = vrot.slane %v8140, 4
    %v8142 = vadd.f32 %v8140, %v8141
    %v8143 = vrot.slane %v8142, 2
    %v8144 = vadd.f32 %v8142, %v8143
    %v8145 = vrot.slane %v8144, 1
    %v8146 = vadd.f32 %v8144, %v8145
    %v8147 = vsel %vm7822, %v7766, 0.0
    %v8148 = vsel %vm7822, %v7767, 0.0
    %v8149 = vadd.f32 %v8147, %v8148
    %v8150 = vrot.slane %v8149, 4
    %v8151 = vadd.f32 %v8149, %v8150
    %v8152 = vrot.slane %v8151, 2
    %v8153 = vadd.f32 %v8151, %v8152
    %v8154 = vrot.slane %v8153, 1
    %v8155 = vadd.f32 %v8153, %v8154
    %v8156 = vsel %vm7822, %v7768, 0.0
    %v8157 = vsel %vm7822, %v7769, 0.0
    %v8158 = vadd.f32 %v8156, %v8157
    %v8159 = vrot.slane %v8158, 4
    %v8160 = vadd.f32 %v8158, %v8159
    %v8161 = vrot.slane %v8160, 2
    %v8162 = vadd.f32 %v8160, %v8161
    %v8163 = vrot.slane %v8162, 1
    %v8164 = vadd.f32 %v8162, %v8163
    %v8165 = vsel %vm7822, %v7770, 0.0
    %v8166 = vsel %vm7822, %v7771, 0.0
    %v8167 = vadd.f32 %v8165, %v8166
    %v8168 = vrot.slane %v8167, 4
    %v8169 = vadd.f32 %v8167, %v8168
    %v8170 = vrot.slane %v8169, 2
    %v8171 = vadd.f32 %v8169, %v8170
    %v8172 = vrot.slane %v8171, 1
    %v8173 = vadd.f32 %v8171, %v8172
    %v8174 = vsel %vm7822, %v7772, 0.0
    %v8175 = vsel %vm7822, %v7773, 0.0
    %v8176 = vadd.f32 %v8174, %v8175
    %v8177 = vrot.slane %v8176, 4
    %v8178 = vadd.f32 %v8176, %v8177
    %v8179 = vrot.slane %v8178, 2
    %v8180 = vadd.f32 %v8178, %v8179
    %v8181 = vrot.slane %v8180, 1
    %v8182 = vadd.f32 %v8180, %v8181
    %v8183 = vsel %vm7822, %v7774, 0.0
    %v8184 = vsel %vm7822, %v7775, 0.0
    %v8185 = vadd.f32 %v8183, %v8184
    %v8186 = vrot.slane %v8185, 4
    %v8187 = vadd.f32 %v8185, %v8186
    %v8188 = vrot.slane %v8187, 2
    %v8189 = vadd.f32 %v8187, %v8188
    %v8190 = vrot.slane %v8189, 1
    %v8191 = vadd.f32 %v8189, %v8190
    %v8192 = vsel %vm7822, %v7776, 0.0
    %v8193 = vsel %vm7822, %v7777, 0.0
    %v8194 = vadd.f32 %v8192, %v8193
    %v8195 = vrot.slane %v8194, 4
    %v8196 = vadd.f32 %v8194, %v8195
    %v8197 = vrot.slane %v8196, 2
    %v8198 = vadd.f32 %v8196, %v8197
    %v8199 = vrot.slane %v8198, 1
    %v8200 = vadd.f32 %v8198, %v8199
    %v8201 = vsel %vm7822, %v7778, 0.0
    %v8202 = vsel %vm7822, %v7779, 0.0
    %v8203 = vadd.f32 %v8201, %v8202
    %v8204 = vrot.slane %v8203, 4
    %v8205 = vadd.f32 %v8203, %v8204
    %v8206 = vrot.slane %v8205, 2
    %v8207 = vadd.f32 %v8205, %v8206
    %v8208 = vrot.slane %v8207, 1
    %v8209 = vadd.f32 %v8207, %v8208
    %v8210 = vsel %vm7822, %v7780, 0.0
    %v8211 = vsel %vm7822, %v7781, 0.0
    %v8212 = vadd.f32 %v8210, %v8211
    %v8213 = vrot.slane %v8212, 4
    %v8214 = vadd.f32 %v8212, %v8213
    %v8215 = vrot.slane %v8214, 2
    %v8216 = vadd.f32 %v8214, %v8215
    %v8217 = vrot.slane %v8216, 1
    %v8218 = vadd.f32 %v8216, %v8217
    %v8219 = vsel %vm7822, %v7782, 0.0
    %v8220 = vsel %vm7822, %v7783, 0.0
    %v8221 = vadd.f32 %v8219, %v8220
    %v8222 = vrot.slane %v8221, 4
    %v8223 = vadd.f32 %v8221, %v8222
    %v8224 = vrot.slane %v8223, 2
    %v8225 = vadd.f32 %v8223, %v8224
    %v8226 = vrot.slane %v8225, 1
    %v8227 = vadd.f32 %v8225, %v8226
    %v8228 = vsel %vm7822, %v7784, 0.0
    %v8229 = vsel %vm7822, %v7785, 0.0
    %v8230 = vadd.f32 %v8228, %v8229
    %v8231 = vrot.slane %v8230, 4
    %v8232 = vadd.f32 %v8230, %v8231
    %v8233 = vrot.slane %v8232, 2
    %v8234 = vadd.f32 %v8232, %v8233
    %v8235 = vrot.slane %v8234, 1
    %v8236 = vadd.f32 %v8234, %v8235
    %v8237 = vsel %vm7822, %v7786, 0.0
    %v8238 = vsel %vm7822, %v7787, 0.0
    %v8239 = vadd.f32 %v8237, %v8238
    %v8240 = vrot.slane %v8239, 4
    %v8241 = vadd.f32 %v8239, %v8240
    %v8242 = vrot.slane %v8241, 2
    %v8243 = vadd.f32 %v8241, %v8242
    %v8244 = vrot.slane %v8243, 1
    %v8245 = vadd.f32 %v8243, %v8244
    %v8246 = vsel %vm7822, %v7788, 0.0
    %v8247 = vsel %vm7822, %v7789, 0.0
    %v8248 = vadd.f32 %v8246, %v8247
    %v8249 = vrot.slane %v8248, 4
    %v8250 = vadd.f32 %v8248, %v8249
    %v8251 = vrot.slane %v8250, 2
    %v8252 = vadd.f32 %v8250, %v8251
    %v8253 = vrot.slane %v8252, 1
    %v8254 = vadd.f32 %v8252, %v8253
    %v8255 = vsel %vm7822, %v7790, 0.0
    %v8256 = vsel %vm7822, %v7791, 0.0
    %v8257 = vadd.f32 %v8255, %v8256
    %v8258 = vrot.slane %v8257, 4
    %v8259 = vadd.f32 %v8257, %v8258
    %v8260 = vrot.slane %v8259, 2
    %v8261 = vadd.f32 %v8259, %v8260
    %v8262 = vrot.slane %v8261, 1
    %v8263 = vadd.f32 %v8261, %v8262
    %v8264 = vsel %vm7822, %v7792, 0.0
    %v8265 = vsel %vm7822, %v7793, 0.0
    %v8266 = vadd.f32 %v8264, %v8265
    %v8267 = vrot.slane %v8266, 4
    %v8268 = vadd.f32 %v8266, %v8267
    %v8269 = vrot.slane %v8268, 2
    %v8270 = vadd.f32 %v8268, %v8269
    %v8271 = vrot.slane %v8270, 1
    %v8272 = vadd.f32 %v8270, %v8271
    %v8273 = vsel %vm7822, %v7794, 0.0
    %v8274 = vsel %vm7822, %v7795, 0.0
    %v8275 = vadd.f32 %v8273, %v8274
    %v8276 = vrot.slane %v8275, 4
    %v8277 = vadd.f32 %v8275, %v8276
    %v8278 = vrot.slane %v8277, 2
    %v8279 = vadd.f32 %v8277, %v8278
    %v8280 = vrot.slane %v8279, 1
    %v8281 = vadd.f32 %v8279, %v8280
    %v8282 = vsel %vm7822, %v7796, 0.0
    %v8283 = vsel %vm7822, %v7797, 0.0
    %v8284 = vadd.f32 %v8282, %v8283
    %v8285 = vrot.slane %v8284, 4
    %v8286 = vadd.f32 %v8284, %v8285
    %v8287 = vrot.slane %v8286, 2
    %v8288 = vadd.f32 %v8286, %v8287
    %v8289 = vrot.slane %v8288, 1
    %v8290 = vadd.f32 %v8288, %v8289
    %v8291 = vsel %vm7822, %v7798, 0.0
    %v8292 = vsel %vm7822, %v7799, 0.0
    %v8293 = vadd.f32 %v8291, %v8292
    %v8294 = vrot.slane %v8293, 4
    %v8295 = vadd.f32 %v8293, %v8294
    %v8296 = vrot.slane %v8295, 2
    %v8297 = vadd.f32 %v8295, %v8296
    %v8298 = vrot.slane %v8297, 1
    %v8299 = vadd.f32 %v8297, %v8298
    %v8300 = vsel %vm7822, %v7800, 0.0
    %v8301 = vsel %vm7822, %v7801, 0.0
    %v8302 = vadd.f32 %v8300, %v8301
    %v8303 = vrot.slane %v8302, 4
    %v8304 = vadd.f32 %v8302, %v8303
    %v8305 = vrot.slane %v8304, 2
    %v8306 = vadd.f32 %v8304, %v8305
    %v8307 = vrot.slane %v8306, 1
    %v8308 = vadd.f32 %v8306, %v8307
    %v8309 = vsel %vm7822, %v7802, 0.0
    %v8310 = vsel %vm7822, %v7803, 0.0
    %v8311 = vadd.f32 %v8309, %v8310
    %v8312 = vrot.slane %v8311, 4
    %v8313 = vadd.f32 %v8311, %v8312
    %v8314 = vrot.slane %v8313, 2
    %v8315 = vadd.f32 %v8313, %v8314
    %v8316 = vrot.slane %v8315, 1
    %v8317 = vadd.f32 %v8315, %v8316
    %v8318 = vsel %vm7822, %v7804, 0.0
    %v8319 = vsel %vm7822, %v7805, 0.0
    %v8320 = vadd.f32 %v8318, %v8319
    %v8321 = vrot.slane %v8320, 4
    %v8322 = vadd.f32 %v8320, %v8321
    %v8323 = vrot.slane %v8322, 2
    %v8324 = vadd.f32 %v8322, %v8323
    %v8325 = vrot.slane %v8324, 1
    %v8326 = vadd.f32 %v8324, %v8325
    %v8327 = vsel %vm7822, %v7806, 0.0
    %v8328 = vsel %vm7822, %v7807, 0.0
    %v8329 = vadd.f32 %v8327, %v8328
    %v8330 = vrot.slane %v8329, 4
    %v8331 = vadd.f32 %v8329, %v8330
    %v8332 = vrot.slane %v8331, 2
    %v8333 = vadd.f32 %v8331, %v8332
    %v8334 = vrot.slane %v8333, 1
    %v8335 = vadd.f32 %v8333, %v8334
    %v8336 = vsel %vm7822, %v7808, 0.0
    %v8337 = vsel %vm7822, %v7809, 0.0
    %v8338 = vadd.f32 %v8336, %v8337
    %v8339 = vrot.slane %v8338, 4
    %v8340 = vadd.f32 %v8338, %v8339
    %v8341 = vrot.slane %v8340, 2
    %v8342 = vadd.f32 %v8340, %v8341
    %v8343 = vrot.slane %v8342, 1
    %v8344 = vadd.f32 %v8342, %v8343
    %v8345 = vsel %vm7822, %v7810, 0.0
    %v8346 = vsel %vm7822, %v7811, 0.0
    %v8347 = vadd.f32 %v8345, %v8346
    %v8348 = vrot.slane %v8347, 4
    %v8349 = vadd.f32 %v8347, %v8348
    %v8350 = vrot.slane %v8349, 2
    %v8351 = vadd.f32 %v8349, %v8350
    %v8352 = vrot.slane %v8351, 1
    %v8353 = vadd.f32 %v8351, %v8352
    %v8354 = vsel %vm7822, %v7812, 0.0
    %v8355 = vsel %vm7822, %v7813, 0.0
    %v8356 = vadd.f32 %v8354, %v8355
    %v8357 = vrot.slane %v8356, 4
    %v8358 = vadd.f32 %v8356, %v8357
    %v8359 = vrot.slane %v8358, 2
    %v8360 = vadd.f32 %v8358, %v8359
    %v8361 = vrot.slane %v8360, 1
    %v8362 = vadd.f32 %v8360, %v8361
    %v8363 = vsel %vm7822, %v7814, 0.0
    %v8364 = vsel %vm7822, %v7815, 0.0
    %v8365 = vadd.f32 %v8363, %v8364
    %v8366 = vrot.slane %v8365, 4
    %v8367 = vadd.f32 %v8365, %v8366
    %v8368 = vrot.slane %v8367, 2
    %v8369 = vadd.f32 %v8367, %v8368
    %v8370 = vrot.slane %v8369, 1
    %v8371 = vadd.f32 %v8369, %v8370
    %v8372 = vsel %vm7822, %v7816, 0.0
    %v8373 = vsel %vm7822, %v7817, 0.0
    %v8374 = vadd.f32 %v8372, %v8373
    %v8375 = vrot.slane %v8374, 4
    %v8376 = vadd.f32 %v8374, %v8375
    %v8377 = vrot.slane %v8376, 2
    %v8378 = vadd.f32 %v8376, %v8377
    %v8379 = vrot.slane %v8378, 1
    %v8380 = vadd.f32 %v8378, %v8379
    %v8381 = vsel %vm7822, %v7818, 0.0
    %v8382 = vsel %vm7822, %v7819, 0.0
    %v8383 = vadd.f32 %v8381, %v8382
    %v8384 = vrot.slane %v8383, 4
    %v8385 = vadd.f32 %v8383, %v8384
    %v8386 = vrot.slane %v8385, 2
    %v8387 = vadd.f32 %v8385, %v8386
    %v8388 = vrot.slane %v8387, 1
    %v8389 = vadd.f32 %v8387, %v8388
    %v8390 = vsel %vm7822, %v7820, 0.0
    %v8391 = vsel %vm7822, %v7821, 0.0
    %v8392 = vadd.f32 %v8390, %v8391
    %v8393 = vrot.slane %v8392, 4
    %v8394 = vadd.f32 %v8392, %v8393
    %v8395 = vrot.slane %v8394, 2
    %v8396 = vadd.f32 %v8394, %v8395
    %v8397 = vrot.slane %v8396, 1
    %v8398 = vadd.f32 %v8396, %v8397
    %v8399 = vpack.c.bf16 %v7831, %v7831
    %v8400 = vpack.c.bf16 %v7840, %v7840
    %v8401 = vpack.c.bf16 %v7849, %v7849
    %v8402 = vpack.c.bf16 %v7858, %v7858
    %v8403 = vpack.c.bf16 %v7867, %v7867
    %v8404 = vpack.c.bf16 %v7876, %v7876
    %v8405 = vpack.c.bf16 %v7885, %v7885
    %v8406 = vpack.c.bf16 %v7894, %v7894
    %v8407 = vpack.c.bf16 %v7903, %v7903
    %v8408 = vpack.c.bf16 %v7912, %v7912
    %v8409 = vpack.c.bf16 %v7921, %v7921
    %v8410 = vpack.c.bf16 %v7930, %v7930
    %v8411 = vpack.c.bf16 %v7939, %v7939
    %v8412 = vpack.c.bf16 %v7948, %v7948
    %v8413 = vpack.c.bf16 %v7957, %v7957
    %v8414 = vpack.c.bf16 %v7966, %v7966
    %v8415 = vpack.c.bf16 %v7975, %v7975
    %v8416 = vpack.c.bf16 %v7984, %v7984
    %v8417 = vpack.c.bf16 %v7993, %v7993
    %v8418 = vpack.c.bf16 %v8002, %v8002
    %v8419 = vpack.c.bf16 %v8011, %v8011
    %v8420 = vpack.c.bf16 %v8020, %v8020
    %v8421 = vpack.c.bf16 %v8029, %v8029
    %v8422 = vpack.c.bf16 %v8038, %v8038
    %v8423 = vpack.c.bf16 %v8047, %v8047
    %v8424 = vpack.c.bf16 %v8056, %v8056
    %v8425 = vpack.c.bf16 %v8065, %v8065
    %v8426 = vpack.c.bf16 %v8074, %v8074
    %v8427 = vpack.c.bf16 %v8083, %v8083
    %v8428 = vpack.c.bf16 %v8092, %v8092
    %v8429 = vpack.c.bf16 %v8101, %v8101
    %v8430 = vpack.c.bf16 %v8110, %v8110
    %v8431 = vpack.c.bf16 %v8119, %v8119
    %v8432 = vpack.c.bf16 %v8128, %v8128
    %v8433 = vpack.c.bf16 %v8137, %v8137
    %v8434 = vpack.c.bf16 %v8146, %v8146
    %v8435 = vpack.c.bf16 %v8155, %v8155
    %v8436 = vpack.c.bf16 %v8164, %v8164
    %v8437 = vpack.c.bf16 %v8173, %v8173
    %v8438 = vpack.c.bf16 %v8182, %v8182
    %v8439 = vpack.c.bf16 %v8191, %v8191
    %v8440 = vpack.c.bf16 %v8200, %v8200
    %v8441 = vpack.c.bf16 %v8209, %v8209
    %v8442 = vpack.c.bf16 %v8218, %v8218
    %v8443 = vpack.c.bf16 %v8227, %v8227
    %v8444 = vpack.c.bf16 %v8236, %v8236
    %v8445 = vpack.c.bf16 %v8245, %v8245
    %v8446 = vpack.c.bf16 %v8254, %v8254
    %v8447 = vpack.c.bf16 %v8263, %v8263
    %v8448 = vpack.c.bf16 %v8272, %v8272
    %v8449 = vpack.c.bf16 %v8281, %v8281
    %v8450 = vpack.c.bf16 %v8290, %v8290
    %v8451 = vpack.c.bf16 %v8299, %v8299
    %v8452 = vpack.c.bf16 %v8308, %v8308
    %v8453 = vpack.c.bf16 %v8317, %v8317
    %v8454 = vpack.c.bf16 %v8326, %v8326
    %v8455 = vpack.c.bf16 %v8335, %v8335
    %v8456 = vpack.c.bf16 %v8344, %v8344
    %v8457 = vpack.c.bf16 %v8353, %v8353
    %v8458 = vpack.c.bf16 %v8362, %v8362
    %v8459 = vpack.c.bf16 %v8371, %v8371
    %v8460 = vpack.c.bf16 %v8380, %v8380
    %v8461 = vpack.c.bf16 %v8389, %v8389
    %v8462 = vpack.c.bf16 %v8398, %v8398
    %v8463 = vld [vmem:[%s5] sm:$0xf]
    %v8464 = vld [vmem:[%s5 + $0x4] sm:$0xf]
    %v8465 = vld [vmem:[%s5 + $0x8] sm:$0xf]
    %v8466 = vld [vmem:[%s5 + $0xc] sm:$0xf]
    %v8467 = vld [vmem:[%s5 + $0x10] sm:$0xf]
    %v8468 = vld [vmem:[%s5 + $0x14] sm:$0xf]
    %v8469 = vld [vmem:[%s5 + $0x18] sm:$0xf]
    %v8470 = vld [vmem:[%s5 + $0x1c] sm:$0xf]
    %v8471 = vld [vmem:[%s6] sm:$0x1]
    %v8473 = vlaneseq
    %v8474 = vshrl.u32 %v8473, 7
    %v8475 = vsub.s32 0, %v8474
    %v8476 = vrot.slane %v8471, %v8475
    %v8542 = vunpack.c.l.b16 %v8399
    %v8543 = vunpack.c.l.b16 %v8400
    %v8544 = vunpack.c.l.b16 %v8401
    %v8545 = vunpack.c.l.b16 %v8402
    %v8546 = vunpack.c.l.b16 %v8403
    %v8547 = vunpack.c.l.b16 %v8404
    %v8548 = vunpack.c.l.b16 %v8405
    %v8549 = vunpack.c.l.b16 %v8406
    %v8550 = vunpack.c.l.b16 %v8407
    %v8551 = vunpack.c.l.b16 %v8408
    %v8552 = vunpack.c.l.b16 %v8409
    %v8553 = vunpack.c.l.b16 %v8410
    %v8554 = vunpack.c.l.b16 %v8411
    %v8555 = vunpack.c.l.b16 %v8412
    %v8556 = vunpack.c.l.b16 %v8413
    %v8557 = vunpack.c.l.b16 %v8414
    %v8558 = vunpack.c.l.b16 %v8415
    %v8559 = vunpack.c.l.b16 %v8416
    %v8560 = vunpack.c.l.b16 %v8417
    %v8561 = vunpack.c.l.b16 %v8418
    %v8562 = vunpack.c.l.b16 %v8419
    %v8563 = vunpack.c.l.b16 %v8420
    %v8564 = vunpack.c.l.b16 %v8421
    %v8565 = vunpack.c.l.b16 %v8422
    %v8566 = vunpack.c.l.b16 %v8423
    %v8567 = vunpack.c.l.b16 %v8424
    %v8568 = vunpack.c.l.b16 %v8425
    %v8569 = vunpack.c.l.b16 %v8426
    %v8570 = vunpack.c.l.b16 %v8427
    %v8571 = vunpack.c.l.b16 %v8428
    %v8572 = vunpack.c.l.b16 %v8429
    %v8573 = vunpack.c.l.b16 %v8430
    %v8574 = vunpack.c.l.b16 %v8431
    %v8575 = vunpack.c.l.b16 %v8432
    %v8576 = vunpack.c.l.b16 %v8433
    %v8577 = vunpack.c.l.b16 %v8434
    %v8578 = vunpack.c.l.b16 %v8435
    %v8579 = vunpack.c.l.b16 %v8436
    %v8580 = vunpack.c.l.b16 %v8437
    %v8581 = vunpack.c.l.b16 %v8438
    %v8582 = vunpack.c.l.b16 %v8439
    %v8583 = vunpack.c.l.b16 %v8440
    %v8584 = vunpack.c.l.b16 %v8441
    %v8585 = vunpack.c.l.b16 %v8442
    %v8586 = vunpack.c.l.b16 %v8443
    %v8587 = vunpack.c.l.b16 %v8444
    %v8588 = vunpack.c.l.b16 %v8445
    %v8589 = vunpack.c.l.b16 %v8446
    %v8590 = vunpack.c.l.b16 %v8447
    %v8591 = vunpack.c.l.b16 %v8448
    %v8592 = vunpack.c.l.b16 %v8449
    %v8593 = vunpack.c.l.b16 %v8450
    %v8594 = vunpack.c.l.b16 %v8451
    %v8595 = vunpack.c.l.b16 %v8452
    %v8596 = vunpack.c.l.b16 %v8453
    %v8597 = vunpack.c.l.b16 %v8454
    %v8598 = vunpack.c.l.b16 %v8455
    %v8599 = vunpack.c.l.b16 %v8456
    %v8600 = vunpack.c.l.b16 %v8457
    %v8601 = vunpack.c.l.b16 %v8458
    %v8602 = vunpack.c.l.b16 %v8459
    %v8603 = vunpack.c.l.b16 %v8460
    %v8604 = vunpack.c.l.b16 %v8461
    %v8605 = vunpack.c.l.b16 %v8462
    %vm8606 = vcmask 1041409
    %v8607 = vsel %vm8606, %v8543, %v8542
    %vm8608 = vcmask 1042434
    %v8609 = vsel %vm8608, %v8544, %v8607
    %vm8610 = vcmask 1043459
    %v8611 = vsel %vm8610, %v8545, %v8609
    %vm8612 = vcmask 1044484
    %v8613 = vsel %vm8612, %v8546, %v8611
    %vm8614 = vcmask 1045509
    %v8615 = vsel %vm8614, %v8547, %v8613
    %vm8616 = vcmask 1046534
    %v8617 = vsel %vm8616, %v8548, %v8615
    %vm8618 = vcmask 1047559
    %v8619 = vsel %vm8618, %v8549, %v8617
    %v8620 = vsel %vm8606, %v8551, %v8550
    %v8621 = vsel %vm8608, %v8552, %v8620
    %v8622 = vsel %vm8610, %v8553, %v8621
    %v8623 = vsel %vm8612, %v8554, %v8622
    %v8624 = vsel %vm8614, %v8555, %v8623
    %v8625 = vsel %vm8616, %v8556, %v8624
    %v8626 = vsel %vm8618, %v8557, %v8625
    %v8627 = vsel %vm8606, %v8559, %v8558
    %v8628 = vsel %vm8608, %v8560, %v8627
    %v8629 = vsel %vm8610, %v8561, %v8628
    %v8630 = vsel %vm8612, %v8562, %v8629
    %v8631 = vsel %vm8614, %v8563, %v8630
    %v8632 = vsel %vm8616, %v8564, %v8631
    %v8633 = vsel %vm8618, %v8565, %v8632
    %v8634 = vsel %vm8606, %v8567, %v8566
    %v8635 = vsel %vm8608, %v8568, %v8634
    %v8636 = vsel %vm8610, %v8569, %v8635
    %v8637 = vsel %vm8612, %v8570, %v8636
    %v8638 = vsel %vm8614, %v8571, %v8637
    %v8639 = vsel %vm8616, %v8572, %v8638
    %v8640 = vsel %vm8618, %v8573, %v8639
    %v8641 = vsel %vm8606, %v8575, %v8574
    %v8642 = vsel %vm8608, %v8576, %v8641
    %v8643 = vsel %vm8610, %v8577, %v8642
    %v8644 = vsel %vm8612, %v8578, %v8643
    %v8645 = vsel %vm8614, %v8579, %v8644
    %v8646 = vsel %vm8616, %v8580, %v8645
    %v8647 = vsel %vm8618, %v8581, %v8646
    %v8648 = vsel %vm8606, %v8583, %v8582
    %v8649 = vsel %vm8608, %v8584, %v8648
    %v8650 = vsel %vm8610, %v8585, %v8649
    %v8651 = vsel %vm8612, %v8586, %v8650
    %v8652 = vsel %vm8614, %v8587, %v8651
    %v8653 = vsel %vm8616, %v8588, %v8652
    %v8654 = vsel %vm8618, %v8589, %v8653
    %v8655 = vsel %vm8606, %v8591, %v8590
    %v8656 = vsel %vm8608, %v8592, %v8655
    %v8657 = vsel %vm8610, %v8593, %v8656
    %v8658 = vsel %vm8612, %v8594, %v8657
    %v8659 = vsel %vm8614, %v8595, %v8658
    %v8660 = vsel %vm8616, %v8596, %v8659
    %v8661 = vsel %vm8618, %v8597, %v8660
    %v8662 = vsel %vm8606, %v8599, %v8598
    %v8663 = vsel %vm8608, %v8600, %v8662
    %v8664 = vsel %vm8610, %v8601, %v8663
    %v8665 = vsel %vm8612, %v8602, %v8664
    %v8666 = vsel %vm8614, %v8603, %v8665
    %v8667 = vsel %vm8616, %v8604, %v8666
    %v8668 = vsel %vm8618, %v8605, %v8667
    %v8669 = vpack.c.b16 %v8626, %v8619
    %v8670 = vpack.c.b16 %v8640, %v8633
    %v8671 = vpack.c.b16 %v8654, %v8647
    %v8672 = vpack.c.b16 %v8668, %v8661
    %v8681 = vunpack.c.l.b16 %v8463
    %v8682 = vunpack.c.l.b16 %v8464
    %v8683 = vunpack.c.l.b16 %v8465
    %v8684 = vunpack.c.l.b16 %v8466
    %v8685 = vunpack.c.l.b16 %v8467
    %v8686 = vunpack.c.l.b16 %v8468
    %v8687 = vunpack.c.l.b16 %v8469
    %v8688 = vunpack.c.l.b16 %v8470
    %v8689 = vpack.c.b16 %v8682, %v8681
    %v8690 = vpack.c.b16 %v8684, %v8683
    %v8691 = vpack.c.b16 %v8686, %v8685
    %v8692 = vpack.c.b16 %v8688, %v8687
    %v8698 = vsel %vm7822, %v8669, 0
    %v8701 = vsel %vm7822, %v8670, 0
    %v8704 = vsel %vm7822, %v8671, 0
    %v8707 = vsel %vm7822, %v8672, 0
    %8709 = vmatprep.subr.bf16.mxu0 0
    %8710 = vmatpush1.bf16.msra.mxu0 %v8689
    %8711 = vmatprep.subr.bf16.mxu0 0
    %8712 = vmatpush1.bf16.msra.mxu0 %v8690
    %8713 = vmatprep.subr.bf16.mxu0 0
    %8714 = vmatpush1.bf16.msra.mxu0 %v8691
    %8715 = vmatprep.subr.bf16.mxu0 0
    %8716 = vmatpush1.bf16.msra.mxu0 %v8692
    %8717 = vmatprep.subr.bf16.mxu0 0
    %8718 = vmatpush1.bf16.msra.mxu0 0
    %8719 = vmatprep.subr.bf16.mxu0 0
    %8720 = vmatpush1.bf16.msra.mxu0 0
    %8721 = vmatprep.subr.bf16.mxu0 0
    %8722 = vmatpush1.bf16.msra.mxu0 0
    %8723 = vmatprep.subr.bf16.mxu0 0
    %8724 = vmatpush1.bf16.msra.mxu0 0
    %8725 = vmatprep.subr.bf16.mxu0 0
    %8726 = vmatpush1.bf16.msra.mxu0 0
    %8727 = vmatprep.subr.bf16.mxu0 0
    %8728 = vmatpush1.bf16.msra.mxu0 0
    %8729 = vmatprep.subr.bf16.mxu0 0
    %8730 = vmatpush1.bf16.msra.mxu0 0
    %8731 = vmatprep.subr.bf16.mxu0 0
    %8732 = vmatpush1.bf16.msra.mxu0 0
    %8733 = vmatprep.subr.bf16.mxu0 0
    %8734 = vmatpush1.bf16.msra.mxu0 0
    %8735 = vmatprep.subr.bf16.mxu0 0
    %8736 = vmatpush1.bf16.msra.mxu0 0
    %8737 = vmatprep.subr.bf16.mxu0 0
    %8738 = vmatpush1.bf16.msra.mxu0 0
    %8739 = vmatprep.subr.bf16.mxu0 0
    %8740 = vmatpush1.bf16.msra.mxu0 0
    %8741 = vmatprep.mubr.bf16.mxu0 0
    %8742 = vmatmul.mubr.bf16.gmra.mrb[0].mxu0 %v8698
    %v8743 = vpop.f32.mrb[0].mxu0
    %v8744 = vadd.f32 %v8476, %v8743
    %v8745 = vpop.f32.mrb[0].mxu0
    %v8746 = vpop.f32.mrb[0].mxu0
    %v8747 = vadd.f32 %v8476, %v8746
    %v8748 = vpop.f32.mrb[0].mxu0
    %8749 = vmatprep.mubr.bf16.mxu0 0
    %8750 = vmatmul.mubr.bf16.gmra.mrb[0].mxu0 %v8701
    %v8751 = vpop.f32.mrb[0].mxu0
    %v8752 = vadd.f32 %v8476, %v8751
    %v8753 = vpop.f32.mrb[0].mxu0
    %v8754 = vpop.f32.mrb[0].mxu0
    %v8755 = vadd.f32 %v8476, %v8754
    %v8756 = vpop.f32.mrb[0].mxu0
    %8757 = vmatprep.mubr.bf16.mxu0 0
    %8758 = vmatmul.mubr.bf16.gmra.mrb[0].mxu0 %v8704
    %v8759 = vpop.f32.mrb[0].mxu0
    %v8760 = vadd.f32 %v8476, %v8759
    %v8761 = vpop.f32.mrb[0].mxu0
    %v8762 = vpop.f32.mrb[0].mxu0
    %v8763 = vadd.f32 %v8476, %v8762
    %v8764 = vpop.f32.mrb[0].mxu0
    %8765 = vmatprep.mubr.bf16.mxu0 0
    %8766 = vmatmul.mubr.bf16.gmra.mrb[0].mxu0 %v8707
    %v8767 = vpop.f32.mrb[0].mxu0
    %v8768 = vadd.f32 %v8476, %v8767
    %v8769 = vpop.f32.mrb[0].mxu0
    %v8770 = vpop.f32.mrb[0].mxu0
    %v8771 = vadd.f32 %v8476, %v8770
    %v8772 = vpop.f32.mrb[0].mxu0
    %8773 = vdwg.mxu0
    %v8774 = vmax.f32 %v8744, 0.0
    %v8775 = vmax.f32 %v8747, 0.0
    %v8776 = vmax.f32 %v8752, 0.0
    %v8777 = vmax.f32 %v8755, 0.0
    %v8778 = vmax.f32 %v8760, 0.0
    %v8779 = vmax.f32 %v8763, 0.0
    %v8780 = vmax.f32 %v8768, 0.0
    %v8781 = vmax.f32 %v8771, 0.0
    %v8782 = vld [vmem:[%s7] sm:$0x1]
    %v8783 = vpack.c.bf16 %v8775, %v8774
    %v8784 = vpack.c.bf16 %v8777, %v8776
    %v8785 = vpack.c.bf16 %v8779, %v8778
    %v8786 = vpack.c.bf16 %v8781, %v8780
    %v8787 = vld [vmem:[#allocation3] sm:$0x1]
    %8789 = vset.pattern.permute.xlu0 0
    %8790 = vperm.xlu0 %8789, %v8787
    %v8791 = vpop.permute.xlu0 %8790
    %v8793 = vlaneseq
    %v8794 = vshrl.u32 %v8793, 7
    %v8795 = vsub.s32 0, %v8794
    %v8796 = vrot.slane %v8791, %v8795
    %v8798 = vsel %vm4262, %v8782, 0
    %v8801 = vsel %vm4262, %v8783, 0
    %v8804 = vsel %vm4262, %v8784, 0
    %v8807 = vsel %vm4262, %v8785, 0
    %v8810 = vsel %vm4262, %v8786, 0
    %8812 = vmatprep.subr.bf16.mxu0 0
    %8813 = vmatpush1.bf16.xpose.msra.mxu0 %v8801
    %8814 = vmatprep.subr.bf16.mxu0 0
    %8815 = vmatpush1.bf16.xpose.msra.mxu0 %v8804
    %8816 = vmatprep.subr.bf16.mxu0 0
    %8817 = vmatpush1.bf16.xpose.msra.mxu0 %v8807
    %8818 = vmatprep.subr.bf16.mxu0 0
    %8819 = vmatpush1.bf16.xpose.msra.mxu0 %v8810
    %8820 = vmatprep.subr.bf16.mxu0 0
    %8821 = vmatpush1.bf16.xpose.msra.mxu0 0
    %8822 = vmatprep.subr.bf16.mxu0 0
    %8823 = vmatpush1.bf16.xpose.msra.mxu0 0
    %8824 = vmatprep.subr.bf16.mxu0 0
    %8825 = vmatpush1.bf16.xpose.msra.mxu0 0
    %8826 = vmatprep.subr.bf16.mxu0 0
    %8827 = vmatpush1.bf16.xpose.msra.mxu0 0
    %8828 = vmatprep.subr.bf16.mxu0 0
    %8829 = vmatpush1.bf16.xpose.msra.mxu0 0
    %8830 = vmatprep.subr.bf16.mxu0 0
    %8831 = vmatpush1.bf16.xpose.msra.mxu0 0
    %8832 = vmatprep.subr.bf16.mxu0 0
    %8833 = vmatpush1.bf16.xpose.msra.mxu0 0
    %8834 = vmatprep.subr.bf16.mxu0 0
    %8835 = vmatpush1.bf16.xpose.msra.mxu0 0
    %8836 = vmatprep.subr.bf16.mxu0 0
    %8837 = vmatpush1.bf16.xpose.msra.mxu0 0
    %8838 = vmatprep.subr.bf16.mxu0 0
    %8839 = vmatpush1.bf16.xpose.msra.mxu0 0
    %8840 = vmatprep.subr.bf16.mxu0 0
    %8841 = vmatpush1.bf16.xpose.msra.mxu0 0
    %8842 = vmatprep.subr.bf16.mxu0 0
    %8843 = vmatpush1.bf16.xpose.msra.mxu0 0
    %8844 = vmatprep.mubr.bf16.mxu0 0
    %8845 = vmatmul.mubr.bf16.gmra.mrb[0].mxu0 %v8798
    %v8846 = vpop.f32.mrb[0].mxu0
    %v8847 = vadd.f32 %v8796, %v8846
    %v8848 = vpop.f32.mrb[0].mxu0
    %v8849 = vpop.f32.mrb[0].mxu0
    %v8850 = vpop.f32.mrb[0].mxu0
    %8851 = vdwg.mxu0
    %v8852 = vxor.u32 %v8847, 2147483648
    %v8853 = vmul.f32 %v8852, 1.442695
    %v8854 = vpow.pop %v8853
    %v8855 = vadd.f32 %v8854, 1.0
    %v8856 = vrcp.pop %v8855
    %v8857 = vmul.f32 1.0, %v8856
    %vm8858 = vcmask 516096
    %8859 = vst.msk [vmem:[#allocation4] sm:$0x1] %vm8858, %v8857
    // Predicated region
    $region38: #{tpu_custom_call.1} parent=1 // pred_check
      _
    $region39: #{tpu_custom_call.1} parent=1 // pred_check_branch
      %8861 = sbr.rel (0) target = $region41
    $region40: #{tpu_custom_call.1} parent=1 // pred_region
      %s8863 = ssub.s32 16, 16
      %8864 = vsyncadd [#allocation5], %s8863
      %s8866 = sshll.u32 [#allocation4], 4
      %s8867 = int_to_ptr.vmem [resolvable:$true] %s8866
      %8869 = dma.vmem_to_hbm [thread:$0]  %s8867, 16, %s9, [#allocation5]
    $region41: #{tpu_custom_call.1} parent=1 // pred_fallthru
      _
    // Predicated region
    $region42: #{tpu_custom_call.1} parent=1 // pred_check
      _
    $region43: #{tpu_custom_call.1} parent=1 // pred_check_branch
      %8871 = sbr.rel (0) target = $region45
    $region44: #{tpu_custom_call.1} parent=1 // pred_region
      %8872 = dma.done [#allocation5], 16
    $region45: #{tpu_custom_call.1} parent=1 // pred_fallthru
      _
    %8873 = vsyncpa [#allocation5], 1

</llo_original>
